<compile_context>
chip_gen: v7x
topology: tpu7x:2x2x1
jax: 0.10.0
libtpu: 0.0.40
codegen_flags: <defaults>
</compile_context>

<pallas_src>
import functools
import math

import jax
import jax.numpy as jnp
from jax.experimental import pallas as pl
from jax.experimental.pallas import tpu as pltpu


def _round_up(x, m):
    return (x + m - 1) // m * m


def _conv_transpose_kernel(x_ref, w_ref, b_ref, o_ref, y_ref, *,
                           Hp, Wp, Hc, Wcp, kh, kw, stride, qmax, lmax, bn):
    """One (Cout-block, batch-element) step of the equalized transposed conv.

    x_ref: (1, Hp*Wp, Cin)        zero-haloed input image, channels on lanes
    w_ref: (1, Cin, kh*kw*bn)     pre-scaled weights, all taps side by side (lanes)
    b_ref: (1, bn)                bias (f32)
    o_ref: (1, s*s, Hc, Wcp, bn)  output in sub-pixel "phase" layout (f32)
    y_ref: (Hp, Wp, kh*kw*bn)     VMEM scratch holding the fused matmul result
    """
    s = stride
    T = kh * kw

    # --- one wide MXU matmul per grid step: all kh*kw taps fused on the N axis ---
    y_all = jnp.dot(x_ref[0], w_ref[0], preferred_element_type=jnp.float32)
    # Wp % 8 == 0 -> this reshape is a pure layout reinterpretation; one explicit
    # store lands the per-tap planes in VMEM for the window reads below.
    y_ref[...] = y_all.reshape(Hp, Wp, T * bn)

    b_row = b_ref[...].astype(jnp.float32).reshape(1, 1, bn)

    # --- per-phase accumulation: shifts on loads, exactly one store per phase ---
    # out_full[ih*s+ki, iw*s+kj, :] == phase[(ki%s)*s + kj%s][ih + ki//s, iw + kj//s, :]
    # and, thanks to the zero halo on x,
    #   phase[kr,lr][ch, cw, :] = bias + sum_{kq,lq} y_tap[qmax-kq+ch, lmax-lq+cw, :]
    # i.e. plain contiguous (sublane-shifted) windows of y_ref.
    for kr in range(s):
        for lr in range(s):
            acc = None
            for kq in range(qmax + 1):
                ki = kq * s + kr
                if ki >= kh:
                    continue
                for lq in range(lmax + 1):
                    kj = lq * s + lr
                    if kj >= kw:
                        continue
                    t = ki * kw + kj
                    term = y_ref[pl.ds(qmax - kq, Hc),
                                 pl.ds(lmax - lq, Wcp),
                                 pl.ds(t * bn, bn)]
                    acc = term if acc is None else acc + term
            acc = b_row if acc is None else acc + b_row   # bias folded in here
            if acc.shape != (Hc, Wcp, bn):                # phase with no taps (kh < s)
                acc = jnp.broadcast_to(acc, (Hc, Wcp, bn))
            # Single aligned, lane-dense store per phase (no RMW on o_ref).
            o_ref[0, kr * s + lr] = acc


def equal_conv_transpose2d(x, weight, bias=None, *, stride=1, padding=0,
                           compute_dtype=jnp.bfloat16):
    """EqualConvTranspose2d.forward.

    x:      (N, Cin, H, W)       float32, NCHW (PyTorch layout)
    weight: (Cin, Cout, kh, kw)  float32 (PyTorch conv_transpose weight layout)
    bias:   (Cout,) or None
    compute_dtype: dtype of x / weight inside the kernel (bf16 recommended on
                   v6e/v7x; accumulation is always f32).
    """
    N, Cin, H, W = x.shape
    Cin_w, Cout, kh, kw = weight.shape
    assert Cin == Cin_w, (Cin, Cin_w)
    s, p = int(stride), int(padding)
    assert s >= 1 and p >= 0

    scale = 1.0 / math.sqrt(Cin * kh * kw)               # equalized-lr scale
    Ho = (H - 1) * s - 2 * p + kh
    Wo = (W - 1) * s - 2 * p + kw

    qmax = (kh - 1) // s                                 # max row tap-quotient
    lmax = (kw - 1) // s                                 # max col tap-quotient
    Hc = H + qmax                                        # phase-plane extents
    Wc = W + lmax
    Wcp = _round_up(Wc, 8)                               # sublane-aligned stores
    Hp = H + 2 * qmax                                    # haloed input extents;
    Wp = _round_up(lmax + Wcp, 8)                        # Wp%8 keeps reshape free

    bn = 128                                             # lane-dense Cout block
    Cp = _round_up(Cout, bn)
    nblk = Cp // bn
    T = kh * kw

    # ---- trace-time prep (weight-sized XLA work, constant-folded under jit) ----
    w_s = weight.astype(jnp.float32) * scale
    w_s = jnp.transpose(w_s, (2, 3, 0, 1)).reshape(T, Cin, Cout)
    w_s = jnp.pad(w_s, ((0, 0), (0, 0), (0, Cp - Cout)))
    # (T, Cin, Cp) -> (nblk, Cin, T*bn): per Cout block, all taps side by side.
    w_all = jnp.transpose(w_s.reshape(T, Cin, nblk, bn), (2, 1, 0, 3))
    w_all = w_all.reshape(nblk, Cin, T * bn).astype(compute_dtype)

    b = jnp.zeros((Cout,), jnp.float32) if bias is None else bias.astype(jnp.float32)
    b2 = jnp.pad(b, (0, Cp - Cout)).reshape(1, Cp)

    # NHWC + zero halo: channels on lanes; the halo makes every tap's contribution
    # to a whole phase plane a contiguous window of the fused matmul result.
    x_nhwc = jnp.transpose(x, (0, 2, 3, 1)).astype(compute_dtype)
    x_pad = jnp.pad(x_nhwc, ((0, 0), (qmax, qmax), (lmax, Wp - W - lmax), (0, 0)))
    x_flat = x_pad.reshape(N, Hp * Wp, Cin)

    kernel = functools.partial(
        _conv_transpose_kernel, Hp=Hp, Wp=Wp, Hc=Hc, Wcp=Wcp,
        kh=kh, kw=kw, stride=s, qmax=qmax, lmax=lmax, bn=bn)

    # VMEM budget from the actual block sizes (double-buffered I/O blocks + the
    # matmul scratch), clamped well inside v7x's 64 MiB physical VMEM.
    esz = jnp.dtype(compute_dtype).itemsize
    x_blk = Hp * Wp * Cin * esz
    w_blk = Cin * T * bn * esz
    o_blk = s * s * Hc * Wcp * bn * 4
    y_scr = Hp * Wp * T * bn * 4
    vmem_bytes = 2 * (x_blk + w_blk + bn * 4 + o_blk) + y_scr + (4 << 20)
    vmem_limit = int(min(max(vmem_bytes, 32 << 20), 48 << 20))
    # TODO(synk): tile the spatial axis (blocks of H rows with a qmax-row halo)
    # once single-image blocks no longer fit v7x's 64 MiB VMEM at large resolutions.

    cells = pl.pallas_call(
        kernel,
        out_shape=jax.ShapeDtypeStruct((N, s * s, Hc, Wcp, Cp), jnp.float32),
        grid_spec=pltpu.PrefetchScalarGridSpec(
            num_scalar_prefetch=0,
            # Cout blocks outer: the (larger) weight block stays VMEM-resident
            # across the inner batch loop; both axes are megacore-parallel.
            grid=(nblk, N),
            in_specs=[
                pl.BlockSpec((1, Hp * Wp, Cin), lambda j, n: (n, 0, 0)),
                pl.BlockSpec((1, Cin, T * bn), lambda j, n: (j, 0, 0)),
                pl.BlockSpec((1, bn), lambda j, n: (0, j)),
            ],
            out_specs=pl.BlockSpec((1, s * s, Hc, Wcp, bn),
                                   lambda j, n: (n, 0, 0, 0, j)),
            scratch_shapes=[pltpu.VMEM((Hp, Wp, T * bn), jnp.float32)],
        ),
        compiler_params=pltpu.CompilerParams(
            dimension_semantics=("parallel", "parallel"),
            vmem_limit_bytes=vmem_limit,
        ),
    )(x_flat, w_all, b2)

    # Interleave the s*s sub-pixel phases, crop the alignment/`padding` borders
    # and the Cout padding (cheap XLA layout glue on the final output only).
    out_full = cells.reshape(N, s, s, Hc, Wcp, Cp)
    out_full = out_full.transpose(0, 3, 1, 4, 2, 5).reshape(N, Hc * s, Wcp * s, Cp)
    out = out_full[:, p:p + Ho, p:p + Wo, :Cout]
    # TODO(synk): emit NHWC (and fuse the crop into the consumer) when the caller
    # allows it; NCHW is kept here to match the PyTorch module exactly.
    return out.transpose(0, 3, 1, 2)


def _conv_transpose2d_ref(x, weight, bias, *, stride, padding):
    """Pure-XLA reference: conv_transpose == input-dilated conv with the
    spatially flipped, in/out-swapped kernel."""
    Cin, Cout, kh, kw = weight.shape
    scale = 1.0 / math.sqrt(Cin * kh * kw)
    w = jnp.flip(weight * scale, axis=(2, 3)).transpose(1, 0, 2, 3)  # (Cout, Cin, kh, kw)
    out = jax.lax.conv_general_dilated(
        x, w,
        window_strides=(1, 1),
        padding=[(kh - 1 - padding, kh - 1 - padding),
                 (kw - 1 - padding, kw - 1 - padding)],
        lhs_dilation=(stride, stride),
        dimension_numbers=("NCHW", "OIHW", "NCHW"),
        precision=jax.lax.Precision.HIGHEST,
    )
    if bias is not None:
        out = out + bias[None, :, None, None]
    return out


if __name__ == "__main__":
    key = jax.random.PRNGKey(0)

    configs = [
        # (Cin, Cout, k, stride, padding, N, H, W, compute_dtype, tol)
        (64, 128, 4, 2, 1, 2, 16, 16, jnp.bfloat16, 2e-2),  # classic 2x upsampler
        (32, 64, 3, 1, 0, 2, 8, 8, jnp.float32, 5e-3),      # stride 1, Cout padded to 128
        (16, 48, 3, 2, 1, 1, 8, 8, jnp.bfloat16, 2e-2),     # odd taps-per-phase edge case
    ]
    for (cin, cout, k, s, p, n, h, w, cdt, tol) in configs:
        k_w, k_x, k_b = jax.random.split(jax.random.fold_in(key, cin), 3)
        # weight ~ N(0,1) as in the module __init__; bias is a (nonzero) stand-in
        # for trained parameters so the bias path is actually exercised.
        weight = jax.random.normal(k_w, (cin, cout, k, k), dtype=jnp.float32)
        bias = 0.1 * jax.random.normal(k_b, (cout,), dtype=jnp.float32)
        x = jax.random.normal(k_x, (n, cin, h, w), dtype=jnp.float32)

        fwd = jax.jit(functools.partial(equal_conv_transpose2d,
                                        stride=s, padding=p, compute_dtype=cdt))
        out = fwd(x, weight, bias)
        jax.block_until_ready(out)

        ho = (h - 1) * s - 2 * p + k
        assert out.shape == (n, cout, ho, ho), out.shape
        assert bool(jnp.all(jnp.isfinite(out))), "non-finite output"

        ref = _conv_transpose2d_ref(x, weight, bias, stride=s, padding=p)
        err = float(jnp.max(jnp.abs(out - ref)))
        assert err < tol, f"mismatch vs reference: max abs err {err} (tol {tol})"

    print("KERNEL_OK")
</pallas_src>

<mosaic_0001>
module attributes {stable_mosaic.version = 11 : i64} {
  func.func @_conv_transpose_kernel(%arg0: i32, %arg1: i32, %arg2: memref<1x576x64xbf16, #tpu.memory_space<vmem>>, %arg3: memref<1x64x2048xbf16, #tpu.memory_space<vmem>>, %arg4: memref<1x128xf32, #tpu.memory_space<vmem>>, %arg5: memref<1x4x17x24x128xf32, #tpu.memory_space<vmem>>, %arg6: memref<18x32x2048xf32, #tpu.memory_space<vmem>>) attributes {dimension_semantics = [#tpu.dimension_semantics<parallel>, #tpu.dimension_semantics<parallel>], iteration_bounds = array<i64: 1, 2>, scalar_prefetch = 0 : i64, scratch_operands = 1 : i64, tpu.core_type = #tpu.core_type<tc>, window_params = [{transform_indices = @transform_0, window_bounds = array<i64: 1, 576, 64>}, {transform_indices = @transform_1, window_bounds = array<i64: 1, 64, 2048>}, {transform_indices = @transform_2, window_bounds = array<i64: 1, 128>}, {transform_indices = @transform_3, window_bounds = array<i64: 1, 4, 17, 24, 128>}]} {
    %c0 = arith.constant 0 : index
    %c0_0 = arith.constant 0 : index
    %c0_1 = arith.constant 0 : index
    %0 = vector.load %arg2[%c0, %c0_0, %c0_1] : memref<1x576x64xbf16, #tpu.memory_space<vmem>>, vector<1x576x64xbf16>
    %1 = vector.shape_cast %0 : vector<1x576x64xbf16> to vector<576x64xbf16>
    %c0_2 = arith.constant 0 : index
    %c0_3 = arith.constant 0 : index
    %c0_4 = arith.constant 0 : index
    %2 = vector.load %arg3[%c0_2, %c0_3, %c0_4] : memref<1x64x2048xbf16, #tpu.memory_space<vmem>>, vector<1x64x2048xbf16>
    %3 = vector.shape_cast %2 : vector<1x64x2048xbf16> to vector<64x2048xbf16>
    %cst = arith.constant dense<0.000000e+00> : vector<576x2048xf32>
    %4 = tpu.matmul %1, %3, %cst {dimension_numbers = #tpu.dot_dimension_numbers<[1], [0], [0], [1], [0, 0, 1, 1], [], []>} : vector<576x64xbf16>, vector<64x2048xbf16>, vector<576x2048xf32> -> vector<576x2048xf32>
    %5 = vector.shape_cast %4 : vector<576x2048xf32> to vector<18x32x2048xf32>
    %c0_5 = arith.constant 0 : index
    %c0_6 = arith.constant 0 : index
    %c0_7 = arith.constant 0 : index
    %6 = vector.load %arg6[%c0_5, %c0_6, %c0_7] : memref<18x32x2048xf32, #tpu.memory_space<vmem>>, vector<18x32x2048xf32>
    tpu.vector_store %arg6[%c0_5, %c0_6, %c0_7], %5 {strides = array<i32>} : memref<18x32x2048xf32, #tpu.memory_space<vmem>>, vector<18x32x2048xf32>,
    %c0_8 = arith.constant 0 : index
    %c0_9 = arith.constant 0 : index
    %7 = vector.load %arg4[%c0_8, %c0_9] : memref<1x128xf32, #tpu.memory_space<vmem>>, vector<1x128xf32>
    %8 = vector.shape_cast %7 : vector<1x128xf32> to vector<1x1x128xf32>
    %c1 = arith.constant 1 : index
    %c1_10 = arith.constant 1 : index
    %c0_11 = arith.constant 0 : index
    %9 = vector.load %arg6[%c1, %c1_10, %c0_11] : memref<18x32x2048xf32, #tpu.memory_space<vmem>>, vector<17x24x128xf32>
    %c1_12 = arith.constant 1 : index
    %c0_13 = arith.constant 0 : index
    %c256 = arith.constant 256 : index
    %10 = vector.load %arg6[%c1_12, %c0_13, %c256] : memref<18x32x2048xf32, #tpu.memory_space<vmem>>, vector<17x24x128xf32>
    %11 = arith.addf %9, %10 : vector<17x24x128xf32>
    %c0_14 = arith.constant 0 : index
    %c1_15 = arith.constant 1 : index
    %c1024 = arith.constant 1024 : index
    %12 = vector.load %arg6[%c0_14, %c1_15, %c1024] : memref<18x32x2048xf32, #tpu.memory_space<vmem>>, vector<17x24x128xf32>
    %13 = arith.addf %11, %12 : vector<17x24x128xf32>
    %c0_16 = arith.constant 0 : index
    %c0_17 = arith.constant 0 : index
    %c1280 = arith.constant 1280 : index
    %14 = vector.load %arg6[%c0_16, %c0_17, %c1280] : memref<18x32x2048xf32, #tpu.memory_space<vmem>>, vector<17x24x128xf32>
    %15 = arith.addf %13, %14 : vector<17x24x128xf32>
    %16 = vector.broadcast %8 : vector<1x1x128xf32> to vector<17x24x128xf32>
    %17 = arith.addf %15, %16 : vector<17x24x128xf32>
    %c0_18 = arith.constant 0 : index
    %c0_19 = arith.constant 0 : index
    %c0_20 = arith.constant 0 : index
    %c0_21 = arith.constant 0 : index
    %c0_22 = arith.constant 0 : index
    %18 = vector.load %arg5[%c0_18, %c0_19, %c0_20, %c0_21, %c0_22] : memref<1x4x17x24x128xf32, #tpu.memory_space<vmem>>, vector<1x1x17x24x128xf32>
    %19 = vector.shape_cast %18 : vector<1x1x17x24x128xf32> to vector<17x24x128xf32>
    %20 = vector.shape_cast %17 : vector<17x24x128xf32> to vector<1x1x17x24x128xf32>
    tpu.vector_store %arg5[%c0_18, %c0_19, %c0_20, %c0_21, %c0_22], %20 {strides = array<i32>} : memref<1x4x17x24x128xf32, #tpu.memory_space<vmem>>, vector<1x1x17x24x128xf32>,
    %c1_23 = arith.constant 1 : index
    %c1_24 = arith.constant 1 : index
    %c128 = arith.constant 128 : index
    %21 = vector.load %arg6[%c1_23, %c1_24, %c128] : memref<18x32x2048xf32, #tpu.memory_space<vmem>>, vector<17x24x128xf32>
    %c1_25 = arith.constant 1 : index
    %c0_26 = arith.constant 0 : index
    %c384 = arith.constant 384 : index
    %22 = vector.load %arg6[%c1_25, %c0_26, %c384] : memref<18x32x2048xf32, #tpu.memory_space<vmem>>, vector<17x24x128xf32>
    %23 = arith.addf %21, %22 : vector<17x24x128xf32>
    %c0_27 = arith.constant 0 : index
    %c1_28 = arith.constant 1 : index
    %c1152 = arith.constant 1152 : index
    %24 = vector.load %arg6[%c0_27, %c1_28, %c1152] : memref<18x32x2048xf32, #tpu.memory_space<vmem>>, vector<17x24x128xf32>
    %25 = arith.addf %23, %24 : vector<17x24x128xf32>
    %c0_29 = arith.constant 0 : index
    %c0_30 = arith.constant 0 : index
    %c1408 = arith.constant 1408 : index
    %26 = vector.load %arg6[%c0_29, %c0_30, %c1408] : memref<18x32x2048xf32, #tpu.memory_space<vmem>>, vector<17x24x128xf32>
    %27 = arith.addf %25, %26 : vector<17x24x128xf32>
    %28 = vector.broadcast %8 : vector<1x1x128xf32> to vector<17x24x128xf32>
    %29 = arith.addf %27, %28 : vector<17x24x128xf32>
    %c0_31 = arith.constant 0 : index
    %c1_32 = arith.constant 1 : index
    %c0_33 = arith.constant 0 : index
    %c0_34 = arith.constant 0 : index
    %c0_35 = arith.constant 0 : index
    %30 = vector.load %arg5[%c0_31, %c1_32, %c0_33, %c0_34, %c0_35] : memref<1x4x17x24x128xf32, #tpu.memory_space<vmem>>, vector<1x1x17x24x128xf32>
    %31 = vector.shape_cast %30 : vector<1x1x17x24x128xf32> to vector<17x24x128xf32>
    %32 = vector.shape_cast %29 : vector<17x24x128xf32> to vector<1x1x17x24x128xf32>
    tpu.vector_store %arg5[%c0_31, %c1_32, %c0_33, %c0_34, %c0_35], %32 {strides = array<i32>} : memref<1x4x17x24x128xf32, #tpu.memory_space<vmem>>, vector<1x1x17x24x128xf32>,
    %c1_36 = arith.constant 1 : index
    %c1_37 = arith.constant 1 : index
    %c512 = arith.constant 512 : index
    %33 = vector.load %arg6[%c1_36, %c1_37, %c512] : memref<18x32x2048xf32, #tpu.memory_space<vmem>>, vector<17x24x128xf32>
    %c1_38 = arith.constant 1 : index
    %c0_39 = arith.constant 0 : index
    %c768 = arith.constant 768 : index
    %34 = vector.load %arg6[%c1_38, %c0_39, %c768] : memref<18x32x2048xf32, #tpu.memory_space<vmem>>, vector<17x24x128xf32>
    %35 = arith.addf %33, %34 : vector<17x24x128xf32>
    %c0_40 = arith.constant 0 : index
    %c1_41 = arith.constant 1 : index
    %c1536 = arith.constant 1536 : index
    %36 = vector.load %arg6[%c0_40, %c1_41, %c1536] : memref<18x32x2048xf32, #tpu.memory_space<vmem>>, vector<17x24x128xf32>
    %37 = arith.addf %35, %36 : vector<17x24x128xf32>
    %c0_42 = arith.constant 0 : index
    %c0_43 = arith.constant 0 : index
    %c1792 = arith.constant 1792 : index
    %38 = vector.load %arg6[%c0_42, %c0_43, %c1792] : memref<18x32x2048xf32, #tpu.memory_space<vmem>>, vector<17x24x128xf32>
    %39 = arith.addf %37, %38 : vector<17x24x128xf32>
    %40 = vector.broadcast %8 : vector<1x1x128xf32> to vector<17x24x128xf32>
    %41 = arith.addf %39, %40 : vector<17x24x128xf32>
    %c0_44 = arith.constant 0 : index
    %c2 = arith.constant 2 : index
    %c0_45 = arith.constant 0 : index
    %c0_46 = arith.constant 0 : index
    %c0_47 = arith.constant 0 : index
    %42 = vector.load %arg5[%c0_44, %c2, %c0_45, %c0_46, %c0_47] : memref<1x4x17x24x128xf32, #tpu.memory_space<vmem>>, vector<1x1x17x24x128xf32>
    %43 = vector.shape_cast %42 : vector<1x1x17x24x128xf32> to vector<17x24x128xf32>
    %44 = vector.shape_cast %41 : vector<17x24x128xf32> to vector<1x1x17x24x128xf32>
    tpu.vector_store %arg5[%c0_44, %c2, %c0_45, %c0_46, %c0_47], %44 {strides = array<i32>} : memref<1x4x17x24x128xf32, #tpu.memory_space<vmem>>, vector<1x1x17x24x128xf32>,
    %c1_48 = arith.constant 1 : index
    %c1_49 = arith.constant 1 : index
    %c640 = arith.constant 640 : index
    %45 = vector.load %arg6[%c1_48, %c1_49, %c640] : memref<18x32x2048xf32, #tpu.memory_space<vmem>>, vector<17x24x128xf32>
    %c1_50 = arith.constant 1 : index
    %c0_51 = arith.constant 0 : index
    %c896 = arith.constant 896 : index
    %46 = vector.load %arg6[%c1_50, %c0_51, %c896] : memref<18x32x2048xf32, #tpu.memory_space<vmem>>, vector<17x24x128xf32>
    %47 = arith.addf %45, %46 : vector<17x24x128xf32>
    %c0_52 = arith.constant 0 : index
    %c1_53 = arith.constant 1 : index
    %c1664 = arith.constant 1664 : index
    %48 = vector.load %arg6[%c0_52, %c1_53, %c1664] : memref<18x32x2048xf32, #tpu.memory_space<vmem>>, vector<17x24x128xf32>
    %49 = arith.addf %47, %48 : vector<17x24x128xf32>
    %c0_54 = arith.constant 0 : index
    %c0_55 = arith.constant 0 : index
    %c1920 = arith.constant 1920 : index
    %50 = vector.load %arg6[%c0_54, %c0_55, %c1920] : memref<18x32x2048xf32, #tpu.memory_space<vmem>>, vector<17x24x128xf32>
    %51 = arith.addf %49, %50 : vector<17x24x128xf32>
    %52 = vector.broadcast %8 : vector<1x1x128xf32> to vector<17x24x128xf32>
    %53 = arith.addf %51, %52 : vector<17x24x128xf32>
    %c0_56 = arith.constant 0 : index
    %c3 = arith.constant 3 : index
    %c0_57 = arith.constant 0 : index
    %c0_58 = arith.constant 0 : index
    %c0_59 = arith.constant 0 : index
    %54 = vector.load %arg5[%c0_56, %c3, %c0_57, %c0_58, %c0_59] : memref<1x4x17x24x128xf32, #tpu.memory_space<vmem>>, vector<1x1x17x24x128xf32>
    %55 = vector.shape_cast %54 : vector<1x1x17x24x128xf32> to vector<17x24x128xf32>
    %56 = vector.shape_cast %53 : vector<17x24x128xf32> to vector<1x1x17x24x128xf32>
    tpu.vector_store %arg5[%c0_56, %c3, %c0_57, %c0_58, %c0_59], %56 {strides = array<i32>} : memref<1x4x17x24x128xf32, #tpu.memory_space<vmem>>, vector<1x1x17x24x128xf32>,
    return
  }
  func.func @transform_0(%arg0: i32, %arg1: i32) -> (i32, i32, i32) {
    %c0_i32 = arith.constant 0 : i32
    %c0_i32_0 = arith.constant 0 : i32
    %c0_i32_1 = arith.constant 0 : i32
    return %arg1, %c0_i32, %c0_i32_0 : i32, i32, i32
  }
  func.func @transform_1(%arg0: i32, %arg1: i32) -> (i32, i32, i32) {
    %c0_i32 = arith.constant 0 : i32
    %c0_i32_0 = arith.constant 0 : i32
    %c0_i32_1 = arith.constant 0 : i32
    return %arg0, %c0_i32, %c0_i32_0 : i32, i32, i32
  }
  func.func @transform_2(%arg0: i32, %arg1: i32) -> (i32, i32) {
    %c0_i32 = arith.constant 0 : i32
    %c0_i32_0 = arith.constant 0 : i32
    return %c0_i32, %arg0 : i32, i32
  }
  func.func @transform_3(%arg0: i32, %arg1: i32) -> (i32, i32, i32, i32, i32) {
    %c0_i32 = arith.constant 0 : i32
    %c0_i32_0 = arith.constant 0 : i32
    %c0_i32_1 = arith.constant 0 : i32
    %c0_i32_2 = arith.constant 0 : i32
    return %arg1, %c0_i32, %c0_i32_0, %c0_i32_1, %arg0 : i32, i32, i32, i32, i32
  }
}

</mosaic_0001>

<llo_original>
// kernel: equal_conv_transpose2d.1
$region0: #{equal_conv_transpose2d.1}
  #allocation0 [shape = 'u32[]', space=smem, size = 0x4, offset = 0x4, fixed_abs, tag = 'smem constant byte address 0x4 - core index']
  #allocation1 [shape = 'u32[144,128]{1,0:T(1,128)}', space=vmem, size = 0x12000, scoped, tag = 'internal scratch']
  #allocation2 [shape = 'f32[18,32,2048]{2,1,0:T(8,128)}', space=vmem, size = 0x480000, scoped, tag = 'scratch operand']
  %s0 = inlined_call_operand.vmem [shape: bf16[2,576,64], index: 0, kind: input, shape index: {}]
  %s1 = inlined_call_operand.vmem [shape: bf16[1,64,2048], index: 1, kind: input, shape index: {}]
  %s2 = inlined_call_operand.vmem [shape: f32[1,128], index: 2, kind: input, shape index: {}]
  %s3 = inlined_call_operand.vmem [shape: f32[2,4,17,24,128], index: 3, kind: output, shape index: {}]
  %s4 = sld [smem:[#allocation0]]
  $region45: #{equal_conv_transpose2d.1} parent=0
    _
  %s6 = ssub.s32 1, %s4
  %s7 = scalar_select 0, %s6, %s4
  loop: start=0, step=1, limit=4
  $region2: #{equal_conv_transpose2d.1} parent=0 // loop_pre_header
    _
  $region3: #{equal_conv_transpose2d.1} parent=0 // loop_header
    %s9 = sphi 0, %s13
    %p10 = scmp.ge.s32.totalorder %s9, 4
    %s16 = sphi 0, %s28
    %s17 = sphi 0, %s24
    %s18 = sphi 0, %s16
    %s19 = sphi 0, %s17
    %s20 = sphi 0, %s18
    %s21 = sphi 0, %s19
    %s31 = sphi 0, %s33
    %s34 = sphi 0, %s31
    %s35 = sphi 0, %s34
    %s51 = sphi 0, %s35
    %s57 = sphi 0, %s59
    %s60 = sphi 0, %s57
    %s61 = sphi 0, %s60
    %s77 = sphi 0, %s61
    %s83 = sphi 0, %s85
    %s86 = sphi 0, %s83
    %s87 = sphi 0, %s86
    %s103 = sphi 0, %s87
    %s111 = sphi 0, %s113
    %s114 = sphi 0, %s111
    %s115 = sphi 0, %s114
    %s131 = sphi 0, %s115
  $region4: #{equal_conv_transpose2d.1} parent=0 // loop_header_branch
    %12 = sbr.rel (%p10) target = $region8
  $region5: #{equal_conv_transpose2d.1} parent=0 // loop_body
    %s14 = ssub.s32 %s9, 1
    %s15 = ssub.s32 %s9, 2
    %s22 = sadd.s32 1, %s17
    %p23 = scmp.ge.s32.totalorder %s22, 2
    %s24 = scalar_select %p23, 0, %s22
    %s25 = sadd.s32 1, %s16
    %s26 = scalar_select %p23, %s25, %s16
    %p27 = scmp.ge.s32.totalorder %s26, 1
    %s28 = scalar_select %p27, 0, %s26
    %s29 = ssub.s32 %s17, %s24
    %p30 = scmp.eq.s32.totalorder %s29, 0
    %s32 = sadd.s32 %s31, 1
    %s33 = scalar_select %p30, %s31, %s32
    %p36 = pneg %p30
    %p37 = scmp.eq.s32.totalorder %s9, 1
    %p38 = por %p36, %p37
    %p39 = scmp.ne.s32.totalorder %s31, %s34
    %p40 = scmp.eq.s32.totalorder %s9, 0
    %p41 = por %p39, %p40
    %p42 = scmp.ne.s32.totalorder %s31, %s34
    %p43 = scmp.eq.s32.totalorder %s14, 1
    %p44 = por %p42, %p43
    %p45 = scmp.ne.s32.totalorder %s34, %s35
    %p46 = scmp.eq.s32.totalorder %s14, 0
    %p47 = por %p45, %p46
    %p48 = scmp.ne.s32.totalorder %s34, %s35
    %p49 = scmp.eq.s32.totalorder %s15, 1
    %p50 = por %p48, %p49
    %p52 = scmp.ne.s32.totalorder %s35, %s51
    %p53 = scmp.eq.s32.totalorder %s15, 0
    %p54 = por %p52, %p53
    %s55 = ssub.s32 %s16, %s28
    %p56 = scmp.eq.s32.totalorder %s55, 0
    %s58 = sadd.s32 %s57, 1
    %s59 = scalar_select %p56, %s57, %s58
    %p62 = pneg %p56
    %p63 = scmp.eq.s32.totalorder %s9, 1
    %p64 = por %p62, %p63
    %p65 = scmp.ne.s32.totalorder %s57, %s60
    %p66 = scmp.eq.s32.totalorder %s9, 0
    %p67 = por %p65, %p66
    %p68 = scmp.ne.s32.totalorder %s57, %s60
    %p69 = scmp.eq.s32.totalorder %s14, 1
    %p70 = por %p68, %p69
    %p71 = scmp.ne.s32.totalorder %s60, %s61
    %p72 = scmp.eq.s32.totalorder %s14, 0
    %p73 = por %p71, %p72
    %p74 = scmp.ne.s32.totalorder %s60, %s61
    %p75 = scmp.eq.s32.totalorder %s15, 1
    %p76 = por %p74, %p75
    %p78 = scmp.ne.s32.totalorder %s61, %s77
    %p79 = scmp.eq.s32.totalorder %s15, 0
    %p80 = por %p78, %p79
    %s81 = ssub.s32 %s16, %s28
    %p82 = scmp.eq.s32.totalorder %s81, 0
    %s84 = sadd.s32 %s83, 1
    %s85 = scalar_select %p82, %s83, %s84
    %p88 = pneg %p82
    %p89 = scmp.eq.s32.totalorder %s9, 1
    %p90 = por %p88, %p89
    %p91 = scmp.ne.s32.totalorder %s83, %s86
    %p92 = scmp.eq.s32.totalorder %s9, 0
    %p93 = por %p91, %p92
    %p94 = scmp.ne.s32.totalorder %s83, %s86
    %p95 = scmp.eq.s32.totalorder %s14, 1
    %p96 = por %p94, %p95
    %p97 = scmp.ne.s32.totalorder %s86, %s87
    %p98 = scmp.eq.s32.totalorder %s14, 0
    %p99 = por %p97, %p98
    %p100 = scmp.ne.s32.totalorder %s86, %s87
    %p101 = scmp.eq.s32.totalorder %s15, 1
    %p102 = por %p100, %p101
    %p104 = scmp.ne.s32.totalorder %s87, %s103
    %p105 = scmp.eq.s32.totalorder %s15, 0
    %p106 = por %p104, %p105
    %s107 = ssub.s32 %s17, %s24
    %s108 = ssub.s32 %s16, %s28
    %s109 = sor.u32 %s107, %s108
    %p110 = scmp.eq.s32.totalorder %s109, 0
    %s112 = sadd.s32 %s111, 1
    %s113 = scalar_select %p110, %s111, %s112
    %p116 = pneg %p110
    %p117 = scmp.eq.s32.totalorder %s9, 1
    %p118 = por %p116, %p117
    %p119 = scmp.ne.s32.totalorder %s111, %s114
    %p120 = scmp.eq.s32.totalorder %s9, 0
    %p121 = por %p119, %p120
    %p122 = scmp.ne.s32.totalorder %s111, %s114
    %p123 = scmp.eq.s32.totalorder %s14, 1
    %p124 = por %p122, %p123
    %p125 = scmp.ne.s32.totalorder %s114, %s115
    %p126 = scmp.eq.s32.totalorder %s14, 0
    %p127 = por %p125, %p126
    %p128 = scmp.ne.s32.totalorder %s114, %s115
    %p129 = scmp.eq.s32.totalorder %s15, 1
    %p130 = por %p128, %p129
    %p132 = scmp.ne.s32.totalorder %s115, %s131
    %p133 = scmp.eq.s32.totalorder %s15, 0
    %p134 = por %p132, %p133
    %p135 = scmp.le.s32.totalorder 1, %s9
    %p136 = scmp.lt.s32.totalorder %s9, 3
    %p137 = pnand %p135, %p136
    %p138 = pneg %p137
    // Predicated region
    $region9: #{equal_conv_transpose2d.1} parent=5 // pred_check
      _
    $region10: #{equal_conv_transpose2d.1} parent=5 // pred_check_branch
      %140 = sbr.rel (%p137) target = $region12
    $region11: #{equal_conv_transpose2d.1} parent=5 // pred_region
      %s141 = ssub.s32 %s9, 1
      // Predicated region
      $region13: #{equal_conv_transpose2d.1} parent=11 // pred_check
        %p142 = pneg %p73
      $region14: #{equal_conv_transpose2d.1} parent=11 // pred_check_branch
        %144 = sbr.rel (%p142) target = $region16
      $region15: #{equal_conv_transpose2d.1} parent=11 // pred_region
        %p145 = scmp.lt.s32.totalorder %s18, 0
        %s146 = scalar_select %p145, %s18, 0
        %s147 = smul.addr %s146, 128
        %s148 = smul.addr %s147, 4
        %s149 = scalar_lea.vmem %s1, %s148
      $region16: #{equal_conv_transpose2d.1} parent=11 // pred_fallthru
        _
      // Predicated region
      $region17: #{equal_conv_transpose2d.1} parent=11 // pred_check
        %p150 = pneg %p99
      $region18: #{equal_conv_transpose2d.1} parent=11 // pred_check_branch
        %152 = sbr.rel (%p150) target = $region20
      $region19: #{equal_conv_transpose2d.1} parent=11 // pred_region
        %p153 = scmp.lt.s32.totalorder %s18, 0
        %s154 = scalar_select %p153, %s18, 0
        %s155 = scalar_lea.vmem %s2, %s154
      $region20: #{equal_conv_transpose2d.1} parent=11 // pred_fallthru
        _
    $region12: #{equal_conv_transpose2d.1} parent=5 // pred_fallthru
      _
    %p156 = scmp.lt.s32.totalorder %s9, 2
    // Predicated region
    $region21: #{equal_conv_transpose2d.1} parent=5 // pred_check
      %p157 = pneg %p156
    $region22: #{equal_conv_transpose2d.1} parent=5 // pred_check_branch
      %159 = sbr.rel (%p157) target = $region24
    $region23: #{equal_conv_transpose2d.1} parent=5 // pred_region
      // Predicated region
      $region25: #{equal_conv_transpose2d.1} parent=23 // pred_check
        %p160 = pneg %p41
      $region26: #{equal_conv_transpose2d.1} parent=23 // pred_check_branch
        %162 = sbr.rel (%p160) target = $region28
      $region27: #{equal_conv_transpose2d.1} parent=23 // pred_region
        %p163 = scmp.lt.s32.totalorder %s17, 1
        %s164 = scalar_select %p163, %s17, 1
        %s165 = smul.addr %s164, 72
        %s166 = smul.addr %s165, 4
        %s167 = scalar_lea.vmem %s0, %s166
      $region28: #{equal_conv_transpose2d.1} parent=23 // pred_fallthru
        _
    $region24: #{equal_conv_transpose2d.1} parent=5 // pred_fallthru
      _
    %p168 = scmp.le.s32.totalorder 1, %s9
    %p169 = scmp.lt.s32.totalorder %s9, 3
    %p170 = pnand %p168, %p169
    %p171 = pneg %p170
    // Predicated region
    $region29: #{equal_conv_transpose2d.1} parent=5 // pred_check
      _
    $region30: #{equal_conv_transpose2d.1} parent=5 // pred_check_branch
      %173 = sbr.rel (%p170) target = $region32
    $region31: #{equal_conv_transpose2d.1} parent=5 // pred_region
      %s174 = ssub.s32 %s9, 1
      %p175 = scmp.lt.s32.totalorder %s19, 1
      %s176 = scalar_select %p175, %s19, 1
      %s177 = smul.addr %s176, 72
      %s178 = smul.addr %s177, 4
      %s179 = scalar_lea.vmem %s0, %s178
      %p180 = pneg %p47
      %p181 = pneg %p44
      %p182 = scmp.lt.s32.totalorder %s18, 0
      %s183 = scalar_select %p182, %s18, 0
      %s184 = smul.addr %s183, 128
      %s185 = smul.addr %s184, 4
      %s186 = scalar_lea.vmem %s1, %s185
      %p187 = pneg %p73
      %p188 = pneg %p70
      %p189 = scmp.lt.s32.totalorder %s18, 0
      %s190 = scalar_select %p189, %s18, 0
      %s191 = scalar_lea.vmem %s2, %s190
      %p192 = pneg %p99
      %p193 = pneg %p96
      %p194 = pneg %p127
      %p195 = pneg %p124
      %p196 = scmp.lt.s32.totalorder %s19, 1
      %s197 = scalar_select %p196, %s19, 1
      %p198 = scmp.lt.s32.totalorder %s18, 0
      %s199 = scalar_select %p198, %s18, 0
      %s200 = smul.addr %s197, 204
      %s201 = sadd.s32 %s199, %s200
      %s202 = smul.addr %s201, 8
      %s203 = scalar_lea.vmem %s3, %s202
      %p204 = scmp.lt.s32.totalorder %s19, 1
      %s205 = scalar_select %p204, %s19, 1
      %s206 = smul.addr %s205, 72
      %s207 = smul.addr %s206, 4
      %s208 = scalar_lea.vmem %s0, %s207
      %p209 = scmp.lt.s32.totalorder %s18, 0
      %s210 = scalar_select %p209, %s18, 0
      %s211 = smul.addr %s210, 128
      %s212 = smul.addr %s211, 4
      %s213 = scalar_lea.vmem %s1, %s212
      %p214 = scmp.lt.s32.totalorder %s18, 0
      %s215 = scalar_select %p214, %s18, 0
      %s216 = scalar_lea.vmem %s2, %s215
      %p217 = scmp.lt.s32.totalorder %s19, 1
      %s218 = scalar_select %p217, %s19, 1
      %p219 = scmp.lt.s32.totalorder %s18, 0
      %s220 = scalar_select %p219, %s18, 0
      %s221 = smul.addr %s218, 204
      %s222 = sadd.s32 %s220, %s221
      %s223 = smul.addr %s222, 8
      %s224 = scalar_lea.vmem %s3, %s223
      %v226 = vld [vmem:[%s208] sm:$0xf]
      %v227 = vld [vmem:[%s208 + $0x4] sm:$0xf]
      %v228 = vld [vmem:[%s208 + $0x8] sm:$0xf]
      %v229 = vld [vmem:[%s208 + $0xc] sm:$0xf]
      %v230 = vld [vmem:[%s208 + $0x10] sm:$0xf]
      %v231 = vld [vmem:[%s208 + $0x14] sm:$0xf]
      %v232 = vld [vmem:[%s208 + $0x18] sm:$0xf]
      %v233 = vld [vmem:[%s208 + $0x1c] sm:$0xf]
      %v234 = vld [vmem:[%s208 + $0x20] sm:$0xf]
      %v235 = vld [vmem:[%s208 + $0x24] sm:$0xf]
      %v236 = vld [vmem:[%s208 + $0x28] sm:$0xf]
      %v237 = vld [vmem:[%s208 + $0x2c] sm:$0xf]
      %v238 = vld [vmem:[%s208 + $0x30] sm:$0xf]
      %v239 = vld [vmem:[%s208 + $0x34] sm:$0xf]
      %v240 = vld [vmem:[%s208 + $0x38] sm:$0xf]
      %v241 = vld [vmem:[%s208 + $0x3c] sm:$0xf]
      %v242 = vld [vmem:[%s208 + $0x40] sm:$0xf]
      %v243 = vld [vmem:[%s208 + $0x44] sm:$0xf]
      %v244 = vld [vmem:[%s208 + $0x48] sm:$0xf]
      %v245 = vld [vmem:[%s208 + $0x4c] sm:$0xf]
      %v246 = vld [vmem:[%s208 + $0x50] sm:$0xf]
      %v247 = vld [vmem:[%s208 + $0x54] sm:$0xf]
      %v248 = vld [vmem:[%s208 + $0x58] sm:$0xf]
      %v249 = vld [vmem:[%s208 + $0x5c] sm:$0xf]
      %v250 = vld [vmem:[%s208 + $0x60] sm:$0xf]
      %v251 = vld [vmem:[%s208 + $0x64] sm:$0xf]
      %v252 = vld [vmem:[%s208 + $0x68] sm:$0xf]
      %v253 = vld [vmem:[%s208 + $0x6c] sm:$0xf]
      %v254 = vld [vmem:[%s208 + $0x70] sm:$0xf]
      %v255 = vld [vmem:[%s208 + $0x74] sm:$0xf]
      %v256 = vld [vmem:[%s208 + $0x78] sm:$0xf]
      %v257 = vld [vmem:[%s208 + $0x7c] sm:$0xf]
      %v258 = vld [vmem:[%s208 + $0x80] sm:$0xf]
      %v259 = vld [vmem:[%s208 + $0x84] sm:$0xf]
      %v260 = vld [vmem:[%s208 + $0x88] sm:$0xf]
      %v261 = vld [vmem:[%s208 + $0x8c] sm:$0xf]
      %v262 = vld [vmem:[%s208 + $0x90] sm:$0xf]
      %v263 = vld [vmem:[%s208 + $0x94] sm:$0xf]
      %v264 = vld [vmem:[%s208 + $0x98] sm:$0xf]
      %v265 = vld [vmem:[%s208 + $0x9c] sm:$0xf]
      %v266 = vld [vmem:[%s208 + $0xa0] sm:$0xf]
      %v267 = vld [vmem:[%s208 + $0xa4] sm:$0xf]
      %v268 = vld [vmem:[%s208 + $0xa8] sm:$0xf]
      %v269 = vld [vmem:[%s208 + $0xac] sm:$0xf]
      %v270 = vld [vmem:[%s208 + $0xb0] sm:$0xf]
      %v271 = vld [vmem:[%s208 + $0xb4] sm:$0xf]
      %v272 = vld [vmem:[%s208 + $0xb8] sm:$0xf]
      %v273 = vld [vmem:[%s208 + $0xbc] sm:$0xf]
      %v274 = vld [vmem:[%s208 + $0xc0] sm:$0xf]
      %v275 = vld [vmem:[%s208 + $0xc4] sm:$0xf]
      %v276 = vld [vmem:[%s208 + $0xc8] sm:$0xf]
      %v277 = vld [vmem:[%s208 + $0xcc] sm:$0xf]
      %v278 = vld [vmem:[%s208 + $0xd0] sm:$0xf]
      %v279 = vld [vmem:[%s208 + $0xd4] sm:$0xf]
      %v280 = vld [vmem:[%s208 + $0xd8] sm:$0xf]
      %v281 = vld [vmem:[%s208 + $0xdc] sm:$0xf]
      %v282 = vld [vmem:[%s208 + $0xe0] sm:$0xf]
      %v283 = vld [vmem:[%s208 + $0xe4] sm:$0xf]
      %v284 = vld [vmem:[%s208 + $0xe8] sm:$0xf]
      %v285 = vld [vmem:[%s208 + $0xec] sm:$0xf]
      %v286 = vld [vmem:[%s208 + $0xf0] sm:$0xf]
      %v287 = vld [vmem:[%s208 + $0xf4] sm:$0xf]
      %v288 = vld [vmem:[%s208 + $0xf8] sm:$0xf]
      %v289 = vld [vmem:[%s208 + $0xfc] sm:$0xf]
      %v290 = vld [vmem:[%s208 + $0x100] sm:$0xf]
      %v291 = vld [vmem:[%s208 + $0x104] sm:$0xf]
      %v292 = vld [vmem:[%s208 + $0x108] sm:$0xf]
      %v293 = vld [vmem:[%s208 + $0x10c] sm:$0xf]
      %v294 = vld [vmem:[%s208 + $0x110] sm:$0xf]
      %v295 = vld [vmem:[%s208 + $0x114] sm:$0xf]
      %v296 = vld [vmem:[%s208 + $0x118] sm:$0xf]
      %v297 = vld [vmem:[%s208 + $0x11c] sm:$0xf]
      %v298 = vld [vmem:[%s213] sm:$0xff]
      %v299 = vld [vmem:[%s213 + $0x8] sm:$0xff]
      %v300 = vld [vmem:[%s213 + $0x10] sm:$0xff]
      %v301 = vld [vmem:[%s213 + $0x18] sm:$0xff]
      %v302 = vld [vmem:[%s213 + $0x20] sm:$0xff]
      %v303 = vld [vmem:[%s213 + $0x28] sm:$0xff]
      %v304 = vld [vmem:[%s213 + $0x30] sm:$0xff]
      %v305 = vld [vmem:[%s213 + $0x38] sm:$0xff]
      %v306 = vld [vmem:[%s213 + $0x40] sm:$0xff]
      %v307 = vld [vmem:[%s213 + $0x48] sm:$0xff]
      %v308 = vld [vmem:[%s213 + $0x50] sm:$0xff]
      %v309 = vld [vmem:[%s213 + $0x58] sm:$0xff]
      %v310 = vld [vmem:[%s213 + $0x60] sm:$0xff]
      %v311 = vld [vmem:[%s213 + $0x68] sm:$0xff]
      %v312 = vld [vmem:[%s213 + $0x70] sm:$0xff]
      %v313 = vld [vmem:[%s213 + $0x78] sm:$0xff]
      %v314 = vld [vmem:[%s213 + $0x80] sm:$0xff]
      %v315 = vld [vmem:[%s213 + $0x88] sm:$0xff]
      %v316 = vld [vmem:[%s213 + $0x90] sm:$0xff]
      %v317 = vld [vmem:[%s213 + $0x98] sm:$0xff]
      %v318 = vld [vmem:[%s213 + $0xa0] sm:$0xff]
      %v319 = vld [vmem:[%s213 + $0xa8] sm:$0xff]
      %v320 = vld [vmem:[%s213 + $0xb0] sm:$0xff]
      %v321 = vld [vmem:[%s213 + $0xb8] sm:$0xff]
      %v322 = vld [vmem:[%s213 + $0xc0] sm:$0xff]
      %v323 = vld [vmem:[%s213 + $0xc8] sm:$0xff]
      %v324 = vld [vmem:[%s213 + $0xd0] sm:$0xff]
      %v325 = vld [vmem:[%s213 + $0xd8] sm:$0xff]
      %v326 = vld [vmem:[%s213 + $0xe0] sm:$0xff]
      %v327 = vld [vmem:[%s213 + $0xe8] sm:$0xff]
      %v328 = vld [vmem:[%s213 + $0xf0] sm:$0xff]
      %v329 = vld [vmem:[%s213 + $0xf8] sm:$0xff]
      %v330 = vld [vmem:[%s213 + $0x100] sm:$0xff]
      %v331 = vld [vmem:[%s213 + $0x108] sm:$0xff]
      %v332 = vld [vmem:[%s213 + $0x110] sm:$0xff]
      %v333 = vld [vmem:[%s213 + $0x118] sm:$0xff]
      %v334 = vld [vmem:[%s213 + $0x120] sm:$0xff]
      %v335 = vld [vmem:[%s213 + $0x128] sm:$0xff]
      %v336 = vld [vmem:[%s213 + $0x130] sm:$0xff]
      %v337 = vld [vmem:[%s213 + $0x138] sm:$0xff]
      %v338 = vld [vmem:[%s213 + $0x140] sm:$0xff]
      %v339 = vld [vmem:[%s213 + $0x148] sm:$0xff]
      %v340 = vld [vmem:[%s213 + $0x150] sm:$0xff]
      %v341 = vld [vmem:[%s213 + $0x158] sm:$0xff]
      %v342 = vld [vmem:[%s213 + $0x160] sm:$0xff]
      %v343 = vld [vmem:[%s213 + $0x168] sm:$0xff]
      %v344 = vld [vmem:[%s213 + $0x170] sm:$0xff]
      %v345 = vld [vmem:[%s213 + $0x178] sm:$0xff]
      %v346 = vld [vmem:[%s213 + $0x180] sm:$0xff]
      %v347 = vld [vmem:[%s213 + $0x188] sm:$0xff]
      %v348 = vld [vmem:[%s213 + $0x190] sm:$0xff]
      %v349 = vld [vmem:[%s213 + $0x198] sm:$0xff]
      %v350 = vld [vmem:[%s213 + $0x1a0] sm:$0xff]
      %v351 = vld [vmem:[%s213 + $0x1a8] sm:$0xff]
      %v352 = vld [vmem:[%s213 + $0x1b0] sm:$0xff]
      %v353 = vld [vmem:[%s213 + $0x1b8] sm:$0xff]
      %v354 = vld [vmem:[%s213 + $0x1c0] sm:$0xff]
      %v355 = vld [vmem:[%s213 + $0x1c8] sm:$0xff]
      %v356 = vld [vmem:[%s213 + $0x1d0] sm:$0xff]
      %v357 = vld [vmem:[%s213 + $0x1d8] sm:$0xff]
      %v358 = vld [vmem:[%s213 + $0x1e0] sm:$0xff]
      %v359 = vld [vmem:[%s213 + $0x1e8] sm:$0xff]
      %v360 = vld [vmem:[%s213 + $0x1f0] sm:$0xff]
      %v361 = vld [vmem:[%s213 + $0x1f8] sm:$0xff]
      %v434 = vunpack.c.l.b16 %v226
      %v435 = vunpack.c.l.b16 %v227
      %v436 = vunpack.c.l.b16 %v228
      %v437 = vunpack.c.l.b16 %v229
      %v438 = vunpack.c.l.b16 %v230
      %v439 = vunpack.c.l.b16 %v231
      %v440 = vunpack.c.l.b16 %v232
      %v441 = vunpack.c.l.b16 %v233
      %v442 = vunpack.c.l.b16 %v234
      %v443 = vunpack.c.l.b16 %v235
      %v444 = vunpack.c.l.b16 %v236
      %v445 = vunpack.c.l.b16 %v237
      %v446 = vunpack.c.l.b16 %v238
      %v447 = vunpack.c.l.b16 %v239
      %v448 = vunpack.c.l.b16 %v240
      %v449 = vunpack.c.l.b16 %v241
      %v450 = vunpack.c.l.b16 %v242
      %v451 = vunpack.c.l.b16 %v243
      %v452 = vunpack.c.l.b16 %v244
      %v453 = vunpack.c.l.b16 %v245
      %v454 = vunpack.c.l.b16 %v246
      %v455 = vunpack.c.l.b16 %v247
      %v456 = vunpack.c.l.b16 %v248
      %v457 = vunpack.c.l.b16 %v249
      %v458 = vunpack.c.l.b16 %v250
      %v459 = vunpack.c.l.b16 %v251
      %v460 = vunpack.c.l.b16 %v252
      %v461 = vunpack.c.l.b16 %v253
      %v462 = vunpack.c.l.b16 %v254
      %v463 = vunpack.c.l.b16 %v255
      %v464 = vunpack.c.l.b16 %v256
      %v465 = vunpack.c.l.b16 %v257
      %v466 = vunpack.c.l.b16 %v258
      %v467 = vunpack.c.l.b16 %v259
      %v468 = vunpack.c.l.b16 %v260
      %v469 = vunpack.c.l.b16 %v261
      %v470 = vunpack.c.l.b16 %v262
      %v471 = vunpack.c.l.b16 %v263
      %v472 = vunpack.c.l.b16 %v264
      %v473 = vunpack.c.l.b16 %v265
      %v474 = vunpack.c.l.b16 %v266
      %v475 = vunpack.c.l.b16 %v267
      %v476 = vunpack.c.l.b16 %v268
      %v477 = vunpack.c.l.b16 %v269
      %v478 = vunpack.c.l.b16 %v270
      %v479 = vunpack.c.l.b16 %v271
      %v480 = vunpack.c.l.b16 %v272
      %v481 = vunpack.c.l.b16 %v273
      %v482 = vunpack.c.l.b16 %v274
      %v483 = vunpack.c.l.b16 %v275
      %v484 = vunpack.c.l.b16 %v276
      %v485 = vunpack.c.l.b16 %v277
      %v486 = vunpack.c.l.b16 %v278
      %v487 = vunpack.c.l.b16 %v279
      %v488 = vunpack.c.l.b16 %v280
      %v489 = vunpack.c.l.b16 %v281
      %v490 = vunpack.c.l.b16 %v282
      %v491 = vunpack.c.l.b16 %v283
      %v492 = vunpack.c.l.b16 %v284
      %v493 = vunpack.c.l.b16 %v285
      %v494 = vunpack.c.l.b16 %v286
      %v495 = vunpack.c.l.b16 %v287
      %v496 = vunpack.c.l.b16 %v288
      %v497 = vunpack.c.l.b16 %v289
      %v498 = vunpack.c.l.b16 %v290
      %v499 = vunpack.c.l.b16 %v291
      %v500 = vunpack.c.l.b16 %v292
      %v501 = vunpack.c.l.b16 %v293
      %v502 = vunpack.c.l.b16 %v294
      %v503 = vunpack.c.l.b16 %v295
      %v504 = vunpack.c.l.b16 %v296
      %v505 = vunpack.c.l.b16 %v297
      %v506 = vpack.c.b16 %v435, %v434
      %v507 = vpack.c.b16 %v437, %v436
      %v508 = vpack.c.b16 %v439, %v438
      %v509 = vpack.c.b16 %v441, %v440
      %v510 = vpack.c.b16 %v443, %v442
      %v511 = vpack.c.b16 %v445, %v444
      %v512 = vpack.c.b16 %v447, %v446
      %v513 = vpack.c.b16 %v449, %v448
      %v514 = vpack.c.b16 %v451, %v450
      %v515 = vpack.c.b16 %v453, %v452
      %v516 = vpack.c.b16 %v455, %v454
      %v517 = vpack.c.b16 %v457, %v456
      %v518 = vpack.c.b16 %v459, %v458
      %v519 = vpack.c.b16 %v461, %v460
      %v520 = vpack.c.b16 %v463, %v462
      %v521 = vpack.c.b16 %v465, %v464
      %v522 = vpack.c.b16 %v467, %v466
      %v523 = vpack.c.b16 %v469, %v468
      %v524 = vpack.c.b16 %v471, %v470
      %v525 = vpack.c.b16 %v473, %v472
      %v526 = vpack.c.b16 %v475, %v474
      %v527 = vpack.c.b16 %v477, %v476
      %v528 = vpack.c.b16 %v479, %v478
      %v529 = vpack.c.b16 %v481, %v480
      %v530 = vpack.c.b16 %v483, %v482
      %v531 = vpack.c.b16 %v485, %v484
      %v532 = vpack.c.b16 %v487, %v486
      %v533 = vpack.c.b16 %v489, %v488
      %v534 = vpack.c.b16 %v491, %v490
      %v535 = vpack.c.b16 %v493, %v492
      %v536 = vpack.c.b16 %v495, %v494
      %v537 = vpack.c.b16 %v497, %v496
      %v538 = vpack.c.b16 %v499, %v498
      %v539 = vpack.c.b16 %v501, %v500
      %v540 = vpack.c.b16 %v503, %v502
      %v541 = vpack.c.b16 %v505, %v504
      %v606 = vunpack.c.l.b16 %v298
      %v607 = vunpack.c.h.b16 %v298
      %v608 = vunpack.c.l.b16 %v299
      %v609 = vunpack.c.h.b16 %v299
      %v610 = vunpack.c.l.b16 %v300
      %v611 = vunpack.c.h.b16 %v300
      %v612 = vunpack.c.l.b16 %v301
      %v613 = vunpack.c.h.b16 %v301
      %v614 = vunpack.c.l.b16 %v302
      %v615 = vunpack.c.h.b16 %v302
      %v616 = vunpack.c.l.b16 %v303
      %v617 = vunpack.c.h.b16 %v303
      %v618 = vunpack.c.l.b16 %v304
      %v619 = vunpack.c.h.b16 %v304
      %v620 = vunpack.c.l.b16 %v305
      %v621 = vunpack.c.h.b16 %v305
      %v622 = vunpack.c.l.b16 %v306
      %v623 = vunpack.c.h.b16 %v306
      %v624 = vunpack.c.l.b16 %v307
      %v625 = vunpack.c.h.b16 %v307
      %v626 = vunpack.c.l.b16 %v308
      %v627 = vunpack.c.h.b16 %v308
      %v628 = vunpack.c.l.b16 %v309
      %v629 = vunpack.c.h.b16 %v309
      %v630 = vunpack.c.l.b16 %v310
      %v631 = vunpack.c.h.b16 %v310
      %v632 = vunpack.c.l.b16 %v311
      %v633 = vunpack.c.h.b16 %v311
      %v634 = vunpack.c.l.b16 %v312
      %v635 = vunpack.c.h.b16 %v312
      %v636 = vunpack.c.l.b16 %v313
      %v637 = vunpack.c.h.b16 %v313
      %v638 = vunpack.c.l.b16 %v314
      %v639 = vunpack.c.h.b16 %v314
      %v640 = vunpack.c.l.b16 %v315
      %v641 = vunpack.c.h.b16 %v315
      %v642 = vunpack.c.l.b16 %v316
      %v643 = vunpack.c.h.b16 %v316
      %v644 = vunpack.c.l.b16 %v317
      %v645 = vunpack.c.h.b16 %v317
      %v646 = vunpack.c.l.b16 %v318
      %v647 = vunpack.c.h.b16 %v318
      %v648 = vunpack.c.l.b16 %v319
      %v649 = vunpack.c.h.b16 %v319
      %v650 = vunpack.c.l.b16 %v320
      %v651 = vunpack.c.h.b16 %v320
      %v652 = vunpack.c.l.b16 %v321
      %v653 = vunpack.c.h.b16 %v321
      %v654 = vunpack.c.l.b16 %v322
      %v655 = vunpack.c.h.b16 %v322
      %v656 = vunpack.c.l.b16 %v323
      %v657 = vunpack.c.h.b16 %v323
      %v658 = vunpack.c.l.b16 %v324
      %v659 = vunpack.c.h.b16 %v324
      %v660 = vunpack.c.l.b16 %v325
      %v661 = vunpack.c.h.b16 %v325
      %v662 = vunpack.c.l.b16 %v326
      %v663 = vunpack.c.h.b16 %v326
      %v664 = vunpack.c.l.b16 %v327
      %v665 = vunpack.c.h.b16 %v327
      %v666 = vunpack.c.l.b16 %v328
      %v667 = vunpack.c.h.b16 %v328
      %v668 = vunpack.c.l.b16 %v329
      %v669 = vunpack.c.h.b16 %v329
      %v670 = vunpack.c.l.b16 %v330
      %v671 = vunpack.c.h.b16 %v330
      %v672 = vunpack.c.l.b16 %v331
      %v673 = vunpack.c.h.b16 %v331
      %v674 = vunpack.c.l.b16 %v332
      %v675 = vunpack.c.h.b16 %v332
      %v676 = vunpack.c.l.b16 %v333
      %v677 = vunpack.c.h.b16 %v333
      %v678 = vunpack.c.l.b16 %v334
      %v679 = vunpack.c.h.b16 %v334
      %v680 = vunpack.c.l.b16 %v335
      %v681 = vunpack.c.h.b16 %v335
      %v682 = vunpack.c.l.b16 %v336
      %v683 = vunpack.c.h.b16 %v336
      %v684 = vunpack.c.l.b16 %v337
      %v685 = vunpack.c.h.b16 %v337
      %v686 = vunpack.c.l.b16 %v338
      %v687 = vunpack.c.h.b16 %v338
      %v688 = vunpack.c.l.b16 %v339
      %v689 = vunpack.c.h.b16 %v339
      %v690 = vunpack.c.l.b16 %v340
      %v691 = vunpack.c.h.b16 %v340
      %v692 = vunpack.c.l.b16 %v341
      %v693 = vunpack.c.h.b16 %v341
      %v694 = vunpack.c.l.b16 %v342
      %v695 = vunpack.c.h.b16 %v342
      %v696 = vunpack.c.l.b16 %v343
      %v697 = vunpack.c.h.b16 %v343
      %v698 = vunpack.c.l.b16 %v344
      %v699 = vunpack.c.h.b16 %v344
      %v700 = vunpack.c.l.b16 %v345
      %v701 = vunpack.c.h.b16 %v345
      %v702 = vunpack.c.l.b16 %v346
      %v703 = vunpack.c.h.b16 %v346
      %v704 = vunpack.c.l.b16 %v347
      %v705 = vunpack.c.h.b16 %v347
      %v706 = vunpack.c.l.b16 %v348
      %v707 = vunpack.c.h.b16 %v348
      %v708 = vunpack.c.l.b16 %v349
      %v709 = vunpack.c.h.b16 %v349
      %v710 = vunpack.c.l.b16 %v350
      %v711 = vunpack.c.h.b16 %v350
      %v712 = vunpack.c.l.b16 %v351
      %v713 = vunpack.c.h.b16 %v351
      %v714 = vunpack.c.l.b16 %v352
      %v715 = vunpack.c.h.b16 %v352
      %v716 = vunpack.c.l.b16 %v353
      %v717 = vunpack.c.h.b16 %v353
      %v718 = vunpack.c.l.b16 %v354
      %v719 = vunpack.c.h.b16 %v354
      %v720 = vunpack.c.l.b16 %v355
      %v721 = vunpack.c.h.b16 %v355
      %v722 = vunpack.c.l.b16 %v356
      %v723 = vunpack.c.h.b16 %v356
      %v724 = vunpack.c.l.b16 %v357
      %v725 = vunpack.c.h.b16 %v357
      %v726 = vunpack.c.l.b16 %v358
      %v727 = vunpack.c.h.b16 %v358
      %v728 = vunpack.c.l.b16 %v359
      %v729 = vunpack.c.h.b16 %v359
      %v730 = vunpack.c.l.b16 %v360
      %v731 = vunpack.c.h.b16 %v360
      %v732 = vunpack.c.l.b16 %v361
      %v733 = vunpack.c.h.b16 %v361
      %v734 = vpack.c.b16 %v622, %v606
      %v735 = vpack.c.b16 %v623, %v607
      %v736 = vpack.c.b16 %v624, %v608
      %v737 = vpack.c.b16 %v625, %v609
      %v738 = vpack.c.b16 %v626, %v610
      %v739 = vpack.c.b16 %v627, %v611
      %v740 = vpack.c.b16 %v628, %v612
      %v741 = vpack.c.b16 %v629, %v613
      %v742 = vpack.c.b16 %v630, %v614
      %v743 = vpack.c.b16 %v631, %v615
      %v744 = vpack.c.b16 %v632, %v616
      %v745 = vpack.c.b16 %v633, %v617
      %v746 = vpack.c.b16 %v634, %v618
      %v747 = vpack.c.b16 %v635, %v619
      %v748 = vpack.c.b16 %v636, %v620
      %v749 = vpack.c.b16 %v637, %v621
      %v750 = vpack.c.b16 %v654, %v638
      %v751 = vpack.c.b16 %v655, %v639
      %v752 = vpack.c.b16 %v656, %v640
      %v753 = vpack.c.b16 %v657, %v641
      %v754 = vpack.c.b16 %v658, %v642
      %v755 = vpack.c.b16 %v659, %v643
      %v756 = vpack.c.b16 %v660, %v644
      %v757 = vpack.c.b16 %v661, %v645
      %v758 = vpack.c.b16 %v662, %v646
      %v759 = vpack.c.b16 %v663, %v647
      %v760 = vpack.c.b16 %v664, %v648
      %v761 = vpack.c.b16 %v665, %v649
      %v762 = vpack.c.b16 %v666, %v650
      %v763 = vpack.c.b16 %v667, %v651
      %v764 = vpack.c.b16 %v668, %v652
      %v765 = vpack.c.b16 %v669, %v653
      %v766 = vpack.c.b16 %v686, %v670
      %v767 = vpack.c.b16 %v687, %v671
      %v768 = vpack.c.b16 %v688, %v672
      %v769 = vpack.c.b16 %v689, %v673
      %v770 = vpack.c.b16 %v690, %v674
      %v771 = vpack.c.b16 %v691, %v675
      %v772 = vpack.c.b16 %v692, %v676
      %v773 = vpack.c.b16 %v693, %v677
      %v774 = vpack.c.b16 %v694, %v678
      %v775 = vpack.c.b16 %v695, %v679
      %v776 = vpack.c.b16 %v696, %v680
      %v777 = vpack.c.b16 %v697, %v681
      %v778 = vpack.c.b16 %v698, %v682
      %v779 = vpack.c.b16 %v699, %v683
      %v780 = vpack.c.b16 %v700, %v684
      %v781 = vpack.c.b16 %v701, %v685
      %v782 = vpack.c.b16 %v718, %v702
      %v783 = vpack.c.b16 %v719, %v703
      %v784 = vpack.c.b16 %v720, %v704
      %v785 = vpack.c.b16 %v721, %v705
      %v786 = vpack.c.b16 %v722, %v706
      %v787 = vpack.c.b16 %v723, %v707
      %v788 = vpack.c.b16 %v724, %v708
      %v789 = vpack.c.b16 %v725, %v709
      %v790 = vpack.c.b16 %v726, %v710
      %v791 = vpack.c.b16 %v727, %v711
      %v792 = vpack.c.b16 %v728, %v712
      %v793 = vpack.c.b16 %v729, %v713
      %v794 = vpack.c.b16 %v730, %v714
      %v795 = vpack.c.b16 %v731, %v715
      %v796 = vpack.c.b16 %v732, %v716
      %v797 = vpack.c.b16 %v733, %v717
      %vm862 = vcmask 523264
      %v864 = vsel %vm862, %v506, 0
      %v867 = vsel %vm862, %v507, 0
      %v870 = vsel %vm862, %v508, 0
      %v873 = vsel %vm862, %v509, 0
      %v876 = vsel %vm862, %v510, 0
      %v879 = vsel %vm862, %v511, 0
      %v882 = vsel %vm862, %v512, 0
      %v885 = vsel %vm862, %v513, 0
      %v888 = vsel %vm862, %v514, 0
      %v891 = vsel %vm862, %v515, 0
      %v894 = vsel %vm862, %v516, 0
      %v897 = vsel %vm862, %v517, 0
      %v900 = vsel %vm862, %v518, 0
      %v903 = vsel %vm862, %v519, 0
      %v906 = vsel %vm862, %v520, 0
      %v909 = vsel %vm862, %v521, 0
      %v912 = vsel %vm862, %v522, 0
      %v915 = vsel %vm862, %v523, 0
      %v918 = vsel %vm862, %v524, 0
      %v921 = vsel %vm862, %v525, 0
      %v924 = vsel %vm862, %v526, 0
      %v927 = vsel %vm862, %v527, 0
      %v930 = vsel %vm862, %v528, 0
      %v933 = vsel %vm862, %v529, 0
      %v936 = vsel %vm862, %v530, 0
      %v939 = vsel %vm862, %v531, 0
      %v942 = vsel %vm862, %v532, 0
      %v945 = vsel %vm862, %v533, 0
      %v948 = vsel %vm862, %v534, 0
      %v951 = vsel %vm862, %v535, 0
      %v954 = vsel %vm862, %v536, 0
      %v957 = vsel %vm862, %v537, 0
      %v960 = vsel %vm862, %v538, 0
      %v963 = vsel %vm862, %v539, 0
      %v966 = vsel %vm862, %v540, 0
      %v969 = vsel %vm862, %v541, 0
      %971 = vmatprep.subr.bf16.mxu0 %v735
      %972 = vmatpush1.bf16.msra.mxu0 %v734
      %973 = vmatprep.subr.bf16.mxu0 %v751
      %974 = vmatpush1.bf16.msra.mxu0 %v750
      %975 = vmatprep.subr.bf16.mxu0 %v767
      %976 = vmatpush1.bf16.msra.mxu0 %v766
      %977 = vmatprep.subr.bf16.mxu0 %v783
      %978 = vmatpush1.bf16.msra.mxu0 %v782
      %979 = vmatprep.subr.bf16.mxu0 0
      %980 = vmatpush1.bf16.msra.mxu0 0
      %981 = vmatprep.subr.bf16.mxu0 0
      %982 = vmatpush1.bf16.msra.mxu0 0
      %983 = vmatprep.subr.bf16.mxu0 0
      %984 = vmatpush1.bf16.msra.mxu0 0
      %985 = vmatprep.subr.bf16.mxu0 0
      %986 = vmatpush1.bf16.msra.mxu0 0
      %987 = vmatprep.subr.bf16.mxu0 0
      %988 = vmatpush1.bf16.msra.mxu0 0
      %989 = vmatprep.subr.bf16.mxu0 0
      %990 = vmatpush1.bf16.msra.mxu0 0
      %991 = vmatprep.subr.bf16.mxu0 0
      %992 = vmatpush1.bf16.msra.mxu0 0
      %993 = vmatprep.subr.bf16.mxu0 0
      %994 = vmatpush1.bf16.msra.mxu0 0
      %995 = vmatprep.subr.bf16.mxu0 0
      %996 = vmatpush1.bf16.msra.mxu0 0
      %997 = vmatprep.subr.bf16.mxu0 0
      %998 = vmatpush1.bf16.msra.mxu0 0
      %999 = vmatprep.subr.bf16.mxu0 0
      %1000 = vmatpush1.bf16.msra.mxu0 0
      %1001 = vmatprep.subr.bf16.mxu0 0
      %1002 = vmatpush1.bf16.msra.mxu0 0
      %1003 = vmatprep.mubr.bf16.mxu0 0
      %1004 = vmatmul.mubr.bf16.gmra.mrb[0].mxu0 %v864
      %v1005 = vpop.f32.mrb[0].mxu0
      %v1006 = vadd.f32 0.0, %v1005
      %v1007 = vpop.f32.mrb[0].mxu0
      %v1008 = vadd.f32 0.0, %v1007
      %v1009 = vpop.f32.mrb[0].mxu0
      %v1010 = vadd.f32 0.0, %v1009
      %v1011 = vpop.f32.mrb[0].mxu0
      %v1012 = vadd.f32 0.0, %v1011
      %1013 = vmatprep.mubr.bf16.mxu0 0
      %1014 = vmatmul.mubr.bf16.gmra.mrb[0].mxu0 %v867
      %v1015 = vpop.f32.mrb[0].mxu0
      %v1016 = vadd.f32 0.0, %v1015
      %v1017 = vpop.f32.mrb[0].mxu0
      %v1018 = vadd.f32 0.0, %v1017
      %v1019 = vpop.f32.mrb[0].mxu0
      %v1020 = vadd.f32 0.0, %v1019
      %v1021 = vpop.f32.mrb[0].mxu0
      %v1022 = vadd.f32 0.0, %v1021
      %1023 = vmatprep.mubr.bf16.mxu0 0
      %1024 = vmatmul.mubr.bf16.gmra.mrb[0].mxu0 %v870
      %v1025 = vpop.f32.mrb[0].mxu0
      %v1026 = vadd.f32 0.0, %v1025
      %v1027 = vpop.f32.mrb[0].mxu0
      %v1028 = vadd.f32 0.0, %v1027
      %v1029 = vpop.f32.mrb[0].mxu0
      %v1030 = vadd.f32 0.0, %v1029
      %v1031 = vpop.f32.mrb[0].mxu0
      %v1032 = vadd.f32 0.0, %v1031
      %1033 = vmatprep.mubr.bf16.mxu0 0
      %1034 = vmatmul.mubr.bf16.gmra.mrb[0].mxu0 %v873
      %v1035 = vpop.f32.mrb[0].mxu0
      %v1036 = vadd.f32 0.0, %v1035
      %v1037 = vpop.f32.mrb[0].mxu0
      %v1038 = vadd.f32 0.0, %v1037
      %v1039 = vpop.f32.mrb[0].mxu0
      %v1040 = vadd.f32 0.0, %v1039
      %v1041 = vpop.f32.mrb[0].mxu0
      %v1042 = vadd.f32 0.0, %v1041
      %1043 = vmatprep.mubr.bf16.mxu0 0
      %1044 = vmatmul.mubr.bf16.gmra.mrb[0].mxu0 %v876
      %v1045 = vpop.f32.mrb[0].mxu0
      %v1046 = vadd.f32 0.0, %v1045
      %v1047 = vpop.f32.mrb[0].mxu0
      %v1048 = vadd.f32 0.0, %v1047
      %v1049 = vpop.f32.mrb[0].mxu0
      %v1050 = vadd.f32 0.0, %v1049
      %v1051 = vpop.f32.mrb[0].mxu0
      %v1052 = vadd.f32 0.0, %v1051
      %1053 = vmatprep.mubr.bf16.mxu0 0
      %1054 = vmatmul.mubr.bf16.gmra.mrb[0].mxu0 %v879
      %v1055 = vpop.f32.mrb[0].mxu0
      %v1056 = vadd.f32 0.0, %v1055
      %v1057 = vpop.f32.mrb[0].mxu0
      %v1058 = vadd.f32 0.0, %v1057
      %v1059 = vpop.f32.mrb[0].mxu0
      %v1060 = vadd.f32 0.0, %v1059
      %v1061 = vpop.f32.mrb[0].mxu0
      %v1062 = vadd.f32 0.0, %v1061
      %1063 = vmatprep.mubr.bf16.mxu0 0
      %1064 = vmatmul.mubr.bf16.gmra.mrb[0].mxu0 %v882
      %v1065 = vpop.f32.mrb[0].mxu0
      %v1066 = vadd.f32 0.0, %v1065
      %v1067 = vpop.f32.mrb[0].mxu0
      %v1068 = vadd.f32 0.0, %v1067
      %v1069 = vpop.f32.mrb[0].mxu0
      %v1070 = vadd.f32 0.0, %v1069
      %v1071 = vpop.f32.mrb[0].mxu0
      %v1072 = vadd.f32 0.0, %v1071
      %1073 = vmatprep.mubr.bf16.mxu0 0
      %1074 = vmatmul.mubr.bf16.gmra.mrb[0].mxu0 %v885
      %v1075 = vpop.f32.mrb[0].mxu0
      %v1076 = vadd.f32 0.0, %v1075
      %v1077 = vpop.f32.mrb[0].mxu0
      %v1078 = vadd.f32 0.0, %v1077
      %v1079 = vpop.f32.mrb[0].mxu0
      %v1080 = vadd.f32 0.0, %v1079
      %v1081 = vpop.f32.mrb[0].mxu0
      %v1082 = vadd.f32 0.0, %v1081
      %1083 = vmatprep.mubr.bf16.mxu0 0
      %1084 = vmatmul.mubr.bf16.gmra.mrb[0].mxu0 %v888
      %v1085 = vpop.f32.mrb[0].mxu0
      %v1086 = vadd.f32 0.0, %v1085
      %v1087 = vpop.f32.mrb[0].mxu0
      %v1088 = vadd.f32 0.0, %v1087
      %v1089 = vpop.f32.mrb[0].mxu0
      %v1090 = vadd.f32 0.0, %v1089
      %v1091 = vpop.f32.mrb[0].mxu0
      %v1092 = vadd.f32 0.0, %v1091
      %1093 = vmatprep.mubr.bf16.mxu0 0
      %1094 = vmatmul.mubr.bf16.gmra.mrb[0].mxu0 %v891
      %v1095 = vpop.f32.mrb[0].mxu0
      %v1096 = vadd.f32 0.0, %v1095
      %v1097 = vpop.f32.mrb[0].mxu0
      %v1098 = vadd.f32 0.0, %v1097
      %v1099 = vpop.f32.mrb[0].mxu0
      %v1100 = vadd.f32 0.0, %v1099
      %v1101 = vpop.f32.mrb[0].mxu0
      %v1102 = vadd.f32 0.0, %v1101
      %1103 = vmatprep.mubr.bf16.mxu0 0
      %1104 = vmatmul.mubr.bf16.gmra.mrb[0].mxu0 %v894
      %v1105 = vpop.f32.mrb[0].mxu0
      %v1106 = vadd.f32 0.0, %v1105
      %v1107 = vpop.f32.mrb[0].mxu0
      %v1108 = vadd.f32 0.0, %v1107
      %v1109 = vpop.f32.mrb[0].mxu0
      %v1110 = vadd.f32 0.0, %v1109
      %v1111 = vpop.f32.mrb[0].mxu0
      %v1112 = vadd.f32 0.0, %v1111
      %1113 = vmatprep.mubr.bf16.mxu0 0
      %1114 = vmatmul.mubr.bf16.gmra.mrb[0].mxu0 %v897
      %v1115 = vpop.f32.mrb[0].mxu0
      %v1116 = vadd.f32 0.0, %v1115
      %v1117 = vpop.f32.mrb[0].mxu0
      %v1118 = vadd.f32 0.0, %v1117
      %v1119 = vpop.f32.mrb[0].mxu0
      %v1120 = vadd.f32 0.0, %v1119
      %v1121 = vpop.f32.mrb[0].mxu0
      %v1122 = vadd.f32 0.0, %v1121
      %1123 = vmatprep.mubr.bf16.mxu0 0
      %1124 = vmatmul.mubr.bf16.gmra.mrb[0].mxu0 %v900
      %v1125 = vpop.f32.mrb[0].mxu0
      %v1126 = vadd.f32 0.0, %v1125
      %v1127 = vpop.f32.mrb[0].mxu0
      %v1128 = vadd.f32 0.0, %v1127
      %v1129 = vpop.f32.mrb[0].mxu0
      %v1130 = vadd.f32 0.0, %v1129
      %v1131 = vpop.f32.mrb[0].mxu0
      %v1132 = vadd.f32 0.0, %v1131
      %1133 = vmatprep.mubr.bf16.mxu0 0
      %1134 = vmatmul.mubr.bf16.gmra.mrb[0].mxu0 %v903
      %v1135 = vpop.f32.mrb[0].mxu0
      %v1136 = vadd.f32 0.0, %v1135
      %v1137 = vpop.f32.mrb[0].mxu0
      %v1138 = vadd.f32 0.0, %v1137
      %v1139 = vpop.f32.mrb[0].mxu0
      %v1140 = vadd.f32 0.0, %v1139
      %v1141 = vpop.f32.mrb[0].mxu0
      %v1142 = vadd.f32 0.0, %v1141
      %1143 = vmatprep.mubr.bf16.mxu0 0
      %1144 = vmatmul.mubr.bf16.gmra.mrb[0].mxu0 %v906
      %v1145 = vpop.f32.mrb[0].mxu0
      %v1146 = vadd.f32 0.0, %v1145
      %v1147 = vpop.f32.mrb[0].mxu0
      %v1148 = vadd.f32 0.0, %v1147
      %v1149 = vpop.f32.mrb[0].mxu0
      %v1150 = vadd.f32 0.0, %v1149
      %v1151 = vpop.f32.mrb[0].mxu0
      %v1152 = vadd.f32 0.0, %v1151
      %1153 = vmatprep.mubr.bf16.mxu0 0
      %1154 = vmatmul.mubr.bf16.gmra.mrb[0].mxu0 %v909
      %v1155 = vpop.f32.mrb[0].mxu0
      %v1156 = vadd.f32 0.0, %v1155
      %v1157 = vpop.f32.mrb[0].mxu0
      %v1158 = vadd.f32 0.0, %v1157
      %v1159 = vpop.f32.mrb[0].mxu0
      %v1160 = vadd.f32 0.0, %v1159
      %v1161 = vpop.f32.mrb[0].mxu0
      %v1162 = vadd.f32 0.0, %v1161
      %1163 = vmatprep.mubr.bf16.mxu0 0
      %1164 = vmatmul.mubr.bf16.gmra.mrb[0].mxu0 %v912
      %v1165 = vpop.f32.mrb[0].mxu0
      %v1166 = vadd.f32 0.0, %v1165
      %v1167 = vpop.f32.mrb[0].mxu0
      %v1168 = vadd.f32 0.0, %v1167
      %v1169 = vpop.f32.mrb[0].mxu0
      %v1170 = vadd.f32 0.0, %v1169
      %v1171 = vpop.f32.mrb[0].mxu0
      %v1172 = vadd.f32 0.0, %v1171
      %1173 = vmatprep.mubr.bf16.mxu0 0
      %1174 = vmatmul.mubr.bf16.gmra.mrb[0].mxu0 %v915
      %v1175 = vpop.f32.mrb[0].mxu0
      %v1176 = vadd.f32 0.0, %v1175
      %v1177 = vpop.f32.mrb[0].mxu0
      %v1178 = vadd.f32 0.0, %v1177
      %v1179 = vpop.f32.mrb[0].mxu0
      %v1180 = vadd.f32 0.0, %v1179
      %v1181 = vpop.f32.mrb[0].mxu0
      %v1182 = vadd.f32 0.0, %v1181
      %1183 = vmatprep.mubr.bf16.mxu0 0
      %1184 = vmatmul.mubr.bf16.gmra.mrb[0].mxu0 %v918
      %v1185 = vpop.f32.mrb[0].mxu0
      %v1186 = vadd.f32 0.0, %v1185
      %v1187 = vpop.f32.mrb[0].mxu0
      %v1188 = vadd.f32 0.0, %v1187
      %v1189 = vpop.f32.mrb[0].mxu0
      %v1190 = vadd.f32 0.0, %v1189
      %v1191 = vpop.f32.mrb[0].mxu0
      %v1192 = vadd.f32 0.0, %v1191
      %1193 = vmatprep.mubr.bf16.mxu0 0
      %1194 = vmatmul.mubr.bf16.gmra.mrb[0].mxu0 %v921
      %v1195 = vpop.f32.mrb[0].mxu0
      %v1196 = vadd.f32 0.0, %v1195
      %v1197 = vpop.f32.mrb[0].mxu0
      %v1198 = vadd.f32 0.0, %v1197
      %v1199 = vpop.f32.mrb[0].mxu0
      %v1200 = vadd.f32 0.0, %v1199
      %v1201 = vpop.f32.mrb[0].mxu0
      %v1202 = vadd.f32 0.0, %v1201
      %1203 = vmatprep.mubr.bf16.mxu0 0
      %1204 = vmatmul.mubr.bf16.gmra.mrb[0].mxu0 %v924
      %v1205 = vpop.f32.mrb[0].mxu0
      %v1206 = vadd.f32 0.0, %v1205
      %v1207 = vpop.f32.mrb[0].mxu0
      %v1208 = vadd.f32 0.0, %v1207
      %v1209 = vpop.f32.mrb[0].mxu0
      %v1210 = vadd.f32 0.0, %v1209
      %v1211 = vpop.f32.mrb[0].mxu0
      %v1212 = vadd.f32 0.0, %v1211
      %1213 = vmatprep.mubr.bf16.mxu0 0
      %1214 = vmatmul.mubr.bf16.gmra.mrb[0].mxu0 %v927
      %v1215 = vpop.f32.mrb[0].mxu0
      %v1216 = vadd.f32 0.0, %v1215
      %v1217 = vpop.f32.mrb[0].mxu0
      %v1218 = vadd.f32 0.0, %v1217
      %v1219 = vpop.f32.mrb[0].mxu0
      %v1220 = vadd.f32 0.0, %v1219
      %v1221 = vpop.f32.mrb[0].mxu0
      %v1222 = vadd.f32 0.0, %v1221
      %1223 = vmatprep.mubr.bf16.mxu0 0
      %1224 = vmatmul.mubr.bf16.gmra.mrb[0].mxu0 %v930
      %v1225 = vpop.f32.mrb[0].mxu0
      %v1226 = vadd.f32 0.0, %v1225
      %v1227 = vpop.f32.mrb[0].mxu0
      %v1228 = vadd.f32 0.0, %v1227
      %v1229 = vpop.f32.mrb[0].mxu0
      %v1230 = vadd.f32 0.0, %v1229
      %v1231 = vpop.f32.mrb[0].mxu0
      %v1232 = vadd.f32 0.0, %v1231
      %1233 = vmatprep.mubr.bf16.mxu0 0
      %1234 = vmatmul.mubr.bf16.gmra.mrb[0].mxu0 %v933
      %v1235 = vpop.f32.mrb[0].mxu0
      %v1236 = vadd.f32 0.0, %v1235
      %v1237 = vpop.f32.mrb[0].mxu0
      %v1238 = vadd.f32 0.0, %v1237
      %v1239 = vpop.f32.mrb[0].mxu0
      %v1240 = vadd.f32 0.0, %v1239
      %v1241 = vpop.f32.mrb[0].mxu0
      %v1242 = vadd.f32 0.0, %v1241
      %1243 = vmatprep.mubr.bf16.mxu0 0
      %1244 = vmatmul.mubr.bf16.gmra.mrb[0].mxu0 %v936
      %v1245 = vpop.f32.mrb[0].mxu0
      %v1246 = vadd.f32 0.0, %v1245
      %v1247 = vpop.f32.mrb[0].mxu0
      %v1248 = vadd.f32 0.0, %v1247
      %v1249 = vpop.f32.mrb[0].mxu0
      %v1250 = vadd.f32 0.0, %v1249
      %v1251 = vpop.f32.mrb[0].mxu0
      %v1252 = vadd.f32 0.0, %v1251
      %1253 = vmatprep.mubr.bf16.mxu0 0
      %1254 = vmatmul.mubr.bf16.gmra.mrb[0].mxu0 %v939
      %v1255 = vpop.f32.mrb[0].mxu0
      %v1256 = vadd.f32 0.0, %v1255
      %v1257 = vpop.f32.mrb[0].mxu0
      %v1258 = vadd.f32 0.0, %v1257
      %v1259 = vpop.f32.mrb[0].mxu0
      %v1260 = vadd.f32 0.0, %v1259
      %v1261 = vpop.f32.mrb[0].mxu0
      %v1262 = vadd.f32 0.0, %v1261
      %1263 = vmatprep.mubr.bf16.mxu0 0
      %1264 = vmatmul.mubr.bf16.gmra.mrb[0].mxu0 %v942
      %v1265 = vpop.f32.mrb[0].mxu0
      %v1266 = vadd.f32 0.0, %v1265
      %v1267 = vpop.f32.mrb[0].mxu0
      %v1268 = vadd.f32 0.0, %v1267
      %v1269 = vpop.f32.mrb[0].mxu0
      %v1270 = vadd.f32 0.0, %v1269
      %v1271 = vpop.f32.mrb[0].mxu0
      %v1272 = vadd.f32 0.0, %v1271
      %1273 = vmatprep.mubr.bf16.mxu0 0
      %1274 = vmatmul.mubr.bf16.gmra.mrb[0].mxu0 %v945
      %v1275 = vpop.f32.mrb[0].mxu0
      %v1276 = vadd.f32 0.0, %v1275
      %v1277 = vpop.f32.mrb[0].mxu0
      %v1278 = vadd.f32 0.0, %v1277
      %v1279 = vpop.f32.mrb[0].mxu0
      %v1280 = vadd.f32 0.0, %v1279
      %v1281 = vpop.f32.mrb[0].mxu0
      %v1282 = vadd.f32 0.0, %v1281
      %1283 = vmatprep.mubr.bf16.mxu0 0
      %1284 = vmatmul.mubr.bf16.gmra.mrb[0].mxu0 %v948
      %v1285 = vpop.f32.mrb[0].mxu0
      %v1286 = vadd.f32 0.0, %v1285
      %v1287 = vpop.f32.mrb[0].mxu0
      %v1288 = vadd.f32 0.0, %v1287
      %v1289 = vpop.f32.mrb[0].mxu0
      %v1290 = vadd.f32 0.0, %v1289
      %v1291 = vpop.f32.mrb[0].mxu0
      %v1292 = vadd.f32 0.0, %v1291
      %1293 = vmatprep.mubr.bf16.mxu0 0
      %1294 = vmatmul.mubr.bf16.gmra.mrb[0].mxu0 %v951
      %v1295 = vpop.f32.mrb[0].mxu0
      %v1296 = vadd.f32 0.0, %v1295
      %v1297 = vpop.f32.mrb[0].mxu0
      %v1298 = vadd.f32 0.0, %v1297
      %v1299 = vpop.f32.mrb[0].mxu0
      %v1300 = vadd.f32 0.0, %v1299
      %v1301 = vpop.f32.mrb[0].mxu0
      %v1302 = vadd.f32 0.0, %v1301
      %1303 = vmatprep.mubr.bf16.mxu0 0
      %1304 = vmatmul.mubr.bf16.gmra.mrb[0].mxu0 %v954
      %v1305 = vpop.f32.mrb[0].mxu0
      %v1306 = vadd.f32 0.0, %v1305
      %v1307 = vpop.f32.mrb[0].mxu0
      %v1308 = vadd.f32 0.0, %v1307
      %v1309 = vpop.f32.mrb[0].mxu0
      %v1310 = vadd.f32 0.0, %v1309
      %v1311 = vpop.f32.mrb[0].mxu0
      %v1312 = vadd.f32 0.0, %v1311
      %1313 = vmatprep.mubr.bf16.mxu0 0
      %1314 = vmatmul.mubr.bf16.gmra.mrb[0].mxu0 %v957
      %v1315 = vpop.f32.mrb[0].mxu0
      %v1316 = vadd.f32 0.0, %v1315
      %v1317 = vpop.f32.mrb[0].mxu0
      %v1318 = vadd.f32 0.0, %v1317
      %v1319 = vpop.f32.mrb[0].mxu0
      %v1320 = vadd.f32 0.0, %v1319
      %v1321 = vpop.f32.mrb[0].mxu0
      %v1322 = vadd.f32 0.0, %v1321
      %1323 = vmatprep.mubr.bf16.mxu0 0
      %1324 = vmatmul.mubr.bf16.gmra.mrb[0].mxu0 %v960
      %v1325 = vpop.f32.mrb[0].mxu0
      %v1326 = vadd.f32 0.0, %v1325
      %v1327 = vpop.f32.mrb[0].mxu0
      %v1328 = vadd.f32 0.0, %v1327
      %v1329 = vpop.f32.mrb[0].mxu0
      %v1330 = vadd.f32 0.0, %v1329
      %v1331 = vpop.f32.mrb[0].mxu0
      %v1332 = vadd.f32 0.0, %v1331
      %1333 = vmatprep.mubr.bf16.mxu0 0
      %1334 = vmatmul.mubr.bf16.gmra.mrb[0].mxu0 %v963
      %v1335 = vpop.f32.mrb[0].mxu0
      %v1336 = vadd.f32 0.0, %v1335
      %v1337 = vpop.f32.mrb[0].mxu0
      %v1338 = vadd.f32 0.0, %v1337
      %v1339 = vpop.f32.mrb[0].mxu0
      %v1340 = vadd.f32 0.0, %v1339
      %v1341 = vpop.f32.mrb[0].mxu0
      %v1342 = vadd.f32 0.0, %v1341
      %1343 = vmatprep.mubr.bf16.mxu0 0
      %1344 = vmatmul.mubr.bf16.gmra.mrb[0].mxu0 %v966
      %v1345 = vpop.f32.mrb[0].mxu0
      %v1346 = vadd.f32 0.0, %v1345
      %v1347 = vpop.f32.mrb[0].mxu0
      %v1348 = vadd.f32 0.0, %v1347
      %v1349 = vpop.f32.mrb[0].mxu0
      %v1350 = vadd.f32 0.0, %v1349
      %v1351 = vpop.f32.mrb[0].mxu0
      %v1352 = vadd.f32 0.0, %v1351
      %1353 = vmatprep.mubr.bf16.mxu0 0
      %1354 = vmatmul.mubr.bf16.gmra.mrb[0].mxu0 %v969
      %v1355 = vpop.f32.mrb[0].mxu0
      %v1356 = vadd.f32 0.0, %v1355
      %v1357 = vpop.f32.mrb[0].mxu0
      %v1358 = vadd.f32 0.0, %v1357
      %v1359 = vpop.f32.mrb[0].mxu0
      %v1360 = vadd.f32 0.0, %v1359
      %v1361 = vpop.f32.mrb[0].mxu0
      %v1362 = vadd.f32 0.0, %v1361
      %1363 = vdwg.mxu0
      %1364 = vmatprep.subr.bf16.mxu0 %v737
      %1365 = vmatpush1.bf16.msra.mxu0 %v736
      %1366 = vmatprep.subr.bf16.mxu0 %v753
      %1367 = vmatpush1.bf16.msra.mxu0 %v752
      %1368 = vmatprep.subr.bf16.mxu0 %v769
      %1369 = vmatpush1.bf16.msra.mxu0 %v768
      %1370 = vmatprep.subr.bf16.mxu0 %v785
      %1371 = vmatpush1.bf16.msra.mxu0 %v784
      %1372 = vmatprep.subr.bf16.mxu0 0
      %1373 = vmatpush1.bf16.msra.mxu0 0
      %1374 = vmatprep.subr.bf16.mxu0 0
      %1375 = vmatpush1.bf16.msra.mxu0 0
      %1376 = vmatprep.subr.bf16.mxu0 0
      %1377 = vmatpush1.bf16.msra.mxu0 0
      %1378 = vmatprep.subr.bf16.mxu0 0
      %1379 = vmatpush1.bf16.msra.mxu0 0
      %1380 = vmatprep.subr.bf16.mxu0 0
      %1381 = vmatpush1.bf16.msra.mxu0 0
      %1382 = vmatprep.subr.bf16.mxu0 0
      %1383 = vmatpush1.bf16.msra.mxu0 0
      %1384 = vmatprep.subr.bf16.mxu0 0
      %1385 = vmatpush1.bf16.msra.mxu0 0
      %1386 = vmatprep.subr.bf16.mxu0 0
      %1387 = vmatpush1.bf16.msra.mxu0 0
      %1388 = vmatprep.subr.bf16.mxu0 0
      %1389 = vmatpush1.bf16.msra.mxu0 0
      %1390 = vmatprep.subr.bf16.mxu0 0
      %1391 = vmatpush1.bf16.msra.mxu0 0
      %1392 = vmatprep.subr.bf16.mxu0 0
      %1393 = vmatpush1.bf16.msra.mxu0 0
      %1394 = vmatprep.subr.bf16.mxu0 0
      %1395 = vmatpush1.bf16.msra.mxu0 0
      %1396 = vmatprep.mubr.bf16.mxu0 0
      %1397 = vmatmul.mubr.bf16.gmra.mrb[0].mxu0 %v864
      %v1398 = vpop.f32.mrb[0].mxu0
      %v1399 = vadd.f32 0.0, %v1398
      %v1400 = vpop.f32.mrb[0].mxu0
      %v1401 = vadd.f32 0.0, %v1400
      %v1402 = vpop.f32.mrb[0].mxu0
      %v1403 = vadd.f32 0.0, %v1402
      %v1404 = vpop.f32.mrb[0].mxu0
      %v1405 = vadd.f32 0.0, %v1404
      %1406 = vmatprep.mubr.bf16.mxu0 0
      %1407 = vmatmul.mubr.bf16.gmra.mrb[0].mxu0 %v867
      %v1408 = vpop.f32.mrb[0].mxu0
      %v1409 = vadd.f32 0.0, %v1408
      %v1410 = vpop.f32.mrb[0].mxu0
      %v1411 = vadd.f32 0.0, %v1410
      %v1412 = vpop.f32.mrb[0].mxu0
      %v1413 = vadd.f32 0.0, %v1412
      %v1414 = vpop.f32.mrb[0].mxu0
      %v1415 = vadd.f32 0.0, %v1414
      %1416 = vmatprep.mubr.bf16.mxu0 0
      %1417 = vmatmul.mubr.bf16.gmra.mrb[0].mxu0 %v870
      %v1418 = vpop.f32.mrb[0].mxu0
      %v1419 = vadd.f32 0.0, %v1418
      %v1420 = vpop.f32.mrb[0].mxu0
      %v1421 = vadd.f32 0.0, %v1420
      %v1422 = vpop.f32.mrb[0].mxu0
      %v1423 = vadd.f32 0.0, %v1422
      %v1424 = vpop.f32.mrb[0].mxu0
      %v1425 = vadd.f32 0.0, %v1424
      %1426 = vmatprep.mubr.bf16.mxu0 0
      %1427 = vmatmul.mubr.bf16.gmra.mrb[0].mxu0 %v873
      %v1428 = vpop.f32.mrb[0].mxu0
      %v1429 = vadd.f32 0.0, %v1428
      %v1430 = vpop.f32.mrb[0].mxu0
      %v1431 = vadd.f32 0.0, %v1430
      %v1432 = vpop.f32.mrb[0].mxu0
      %v1433 = vadd.f32 0.0, %v1432
      %v1434 = vpop.f32.mrb[0].mxu0
      %v1435 = vadd.f32 0.0, %v1434
      %1436 = vmatprep.mubr.bf16.mxu0 0
      %1437 = vmatmul.mubr.bf16.gmra.mrb[0].mxu0 %v876
      %v1438 = vpop.f32.mrb[0].mxu0
      %v1439 = vadd.f32 0.0, %v1438
      %v1440 = vpop.f32.mrb[0].mxu0
      %v1441 = vadd.f32 0.0, %v1440
      %v1442 = vpop.f32.mrb[0].mxu0
      %v1443 = vadd.f32 0.0, %v1442
      %v1444 = vpop.f32.mrb[0].mxu0
      %v1445 = vadd.f32 0.0, %v1444
      %1446 = vmatprep.mubr.bf16.mxu0 0
      %1447 = vmatmul.mubr.bf16.gmra.mrb[0].mxu0 %v879
      %v1448 = vpop.f32.mrb[0].mxu0
      %v1449 = vadd.f32 0.0, %v1448
      %v1450 = vpop.f32.mrb[0].mxu0
      %v1451 = vadd.f32 0.0, %v1450
      %v1452 = vpop.f32.mrb[0].mxu0
      %v1453 = vadd.f32 0.0, %v1452
      %v1454 = vpop.f32.mrb[0].mxu0
      %v1455 = vadd.f32 0.0, %v1454
      %1456 = vmatprep.mubr.bf16.mxu0 0
      %1457 = vmatmul.mubr.bf16.gmra.mrb[0].mxu0 %v882
      %v1458 = vpop.f32.mrb[0].mxu0
      %v1459 = vadd.f32 0.0, %v1458
      %v1460 = vpop.f32.mrb[0].mxu0
      %v1461 = vadd.f32 0.0, %v1460
      %v1462 = vpop.f32.mrb[0].mxu0
      %v1463 = vadd.f32 0.0, %v1462
      %v1464 = vpop.f32.mrb[0].mxu0
      %v1465 = vadd.f32 0.0, %v1464
      %1466 = vmatprep.mubr.bf16.mxu0 0
      %1467 = vmatmul.mubr.bf16.gmra.mrb[0].mxu0 %v885
      %v1468 = vpop.f32.mrb[0].mxu0
      %v1469 = vadd.f32 0.0, %v1468
      %v1470 = vpop.f32.mrb[0].mxu0
      %v1471 = vadd.f32 0.0, %v1470
      %v1472 = vpop.f32.mrb[0].mxu0
      %v1473 = vadd.f32 0.0, %v1472
      %v1474 = vpop.f32.mrb[0].mxu0
      %v1475 = vadd.f32 0.0, %v1474
      %1476 = vmatprep.mubr.bf16.mxu0 0
      %1477 = vmatmul.mubr.bf16.gmra.mrb[0].mxu0 %v888
      %v1478 = vpop.f32.mrb[0].mxu0
      %v1479 = vadd.f32 0.0, %v1478
      %v1480 = vpop.f32.mrb[0].mxu0
      %v1481 = vadd.f32 0.0, %v1480
      %v1482 = vpop.f32.mrb[0].mxu0
      %v1483 = vadd.f32 0.0, %v1482
      %v1484 = vpop.f32.mrb[0].mxu0
      %v1485 = vadd.f32 0.0, %v1484
      %1486 = vmatprep.mubr.bf16.mxu0 0
      %1487 = vmatmul.mubr.bf16.gmra.mrb[0].mxu0 %v891
      %v1488 = vpop.f32.mrb[0].mxu0
      %v1489 = vadd.f32 0.0, %v1488
      %v1490 = vpop.f32.mrb[0].mxu0
      %v1491 = vadd.f32 0.0, %v1490
      %v1492 = vpop.f32.mrb[0].mxu0
      %v1493 = vadd.f32 0.0, %v1492
      %v1494 = vpop.f32.mrb[0].mxu0
      %v1495 = vadd.f32 0.0, %v1494
      %1496 = vmatprep.mubr.bf16.mxu0 0
      %1497 = vmatmul.mubr.bf16.gmra.mrb[0].mxu0 %v894
      %v1498 = vpop.f32.mrb[0].mxu0
      %v1499 = vadd.f32 0.0, %v1498
      %v1500 = vpop.f32.mrb[0].mxu0
      %v1501 = vadd.f32 0.0, %v1500
      %v1502 = vpop.f32.mrb[0].mxu0
      %v1503 = vadd.f32 0.0, %v1502
      %v1504 = vpop.f32.mrb[0].mxu0
      %v1505 = vadd.f32 0.0, %v1504
      %1506 = vmatprep.mubr.bf16.mxu0 0
      %1507 = vmatmul.mubr.bf16.gmra.mrb[0].mxu0 %v897
      %v1508 = vpop.f32.mrb[0].mxu0
      %v1509 = vadd.f32 0.0, %v1508
      %v1510 = vpop.f32.mrb[0].mxu0
      %v1511 = vadd.f32 0.0, %v1510
      %v1512 = vpop.f32.mrb[0].mxu0
      %v1513 = vadd.f32 0.0, %v1512
      %v1514 = vpop.f32.mrb[0].mxu0
      %v1515 = vadd.f32 0.0, %v1514
      %1516 = vmatprep.mubr.bf16.mxu0 0
      %1517 = vmatmul.mubr.bf16.gmra.mrb[0].mxu0 %v900
      %v1518 = vpop.f32.mrb[0].mxu0
      %v1519 = vadd.f32 0.0, %v1518
      %v1520 = vpop.f32.mrb[0].mxu0
      %v1521 = vadd.f32 0.0, %v1520
      %v1522 = vpop.f32.mrb[0].mxu0
      %v1523 = vadd.f32 0.0, %v1522
      %v1524 = vpop.f32.mrb[0].mxu0
      %v1525 = vadd.f32 0.0, %v1524
      %1526 = vmatprep.mubr.bf16.mxu0 0
      %1527 = vmatmul.mubr.bf16.gmra.mrb[0].mxu0 %v903
      %v1528 = vpop.f32.mrb[0].mxu0
      %v1529 = vadd.f32 0.0, %v1528
      %v1530 = vpop.f32.mrb[0].mxu0
      %v1531 = vadd.f32 0.0, %v1530
      %v1532 = vpop.f32.mrb[0].mxu0
      %v1533 = vadd.f32 0.0, %v1532
      %v1534 = vpop.f32.mrb[0].mxu0
      %v1535 = vadd.f32 0.0, %v1534
      %1536 = vmatprep.mubr.bf16.mxu0 0
      %1537 = vmatmul.mubr.bf16.gmra.mrb[0].mxu0 %v906
      %v1538 = vpop.f32.mrb[0].mxu0
      %v1539 = vadd.f32 0.0, %v1538
      %v1540 = vpop.f32.mrb[0].mxu0
      %v1541 = vadd.f32 0.0, %v1540
      %v1542 = vpop.f32.mrb[0].mxu0
      %v1543 = vadd.f32 0.0, %v1542
      %v1544 = vpop.f32.mrb[0].mxu0
      %v1545 = vadd.f32 0.0, %v1544
      %1546 = vmatprep.mubr.bf16.mxu0 0
      %1547 = vmatmul.mubr.bf16.gmra.mrb[0].mxu0 %v909
      %v1548 = vpop.f32.mrb[0].mxu0
      %v1549 = vadd.f32 0.0, %v1548
      %v1550 = vpop.f32.mrb[0].mxu0
      %v1551 = vadd.f32 0.0, %v1550
      %v1552 = vpop.f32.mrb[0].mxu0
      %v1553 = vadd.f32 0.0, %v1552
      %v1554 = vpop.f32.mrb[0].mxu0
      %v1555 = vadd.f32 0.0, %v1554
      %1556 = vmatprep.mubr.bf16.mxu0 0
      %1557 = vmatmul.mubr.bf16.gmra.mrb[0].mxu0 %v912
      %v1558 = vpop.f32.mrb[0].mxu0
      %v1559 = vadd.f32 0.0, %v1558
      %v1560 = vpop.f32.mrb[0].mxu0
      %v1561 = vadd.f32 0.0, %v1560
      %v1562 = vpop.f32.mrb[0].mxu0
      %v1563 = vadd.f32 0.0, %v1562
      %v1564 = vpop.f32.mrb[0].mxu0
      %v1565 = vadd.f32 0.0, %v1564
      %1566 = vmatprep.mubr.bf16.mxu0 0
      %1567 = vmatmul.mubr.bf16.gmra.mrb[0].mxu0 %v915
      %v1568 = vpop.f32.mrb[0].mxu0
      %v1569 = vadd.f32 0.0, %v1568
      %v1570 = vpop.f32.mrb[0].mxu0
      %v1571 = vadd.f32 0.0, %v1570
      %v1572 = vpop.f32.mrb[0].mxu0
      %v1573 = vadd.f32 0.0, %v1572
      %v1574 = vpop.f32.mrb[0].mxu0
      %v1575 = vadd.f32 0.0, %v1574
      %1576 = vmatprep.mubr.bf16.mxu0 0
      %1577 = vmatmul.mubr.bf16.gmra.mrb[0].mxu0 %v918
      %v1578 = vpop.f32.mrb[0].mxu0
      %v1579 = vadd.f32 0.0, %v1578
      %v1580 = vpop.f32.mrb[0].mxu0
      %v1581 = vadd.f32 0.0, %v1580
      %v1582 = vpop.f32.mrb[0].mxu0
      %v1583 = vadd.f32 0.0, %v1582
      %v1584 = vpop.f32.mrb[0].mxu0
      %v1585 = vadd.f32 0.0, %v1584
      %1586 = vmatprep.mubr.bf16.mxu0 0
      %1587 = vmatmul.mubr.bf16.gmra.mrb[0].mxu0 %v921
      %v1588 = vpop.f32.mrb[0].mxu0
      %v1589 = vadd.f32 0.0, %v1588
      %v1590 = vpop.f32.mrb[0].mxu0
      %v1591 = vadd.f32 0.0, %v1590
      %v1592 = vpop.f32.mrb[0].mxu0
      %v1593 = vadd.f32 0.0, %v1592
      %v1594 = vpop.f32.mrb[0].mxu0
      %v1595 = vadd.f32 0.0, %v1594
      %1596 = vmatprep.mubr.bf16.mxu0 0
      %1597 = vmatmul.mubr.bf16.gmra.mrb[0].mxu0 %v924
      %v1598 = vpop.f32.mrb[0].mxu0
      %v1599 = vadd.f32 0.0, %v1598
      %v1600 = vpop.f32.mrb[0].mxu0
      %v1601 = vadd.f32 0.0, %v1600
      %v1602 = vpop.f32.mrb[0].mxu0
      %v1603 = vadd.f32 0.0, %v1602
      %v1604 = vpop.f32.mrb[0].mxu0
      %v1605 = vadd.f32 0.0, %v1604
      %1606 = vmatprep.mubr.bf16.mxu0 0
      %1607 = vmatmul.mubr.bf16.gmra.mrb[0].mxu0 %v927
      %v1608 = vpop.f32.mrb[0].mxu0
      %v1609 = vadd.f32 0.0, %v1608
      %v1610 = vpop.f32.mrb[0].mxu0
      %v1611 = vadd.f32 0.0, %v1610
      %v1612 = vpop.f32.mrb[0].mxu0
      %v1613 = vadd.f32 0.0, %v1612
      %v1614 = vpop.f32.mrb[0].mxu0
      %v1615 = vadd.f32 0.0, %v1614
      %1616 = vmatprep.mubr.bf16.mxu0 0
      %1617 = vmatmul.mubr.bf16.gmra.mrb[0].mxu0 %v930
      %v1618 = vpop.f32.mrb[0].mxu0
      %v1619 = vadd.f32 0.0, %v1618
      %v1620 = vpop.f32.mrb[0].mxu0
      %v1621 = vadd.f32 0.0, %v1620
      %v1622 = vpop.f32.mrb[0].mxu0
      %v1623 = vadd.f32 0.0, %v1622
      %v1624 = vpop.f32.mrb[0].mxu0
      %v1625 = vadd.f32 0.0, %v1624
      %1626 = vmatprep.mubr.bf16.mxu0 0
      %1627 = vmatmul.mubr.bf16.gmra.mrb[0].mxu0 %v933
      %v1628 = vpop.f32.mrb[0].mxu0
      %v1629 = vadd.f32 0.0, %v1628
      %v1630 = vpop.f32.mrb[0].mxu0
      %v1631 = vadd.f32 0.0, %v1630
      %v1632 = vpop.f32.mrb[0].mxu0
      %v1633 = vadd.f32 0.0, %v1632
      %v1634 = vpop.f32.mrb[0].mxu0
      %v1635 = vadd.f32 0.0, %v1634
      %1636 = vmatprep.mubr.bf16.mxu0 0
      %1637 = vmatmul.mubr.bf16.gmra.mrb[0].mxu0 %v936
      %v1638 = vpop.f32.mrb[0].mxu0
      %v1639 = vadd.f32 0.0, %v1638
      %v1640 = vpop.f32.mrb[0].mxu0
      %v1641 = vadd.f32 0.0, %v1640
      %v1642 = vpop.f32.mrb[0].mxu0
      %v1643 = vadd.f32 0.0, %v1642
      %v1644 = vpop.f32.mrb[0].mxu0
      %v1645 = vadd.f32 0.0, %v1644
      %1646 = vmatprep.mubr.bf16.mxu0 0
      %1647 = vmatmul.mubr.bf16.gmra.mrb[0].mxu0 %v939
      %v1648 = vpop.f32.mrb[0].mxu0
      %v1649 = vadd.f32 0.0, %v1648
      %v1650 = vpop.f32.mrb[0].mxu0
      %v1651 = vadd.f32 0.0, %v1650
      %v1652 = vpop.f32.mrb[0].mxu0
      %v1653 = vadd.f32 0.0, %v1652
      %v1654 = vpop.f32.mrb[0].mxu0
      %v1655 = vadd.f32 0.0, %v1654
      %1656 = vmatprep.mubr.bf16.mxu0 0
      %1657 = vmatmul.mubr.bf16.gmra.mrb[0].mxu0 %v942
      %v1658 = vpop.f32.mrb[0].mxu0
      %v1659 = vadd.f32 0.0, %v1658
      %v1660 = vpop.f32.mrb[0].mxu0
      %v1661 = vadd.f32 0.0, %v1660
      %v1662 = vpop.f32.mrb[0].mxu0
      %v1663 = vadd.f32 0.0, %v1662
      %v1664 = vpop.f32.mrb[0].mxu0
      %v1665 = vadd.f32 0.0, %v1664
      %1666 = vmatprep.mubr.bf16.mxu0 0
      %1667 = vmatmul.mubr.bf16.gmra.mrb[0].mxu0 %v945
      %v1668 = vpop.f32.mrb[0].mxu0
      %v1669 = vadd.f32 0.0, %v1668
      %v1670 = vpop.f32.mrb[0].mxu0
      %v1671 = vadd.f32 0.0, %v1670
      %v1672 = vpop.f32.mrb[0].mxu0
      %v1673 = vadd.f32 0.0, %v1672
      %v1674 = vpop.f32.mrb[0].mxu0
      %v1675 = vadd.f32 0.0, %v1674
      %1676 = vmatprep.mubr.bf16.mxu0 0
      %1677 = vmatmul.mubr.bf16.gmra.mrb[0].mxu0 %v948
      %v1678 = vpop.f32.mrb[0].mxu0
      %v1679 = vadd.f32 0.0, %v1678
      %v1680 = vpop.f32.mrb[0].mxu0
      %v1681 = vadd.f32 0.0, %v1680
      %v1682 = vpop.f32.mrb[0].mxu0
      %v1683 = vadd.f32 0.0, %v1682
      %v1684 = vpop.f32.mrb[0].mxu0
      %v1685 = vadd.f32 0.0, %v1684
      %1686 = vmatprep.mubr.bf16.mxu0 0
      %1687 = vmatmul.mubr.bf16.gmra.mrb[0].mxu0 %v951
      %v1688 = vpop.f32.mrb[0].mxu0
      %v1689 = vadd.f32 0.0, %v1688
      %v1690 = vpop.f32.mrb[0].mxu0
      %v1691 = vadd.f32 0.0, %v1690
      %v1692 = vpop.f32.mrb[0].mxu0
      %v1693 = vadd.f32 0.0, %v1692
      %v1694 = vpop.f32.mrb[0].mxu0
      %v1695 = vadd.f32 0.0, %v1694
      %1696 = vmatprep.mubr.bf16.mxu0 0
      %1697 = vmatmul.mubr.bf16.gmra.mrb[0].mxu0 %v954
      %v1698 = vpop.f32.mrb[0].mxu0
      %v1699 = vadd.f32 0.0, %v1698
      %v1700 = vpop.f32.mrb[0].mxu0
      %v1701 = vadd.f32 0.0, %v1700
      %v1702 = vpop.f32.mrb[0].mxu0
      %v1703 = vadd.f32 0.0, %v1702
      %v1704 = vpop.f32.mrb[0].mxu0
      %v1705 = vadd.f32 0.0, %v1704
      %1706 = vmatprep.mubr.bf16.mxu0 0
      %1707 = vmatmul.mubr.bf16.gmra.mrb[0].mxu0 %v957
      %v1708 = vpop.f32.mrb[0].mxu0
      %v1709 = vadd.f32 0.0, %v1708
      %v1710 = vpop.f32.mrb[0].mxu0
      %v1711 = vadd.f32 0.0, %v1710
      %v1712 = vpop.f32.mrb[0].mxu0
      %v1713 = vadd.f32 0.0, %v1712
      %v1714 = vpop.f32.mrb[0].mxu0
      %v1715 = vadd.f32 0.0, %v1714
      %1716 = vmatprep.mubr.bf16.mxu0 0
      %1717 = vmatmul.mubr.bf16.gmra.mrb[0].mxu0 %v960
      %v1718 = vpop.f32.mrb[0].mxu0
      %v1719 = vadd.f32 0.0, %v1718
      %v1720 = vpop.f32.mrb[0].mxu0
      %v1721 = vadd.f32 0.0, %v1720
      %v1722 = vpop.f32.mrb[0].mxu0
      %v1723 = vadd.f32 0.0, %v1722
      %v1724 = vpop.f32.mrb[0].mxu0
      %v1725 = vadd.f32 0.0, %v1724
      %1726 = vmatprep.mubr.bf16.mxu0 0
      %1727 = vmatmul.mubr.bf16.gmra.mrb[0].mxu0 %v963
      %v1728 = vpop.f32.mrb[0].mxu0
      %v1729 = vadd.f32 0.0, %v1728
      %v1730 = vpop.f32.mrb[0].mxu0
      %v1731 = vadd.f32 0.0, %v1730
      %v1732 = vpop.f32.mrb[0].mxu0
      %v1733 = vadd.f32 0.0, %v1732
      %v1734 = vpop.f32.mrb[0].mxu0
      %v1735 = vadd.f32 0.0, %v1734
      %1736 = vmatprep.mubr.bf16.mxu0 0
      %1737 = vmatmul.mubr.bf16.gmra.mrb[0].mxu0 %v966
      %v1738 = vpop.f32.mrb[0].mxu0
      %v1739 = vadd.f32 0.0, %v1738
      %v1740 = vpop.f32.mrb[0].mxu0
      %v1741 = vadd.f32 0.0, %v1740
      %v1742 = vpop.f32.mrb[0].mxu0
      %v1743 = vadd.f32 0.0, %v1742
      %v1744 = vpop.f32.mrb[0].mxu0
      %v1745 = vadd.f32 0.0, %v1744
      %1746 = vmatprep.mubr.bf16.mxu0 0
      %1747 = vmatmul.mubr.bf16.gmra.mrb[0].mxu0 %v969
      %v1748 = vpop.f32.mrb[0].mxu0
      %v1749 = vadd.f32 0.0, %v1748
      %v1750 = vpop.f32.mrb[0].mxu0
      %v1751 = vadd.f32 0.0, %v1750
      %v1752 = vpop.f32.mrb[0].mxu0
      %v1753 = vadd.f32 0.0, %v1752
      %v1754 = vpop.f32.mrb[0].mxu0
      %v1755 = vadd.f32 0.0, %v1754
      %1756 = vdwg.mxu0
      %1757 = vmatprep.subr.bf16.mxu0 %v739
      %1758 = vmatpush1.bf16.msra.mxu0 %v738
      %1759 = vmatprep.subr.bf16.mxu0 %v755
      %1760 = vmatpush1.bf16.msra.mxu0 %v754
      %1761 = vmatprep.subr.bf16.mxu0 %v771
      %1762 = vmatpush1.bf16.msra.mxu0 %v770
      %1763 = vmatprep.subr.bf16.mxu0 %v787
      %1764 = vmatpush1.bf16.msra.mxu0 %v786
      %1765 = vmatprep.subr.bf16.mxu0 0
      %1766 = vmatpush1.bf16.msra.mxu0 0
      %1767 = vmatprep.subr.bf16.mxu0 0
      %1768 = vmatpush1.bf16.msra.mxu0 0
      %1769 = vmatprep.subr.bf16.mxu0 0
      %1770 = vmatpush1.bf16.msra.mxu0 0
      %1771 = vmatprep.subr.bf16.mxu0 0
      %1772 = vmatpush1.bf16.msra.mxu0 0
      %1773 = vmatprep.subr.bf16.mxu0 0
      %1774 = vmatpush1.bf16.msra.mxu0 0
      %1775 = vmatprep.subr.bf16.mxu0 0
      %1776 = vmatpush1.bf16.msra.mxu0 0
      %1777 = vmatprep.subr.bf16.mxu0 0
      %1778 = vmatpush1.bf16.msra.mxu0 0
      %1779 = vmatprep.subr.bf16.mxu0 0
      %1780 = vmatpush1.bf16.msra.mxu0 0
      %1781 = vmatprep.subr.bf16.mxu0 0
      %1782 = vmatpush1.bf16.msra.mxu0 0
      %1783 = vmatprep.subr.bf16.mxu0 0
      %1784 = vmatpush1.bf16.msra.mxu0 0
      %1785 = vmatprep.subr.bf16.mxu0 0
      %1786 = vmatpush1.bf16.msra.mxu0 0
      %1787 = vmatprep.subr.bf16.mxu0 0
      %1788 = vmatpush1.bf16.msra.mxu0 0
      %1789 = vmatprep.mubr.bf16.mxu0 0
      %1790 = vmatmul.mubr.bf16.gmra.mrb[0].mxu0 %v864
      %v1791 = vpop.f32.mrb[0].mxu0
      %v1792 = vadd.f32 0.0, %v1791
      %v1793 = vpop.f32.mrb[0].mxu0
      %v1794 = vadd.f32 0.0, %v1793
      %v1795 = vpop.f32.mrb[0].mxu0
      %v1796 = vadd.f32 0.0, %v1795
      %v1797 = vpop.f32.mrb[0].mxu0
      %v1798 = vadd.f32 0.0, %v1797
      %1799 = vmatprep.mubr.bf16.mxu0 0
      %1800 = vmatmul.mubr.bf16.gmra.mrb[0].mxu0 %v867
      %v1801 = vpop.f32.mrb[0].mxu0
      %v1802 = vadd.f32 0.0, %v1801
      %v1803 = vpop.f32.mrb[0].mxu0
      %v1804 = vadd.f32 0.0, %v1803
      %v1805 = vpop.f32.mrb[0].mxu0
      %v1806 = vadd.f32 0.0, %v1805
      %v1807 = vpop.f32.mrb[0].mxu0
      %v1808 = vadd.f32 0.0, %v1807
      %1809 = vmatprep.mubr.bf16.mxu0 0
      %1810 = vmatmul.mubr.bf16.gmra.mrb[0].mxu0 %v870
      %v1811 = vpop.f32.mrb[0].mxu0
      %v1812 = vadd.f32 0.0, %v1811
      %v1813 = vpop.f32.mrb[0].mxu0
      %v1814 = vadd.f32 0.0, %v1813
      %v1815 = vpop.f32.mrb[0].mxu0
      %v1816 = vadd.f32 0.0, %v1815
      %v1817 = vpop.f32.mrb[0].mxu0
      %v1818 = vadd.f32 0.0, %v1817
      %1819 = vmatprep.mubr.bf16.mxu0 0
      %1820 = vmatmul.mubr.bf16.gmra.mrb[0].mxu0 %v873
      %v1821 = vpop.f32.mrb[0].mxu0
      %v1822 = vadd.f32 0.0, %v1821
      %v1823 = vpop.f32.mrb[0].mxu0
      %v1824 = vadd.f32 0.0, %v1823
      %v1825 = vpop.f32.mrb[0].mxu0
      %v1826 = vadd.f32 0.0, %v1825
      %v1827 = vpop.f32.mrb[0].mxu0
      %v1828 = vadd.f32 0.0, %v1827
      %1829 = vmatprep.mubr.bf16.mxu0 0
      %1830 = vmatmul.mubr.bf16.gmra.mrb[0].mxu0 %v876
      %v1831 = vpop.f32.mrb[0].mxu0
      %v1832 = vadd.f32 0.0, %v1831
      %v1833 = vpop.f32.mrb[0].mxu0
      %v1834 = vadd.f32 0.0, %v1833
      %v1835 = vpop.f32.mrb[0].mxu0
      %v1836 = vadd.f32 0.0, %v1835
      %v1837 = vpop.f32.mrb[0].mxu0
      %v1838 = vadd.f32 0.0, %v1837
      %1839 = vmatprep.mubr.bf16.mxu0 0
      %1840 = vmatmul.mubr.bf16.gmra.mrb[0].mxu0 %v879
      %v1841 = vpop.f32.mrb[0].mxu0
      %v1842 = vadd.f32 0.0, %v1841
      %v1843 = vpop.f32.mrb[0].mxu0
      %v1844 = vadd.f32 0.0, %v1843
      %v1845 = vpop.f32.mrb[0].mxu0
      %v1846 = vadd.f32 0.0, %v1845
      %v1847 = vpop.f32.mrb[0].mxu0
      %v1848 = vadd.f32 0.0, %v1847
      %1849 = vmatprep.mubr.bf16.mxu0 0
      %1850 = vmatmul.mubr.bf16.gmra.mrb[0].mxu0 %v882
      %v1851 = vpop.f32.mrb[0].mxu0
      %v1852 = vadd.f32 0.0, %v1851
      %v1853 = vpop.f32.mrb[0].mxu0
      %v1854 = vadd.f32 0.0, %v1853
      %v1855 = vpop.f32.mrb[0].mxu0
      %v1856 = vadd.f32 0.0, %v1855
      %v1857 = vpop.f32.mrb[0].mxu0
      %v1858 = vadd.f32 0.0, %v1857
      %1859 = vmatprep.mubr.bf16.mxu0 0
      %1860 = vmatmul.mubr.bf16.gmra.mrb[0].mxu0 %v885
      %v1861 = vpop.f32.mrb[0].mxu0
      %v1862 = vadd.f32 0.0, %v1861
      %v1863 = vpop.f32.mrb[0].mxu0
      %v1864 = vadd.f32 0.0, %v1863
      %v1865 = vpop.f32.mrb[0].mxu0
      %v1866 = vadd.f32 0.0, %v1865
      %v1867 = vpop.f32.mrb[0].mxu0
      %v1868 = vadd.f32 0.0, %v1867
      %1869 = vmatprep.mubr.bf16.mxu0 0
      %1870 = vmatmul.mubr.bf16.gmra.mrb[0].mxu0 %v888
      %v1871 = vpop.f32.mrb[0].mxu0
      %v1872 = vadd.f32 0.0, %v1871
      %v1873 = vpop.f32.mrb[0].mxu0
      %v1874 = vadd.f32 0.0, %v1873
      %v1875 = vpop.f32.mrb[0].mxu0
      %v1876 = vadd.f32 0.0, %v1875
      %v1877 = vpop.f32.mrb[0].mxu0
      %v1878 = vadd.f32 0.0, %v1877
      %1879 = vmatprep.mubr.bf16.mxu0 0
      %1880 = vmatmul.mubr.bf16.gmra.mrb[0].mxu0 %v891
      %v1881 = vpop.f32.mrb[0].mxu0
      %v1882 = vadd.f32 0.0, %v1881
      %v1883 = vpop.f32.mrb[0].mxu0
      %v1884 = vadd.f32 0.0, %v1883
      %v1885 = vpop.f32.mrb[0].mxu0
      %v1886 = vadd.f32 0.0, %v1885
      %v1887 = vpop.f32.mrb[0].mxu0
      %v1888 = vadd.f32 0.0, %v1887
      %1889 = vmatprep.mubr.bf16.mxu0 0
      %1890 = vmatmul.mubr.bf16.gmra.mrb[0].mxu0 %v894
      %v1891 = vpop.f32.mrb[0].mxu0
      %v1892 = vadd.f32 0.0, %v1891
      %v1893 = vpop.f32.mrb[0].mxu0
      %v1894 = vadd.f32 0.0, %v1893
      %v1895 = vpop.f32.mrb[0].mxu0
      %v1896 = vadd.f32 0.0, %v1895
      %v1897 = vpop.f32.mrb[0].mxu0
      %v1898 = vadd.f32 0.0, %v1897
      %1899 = vmatprep.mubr.bf16.mxu0 0
      %1900 = vmatmul.mubr.bf16.gmra.mrb[0].mxu0 %v897
      %v1901 = vpop.f32.mrb[0].mxu0
      %v1902 = vadd.f32 0.0, %v1901
      %v1903 = vpop.f32.mrb[0].mxu0
      %v1904 = vadd.f32 0.0, %v1903
      %v1905 = vpop.f32.mrb[0].mxu0
      %v1906 = vadd.f32 0.0, %v1905
      %v1907 = vpop.f32.mrb[0].mxu0
      %v1908 = vadd.f32 0.0, %v1907
      %1909 = vmatprep.mubr.bf16.mxu0 0
      %1910 = vmatmul.mubr.bf16.gmra.mrb[0].mxu0 %v900
      %v1911 = vpop.f32.mrb[0].mxu0
      %v1912 = vadd.f32 0.0, %v1911
      %v1913 = vpop.f32.mrb[0].mxu0
      %v1914 = vadd.f32 0.0, %v1913
      %v1915 = vpop.f32.mrb[0].mxu0
      %v1916 = vadd.f32 0.0, %v1915
      %v1917 = vpop.f32.mrb[0].mxu0
      %v1918 = vadd.f32 0.0, %v1917
      %1919 = vmatprep.mubr.bf16.mxu0 0
      %1920 = vmatmul.mubr.bf16.gmra.mrb[0].mxu0 %v903
      %v1921 = vpop.f32.mrb[0].mxu0
      %v1922 = vadd.f32 0.0, %v1921
      %v1923 = vpop.f32.mrb[0].mxu0
      %v1924 = vadd.f32 0.0, %v1923
      %v1925 = vpop.f32.mrb[0].mxu0
      %v1926 = vadd.f32 0.0, %v1925
      %v1927 = vpop.f32.mrb[0].mxu0
      %v1928 = vadd.f32 0.0, %v1927
      %1929 = vmatprep.mubr.bf16.mxu0 0
      %1930 = vmatmul.mubr.bf16.gmra.mrb[0].mxu0 %v906
      %v1931 = vpop.f32.mrb[0].mxu0
      %v1932 = vadd.f32 0.0, %v1931
      %v1933 = vpop.f32.mrb[0].mxu0
      %v1934 = vadd.f32 0.0, %v1933
      %v1935 = vpop.f32.mrb[0].mxu0
      %v1936 = vadd.f32 0.0, %v1935
      %v1937 = vpop.f32.mrb[0].mxu0
      %v1938 = vadd.f32 0.0, %v1937
      %1939 = vmatprep.mubr.bf16.mxu0 0
      %1940 = vmatmul.mubr.bf16.gmra.mrb[0].mxu0 %v909
      %v1941 = vpop.f32.mrb[0].mxu0
      %v1942 = vadd.f32 0.0, %v1941
      %v1943 = vpop.f32.mrb[0].mxu0
      %v1944 = vadd.f32 0.0, %v1943
      %v1945 = vpop.f32.mrb[0].mxu0
      %v1946 = vadd.f32 0.0, %v1945
      %v1947 = vpop.f32.mrb[0].mxu0
      %v1948 = vadd.f32 0.0, %v1947
      %1949 = vmatprep.mubr.bf16.mxu0 0
      %1950 = vmatmul.mubr.bf16.gmra.mrb[0].mxu0 %v912
      %v1951 = vpop.f32.mrb[0].mxu0
      %v1952 = vadd.f32 0.0, %v1951
      %v1953 = vpop.f32.mrb[0].mxu0
      %v1954 = vadd.f32 0.0, %v1953
      %v1955 = vpop.f32.mrb[0].mxu0
      %v1956 = vadd.f32 0.0, %v1955
      %v1957 = vpop.f32.mrb[0].mxu0
      %v1958 = vadd.f32 0.0, %v1957
      %1959 = vmatprep.mubr.bf16.mxu0 0
      %1960 = vmatmul.mubr.bf16.gmra.mrb[0].mxu0 %v915
      %v1961 = vpop.f32.mrb[0].mxu0
      %v1962 = vadd.f32 0.0, %v1961
      %v1963 = vpop.f32.mrb[0].mxu0
      %v1964 = vadd.f32 0.0, %v1963
      %v1965 = vpop.f32.mrb[0].mxu0
      %v1966 = vadd.f32 0.0, %v1965
      %v1967 = vpop.f32.mrb[0].mxu0
      %v1968 = vadd.f32 0.0, %v1967
      %1969 = vmatprep.mubr.bf16.mxu0 0
      %1970 = vmatmul.mubr.bf16.gmra.mrb[0].mxu0 %v918
      %v1971 = vpop.f32.mrb[0].mxu0
      %v1972 = vadd.f32 0.0, %v1971
      %v1973 = vpop.f32.mrb[0].mxu0
      %v1974 = vadd.f32 0.0, %v1973
      %v1975 = vpop.f32.mrb[0].mxu0
      %v1976 = vadd.f32 0.0, %v1975
      %v1977 = vpop.f32.mrb[0].mxu0
      %v1978 = vadd.f32 0.0, %v1977
      %1979 = vmatprep.mubr.bf16.mxu0 0
      %1980 = vmatmul.mubr.bf16.gmra.mrb[0].mxu0 %v921
      %v1981 = vpop.f32.mrb[0].mxu0
      %v1982 = vadd.f32 0.0, %v1981
      %v1983 = vpop.f32.mrb[0].mxu0
      %v1984 = vadd.f32 0.0, %v1983
      %v1985 = vpop.f32.mrb[0].mxu0
      %v1986 = vadd.f32 0.0, %v1985
      %v1987 = vpop.f32.mrb[0].mxu0
      %v1988 = vadd.f32 0.0, %v1987
      %1989 = vmatprep.mubr.bf16.mxu0 0
      %1990 = vmatmul.mubr.bf16.gmra.mrb[0].mxu0 %v924
      %v1991 = vpop.f32.mrb[0].mxu0
      %v1992 = vadd.f32 0.0, %v1991
      %v1993 = vpop.f32.mrb[0].mxu0
      %v1994 = vadd.f32 0.0, %v1993
      %v1995 = vpop.f32.mrb[0].mxu0
      %v1996 = vadd.f32 0.0, %v1995
      %v1997 = vpop.f32.mrb[0].mxu0
      %v1998 = vadd.f32 0.0, %v1997
      %1999 = vmatprep.mubr.bf16.mxu0 0
      %2000 = vmatmul.mubr.bf16.gmra.mrb[0].mxu0 %v927
      %v2001 = vpop.f32.mrb[0].mxu0
      %v2002 = vadd.f32 0.0, %v2001
      %v2003 = vpop.f32.mrb[0].mxu0
      %v2004 = vadd.f32 0.0, %v2003
      %v2005 = vpop.f32.mrb[0].mxu0
      %v2006 = vadd.f32 0.0, %v2005
      %v2007 = vpop.f32.mrb[0].mxu0
      %v2008 = vadd.f32 0.0, %v2007
      %2009 = vmatprep.mubr.bf16.mxu0 0
      %2010 = vmatmul.mubr.bf16.gmra.mrb[0].mxu0 %v930
      %v2011 = vpop.f32.mrb[0].mxu0
      %v2012 = vadd.f32 0.0, %v2011
      %v2013 = vpop.f32.mrb[0].mxu0
      %v2014 = vadd.f32 0.0, %v2013
      %v2015 = vpop.f32.mrb[0].mxu0
      %v2016 = vadd.f32 0.0, %v2015
      %v2017 = vpop.f32.mrb[0].mxu0
      %v2018 = vadd.f32 0.0, %v2017
      %2019 = vmatprep.mubr.bf16.mxu0 0
      %2020 = vmatmul.mubr.bf16.gmra.mrb[0].mxu0 %v933
      %v2021 = vpop.f32.mrb[0].mxu0
      %v2022 = vadd.f32 0.0, %v2021
      %v2023 = vpop.f32.mrb[0].mxu0
      %v2024 = vadd.f32 0.0, %v2023
      %v2025 = vpop.f32.mrb[0].mxu0
      %v2026 = vadd.f32 0.0, %v2025
      %v2027 = vpop.f32.mrb[0].mxu0
      %v2028 = vadd.f32 0.0, %v2027
      %2029 = vmatprep.mubr.bf16.mxu0 0
      %2030 = vmatmul.mubr.bf16.gmra.mrb[0].mxu0 %v936
      %v2031 = vpop.f32.mrb[0].mxu0
      %v2032 = vadd.f32 0.0, %v2031
      %v2033 = vpop.f32.mrb[0].mxu0
      %v2034 = vadd.f32 0.0, %v2033
      %v2035 = vpop.f32.mrb[0].mxu0
      %v2036 = vadd.f32 0.0, %v2035
      %v2037 = vpop.f32.mrb[0].mxu0
      %v2038 = vadd.f32 0.0, %v2037
      %2039 = vmatprep.mubr.bf16.mxu0 0
      %2040 = vmatmul.mubr.bf16.gmra.mrb[0].mxu0 %v939
      %v2041 = vpop.f32.mrb[0].mxu0
      %v2042 = vadd.f32 0.0, %v2041
      %v2043 = vpop.f32.mrb[0].mxu0
      %v2044 = vadd.f32 0.0, %v2043
      %v2045 = vpop.f32.mrb[0].mxu0
      %v2046 = vadd.f32 0.0, %v2045
      %v2047 = vpop.f32.mrb[0].mxu0
      %v2048 = vadd.f32 0.0, %v2047
      %2049 = vmatprep.mubr.bf16.mxu0 0
      %2050 = vmatmul.mubr.bf16.gmra.mrb[0].mxu0 %v942
      %v2051 = vpop.f32.mrb[0].mxu0
      %v2052 = vadd.f32 0.0, %v2051
      %v2053 = vpop.f32.mrb[0].mxu0
      %v2054 = vadd.f32 0.0, %v2053
      %v2055 = vpop.f32.mrb[0].mxu0
      %v2056 = vadd.f32 0.0, %v2055
      %v2057 = vpop.f32.mrb[0].mxu0
      %v2058 = vadd.f32 0.0, %v2057
      %2059 = vmatprep.mubr.bf16.mxu0 0
      %2060 = vmatmul.mubr.bf16.gmra.mrb[0].mxu0 %v945
      %v2061 = vpop.f32.mrb[0].mxu0
      %v2062 = vadd.f32 0.0, %v2061
      %v2063 = vpop.f32.mrb[0].mxu0
      %v2064 = vadd.f32 0.0, %v2063
      %v2065 = vpop.f32.mrb[0].mxu0
      %v2066 = vadd.f32 0.0, %v2065
      %v2067 = vpop.f32.mrb[0].mxu0
      %v2068 = vadd.f32 0.0, %v2067
      %2069 = vmatprep.mubr.bf16.mxu0 0
      %2070 = vmatmul.mubr.bf16.gmra.mrb[0].mxu0 %v948
      %v2071 = vpop.f32.mrb[0].mxu0
      %v2072 = vadd.f32 0.0, %v2071
      %v2073 = vpop.f32.mrb[0].mxu0
      %v2074 = vadd.f32 0.0, %v2073
      %v2075 = vpop.f32.mrb[0].mxu0
      %v2076 = vadd.f32 0.0, %v2075
      %v2077 = vpop.f32.mrb[0].mxu0
      %v2078 = vadd.f32 0.0, %v2077
      %2079 = vmatprep.mubr.bf16.mxu0 0
      %2080 = vmatmul.mubr.bf16.gmra.mrb[0].mxu0 %v951
      %v2081 = vpop.f32.mrb[0].mxu0
      %v2082 = vadd.f32 0.0, %v2081
      %v2083 = vpop.f32.mrb[0].mxu0
      %v2084 = vadd.f32 0.0, %v2083
      %v2085 = vpop.f32.mrb[0].mxu0
      %v2086 = vadd.f32 0.0, %v2085
      %v2087 = vpop.f32.mrb[0].mxu0
      %v2088 = vadd.f32 0.0, %v2087
      %2089 = vmatprep.mubr.bf16.mxu0 0
      %2090 = vmatmul.mubr.bf16.gmra.mrb[0].mxu0 %v954
      %v2091 = vpop.f32.mrb[0].mxu0
      %v2092 = vadd.f32 0.0, %v2091
      %v2093 = vpop.f32.mrb[0].mxu0
      %v2094 = vadd.f32 0.0, %v2093
      %v2095 = vpop.f32.mrb[0].mxu0
      %v2096 = vadd.f32 0.0, %v2095
      %v2097 = vpop.f32.mrb[0].mxu0
      %v2098 = vadd.f32 0.0, %v2097
      %2099 = vmatprep.mubr.bf16.mxu0 0
      %2100 = vmatmul.mubr.bf16.gmra.mrb[0].mxu0 %v957
      %v2101 = vpop.f32.mrb[0].mxu0
      %v2102 = vadd.f32 0.0, %v2101
      %v2103 = vpop.f32.mrb[0].mxu0
      %v2104 = vadd.f32 0.0, %v2103
      %v2105 = vpop.f32.mrb[0].mxu0
      %v2106 = vadd.f32 0.0, %v2105
      %v2107 = vpop.f32.mrb[0].mxu0
      %v2108 = vadd.f32 0.0, %v2107
      %2109 = vmatprep.mubr.bf16.mxu0 0
      %2110 = vmatmul.mubr.bf16.gmra.mrb[0].mxu0 %v960
      %v2111 = vpop.f32.mrb[0].mxu0
      %v2112 = vadd.f32 0.0, %v2111
      %v2113 = vpop.f32.mrb[0].mxu0
      %v2114 = vadd.f32 0.0, %v2113
      %v2115 = vpop.f32.mrb[0].mxu0
      %v2116 = vadd.f32 0.0, %v2115
      %v2117 = vpop.f32.mrb[0].mxu0
      %v2118 = vadd.f32 0.0, %v2117
      %2119 = vmatprep.mubr.bf16.mxu0 0
      %2120 = vmatmul.mubr.bf16.gmra.mrb[0].mxu0 %v963
      %v2121 = vpop.f32.mrb[0].mxu0
      %v2122 = vadd.f32 0.0, %v2121
      %v2123 = vpop.f32.mrb[0].mxu0
      %v2124 = vadd.f32 0.0, %v2123
      %v2125 = vpop.f32.mrb[0].mxu0
      %v2126 = vadd.f32 0.0, %v2125
      %v2127 = vpop.f32.mrb[0].mxu0
      %v2128 = vadd.f32 0.0, %v2127
      %2129 = vmatprep.mubr.bf16.mxu0 0
      %2130 = vmatmul.mubr.bf16.gmra.mrb[0].mxu0 %v966
      %v2131 = vpop.f32.mrb[0].mxu0
      %v2132 = vadd.f32 0.0, %v2131
      %v2133 = vpop.f32.mrb[0].mxu0
      %v2134 = vadd.f32 0.0, %v2133
      %v2135 = vpop.f32.mrb[0].mxu0
      %v2136 = vadd.f32 0.0, %v2135
      %v2137 = vpop.f32.mrb[0].mxu0
      %v2138 = vadd.f32 0.0, %v2137
      %2139 = vmatprep.mubr.bf16.mxu0 0
      %2140 = vmatmul.mubr.bf16.gmra.mrb[0].mxu0 %v969
      %v2141 = vpop.f32.mrb[0].mxu0
      %v2142 = vadd.f32 0.0, %v2141
      %v2143 = vpop.f32.mrb[0].mxu0
      %v2144 = vadd.f32 0.0, %v2143
      %v2145 = vpop.f32.mrb[0].mxu0
      %v2146 = vadd.f32 0.0, %v2145
      %v2147 = vpop.f32.mrb[0].mxu0
      %v2148 = vadd.f32 0.0, %v2147
      %2149 = vdwg.mxu0
      %2150 = vmatprep.subr.bf16.mxu0 %v741
      %2151 = vmatpush1.bf16.msra.mxu0 %v740
      %2152 = vmatprep.subr.bf16.mxu0 %v757
      %2153 = vmatpush1.bf16.msra.mxu0 %v756
      %2154 = vmatprep.subr.bf16.mxu0 %v773
      %2155 = vmatpush1.bf16.msra.mxu0 %v772
      %2156 = vmatprep.subr.bf16.mxu0 %v789
      %2157 = vmatpush1.bf16.msra.mxu0 %v788
      %2158 = vmatprep.subr.bf16.mxu0 0
      %2159 = vmatpush1.bf16.msra.mxu0 0
      %2160 = vmatprep.subr.bf16.mxu0 0
      %2161 = vmatpush1.bf16.msra.mxu0 0
      %2162 = vmatprep.subr.bf16.mxu0 0
      %2163 = vmatpush1.bf16.msra.mxu0 0
      %2164 = vmatprep.subr.bf16.mxu0 0
      %2165 = vmatpush1.bf16.msra.mxu0 0
      %2166 = vmatprep.subr.bf16.mxu0 0
      %2167 = vmatpush1.bf16.msra.mxu0 0
      %2168 = vmatprep.subr.bf16.mxu0 0
      %2169 = vmatpush1.bf16.msra.mxu0 0
      %2170 = vmatprep.subr.bf16.mxu0 0
      %2171 = vmatpush1.bf16.msra.mxu0 0
      %2172 = vmatprep.subr.bf16.mxu0 0
      %2173 = vmatpush1.bf16.msra.mxu0 0
      %2174 = vmatprep.subr.bf16.mxu0 0
      %2175 = vmatpush1.bf16.msra.mxu0 0
      %2176 = vmatprep.subr.bf16.mxu0 0
      %2177 = vmatpush1.bf16.msra.mxu0 0
      %2178 = vmatprep.subr.bf16.mxu0 0
      %2179 = vmatpush1.bf16.msra.mxu0 0
      %2180 = vmatprep.subr.bf16.mxu0 0
      %2181 = vmatpush1.bf16.msra.mxu0 0
      %2182 = vmatprep.mubr.bf16.mxu0 0
      %2183 = vmatmul.mubr.bf16.gmra.mrb[0].mxu0 %v864
      %v2184 = vpop.f32.mrb[0].mxu0
      %v2185 = vadd.f32 0.0, %v2184
      %v2186 = vpop.f32.mrb[0].mxu0
      %v2187 = vadd.f32 0.0, %v2186
      %v2188 = vpop.f32.mrb[0].mxu0
      %v2189 = vadd.f32 0.0, %v2188
      %v2190 = vpop.f32.mrb[0].mxu0
      %v2191 = vadd.f32 0.0, %v2190
      %2192 = vmatprep.mubr.bf16.mxu0 0
      %2193 = vmatmul.mubr.bf16.gmra.mrb[0].mxu0 %v867
      %v2194 = vpop.f32.mrb[0].mxu0
      %v2195 = vadd.f32 0.0, %v2194
      %v2196 = vpop.f32.mrb[0].mxu0
      %v2197 = vadd.f32 0.0, %v2196
      %v2198 = vpop.f32.mrb[0].mxu0
      %v2199 = vadd.f32 0.0, %v2198
      %v2200 = vpop.f32.mrb[0].mxu0
      %v2201 = vadd.f32 0.0, %v2200
      %2202 = vmatprep.mubr.bf16.mxu0 0
      %2203 = vmatmul.mubr.bf16.gmra.mrb[0].mxu0 %v870
      %v2204 = vpop.f32.mrb[0].mxu0
      %v2205 = vadd.f32 0.0, %v2204
      %v2206 = vpop.f32.mrb[0].mxu0
      %v2207 = vadd.f32 0.0, %v2206
      %v2208 = vpop.f32.mrb[0].mxu0
      %v2209 = vadd.f32 0.0, %v2208
      %v2210 = vpop.f32.mrb[0].mxu0
      %v2211 = vadd.f32 0.0, %v2210
      %2212 = vmatprep.mubr.bf16.mxu0 0
      %2213 = vmatmul.mubr.bf16.gmra.mrb[0].mxu0 %v873
      %v2214 = vpop.f32.mrb[0].mxu0
      %v2215 = vadd.f32 0.0, %v2214
      %v2216 = vpop.f32.mrb[0].mxu0
      %v2217 = vadd.f32 0.0, %v2216
      %v2218 = vpop.f32.mrb[0].mxu0
      %v2219 = vadd.f32 0.0, %v2218
      %v2220 = vpop.f32.mrb[0].mxu0
      %v2221 = vadd.f32 0.0, %v2220
      %2222 = vmatprep.mubr.bf16.mxu0 0
      %2223 = vmatmul.mubr.bf16.gmra.mrb[0].mxu0 %v876
      %v2224 = vpop.f32.mrb[0].mxu0
      %v2225 = vadd.f32 0.0, %v2224
      %v2226 = vpop.f32.mrb[0].mxu0
      %v2227 = vadd.f32 0.0, %v2226
      %v2228 = vpop.f32.mrb[0].mxu0
      %v2229 = vadd.f32 0.0, %v2228
      %v2230 = vpop.f32.mrb[0].mxu0
      %v2231 = vadd.f32 0.0, %v2230
      %2232 = vmatprep.mubr.bf16.mxu0 0
      %2233 = vmatmul.mubr.bf16.gmra.mrb[0].mxu0 %v879
      %v2234 = vpop.f32.mrb[0].mxu0
      %v2235 = vadd.f32 0.0, %v2234
      %v2236 = vpop.f32.mrb[0].mxu0
      %v2237 = vadd.f32 0.0, %v2236
      %v2238 = vpop.f32.mrb[0].mxu0
      %v2239 = vadd.f32 0.0, %v2238
      %v2240 = vpop.f32.mrb[0].mxu0
      %v2241 = vadd.f32 0.0, %v2240
      %2242 = vmatprep.mubr.bf16.mxu0 0
      %2243 = vmatmul.mubr.bf16.gmra.mrb[0].mxu0 %v882
      %v2244 = vpop.f32.mrb[0].mxu0
      %v2245 = vadd.f32 0.0, %v2244
      %v2246 = vpop.f32.mrb[0].mxu0
      %v2247 = vadd.f32 0.0, %v2246
      %v2248 = vpop.f32.mrb[0].mxu0
      %v2249 = vadd.f32 0.0, %v2248
      %v2250 = vpop.f32.mrb[0].mxu0
      %v2251 = vadd.f32 0.0, %v2250
      %2252 = vmatprep.mubr.bf16.mxu0 0
      %2253 = vmatmul.mubr.bf16.gmra.mrb[0].mxu0 %v885
      %v2254 = vpop.f32.mrb[0].mxu0
      %v2255 = vadd.f32 0.0, %v2254
      %v2256 = vpop.f32.mrb[0].mxu0
      %v2257 = vadd.f32 0.0, %v2256
      %v2258 = vpop.f32.mrb[0].mxu0
      %v2259 = vadd.f32 0.0, %v2258
      %v2260 = vpop.f32.mrb[0].mxu0
      %v2261 = vadd.f32 0.0, %v2260
      %2262 = vmatprep.mubr.bf16.mxu0 0
      %2263 = vmatmul.mubr.bf16.gmra.mrb[0].mxu0 %v888
      %v2264 = vpop.f32.mrb[0].mxu0
      %v2265 = vadd.f32 0.0, %v2264
      %v2266 = vpop.f32.mrb[0].mxu0
      %v2267 = vadd.f32 0.0, %v2266
      %v2268 = vpop.f32.mrb[0].mxu0
      %v2269 = vadd.f32 0.0, %v2268
      %v2270 = vpop.f32.mrb[0].mxu0
      %v2271 = vadd.f32 0.0, %v2270
      %2272 = vmatprep.mubr.bf16.mxu0 0
      %2273 = vmatmul.mubr.bf16.gmra.mrb[0].mxu0 %v891
      %v2274 = vpop.f32.mrb[0].mxu0
      %v2275 = vadd.f32 0.0, %v2274
      %v2276 = vpop.f32.mrb[0].mxu0
      %v2277 = vadd.f32 0.0, %v2276
      %v2278 = vpop.f32.mrb[0].mxu0
      %v2279 = vadd.f32 0.0, %v2278
      %v2280 = vpop.f32.mrb[0].mxu0
      %v2281 = vadd.f32 0.0, %v2280
      %2282 = vmatprep.mubr.bf16.mxu0 0
      %2283 = vmatmul.mubr.bf16.gmra.mrb[0].mxu0 %v894
      %v2284 = vpop.f32.mrb[0].mxu0
      %v2285 = vadd.f32 0.0, %v2284
      %v2286 = vpop.f32.mrb[0].mxu0
      %v2287 = vadd.f32 0.0, %v2286
      %v2288 = vpop.f32.mrb[0].mxu0
      %v2289 = vadd.f32 0.0, %v2288
      %v2290 = vpop.f32.mrb[0].mxu0
      %v2291 = vadd.f32 0.0, %v2290
      %2292 = vmatprep.mubr.bf16.mxu0 0
      %2293 = vmatmul.mubr.bf16.gmra.mrb[0].mxu0 %v897
      %v2294 = vpop.f32.mrb[0].mxu0
      %v2295 = vadd.f32 0.0, %v2294
      %v2296 = vpop.f32.mrb[0].mxu0
      %v2297 = vadd.f32 0.0, %v2296
      %v2298 = vpop.f32.mrb[0].mxu0
      %v2299 = vadd.f32 0.0, %v2298
      %v2300 = vpop.f32.mrb[0].mxu0
      %v2301 = vadd.f32 0.0, %v2300
      %2302 = vmatprep.mubr.bf16.mxu0 0
      %2303 = vmatmul.mubr.bf16.gmra.mrb[0].mxu0 %v900
      %v2304 = vpop.f32.mrb[0].mxu0
      %v2305 = vadd.f32 0.0, %v2304
      %v2306 = vpop.f32.mrb[0].mxu0
      %v2307 = vadd.f32 0.0, %v2306
      %v2308 = vpop.f32.mrb[0].mxu0
      %v2309 = vadd.f32 0.0, %v2308
      %v2310 = vpop.f32.mrb[0].mxu0
      %v2311 = vadd.f32 0.0, %v2310
      %2312 = vmatprep.mubr.bf16.mxu0 0
      %2313 = vmatmul.mubr.bf16.gmra.mrb[0].mxu0 %v903
      %v2314 = vpop.f32.mrb[0].mxu0
      %v2315 = vadd.f32 0.0, %v2314
      %v2316 = vpop.f32.mrb[0].mxu0
      %v2317 = vadd.f32 0.0, %v2316
      %v2318 = vpop.f32.mrb[0].mxu0
      %v2319 = vadd.f32 0.0, %v2318
      %v2320 = vpop.f32.mrb[0].mxu0
      %v2321 = vadd.f32 0.0, %v2320
      %2322 = vmatprep.mubr.bf16.mxu0 0
      %2323 = vmatmul.mubr.bf16.gmra.mrb[0].mxu0 %v906
      %v2324 = vpop.f32.mrb[0].mxu0
      %v2325 = vadd.f32 0.0, %v2324
      %v2326 = vpop.f32.mrb[0].mxu0
      %v2327 = vadd.f32 0.0, %v2326
      %v2328 = vpop.f32.mrb[0].mxu0
      %v2329 = vadd.f32 0.0, %v2328
      %v2330 = vpop.f32.mrb[0].mxu0
      %v2331 = vadd.f32 0.0, %v2330
      %2332 = vmatprep.mubr.bf16.mxu0 0
      %2333 = vmatmul.mubr.bf16.gmra.mrb[0].mxu0 %v909
      %v2334 = vpop.f32.mrb[0].mxu0
      %v2335 = vadd.f32 0.0, %v2334
      %v2336 = vpop.f32.mrb[0].mxu0
      %v2337 = vadd.f32 0.0, %v2336
      %v2338 = vpop.f32.mrb[0].mxu0
      %v2339 = vadd.f32 0.0, %v2338
      %v2340 = vpop.f32.mrb[0].mxu0
      %v2341 = vadd.f32 0.0, %v2340
      %2342 = vmatprep.mubr.bf16.mxu0 0
      %2343 = vmatmul.mubr.bf16.gmra.mrb[0].mxu0 %v912
      %v2344 = vpop.f32.mrb[0].mxu0
      %v2345 = vadd.f32 0.0, %v2344
      %v2346 = vpop.f32.mrb[0].mxu0
      %v2347 = vadd.f32 0.0, %v2346
      %v2348 = vpop.f32.mrb[0].mxu0
      %v2349 = vadd.f32 0.0, %v2348
      %v2350 = vpop.f32.mrb[0].mxu0
      %v2351 = vadd.f32 0.0, %v2350
      %2352 = vmatprep.mubr.bf16.mxu0 0
      %2353 = vmatmul.mubr.bf16.gmra.mrb[0].mxu0 %v915
      %v2354 = vpop.f32.mrb[0].mxu0
      %v2355 = vadd.f32 0.0, %v2354
      %v2356 = vpop.f32.mrb[0].mxu0
      %v2357 = vadd.f32 0.0, %v2356
      %v2358 = vpop.f32.mrb[0].mxu0
      %v2359 = vadd.f32 0.0, %v2358
      %v2360 = vpop.f32.mrb[0].mxu0
      %v2361 = vadd.f32 0.0, %v2360
      %2362 = vmatprep.mubr.bf16.mxu0 0
      %2363 = vmatmul.mubr.bf16.gmra.mrb[0].mxu0 %v918
      %v2364 = vpop.f32.mrb[0].mxu0
      %v2365 = vadd.f32 0.0, %v2364
      %v2366 = vpop.f32.mrb[0].mxu0
      %v2367 = vadd.f32 0.0, %v2366
      %v2368 = vpop.f32.mrb[0].mxu0
      %v2369 = vadd.f32 0.0, %v2368
      %v2370 = vpop.f32.mrb[0].mxu0
      %v2371 = vadd.f32 0.0, %v2370
      %2372 = vmatprep.mubr.bf16.mxu0 0
      %2373 = vmatmul.mubr.bf16.gmra.mrb[0].mxu0 %v921
      %v2374 = vpop.f32.mrb[0].mxu0
      %v2375 = vadd.f32 0.0, %v2374
      %v2376 = vpop.f32.mrb[0].mxu0
      %v2377 = vadd.f32 0.0, %v2376
      %v2378 = vpop.f32.mrb[0].mxu0
      %v2379 = vadd.f32 0.0, %v2378
      %v2380 = vpop.f32.mrb[0].mxu0
      %v2381 = vadd.f32 0.0, %v2380
      %2382 = vmatprep.mubr.bf16.mxu0 0
      %2383 = vmatmul.mubr.bf16.gmra.mrb[0].mxu0 %v924
      %v2384 = vpop.f32.mrb[0].mxu0
      %v2385 = vadd.f32 0.0, %v2384
      %v2386 = vpop.f32.mrb[0].mxu0
      %v2387 = vadd.f32 0.0, %v2386
      %v2388 = vpop.f32.mrb[0].mxu0
      %v2389 = vadd.f32 0.0, %v2388
      %v2390 = vpop.f32.mrb[0].mxu0
      %v2391 = vadd.f32 0.0, %v2390
      %2392 = vmatprep.mubr.bf16.mxu0 0
      %2393 = vmatmul.mubr.bf16.gmra.mrb[0].mxu0 %v927
      %v2394 = vpop.f32.mrb[0].mxu0
      %v2395 = vadd.f32 0.0, %v2394
      %v2396 = vpop.f32.mrb[0].mxu0
      %v2397 = vadd.f32 0.0, %v2396
      %v2398 = vpop.f32.mrb[0].mxu0
      %v2399 = vadd.f32 0.0, %v2398
      %v2400 = vpop.f32.mrb[0].mxu0
      %v2401 = vadd.f32 0.0, %v2400
      %2402 = vmatprep.mubr.bf16.mxu0 0
      %2403 = vmatmul.mubr.bf16.gmra.mrb[0].mxu0 %v930
      %v2404 = vpop.f32.mrb[0].mxu0
      %v2405 = vadd.f32 0.0, %v2404
      %v2406 = vpop.f32.mrb[0].mxu0
      %v2407 = vadd.f32 0.0, %v2406
      %v2408 = vpop.f32.mrb[0].mxu0
      %v2409 = vadd.f32 0.0, %v2408
      %v2410 = vpop.f32.mrb[0].mxu0
      %v2411 = vadd.f32 0.0, %v2410
      %2412 = vmatprep.mubr.bf16.mxu0 0
      %2413 = vmatmul.mubr.bf16.gmra.mrb[0].mxu0 %v933
      %v2414 = vpop.f32.mrb[0].mxu0
      %v2415 = vadd.f32 0.0, %v2414
      %v2416 = vpop.f32.mrb[0].mxu0
      %v2417 = vadd.f32 0.0, %v2416
      %v2418 = vpop.f32.mrb[0].mxu0
      %v2419 = vadd.f32 0.0, %v2418
      %v2420 = vpop.f32.mrb[0].mxu0
      %v2421 = vadd.f32 0.0, %v2420
      %2422 = vmatprep.mubr.bf16.mxu0 0
      %2423 = vmatmul.mubr.bf16.gmra.mrb[0].mxu0 %v936
      %v2424 = vpop.f32.mrb[0].mxu0
      %v2425 = vadd.f32 0.0, %v2424
      %v2426 = vpop.f32.mrb[0].mxu0
      %v2427 = vadd.f32 0.0, %v2426
      %v2428 = vpop.f32.mrb[0].mxu0
      %v2429 = vadd.f32 0.0, %v2428
      %v2430 = vpop.f32.mrb[0].mxu0
      %v2431 = vadd.f32 0.0, %v2430
      %2432 = vmatprep.mubr.bf16.mxu0 0
      %2433 = vmatmul.mubr.bf16.gmra.mrb[0].mxu0 %v939
      %v2434 = vpop.f32.mrb[0].mxu0
      %v2435 = vadd.f32 0.0, %v2434
      %v2436 = vpop.f32.mrb[0].mxu0
      %v2437 = vadd.f32 0.0, %v2436
      %v2438 = vpop.f32.mrb[0].mxu0
      %v2439 = vadd.f32 0.0, %v2438
      %v2440 = vpop.f32.mrb[0].mxu0
      %v2441 = vadd.f32 0.0, %v2440
      %2442 = vmatprep.mubr.bf16.mxu0 0
      %2443 = vmatmul.mubr.bf16.gmra.mrb[0].mxu0 %v942
      %v2444 = vpop.f32.mrb[0].mxu0
      %v2445 = vadd.f32 0.0, %v2444
      %v2446 = vpop.f32.mrb[0].mxu0
      %v2447 = vadd.f32 0.0, %v2446
      %v2448 = vpop.f32.mrb[0].mxu0
      %v2449 = vadd.f32 0.0, %v2448
      %v2450 = vpop.f32.mrb[0].mxu0
      %v2451 = vadd.f32 0.0, %v2450
      %2452 = vmatprep.mubr.bf16.mxu0 0
      %2453 = vmatmul.mubr.bf16.gmra.mrb[0].mxu0 %v945
      %v2454 = vpop.f32.mrb[0].mxu0
      %v2455 = vadd.f32 0.0, %v2454
      %v2456 = vpop.f32.mrb[0].mxu0
      %v2457 = vadd.f32 0.0, %v2456
      %v2458 = vpop.f32.mrb[0].mxu0
      %v2459 = vadd.f32 0.0, %v2458
      %v2460 = vpop.f32.mrb[0].mxu0
      %v2461 = vadd.f32 0.0, %v2460
      %2462 = vmatprep.mubr.bf16.mxu0 0
      %2463 = vmatmul.mubr.bf16.gmra.mrb[0].mxu0 %v948
      %v2464 = vpop.f32.mrb[0].mxu0
      %v2465 = vadd.f32 0.0, %v2464
      %v2466 = vpop.f32.mrb[0].mxu0
      %v2467 = vadd.f32 0.0, %v2466
      %v2468 = vpop.f32.mrb[0].mxu0
      %v2469 = vadd.f32 0.0, %v2468
      %v2470 = vpop.f32.mrb[0].mxu0
      %v2471 = vadd.f32 0.0, %v2470
      %2472 = vmatprep.mubr.bf16.mxu0 0
      %2473 = vmatmul.mubr.bf16.gmra.mrb[0].mxu0 %v951
      %v2474 = vpop.f32.mrb[0].mxu0
      %v2475 = vadd.f32 0.0, %v2474
      %v2476 = vpop.f32.mrb[0].mxu0
      %v2477 = vadd.f32 0.0, %v2476
      %v2478 = vpop.f32.mrb[0].mxu0
      %v2479 = vadd.f32 0.0, %v2478
      %v2480 = vpop.f32.mrb[0].mxu0
      %v2481 = vadd.f32 0.0, %v2480
      %2482 = vmatprep.mubr.bf16.mxu0 0
      %2483 = vmatmul.mubr.bf16.gmra.mrb[0].mxu0 %v954
      %v2484 = vpop.f32.mrb[0].mxu0
      %v2485 = vadd.f32 0.0, %v2484
      %v2486 = vpop.f32.mrb[0].mxu0
      %v2487 = vadd.f32 0.0, %v2486
      %v2488 = vpop.f32.mrb[0].mxu0
      %v2489 = vadd.f32 0.0, %v2488
      %v2490 = vpop.f32.mrb[0].mxu0
      %v2491 = vadd.f32 0.0, %v2490
      %2492 = vmatprep.mubr.bf16.mxu0 0
      %2493 = vmatmul.mubr.bf16.gmra.mrb[0].mxu0 %v957
      %v2494 = vpop.f32.mrb[0].mxu0
      %v2495 = vadd.f32 0.0, %v2494
      %v2496 = vpop.f32.mrb[0].mxu0
      %v2497 = vadd.f32 0.0, %v2496
      %v2498 = vpop.f32.mrb[0].mxu0
      %v2499 = vadd.f32 0.0, %v2498
      %v2500 = vpop.f32.mrb[0].mxu0
      %v2501 = vadd.f32 0.0, %v2500
      %2502 = vmatprep.mubr.bf16.mxu0 0
      %2503 = vmatmul.mubr.bf16.gmra.mrb[0].mxu0 %v960
      %v2504 = vpop.f32.mrb[0].mxu0
      %v2505 = vadd.f32 0.0, %v2504
      %v2506 = vpop.f32.mrb[0].mxu0
      %v2507 = vadd.f32 0.0, %v2506
      %v2508 = vpop.f32.mrb[0].mxu0
      %v2509 = vadd.f32 0.0, %v2508
      %v2510 = vpop.f32.mrb[0].mxu0
      %v2511 = vadd.f32 0.0, %v2510
      %2512 = vmatprep.mubr.bf16.mxu0 0
      %2513 = vmatmul.mubr.bf16.gmra.mrb[0].mxu0 %v963
      %v2514 = vpop.f32.mrb[0].mxu0
      %v2515 = vadd.f32 0.0, %v2514
      %v2516 = vpop.f32.mrb[0].mxu0
      %v2517 = vadd.f32 0.0, %v2516
      %v2518 = vpop.f32.mrb[0].mxu0
      %v2519 = vadd.f32 0.0, %v2518
      %v2520 = vpop.f32.mrb[0].mxu0
      %v2521 = vadd.f32 0.0, %v2520
      %2522 = vmatprep.mubr.bf16.mxu0 0
      %2523 = vmatmul.mubr.bf16.gmra.mrb[0].mxu0 %v966
      %v2524 = vpop.f32.mrb[0].mxu0
      %v2525 = vadd.f32 0.0, %v2524
      %v2526 = vpop.f32.mrb[0].mxu0
      %v2527 = vadd.f32 0.0, %v2526
      %v2528 = vpop.f32.mrb[0].mxu0
      %v2529 = vadd.f32 0.0, %v2528
      %v2530 = vpop.f32.mrb[0].mxu0
      %v2531 = vadd.f32 0.0, %v2530
      %2532 = vmatprep.mubr.bf16.mxu0 0
      %2533 = vmatmul.mubr.bf16.gmra.mrb[0].mxu0 %v969
      %v2534 = vpop.f32.mrb[0].mxu0
      %v2535 = vadd.f32 0.0, %v2534
      %v2536 = vpop.f32.mrb[0].mxu0
      %v2537 = vadd.f32 0.0, %v2536
      %v2538 = vpop.f32.mrb[0].mxu0
      %v2539 = vadd.f32 0.0, %v2538
      %v2540 = vpop.f32.mrb[0].mxu0
      %v2541 = vadd.f32 0.0, %v2540
      %2542 = vdwg.mxu0
      %2543 = vmatprep.subr.bf16.mxu0 %v743
      %2544 = vmatpush1.bf16.msra.mxu0 %v742
      %2545 = vmatprep.subr.bf16.mxu0 %v759
      %2546 = vmatpush1.bf16.msra.mxu0 %v758
      %2547 = vmatprep.subr.bf16.mxu0 %v775
      %2548 = vmatpush1.bf16.msra.mxu0 %v774
      %2549 = vmatprep.subr.bf16.mxu0 %v791
      %2550 = vmatpush1.bf16.msra.mxu0 %v790
      %2551 = vmatprep.subr.bf16.mxu0 0
      %2552 = vmatpush1.bf16.msra.mxu0 0
      %2553 = vmatprep.subr.bf16.mxu0 0
      %2554 = vmatpush1.bf16.msra.mxu0 0
      %2555 = vmatprep.subr.bf16.mxu0 0
      %2556 = vmatpush1.bf16.msra.mxu0 0
      %2557 = vmatprep.subr.bf16.mxu0 0
      %2558 = vmatpush1.bf16.msra.mxu0 0
      %2559 = vmatprep.subr.bf16.mxu0 0
      %2560 = vmatpush1.bf16.msra.mxu0 0
      %2561 = vmatprep.subr.bf16.mxu0 0
      %2562 = vmatpush1.bf16.msra.mxu0 0
      %2563 = vmatprep.subr.bf16.mxu0 0
      %2564 = vmatpush1.bf16.msra.mxu0 0
      %2565 = vmatprep.subr.bf16.mxu0 0
      %2566 = vmatpush1.bf16.msra.mxu0 0
      %2567 = vmatprep.subr.bf16.mxu0 0
      %2568 = vmatpush1.bf16.msra.mxu0 0
      %2569 = vmatprep.subr.bf16.mxu0 0
      %2570 = vmatpush1.bf16.msra.mxu0 0
      %2571 = vmatprep.subr.bf16.mxu0 0
      %2572 = vmatpush1.bf16.msra.mxu0 0
      %2573 = vmatprep.subr.bf16.mxu0 0
      %2574 = vmatpush1.bf16.msra.mxu0 0
      %2575 = vmatprep.mubr.bf16.mxu0 0
      %2576 = vmatmul.mubr.bf16.gmra.mrb[0].mxu0 %v864
      %v2577 = vpop.f32.mrb[0].mxu0
      %v2578 = vadd.f32 0.0, %v2577
      %v2579 = vpop.f32.mrb[0].mxu0
      %v2580 = vadd.f32 0.0, %v2579
      %v2581 = vpop.f32.mrb[0].mxu0
      %v2582 = vadd.f32 0.0, %v2581
      %v2583 = vpop.f32.mrb[0].mxu0
      %v2584 = vadd.f32 0.0, %v2583
      %2585 = vmatprep.mubr.bf16.mxu0 0
      %2586 = vmatmul.mubr.bf16.gmra.mrb[0].mxu0 %v867
      %v2587 = vpop.f32.mrb[0].mxu0
      %v2588 = vadd.f32 0.0, %v2587
      %v2589 = vpop.f32.mrb[0].mxu0
      %v2590 = vadd.f32 0.0, %v2589
      %v2591 = vpop.f32.mrb[0].mxu0
      %v2592 = vadd.f32 0.0, %v2591
      %v2593 = vpop.f32.mrb[0].mxu0
      %v2594 = vadd.f32 0.0, %v2593
      %2595 = vmatprep.mubr.bf16.mxu0 0
      %2596 = vmatmul.mubr.bf16.gmra.mrb[0].mxu0 %v870
      %v2597 = vpop.f32.mrb[0].mxu0
      %v2598 = vadd.f32 0.0, %v2597
      %v2599 = vpop.f32.mrb[0].mxu0
      %v2600 = vadd.f32 0.0, %v2599
      %v2601 = vpop.f32.mrb[0].mxu0
      %v2602 = vadd.f32 0.0, %v2601
      %v2603 = vpop.f32.mrb[0].mxu0
      %v2604 = vadd.f32 0.0, %v2603
      %2605 = vmatprep.mubr.bf16.mxu0 0
      %2606 = vmatmul.mubr.bf16.gmra.mrb[0].mxu0 %v873
      %v2607 = vpop.f32.mrb[0].mxu0
      %v2608 = vadd.f32 0.0, %v2607
      %v2609 = vpop.f32.mrb[0].mxu0
      %v2610 = vadd.f32 0.0, %v2609
      %v2611 = vpop.f32.mrb[0].mxu0
      %v2612 = vadd.f32 0.0, %v2611
      %v2613 = vpop.f32.mrb[0].mxu0
      %v2614 = vadd.f32 0.0, %v2613
      %2615 = vmatprep.mubr.bf16.mxu0 0
      %2616 = vmatmul.mubr.bf16.gmra.mrb[0].mxu0 %v876
      %v2617 = vpop.f32.mrb[0].mxu0
      %v2618 = vadd.f32 0.0, %v2617
      %v2619 = vpop.f32.mrb[0].mxu0
      %v2620 = vadd.f32 0.0, %v2619
      %v2621 = vpop.f32.mrb[0].mxu0
      %v2622 = vadd.f32 0.0, %v2621
      %v2623 = vpop.f32.mrb[0].mxu0
      %v2624 = vadd.f32 0.0, %v2623
      %2625 = vmatprep.mubr.bf16.mxu0 0
      %2626 = vmatmul.mubr.bf16.gmra.mrb[0].mxu0 %v879
      %v2627 = vpop.f32.mrb[0].mxu0
      %v2628 = vadd.f32 0.0, %v2627
      %v2629 = vpop.f32.mrb[0].mxu0
      %v2630 = vadd.f32 0.0, %v2629
      %v2631 = vpop.f32.mrb[0].mxu0
      %v2632 = vadd.f32 0.0, %v2631
      %v2633 = vpop.f32.mrb[0].mxu0
      %v2634 = vadd.f32 0.0, %v2633
      %2635 = vmatprep.mubr.bf16.mxu0 0
      %2636 = vmatmul.mubr.bf16.gmra.mrb[0].mxu0 %v882
      %v2637 = vpop.f32.mrb[0].mxu0
      %v2638 = vadd.f32 0.0, %v2637
      %v2639 = vpop.f32.mrb[0].mxu0
      %v2640 = vadd.f32 0.0, %v2639
      %v2641 = vpop.f32.mrb[0].mxu0
      %v2642 = vadd.f32 0.0, %v2641
      %v2643 = vpop.f32.mrb[0].mxu0
      %v2644 = vadd.f32 0.0, %v2643
      %2645 = vmatprep.mubr.bf16.mxu0 0
      %2646 = vmatmul.mubr.bf16.gmra.mrb[0].mxu0 %v885
      %v2647 = vpop.f32.mrb[0].mxu0
      %v2648 = vadd.f32 0.0, %v2647
      %v2649 = vpop.f32.mrb[0].mxu0
      %v2650 = vadd.f32 0.0, %v2649
      %v2651 = vpop.f32.mrb[0].mxu0
      %v2652 = vadd.f32 0.0, %v2651
      %v2653 = vpop.f32.mrb[0].mxu0
      %v2654 = vadd.f32 0.0, %v2653
      %2655 = vmatprep.mubr.bf16.mxu0 0
      %2656 = vmatmul.mubr.bf16.gmra.mrb[0].mxu0 %v888
      %v2657 = vpop.f32.mrb[0].mxu0
      %v2658 = vadd.f32 0.0, %v2657
      %v2659 = vpop.f32.mrb[0].mxu0
      %v2660 = vadd.f32 0.0, %v2659
      %v2661 = vpop.f32.mrb[0].mxu0
      %v2662 = vadd.f32 0.0, %v2661
      %v2663 = vpop.f32.mrb[0].mxu0
      %v2664 = vadd.f32 0.0, %v2663
      %2665 = vmatprep.mubr.bf16.mxu0 0
      %2666 = vmatmul.mubr.bf16.gmra.mrb[0].mxu0 %v891
      %v2667 = vpop.f32.mrb[0].mxu0
      %v2668 = vadd.f32 0.0, %v2667
      %v2669 = vpop.f32.mrb[0].mxu0
      %v2670 = vadd.f32 0.0, %v2669
      %v2671 = vpop.f32.mrb[0].mxu0
      %v2672 = vadd.f32 0.0, %v2671
      %v2673 = vpop.f32.mrb[0].mxu0
      %v2674 = vadd.f32 0.0, %v2673
      %2675 = vmatprep.mubr.bf16.mxu0 0
      %2676 = vmatmul.mubr.bf16.gmra.mrb[0].mxu0 %v894
      %v2677 = vpop.f32.mrb[0].mxu0
      %v2678 = vadd.f32 0.0, %v2677
      %v2679 = vpop.f32.mrb[0].mxu0
      %v2680 = vadd.f32 0.0, %v2679
      %v2681 = vpop.f32.mrb[0].mxu0
      %v2682 = vadd.f32 0.0, %v2681
      %v2683 = vpop.f32.mrb[0].mxu0
      %v2684 = vadd.f32 0.0, %v2683
      %2685 = vmatprep.mubr.bf16.mxu0 0
      %2686 = vmatmul.mubr.bf16.gmra.mrb[0].mxu0 %v897
      %v2687 = vpop.f32.mrb[0].mxu0
      %v2688 = vadd.f32 0.0, %v2687
      %v2689 = vpop.f32.mrb[0].mxu0
      %v2690 = vadd.f32 0.0, %v2689
      %v2691 = vpop.f32.mrb[0].mxu0
      %v2692 = vadd.f32 0.0, %v2691
      %v2693 = vpop.f32.mrb[0].mxu0
      %v2694 = vadd.f32 0.0, %v2693
      %2695 = vmatprep.mubr.bf16.mxu0 0
      %2696 = vmatmul.mubr.bf16.gmra.mrb[0].mxu0 %v900
      %v2697 = vpop.f32.mrb[0].mxu0
      %v2698 = vadd.f32 0.0, %v2697
      %v2699 = vpop.f32.mrb[0].mxu0
      %v2700 = vadd.f32 0.0, %v2699
      %v2701 = vpop.f32.mrb[0].mxu0
      %v2702 = vadd.f32 0.0, %v2701
      %v2703 = vpop.f32.mrb[0].mxu0
      %v2704 = vadd.f32 0.0, %v2703
      %2705 = vmatprep.mubr.bf16.mxu0 0
      %2706 = vmatmul.mubr.bf16.gmra.mrb[0].mxu0 %v903
      %v2707 = vpop.f32.mrb[0].mxu0
      %v2708 = vadd.f32 0.0, %v2707
      %v2709 = vpop.f32.mrb[0].mxu0
      %v2710 = vadd.f32 0.0, %v2709
      %v2711 = vpop.f32.mrb[0].mxu0
      %v2712 = vadd.f32 0.0, %v2711
      %v2713 = vpop.f32.mrb[0].mxu0
      %v2714 = vadd.f32 0.0, %v2713
      %2715 = vmatprep.mubr.bf16.mxu0 0
      %2716 = vmatmul.mubr.bf16.gmra.mrb[0].mxu0 %v906
      %v2717 = vpop.f32.mrb[0].mxu0
      %v2718 = vadd.f32 0.0, %v2717
      %v2719 = vpop.f32.mrb[0].mxu0
      %v2720 = vadd.f32 0.0, %v2719
      %v2721 = vpop.f32.mrb[0].mxu0
      %v2722 = vadd.f32 0.0, %v2721
      %v2723 = vpop.f32.mrb[0].mxu0
      %v2724 = vadd.f32 0.0, %v2723
      %2725 = vmatprep.mubr.bf16.mxu0 0
      %2726 = vmatmul.mubr.bf16.gmra.mrb[0].mxu0 %v909
      %v2727 = vpop.f32.mrb[0].mxu0
      %v2728 = vadd.f32 0.0, %v2727
      %v2729 = vpop.f32.mrb[0].mxu0
      %v2730 = vadd.f32 0.0, %v2729
      %v2731 = vpop.f32.mrb[0].mxu0
      %v2732 = vadd.f32 0.0, %v2731
      %v2733 = vpop.f32.mrb[0].mxu0
      %v2734 = vadd.f32 0.0, %v2733
      %2735 = vmatprep.mubr.bf16.mxu0 0
      %2736 = vmatmul.mubr.bf16.gmra.mrb[0].mxu0 %v912
      %v2737 = vpop.f32.mrb[0].mxu0
      %v2738 = vadd.f32 0.0, %v2737
      %v2739 = vpop.f32.mrb[0].mxu0
      %v2740 = vadd.f32 0.0, %v2739
      %v2741 = vpop.f32.mrb[0].mxu0
      %v2742 = vadd.f32 0.0, %v2741
      %v2743 = vpop.f32.mrb[0].mxu0
      %v2744 = vadd.f32 0.0, %v2743
      %2745 = vmatprep.mubr.bf16.mxu0 0
      %2746 = vmatmul.mubr.bf16.gmra.mrb[0].mxu0 %v915
      %v2747 = vpop.f32.mrb[0].mxu0
      %v2748 = vadd.f32 0.0, %v2747
      %v2749 = vpop.f32.mrb[0].mxu0
      %v2750 = vadd.f32 0.0, %v2749
      %v2751 = vpop.f32.mrb[0].mxu0
      %v2752 = vadd.f32 0.0, %v2751
      %v2753 = vpop.f32.mrb[0].mxu0
      %v2754 = vadd.f32 0.0, %v2753
      %2755 = vmatprep.mubr.bf16.mxu0 0
      %2756 = vmatmul.mubr.bf16.gmra.mrb[0].mxu0 %v918
      %v2757 = vpop.f32.mrb[0].mxu0
      %v2758 = vadd.f32 0.0, %v2757
      %v2759 = vpop.f32.mrb[0].mxu0
      %v2760 = vadd.f32 0.0, %v2759
      %v2761 = vpop.f32.mrb[0].mxu0
      %v2762 = vadd.f32 0.0, %v2761
      %v2763 = vpop.f32.mrb[0].mxu0
      %v2764 = vadd.f32 0.0, %v2763
      %2765 = vmatprep.mubr.bf16.mxu0 0
      %2766 = vmatmul.mubr.bf16.gmra.mrb[0].mxu0 %v921
      %v2767 = vpop.f32.mrb[0].mxu0
      %v2768 = vadd.f32 0.0, %v2767
      %v2769 = vpop.f32.mrb[0].mxu0
      %v2770 = vadd.f32 0.0, %v2769
      %v2771 = vpop.f32.mrb[0].mxu0
      %v2772 = vadd.f32 0.0, %v2771
      %v2773 = vpop.f32.mrb[0].mxu0
      %v2774 = vadd.f32 0.0, %v2773
      %2775 = vmatprep.mubr.bf16.mxu0 0
      %2776 = vmatmul.mubr.bf16.gmra.mrb[0].mxu0 %v924
      %v2777 = vpop.f32.mrb[0].mxu0
      %v2778 = vadd.f32 0.0, %v2777
      %v2779 = vpop.f32.mrb[0].mxu0
      %v2780 = vadd.f32 0.0, %v2779
      %v2781 = vpop.f32.mrb[0].mxu0
      %v2782 = vadd.f32 0.0, %v2781
      %v2783 = vpop.f32.mrb[0].mxu0
      %v2784 = vadd.f32 0.0, %v2783
      %2785 = vmatprep.mubr.bf16.mxu0 0
      %2786 = vmatmul.mubr.bf16.gmra.mrb[0].mxu0 %v927
      %v2787 = vpop.f32.mrb[0].mxu0
      %v2788 = vadd.f32 0.0, %v2787
      %v2789 = vpop.f32.mrb[0].mxu0
      %v2790 = vadd.f32 0.0, %v2789
      %v2791 = vpop.f32.mrb[0].mxu0
      %v2792 = vadd.f32 0.0, %v2791
      %v2793 = vpop.f32.mrb[0].mxu0
      %v2794 = vadd.f32 0.0, %v2793
      %2795 = vmatprep.mubr.bf16.mxu0 0
      %2796 = vmatmul.mubr.bf16.gmra.mrb[0].mxu0 %v930
      %v2797 = vpop.f32.mrb[0].mxu0
      %v2798 = vadd.f32 0.0, %v2797
      %v2799 = vpop.f32.mrb[0].mxu0
      %v2800 = vadd.f32 0.0, %v2799
      %v2801 = vpop.f32.mrb[0].mxu0
      %v2802 = vadd.f32 0.0, %v2801
      %v2803 = vpop.f32.mrb[0].mxu0
      %v2804 = vadd.f32 0.0, %v2803
      %2805 = vmatprep.mubr.bf16.mxu0 0
      %2806 = vmatmul.mubr.bf16.gmra.mrb[0].mxu0 %v933
      %v2807 = vpop.f32.mrb[0].mxu0
      %v2808 = vadd.f32 0.0, %v2807
      %v2809 = vpop.f32.mrb[0].mxu0
      %v2810 = vadd.f32 0.0, %v2809
      %v2811 = vpop.f32.mrb[0].mxu0
      %v2812 = vadd.f32 0.0, %v2811
      %v2813 = vpop.f32.mrb[0].mxu0
      %v2814 = vadd.f32 0.0, %v2813
      %2815 = vmatprep.mubr.bf16.mxu0 0
      %2816 = vmatmul.mubr.bf16.gmra.mrb[0].mxu0 %v936
      %v2817 = vpop.f32.mrb[0].mxu0
      %v2818 = vadd.f32 0.0, %v2817
      %v2819 = vpop.f32.mrb[0].mxu0
      %v2820 = vadd.f32 0.0, %v2819
      %v2821 = vpop.f32.mrb[0].mxu0
      %v2822 = vadd.f32 0.0, %v2821
      %v2823 = vpop.f32.mrb[0].mxu0
      %v2824 = vadd.f32 0.0, %v2823
      %2825 = vmatprep.mubr.bf16.mxu0 0
      %2826 = vmatmul.mubr.bf16.gmra.mrb[0].mxu0 %v939
      %v2827 = vpop.f32.mrb[0].mxu0
      %v2828 = vadd.f32 0.0, %v2827
      %v2829 = vpop.f32.mrb[0].mxu0
      %v2830 = vadd.f32 0.0, %v2829
      %v2831 = vpop.f32.mrb[0].mxu0
      %v2832 = vadd.f32 0.0, %v2831
      %v2833 = vpop.f32.mrb[0].mxu0
      %v2834 = vadd.f32 0.0, %v2833
      %2835 = vmatprep.mubr.bf16.mxu0 0
      %2836 = vmatmul.mubr.bf16.gmra.mrb[0].mxu0 %v942
      %v2837 = vpop.f32.mrb[0].mxu0
      %v2838 = vadd.f32 0.0, %v2837
      %v2839 = vpop.f32.mrb[0].mxu0
      %v2840 = vadd.f32 0.0, %v2839
      %v2841 = vpop.f32.mrb[0].mxu0
      %v2842 = vadd.f32 0.0, %v2841
      %v2843 = vpop.f32.mrb[0].mxu0
      %v2844 = vadd.f32 0.0, %v2843
      %2845 = vmatprep.mubr.bf16.mxu0 0
      %2846 = vmatmul.mubr.bf16.gmra.mrb[0].mxu0 %v945
      %v2847 = vpop.f32.mrb[0].mxu0
      %v2848 = vadd.f32 0.0, %v2847
      %v2849 = vpop.f32.mrb[0].mxu0
      %v2850 = vadd.f32 0.0, %v2849
      %v2851 = vpop.f32.mrb[0].mxu0
      %v2852 = vadd.f32 0.0, %v2851
      %v2853 = vpop.f32.mrb[0].mxu0
      %v2854 = vadd.f32 0.0, %v2853
      %2855 = vmatprep.mubr.bf16.mxu0 0
      %2856 = vmatmul.mubr.bf16.gmra.mrb[0].mxu0 %v948
      %v2857 = vpop.f32.mrb[0].mxu0
      %v2858 = vadd.f32 0.0, %v2857
      %v2859 = vpop.f32.mrb[0].mxu0
      %v2860 = vadd.f32 0.0, %v2859
      %v2861 = vpop.f32.mrb[0].mxu0
      %v2862 = vadd.f32 0.0, %v2861
      %v2863 = vpop.f32.mrb[0].mxu0
      %v2864 = vadd.f32 0.0, %v2863
      %2865 = vmatprep.mubr.bf16.mxu0 0
      %2866 = vmatmul.mubr.bf16.gmra.mrb[0].mxu0 %v951
      %v2867 = vpop.f32.mrb[0].mxu0
      %v2868 = vadd.f32 0.0, %v2867
      %v2869 = vpop.f32.mrb[0].mxu0
      %v2870 = vadd.f32 0.0, %v2869
      %v2871 = vpop.f32.mrb[0].mxu0
      %v2872 = vadd.f32 0.0, %v2871
      %v2873 = vpop.f32.mrb[0].mxu0
      %v2874 = vadd.f32 0.0, %v2873
      %2875 = vmatprep.mubr.bf16.mxu0 0
      %2876 = vmatmul.mubr.bf16.gmra.mrb[0].mxu0 %v954
      %v2877 = vpop.f32.mrb[0].mxu0
      %v2878 = vadd.f32 0.0, %v2877
      %v2879 = vpop.f32.mrb[0].mxu0
      %v2880 = vadd.f32 0.0, %v2879
      %v2881 = vpop.f32.mrb[0].mxu0
      %v2882 = vadd.f32 0.0, %v2881
      %v2883 = vpop.f32.mrb[0].mxu0
      %v2884 = vadd.f32 0.0, %v2883
      %2885 = vmatprep.mubr.bf16.mxu0 0
      %2886 = vmatmul.mubr.bf16.gmra.mrb[0].mxu0 %v957
      %v2887 = vpop.f32.mrb[0].mxu0
      %v2888 = vadd.f32 0.0, %v2887
      %v2889 = vpop.f32.mrb[0].mxu0
      %v2890 = vadd.f32 0.0, %v2889
      %v2891 = vpop.f32.mrb[0].mxu0
      %v2892 = vadd.f32 0.0, %v2891
      %v2893 = vpop.f32.mrb[0].mxu0
      %v2894 = vadd.f32 0.0, %v2893
      %2895 = vmatprep.mubr.bf16.mxu0 0
      %2896 = vmatmul.mubr.bf16.gmra.mrb[0].mxu0 %v960
      %v2897 = vpop.f32.mrb[0].mxu0
      %v2898 = vadd.f32 0.0, %v2897
      %v2899 = vpop.f32.mrb[0].mxu0
      %v2900 = vadd.f32 0.0, %v2899
      %v2901 = vpop.f32.mrb[0].mxu0
      %v2902 = vadd.f32 0.0, %v2901
      %v2903 = vpop.f32.mrb[0].mxu0
      %v2904 = vadd.f32 0.0, %v2903
      %2905 = vmatprep.mubr.bf16.mxu0 0
      %2906 = vmatmul.mubr.bf16.gmra.mrb[0].mxu0 %v963
      %v2907 = vpop.f32.mrb[0].mxu0
      %v2908 = vadd.f32 0.0, %v2907
      %v2909 = vpop.f32.mrb[0].mxu0
      %v2910 = vadd.f32 0.0, %v2909
      %v2911 = vpop.f32.mrb[0].mxu0
      %v2912 = vadd.f32 0.0, %v2911
      %v2913 = vpop.f32.mrb[0].mxu0
      %v2914 = vadd.f32 0.0, %v2913
      %2915 = vmatprep.mubr.bf16.mxu0 0
      %2916 = vmatmul.mubr.bf16.gmra.mrb[0].mxu0 %v966
      %v2917 = vpop.f32.mrb[0].mxu0
      %v2918 = vadd.f32 0.0, %v2917
      %v2919 = vpop.f32.mrb[0].mxu0
      %v2920 = vadd.f32 0.0, %v2919
      %v2921 = vpop.f32.mrb[0].mxu0
      %v2922 = vadd.f32 0.0, %v2921
      %v2923 = vpop.f32.mrb[0].mxu0
      %v2924 = vadd.f32 0.0, %v2923
      %2925 = vmatprep.mubr.bf16.mxu0 0
      %2926 = vmatmul.mubr.bf16.gmra.mrb[0].mxu0 %v969
      %v2927 = vpop.f32.mrb[0].mxu0
      %v2928 = vadd.f32 0.0, %v2927
      %v2929 = vpop.f32.mrb[0].mxu0
      %v2930 = vadd.f32 0.0, %v2929
      %v2931 = vpop.f32.mrb[0].mxu0
      %v2932 = vadd.f32 0.0, %v2931
      %v2933 = vpop.f32.mrb[0].mxu0
      %v2934 = vadd.f32 0.0, %v2933
      %2935 = vdwg.mxu0
      %2936 = vmatprep.subr.bf16.mxu0 %v745
      %2937 = vmatpush1.bf16.msra.mxu0 %v744
      %2938 = vmatprep.subr.bf16.mxu0 %v761
      %2939 = vmatpush1.bf16.msra.mxu0 %v760
      %2940 = vmatprep.subr.bf16.mxu0 %v777
      %2941 = vmatpush1.bf16.msra.mxu0 %v776
      %2942 = vmatprep.subr.bf16.mxu0 %v793
      %2943 = vmatpush1.bf16.msra.mxu0 %v792
      %2944 = vmatprep.subr.bf16.mxu0 0
      %2945 = vmatpush1.bf16.msra.mxu0 0
      %2946 = vmatprep.subr.bf16.mxu0 0
      %2947 = vmatpush1.bf16.msra.mxu0 0
      %2948 = vmatprep.subr.bf16.mxu0 0
      %2949 = vmatpush1.bf16.msra.mxu0 0
      %2950 = vmatprep.subr.bf16.mxu0 0
      %2951 = vmatpush1.bf16.msra.mxu0 0
      %2952 = vmatprep.subr.bf16.mxu0 0
      %2953 = vmatpush1.bf16.msra.mxu0 0
      %2954 = vmatprep.subr.bf16.mxu0 0
      %2955 = vmatpush1.bf16.msra.mxu0 0
      %2956 = vmatprep.subr.bf16.mxu0 0
      %2957 = vmatpush1.bf16.msra.mxu0 0
      %2958 = vmatprep.subr.bf16.mxu0 0
      %2959 = vmatpush1.bf16.msra.mxu0 0
      %2960 = vmatprep.subr.bf16.mxu0 0
      %2961 = vmatpush1.bf16.msra.mxu0 0
      %2962 = vmatprep.subr.bf16.mxu0 0
      %2963 = vmatpush1.bf16.msra.mxu0 0
      %2964 = vmatprep.subr.bf16.mxu0 0
      %2965 = vmatpush1.bf16.msra.mxu0 0
      %2966 = vmatprep.subr.bf16.mxu0 0
      %2967 = vmatpush1.bf16.msra.mxu0 0
      %2968 = vmatprep.mubr.bf16.mxu0 0
      %2969 = vmatmul.mubr.bf16.gmra.mrb[0].mxu0 %v864
      %v2970 = vpop.f32.mrb[0].mxu0
      %v2971 = vadd.f32 0.0, %v2970
      %v2972 = vpop.f32.mrb[0].mxu0
      %v2973 = vadd.f32 0.0, %v2972
      %v2974 = vpop.f32.mrb[0].mxu0
      %v2975 = vadd.f32 0.0, %v2974
      %v2976 = vpop.f32.mrb[0].mxu0
      %v2977 = vadd.f32 0.0, %v2976
      %2978 = vmatprep.mubr.bf16.mxu0 0
      %2979 = vmatmul.mubr.bf16.gmra.mrb[0].mxu0 %v867
      %v2980 = vpop.f32.mrb[0].mxu0
      %v2981 = vadd.f32 0.0, %v2980
      %v2982 = vpop.f32.mrb[0].mxu0
      %v2983 = vadd.f32 0.0, %v2982
      %v2984 = vpop.f32.mrb[0].mxu0
      %v2985 = vadd.f32 0.0, %v2984
      %v2986 = vpop.f32.mrb[0].mxu0
      %v2987 = vadd.f32 0.0, %v2986
      %2988 = vmatprep.mubr.bf16.mxu0 0
      %2989 = vmatmul.mubr.bf16.gmra.mrb[0].mxu0 %v870
      %v2990 = vpop.f32.mrb[0].mxu0
      %v2991 = vadd.f32 0.0, %v2990
      %v2992 = vpop.f32.mrb[0].mxu0
      %v2993 = vadd.f32 0.0, %v2992
      %v2994 = vpop.f32.mrb[0].mxu0
      %v2995 = vadd.f32 0.0, %v2994
      %v2996 = vpop.f32.mrb[0].mxu0
      %v2997 = vadd.f32 0.0, %v2996
      %2998 = vmatprep.mubr.bf16.mxu0 0
      %2999 = vmatmul.mubr.bf16.gmra.mrb[0].mxu0 %v873
      %v3000 = vpop.f32.mrb[0].mxu0
      %v3001 = vadd.f32 0.0, %v3000
      %v3002 = vpop.f32.mrb[0].mxu0
      %v3003 = vadd.f32 0.0, %v3002
      %v3004 = vpop.f32.mrb[0].mxu0
      %v3005 = vadd.f32 0.0, %v3004
      %v3006 = vpop.f32.mrb[0].mxu0
      %v3007 = vadd.f32 0.0, %v3006
      %3008 = vmatprep.mubr.bf16.mxu0 0
      %3009 = vmatmul.mubr.bf16.gmra.mrb[0].mxu0 %v876
      %v3010 = vpop.f32.mrb[0].mxu0
      %v3011 = vadd.f32 0.0, %v3010
      %v3012 = vpop.f32.mrb[0].mxu0
      %v3013 = vadd.f32 0.0, %v3012
      %v3014 = vpop.f32.mrb[0].mxu0
      %v3015 = vadd.f32 0.0, %v3014
      %v3016 = vpop.f32.mrb[0].mxu0
      %v3017 = vadd.f32 0.0, %v3016
      %3018 = vmatprep.mubr.bf16.mxu0 0
      %3019 = vmatmul.mubr.bf16.gmra.mrb[0].mxu0 %v879
      %v3020 = vpop.f32.mrb[0].mxu0
      %v3021 = vadd.f32 0.0, %v3020
      %v3022 = vpop.f32.mrb[0].mxu0
      %v3023 = vadd.f32 0.0, %v3022
      %v3024 = vpop.f32.mrb[0].mxu0
      %v3025 = vadd.f32 0.0, %v3024
      %v3026 = vpop.f32.mrb[0].mxu0
      %v3027 = vadd.f32 0.0, %v3026
      %3028 = vmatprep.mubr.bf16.mxu0 0
      %3029 = vmatmul.mubr.bf16.gmra.mrb[0].mxu0 %v882
      %v3030 = vpop.f32.mrb[0].mxu0
      %v3031 = vadd.f32 0.0, %v3030
      %v3032 = vpop.f32.mrb[0].mxu0
      %v3033 = vadd.f32 0.0, %v3032
      %v3034 = vpop.f32.mrb[0].mxu0
      %v3035 = vadd.f32 0.0, %v3034
      %v3036 = vpop.f32.mrb[0].mxu0
      %v3037 = vadd.f32 0.0, %v3036
      %3038 = vmatprep.mubr.bf16.mxu0 0
      %3039 = vmatmul.mubr.bf16.gmra.mrb[0].mxu0 %v885
      %v3040 = vpop.f32.mrb[0].mxu0
      %v3041 = vadd.f32 0.0, %v3040
      %v3042 = vpop.f32.mrb[0].mxu0
      %v3043 = vadd.f32 0.0, %v3042
      %v3044 = vpop.f32.mrb[0].mxu0
      %v3045 = vadd.f32 0.0, %v3044
      %v3046 = vpop.f32.mrb[0].mxu0
      %v3047 = vadd.f32 0.0, %v3046
      %3048 = vmatprep.mubr.bf16.mxu0 0
      %3049 = vmatmul.mubr.bf16.gmra.mrb[0].mxu0 %v888
      %v3050 = vpop.f32.mrb[0].mxu0
      %v3051 = vadd.f32 0.0, %v3050
      %v3052 = vpop.f32.mrb[0].mxu0
      %v3053 = vadd.f32 0.0, %v3052
      %v3054 = vpop.f32.mrb[0].mxu0
      %v3055 = vadd.f32 0.0, %v3054
      %v3056 = vpop.f32.mrb[0].mxu0
      %v3057 = vadd.f32 0.0, %v3056
      %3058 = vmatprep.mubr.bf16.mxu0 0
      %3059 = vmatmul.mubr.bf16.gmra.mrb[0].mxu0 %v891
      %v3060 = vpop.f32.mrb[0].mxu0
      %v3061 = vadd.f32 0.0, %v3060
      %v3062 = vpop.f32.mrb[0].mxu0
      %v3063 = vadd.f32 0.0, %v3062
      %v3064 = vpop.f32.mrb[0].mxu0
      %v3065 = vadd.f32 0.0, %v3064
      %v3066 = vpop.f32.mrb[0].mxu0
      %v3067 = vadd.f32 0.0, %v3066
      %3068 = vmatprep.mubr.bf16.mxu0 0
      %3069 = vmatmul.mubr.bf16.gmra.mrb[0].mxu0 %v894
      %v3070 = vpop.f32.mrb[0].mxu0
      %v3071 = vadd.f32 0.0, %v3070
      %v3072 = vpop.f32.mrb[0].mxu0
      %v3073 = vadd.f32 0.0, %v3072
      %v3074 = vpop.f32.mrb[0].mxu0
      %v3075 = vadd.f32 0.0, %v3074
      %v3076 = vpop.f32.mrb[0].mxu0
      %v3077 = vadd.f32 0.0, %v3076
      %3078 = vmatprep.mubr.bf16.mxu0 0
      %3079 = vmatmul.mubr.bf16.gmra.mrb[0].mxu0 %v897
      %v3080 = vpop.f32.mrb[0].mxu0
      %v3081 = vadd.f32 0.0, %v3080
      %v3082 = vpop.f32.mrb[0].mxu0
      %v3083 = vadd.f32 0.0, %v3082
      %v3084 = vpop.f32.mrb[0].mxu0
      %v3085 = vadd.f32 0.0, %v3084
      %v3086 = vpop.f32.mrb[0].mxu0
      %v3087 = vadd.f32 0.0, %v3086
      %3088 = vmatprep.mubr.bf16.mxu0 0
      %3089 = vmatmul.mubr.bf16.gmra.mrb[0].mxu0 %v900
      %v3090 = vpop.f32.mrb[0].mxu0
      %v3091 = vadd.f32 0.0, %v3090
      %v3092 = vpop.f32.mrb[0].mxu0
      %v3093 = vadd.f32 0.0, %v3092
      %v3094 = vpop.f32.mrb[0].mxu0
      %v3095 = vadd.f32 0.0, %v3094
      %v3096 = vpop.f32.mrb[0].mxu0
      %v3097 = vadd.f32 0.0, %v3096
      %3098 = vmatprep.mubr.bf16.mxu0 0
      %3099 = vmatmul.mubr.bf16.gmra.mrb[0].mxu0 %v903
      %v3100 = vpop.f32.mrb[0].mxu0
      %v3101 = vadd.f32 0.0, %v3100
      %v3102 = vpop.f32.mrb[0].mxu0
      %v3103 = vadd.f32 0.0, %v3102
      %v3104 = vpop.f32.mrb[0].mxu0
      %v3105 = vadd.f32 0.0, %v3104
      %v3106 = vpop.f32.mrb[0].mxu0
      %v3107 = vadd.f32 0.0, %v3106
      %3108 = vmatprep.mubr.bf16.mxu0 0
      %3109 = vmatmul.mubr.bf16.gmra.mrb[0].mxu0 %v906
      %v3110 = vpop.f32.mrb[0].mxu0
      %v3111 = vadd.f32 0.0, %v3110
      %v3112 = vpop.f32.mrb[0].mxu0
      %v3113 = vadd.f32 0.0, %v3112
      %v3114 = vpop.f32.mrb[0].mxu0
      %v3115 = vadd.f32 0.0, %v3114
      %v3116 = vpop.f32.mrb[0].mxu0
      %v3117 = vadd.f32 0.0, %v3116
      %3118 = vmatprep.mubr.bf16.mxu0 0
      %3119 = vmatmul.mubr.bf16.gmra.mrb[0].mxu0 %v909
      %v3120 = vpop.f32.mrb[0].mxu0
      %v3121 = vadd.f32 0.0, %v3120
      %v3122 = vpop.f32.mrb[0].mxu0
      %v3123 = vadd.f32 0.0, %v3122
      %v3124 = vpop.f32.mrb[0].mxu0
      %v3125 = vadd.f32 0.0, %v3124
      %v3126 = vpop.f32.mrb[0].mxu0
      %v3127 = vadd.f32 0.0, %v3126
      %3128 = vmatprep.mubr.bf16.mxu0 0
      %3129 = vmatmul.mubr.bf16.gmra.mrb[0].mxu0 %v912
      %v3130 = vpop.f32.mrb[0].mxu0
      %v3131 = vadd.f32 0.0, %v3130
      %v3132 = vpop.f32.mrb[0].mxu0
      %v3133 = vadd.f32 0.0, %v3132
      %v3134 = vpop.f32.mrb[0].mxu0
      %v3135 = vadd.f32 0.0, %v3134
      %v3136 = vpop.f32.mrb[0].mxu0
      %v3137 = vadd.f32 0.0, %v3136
      %3138 = vmatprep.mubr.bf16.mxu0 0
      %3139 = vmatmul.mubr.bf16.gmra.mrb[0].mxu0 %v915
      %v3140 = vpop.f32.mrb[0].mxu0
      %v3141 = vadd.f32 0.0, %v3140
      %v3142 = vpop.f32.mrb[0].mxu0
      %v3143 = vadd.f32 0.0, %v3142
      %v3144 = vpop.f32.mrb[0].mxu0
      %v3145 = vadd.f32 0.0, %v3144
      %v3146 = vpop.f32.mrb[0].mxu0
      %v3147 = vadd.f32 0.0, %v3146
      %3148 = vmatprep.mubr.bf16.mxu0 0
      %3149 = vmatmul.mubr.bf16.gmra.mrb[0].mxu0 %v918
      %v3150 = vpop.f32.mrb[0].mxu0
      %v3151 = vadd.f32 0.0, %v3150
      %v3152 = vpop.f32.mrb[0].mxu0
      %v3153 = vadd.f32 0.0, %v3152
      %v3154 = vpop.f32.mrb[0].mxu0
      %v3155 = vadd.f32 0.0, %v3154
      %v3156 = vpop.f32.mrb[0].mxu0
      %v3157 = vadd.f32 0.0, %v3156
      %3158 = vmatprep.mubr.bf16.mxu0 0
      %3159 = vmatmul.mubr.bf16.gmra.mrb[0].mxu0 %v921
      %v3160 = vpop.f32.mrb[0].mxu0
      %v3161 = vadd.f32 0.0, %v3160
      %v3162 = vpop.f32.mrb[0].mxu0
      %v3163 = vadd.f32 0.0, %v3162
      %v3164 = vpop.f32.mrb[0].mxu0
      %v3165 = vadd.f32 0.0, %v3164
      %v3166 = vpop.f32.mrb[0].mxu0
      %v3167 = vadd.f32 0.0, %v3166
      %3168 = vmatprep.mubr.bf16.mxu0 0
      %3169 = vmatmul.mubr.bf16.gmra.mrb[0].mxu0 %v924
      %v3170 = vpop.f32.mrb[0].mxu0
      %v3171 = vadd.f32 0.0, %v3170
      %v3172 = vpop.f32.mrb[0].mxu0
      %v3173 = vadd.f32 0.0, %v3172
      %v3174 = vpop.f32.mrb[0].mxu0
      %v3175 = vadd.f32 0.0, %v3174
      %v3176 = vpop.f32.mrb[0].mxu0
      %v3177 = vadd.f32 0.0, %v3176
      %3178 = vmatprep.mubr.bf16.mxu0 0
      %3179 = vmatmul.mubr.bf16.gmra.mrb[0].mxu0 %v927
      %v3180 = vpop.f32.mrb[0].mxu0
      %v3181 = vadd.f32 0.0, %v3180
      %v3182 = vpop.f32.mrb[0].mxu0
      %v3183 = vadd.f32 0.0, %v3182
      %v3184 = vpop.f32.mrb[0].mxu0
      %v3185 = vadd.f32 0.0, %v3184
      %v3186 = vpop.f32.mrb[0].mxu0
      %v3187 = vadd.f32 0.0, %v3186
      %3188 = vmatprep.mubr.bf16.mxu0 0
      %3189 = vmatmul.mubr.bf16.gmra.mrb[0].mxu0 %v930
      %v3190 = vpop.f32.mrb[0].mxu0
      %v3191 = vadd.f32 0.0, %v3190
      %v3192 = vpop.f32.mrb[0].mxu0
      %v3193 = vadd.f32 0.0, %v3192
      %v3194 = vpop.f32.mrb[0].mxu0
      %v3195 = vadd.f32 0.0, %v3194
      %v3196 = vpop.f32.mrb[0].mxu0
      %v3197 = vadd.f32 0.0, %v3196
      %3198 = vmatprep.mubr.bf16.mxu0 0
      %3199 = vmatmul.mubr.bf16.gmra.mrb[0].mxu0 %v933
      %v3200 = vpop.f32.mrb[0].mxu0
      %v3201 = vadd.f32 0.0, %v3200
      %v3202 = vpop.f32.mrb[0].mxu0
      %v3203 = vadd.f32 0.0, %v3202
      %v3204 = vpop.f32.mrb[0].mxu0
      %v3205 = vadd.f32 0.0, %v3204
      %v3206 = vpop.f32.mrb[0].mxu0
      %v3207 = vadd.f32 0.0, %v3206
      %3208 = vmatprep.mubr.bf16.mxu0 0
      %3209 = vmatmul.mubr.bf16.gmra.mrb[0].mxu0 %v936
      %v3210 = vpop.f32.mrb[0].mxu0
      %v3211 = vadd.f32 0.0, %v3210
      %v3212 = vpop.f32.mrb[0].mxu0
      %v3213 = vadd.f32 0.0, %v3212
      %v3214 = vpop.f32.mrb[0].mxu0
      %v3215 = vadd.f32 0.0, %v3214
      %v3216 = vpop.f32.mrb[0].mxu0
      %v3217 = vadd.f32 0.0, %v3216
      %3218 = vmatprep.mubr.bf16.mxu0 0
      %3219 = vmatmul.mubr.bf16.gmra.mrb[0].mxu0 %v939
      %v3220 = vpop.f32.mrb[0].mxu0
      %v3221 = vadd.f32 0.0, %v3220
      %v3222 = vpop.f32.mrb[0].mxu0
      %v3223 = vadd.f32 0.0, %v3222
      %v3224 = vpop.f32.mrb[0].mxu0
      %v3225 = vadd.f32 0.0, %v3224
      %v3226 = vpop.f32.mrb[0].mxu0
      %v3227 = vadd.f32 0.0, %v3226
      %3228 = vmatprep.mubr.bf16.mxu0 0
      %3229 = vmatmul.mubr.bf16.gmra.mrb[0].mxu0 %v942
      %v3230 = vpop.f32.mrb[0].mxu0
      %v3231 = vadd.f32 0.0, %v3230
      %v3232 = vpop.f32.mrb[0].mxu0
      %v3233 = vadd.f32 0.0, %v3232
      %v3234 = vpop.f32.mrb[0].mxu0
      %v3235 = vadd.f32 0.0, %v3234
      %v3236 = vpop.f32.mrb[0].mxu0
      %v3237 = vadd.f32 0.0, %v3236
      %3238 = vmatprep.mubr.bf16.mxu0 0
      %3239 = vmatmul.mubr.bf16.gmra.mrb[0].mxu0 %v945
      %v3240 = vpop.f32.mrb[0].mxu0
      %v3241 = vadd.f32 0.0, %v3240
      %v3242 = vpop.f32.mrb[0].mxu0
      %v3243 = vadd.f32 0.0, %v3242
      %v3244 = vpop.f32.mrb[0].mxu0
      %v3245 = vadd.f32 0.0, %v3244
      %v3246 = vpop.f32.mrb[0].mxu0
      %v3247 = vadd.f32 0.0, %v3246
      %3248 = vmatprep.mubr.bf16.mxu0 0
      %3249 = vmatmul.mubr.bf16.gmra.mrb[0].mxu0 %v948
      %v3250 = vpop.f32.mrb[0].mxu0
      %v3251 = vadd.f32 0.0, %v3250
      %v3252 = vpop.f32.mrb[0].mxu0
      %v3253 = vadd.f32 0.0, %v3252
      %v3254 = vpop.f32.mrb[0].mxu0
      %v3255 = vadd.f32 0.0, %v3254
      %v3256 = vpop.f32.mrb[0].mxu0
      %v3257 = vadd.f32 0.0, %v3256
      %3258 = vmatprep.mubr.bf16.mxu0 0
      %3259 = vmatmul.mubr.bf16.gmra.mrb[0].mxu0 %v951
      %v3260 = vpop.f32.mrb[0].mxu0
      %v3261 = vadd.f32 0.0, %v3260
      %v3262 = vpop.f32.mrb[0].mxu0
      %v3263 = vadd.f32 0.0, %v3262
      %v3264 = vpop.f32.mrb[0].mxu0
      %v3265 = vadd.f32 0.0, %v3264
      %v3266 = vpop.f32.mrb[0].mxu0
      %v3267 = vadd.f32 0.0, %v3266
      %3268 = vmatprep.mubr.bf16.mxu0 0
      %3269 = vmatmul.mubr.bf16.gmra.mrb[0].mxu0 %v954
      %v3270 = vpop.f32.mrb[0].mxu0
      %v3271 = vadd.f32 0.0, %v3270
      %v3272 = vpop.f32.mrb[0].mxu0
      %v3273 = vadd.f32 0.0, %v3272
      %v3274 = vpop.f32.mrb[0].mxu0
      %v3275 = vadd.f32 0.0, %v3274
      %v3276 = vpop.f32.mrb[0].mxu0
      %v3277 = vadd.f32 0.0, %v3276
      %3278 = vmatprep.mubr.bf16.mxu0 0
      %3279 = vmatmul.mubr.bf16.gmra.mrb[0].mxu0 %v957
      %v3280 = vpop.f32.mrb[0].mxu0
      %v3281 = vadd.f32 0.0, %v3280
      %v3282 = vpop.f32.mrb[0].mxu0
      %v3283 = vadd.f32 0.0, %v3282
      %v3284 = vpop.f32.mrb[0].mxu0
      %v3285 = vadd.f32 0.0, %v3284
      %v3286 = vpop.f32.mrb[0].mxu0
      %v3287 = vadd.f32 0.0, %v3286
      %3288 = vmatprep.mubr.bf16.mxu0 0
      %3289 = vmatmul.mubr.bf16.gmra.mrb[0].mxu0 %v960
      %v3290 = vpop.f32.mrb[0].mxu0
      %v3291 = vadd.f32 0.0, %v3290
      %v3292 = vpop.f32.mrb[0].mxu0
      %v3293 = vadd.f32 0.0, %v3292
      %v3294 = vpop.f32.mrb[0].mxu0
      %v3295 = vadd.f32 0.0, %v3294
      %v3296 = vpop.f32.mrb[0].mxu0
      %v3297 = vadd.f32 0.0, %v3296
      %3298 = vmatprep.mubr.bf16.mxu0 0
      %3299 = vmatmul.mubr.bf16.gmra.mrb[0].mxu0 %v963
      %v3300 = vpop.f32.mrb[0].mxu0
      %v3301 = vadd.f32 0.0, %v3300
      %v3302 = vpop.f32.mrb[0].mxu0
      %v3303 = vadd.f32 0.0, %v3302
      %v3304 = vpop.f32.mrb[0].mxu0
      %v3305 = vadd.f32 0.0, %v3304
      %v3306 = vpop.f32.mrb[0].mxu0
      %v3307 = vadd.f32 0.0, %v3306
      %3308 = vmatprep.mubr.bf16.mxu0 0
      %3309 = vmatmul.mubr.bf16.gmra.mrb[0].mxu0 %v966
      %v3310 = vpop.f32.mrb[0].mxu0
      %v3311 = vadd.f32 0.0, %v3310
      %v3312 = vpop.f32.mrb[0].mxu0
      %v3313 = vadd.f32 0.0, %v3312
      %v3314 = vpop.f32.mrb[0].mxu0
      %v3315 = vadd.f32 0.0, %v3314
      %v3316 = vpop.f32.mrb[0].mxu0
      %v3317 = vadd.f32 0.0, %v3316
      %3318 = vmatprep.mubr.bf16.mxu0 0
      %3319 = vmatmul.mubr.bf16.gmra.mrb[0].mxu0 %v969
      %v3320 = vpop.f32.mrb[0].mxu0
      %v3321 = vadd.f32 0.0, %v3320
      %v3322 = vpop.f32.mrb[0].mxu0
      %v3323 = vadd.f32 0.0, %v3322
      %v3324 = vpop.f32.mrb[0].mxu0
      %v3325 = vadd.f32 0.0, %v3324
      %v3326 = vpop.f32.mrb[0].mxu0
      %v3327 = vadd.f32 0.0, %v3326
      %3328 = vdwg.mxu0
      %3329 = vmatprep.subr.bf16.mxu0 %v747
      %3330 = vmatpush1.bf16.msra.mxu0 %v746
      %3331 = vmatprep.subr.bf16.mxu0 %v763
      %3332 = vmatpush1.bf16.msra.mxu0 %v762
      %3333 = vmatprep.subr.bf16.mxu0 %v779
      %3334 = vmatpush1.bf16.msra.mxu0 %v778
      %3335 = vmatprep.subr.bf16.mxu0 %v795
      %3336 = vmatpush1.bf16.msra.mxu0 %v794
      %3337 = vmatprep.subr.bf16.mxu0 0
      %3338 = vmatpush1.bf16.msra.mxu0 0
      %3339 = vmatprep.subr.bf16.mxu0 0
      %3340 = vmatpush1.bf16.msra.mxu0 0
      %3341 = vmatprep.subr.bf16.mxu0 0
      %3342 = vmatpush1.bf16.msra.mxu0 0
      %3343 = vmatprep.subr.bf16.mxu0 0
      %3344 = vmatpush1.bf16.msra.mxu0 0
      %3345 = vmatprep.subr.bf16.mxu0 0
      %3346 = vmatpush1.bf16.msra.mxu0 0
      %3347 = vmatprep.subr.bf16.mxu0 0
      %3348 = vmatpush1.bf16.msra.mxu0 0
      %3349 = vmatprep.subr.bf16.mxu0 0
      %3350 = vmatpush1.bf16.msra.mxu0 0
      %3351 = vmatprep.subr.bf16.mxu0 0
      %3352 = vmatpush1.bf16.msra.mxu0 0
      %3353 = vmatprep.subr.bf16.mxu0 0
      %3354 = vmatpush1.bf16.msra.mxu0 0
      %3355 = vmatprep.subr.bf16.mxu0 0
      %3356 = vmatpush1.bf16.msra.mxu0 0
      %3357 = vmatprep.subr.bf16.mxu0 0
      %3358 = vmatpush1.bf16.msra.mxu0 0
      %3359 = vmatprep.subr.bf16.mxu0 0
      %3360 = vmatpush1.bf16.msra.mxu0 0
      %3361 = vmatprep.mubr.bf16.mxu0 0
      %3362 = vmatmul.mubr.bf16.gmra.mrb[0].mxu0 %v864
      %v3363 = vpop.f32.mrb[0].mxu0
      %v3364 = vadd.f32 0.0, %v3363
      %v3365 = vpop.f32.mrb[0].mxu0
      %v3366 = vadd.f32 0.0, %v3365
      %v3367 = vpop.f32.mrb[0].mxu0
      %v3368 = vadd.f32 0.0, %v3367
      %v3369 = vpop.f32.mrb[0].mxu0
      %v3370 = vadd.f32 0.0, %v3369
      %3371 = vmatprep.mubr.bf16.mxu0 0
      %3372 = vmatmul.mubr.bf16.gmra.mrb[0].mxu0 %v867
      %v3373 = vpop.f32.mrb[0].mxu0
      %v3374 = vadd.f32 0.0, %v3373
      %v3375 = vpop.f32.mrb[0].mxu0
      %v3376 = vadd.f32 0.0, %v3375
      %v3377 = vpop.f32.mrb[0].mxu0
      %v3378 = vadd.f32 0.0, %v3377
      %v3379 = vpop.f32.mrb[0].mxu0
      %v3380 = vadd.f32 0.0, %v3379
      %3381 = vmatprep.mubr.bf16.mxu0 0
      %3382 = vmatmul.mubr.bf16.gmra.mrb[0].mxu0 %v870
      %v3383 = vpop.f32.mrb[0].mxu0
      %v3384 = vadd.f32 0.0, %v3383
      %v3385 = vpop.f32.mrb[0].mxu0
      %v3386 = vadd.f32 0.0, %v3385
      %v3387 = vpop.f32.mrb[0].mxu0
      %v3388 = vadd.f32 0.0, %v3387
      %v3389 = vpop.f32.mrb[0].mxu0
      %v3390 = vadd.f32 0.0, %v3389
      %3391 = vmatprep.mubr.bf16.mxu0 0
      %3392 = vmatmul.mubr.bf16.gmra.mrb[0].mxu0 %v873
      %v3393 = vpop.f32.mrb[0].mxu0
      %v3394 = vadd.f32 0.0, %v3393
      %v3395 = vpop.f32.mrb[0].mxu0
      %v3396 = vadd.f32 0.0, %v3395
      %v3397 = vpop.f32.mrb[0].mxu0
      %v3398 = vadd.f32 0.0, %v3397
      %v3399 = vpop.f32.mrb[0].mxu0
      %v3400 = vadd.f32 0.0, %v3399
      %3401 = vmatprep.mubr.bf16.mxu0 0
      %3402 = vmatmul.mubr.bf16.gmra.mrb[0].mxu0 %v876
      %v3403 = vpop.f32.mrb[0].mxu0
      %v3404 = vadd.f32 0.0, %v3403
      %v3405 = vpop.f32.mrb[0].mxu0
      %v3406 = vadd.f32 0.0, %v3405
      %v3407 = vpop.f32.mrb[0].mxu0
      %v3408 = vadd.f32 0.0, %v3407
      %v3409 = vpop.f32.mrb[0].mxu0
      %v3410 = vadd.f32 0.0, %v3409
      %3411 = vmatprep.mubr.bf16.mxu0 0
      %3412 = vmatmul.mubr.bf16.gmra.mrb[0].mxu0 %v879
      %v3413 = vpop.f32.mrb[0].mxu0
      %v3414 = vadd.f32 0.0, %v3413
      %v3415 = vpop.f32.mrb[0].mxu0
      %v3416 = vadd.f32 0.0, %v3415
      %v3417 = vpop.f32.mrb[0].mxu0
      %v3418 = vadd.f32 0.0, %v3417
      %v3419 = vpop.f32.mrb[0].mxu0
      %v3420 = vadd.f32 0.0, %v3419
      %3421 = vmatprep.mubr.bf16.mxu0 0
      %3422 = vmatmul.mubr.bf16.gmra.mrb[0].mxu0 %v882
      %v3423 = vpop.f32.mrb[0].mxu0
      %v3424 = vadd.f32 0.0, %v3423
      %v3425 = vpop.f32.mrb[0].mxu0
      %v3426 = vadd.f32 0.0, %v3425
      %v3427 = vpop.f32.mrb[0].mxu0
      %v3428 = vadd.f32 0.0, %v3427
      %v3429 = vpop.f32.mrb[0].mxu0
      %v3430 = vadd.f32 0.0, %v3429
      %3431 = vmatprep.mubr.bf16.mxu0 0
      %3432 = vmatmul.mubr.bf16.gmra.mrb[0].mxu0 %v885
      %v3433 = vpop.f32.mrb[0].mxu0
      %v3434 = vadd.f32 0.0, %v3433
      %v3435 = vpop.f32.mrb[0].mxu0
      %v3436 = vadd.f32 0.0, %v3435
      %v3437 = vpop.f32.mrb[0].mxu0
      %v3438 = vadd.f32 0.0, %v3437
      %v3439 = vpop.f32.mrb[0].mxu0
      %v3440 = vadd.f32 0.0, %v3439
      %3441 = vmatprep.mubr.bf16.mxu0 0
      %3442 = vmatmul.mubr.bf16.gmra.mrb[0].mxu0 %v888
      %v3443 = vpop.f32.mrb[0].mxu0
      %v3444 = vadd.f32 0.0, %v3443
      %v3445 = vpop.f32.mrb[0].mxu0
      %v3446 = vadd.f32 0.0, %v3445
      %v3447 = vpop.f32.mrb[0].mxu0
      %v3448 = vadd.f32 0.0, %v3447
      %v3449 = vpop.f32.mrb[0].mxu0
      %v3450 = vadd.f32 0.0, %v3449
      %3451 = vmatprep.mubr.bf16.mxu0 0
      %3452 = vmatmul.mubr.bf16.gmra.mrb[0].mxu0 %v891
      %v3453 = vpop.f32.mrb[0].mxu0
      %v3454 = vadd.f32 0.0, %v3453
      %v3455 = vpop.f32.mrb[0].mxu0
      %v3456 = vadd.f32 0.0, %v3455
      %v3457 = vpop.f32.mrb[0].mxu0
      %v3458 = vadd.f32 0.0, %v3457
      %v3459 = vpop.f32.mrb[0].mxu0
      %v3460 = vadd.f32 0.0, %v3459
      %3461 = vmatprep.mubr.bf16.mxu0 0
      %3462 = vmatmul.mubr.bf16.gmra.mrb[0].mxu0 %v894
      %v3463 = vpop.f32.mrb[0].mxu0
      %v3464 = vadd.f32 0.0, %v3463
      %v3465 = vpop.f32.mrb[0].mxu0
      %v3466 = vadd.f32 0.0, %v3465
      %v3467 = vpop.f32.mrb[0].mxu0
      %v3468 = vadd.f32 0.0, %v3467
      %v3469 = vpop.f32.mrb[0].mxu0
      %v3470 = vadd.f32 0.0, %v3469
      %3471 = vmatprep.mubr.bf16.mxu0 0
      %3472 = vmatmul.mubr.bf16.gmra.mrb[0].mxu0 %v897
      %v3473 = vpop.f32.mrb[0].mxu0
      %v3474 = vadd.f32 0.0, %v3473
      %v3475 = vpop.f32.mrb[0].mxu0
      %v3476 = vadd.f32 0.0, %v3475
      %v3477 = vpop.f32.mrb[0].mxu0
      %v3478 = vadd.f32 0.0, %v3477
      %v3479 = vpop.f32.mrb[0].mxu0
      %v3480 = vadd.f32 0.0, %v3479
      %3481 = vmatprep.mubr.bf16.mxu0 0
      %3482 = vmatmul.mubr.bf16.gmra.mrb[0].mxu0 %v900
      %v3483 = vpop.f32.mrb[0].mxu0
      %v3484 = vadd.f32 0.0, %v3483
      %v3485 = vpop.f32.mrb[0].mxu0
      %v3486 = vadd.f32 0.0, %v3485
      %v3487 = vpop.f32.mrb[0].mxu0
      %v3488 = vadd.f32 0.0, %v3487
      %v3489 = vpop.f32.mrb[0].mxu0
      %v3490 = vadd.f32 0.0, %v3489
      %3491 = vmatprep.mubr.bf16.mxu0 0
      %3492 = vmatmul.mubr.bf16.gmra.mrb[0].mxu0 %v903
      %v3493 = vpop.f32.mrb[0].mxu0
      %v3494 = vadd.f32 0.0, %v3493
      %v3495 = vpop.f32.mrb[0].mxu0
      %v3496 = vadd.f32 0.0, %v3495
      %v3497 = vpop.f32.mrb[0].mxu0
      %v3498 = vadd.f32 0.0, %v3497
      %v3499 = vpop.f32.mrb[0].mxu0
      %v3500 = vadd.f32 0.0, %v3499
      %3501 = vmatprep.mubr.bf16.mxu0 0
      %3502 = vmatmul.mubr.bf16.gmra.mrb[0].mxu0 %v906
      %v3503 = vpop.f32.mrb[0].mxu0
      %v3504 = vadd.f32 0.0, %v3503
      %v3505 = vpop.f32.mrb[0].mxu0
      %v3506 = vadd.f32 0.0, %v3505
      %v3507 = vpop.f32.mrb[0].mxu0
      %v3508 = vadd.f32 0.0, %v3507
      %v3509 = vpop.f32.mrb[0].mxu0
      %v3510 = vadd.f32 0.0, %v3509
      %3511 = vmatprep.mubr.bf16.mxu0 0
      %3512 = vmatmul.mubr.bf16.gmra.mrb[0].mxu0 %v909
      %v3513 = vpop.f32.mrb[0].mxu0
      %v3514 = vadd.f32 0.0, %v3513
      %v3515 = vpop.f32.mrb[0].mxu0
      %v3516 = vadd.f32 0.0, %v3515
      %v3517 = vpop.f32.mrb[0].mxu0
      %v3518 = vadd.f32 0.0, %v3517
      %v3519 = vpop.f32.mrb[0].mxu0
      %v3520 = vadd.f32 0.0, %v3519
      %3521 = vmatprep.mubr.bf16.mxu0 0
      %3522 = vmatmul.mubr.bf16.gmra.mrb[0].mxu0 %v912
      %v3523 = vpop.f32.mrb[0].mxu0
      %v3524 = vadd.f32 0.0, %v3523
      %v3525 = vpop.f32.mrb[0].mxu0
      %v3526 = vadd.f32 0.0, %v3525
      %v3527 = vpop.f32.mrb[0].mxu0
      %v3528 = vadd.f32 0.0, %v3527
      %v3529 = vpop.f32.mrb[0].mxu0
      %v3530 = vadd.f32 0.0, %v3529
      %3531 = vmatprep.mubr.bf16.mxu0 0
      %3532 = vmatmul.mubr.bf16.gmra.mrb[0].mxu0 %v915
      %v3533 = vpop.f32.mrb[0].mxu0
      %v3534 = vadd.f32 0.0, %v3533
      %v3535 = vpop.f32.mrb[0].mxu0
      %v3536 = vadd.f32 0.0, %v3535
      %v3537 = vpop.f32.mrb[0].mxu0
      %v3538 = vadd.f32 0.0, %v3537
      %v3539 = vpop.f32.mrb[0].mxu0
      %v3540 = vadd.f32 0.0, %v3539
      %3541 = vmatprep.mubr.bf16.mxu0 0
      %3542 = vmatmul.mubr.bf16.gmra.mrb[0].mxu0 %v918
      %v3543 = vpop.f32.mrb[0].mxu0
      %v3544 = vadd.f32 0.0, %v3543
      %v3545 = vpop.f32.mrb[0].mxu0
      %v3546 = vadd.f32 0.0, %v3545
      %v3547 = vpop.f32.mrb[0].mxu0
      %v3548 = vadd.f32 0.0, %v3547
      %v3549 = vpop.f32.mrb[0].mxu0
      %v3550 = vadd.f32 0.0, %v3549
      %3551 = vmatprep.mubr.bf16.mxu0 0
      %3552 = vmatmul.mubr.bf16.gmra.mrb[0].mxu0 %v921
      %v3553 = vpop.f32.mrb[0].mxu0
      %v3554 = vadd.f32 0.0, %v3553
      %v3555 = vpop.f32.mrb[0].mxu0
      %v3556 = vadd.f32 0.0, %v3555
      %v3557 = vpop.f32.mrb[0].mxu0
      %v3558 = vadd.f32 0.0, %v3557
      %v3559 = vpop.f32.mrb[0].mxu0
      %v3560 = vadd.f32 0.0, %v3559
      %3561 = vmatprep.mubr.bf16.mxu0 0
      %3562 = vmatmul.mubr.bf16.gmra.mrb[0].mxu0 %v924
      %v3563 = vpop.f32.mrb[0].mxu0
      %v3564 = vadd.f32 0.0, %v3563
      %v3565 = vpop.f32.mrb[0].mxu0
      %v3566 = vadd.f32 0.0, %v3565
      %v3567 = vpop.f32.mrb[0].mxu0
      %v3568 = vadd.f32 0.0, %v3567
      %v3569 = vpop.f32.mrb[0].mxu0
      %v3570 = vadd.f32 0.0, %v3569
      %3571 = vmatprep.mubr.bf16.mxu0 0
      %3572 = vmatmul.mubr.bf16.gmra.mrb[0].mxu0 %v927
      %v3573 = vpop.f32.mrb[0].mxu0
      %v3574 = vadd.f32 0.0, %v3573
      %v3575 = vpop.f32.mrb[0].mxu0
      %v3576 = vadd.f32 0.0, %v3575
      %v3577 = vpop.f32.mrb[0].mxu0
      %v3578 = vadd.f32 0.0, %v3577
      %v3579 = vpop.f32.mrb[0].mxu0
      %v3580 = vadd.f32 0.0, %v3579
      %3581 = vmatprep.mubr.bf16.mxu0 0
      %3582 = vmatmul.mubr.bf16.gmra.mrb[0].mxu0 %v930
      %v3583 = vpop.f32.mrb[0].mxu0
      %v3584 = vadd.f32 0.0, %v3583
      %v3585 = vpop.f32.mrb[0].mxu0
      %v3586 = vadd.f32 0.0, %v3585
      %v3587 = vpop.f32.mrb[0].mxu0
      %v3588 = vadd.f32 0.0, %v3587
      %v3589 = vpop.f32.mrb[0].mxu0
      %v3590 = vadd.f32 0.0, %v3589
      %3591 = vmatprep.mubr.bf16.mxu0 0
      %3592 = vmatmul.mubr.bf16.gmra.mrb[0].mxu0 %v933
      %v3593 = vpop.f32.mrb[0].mxu0
      %v3594 = vadd.f32 0.0, %v3593
      %v3595 = vpop.f32.mrb[0].mxu0
      %v3596 = vadd.f32 0.0, %v3595
      %v3597 = vpop.f32.mrb[0].mxu0
      %v3598 = vadd.f32 0.0, %v3597
      %v3599 = vpop.f32.mrb[0].mxu0
      %v3600 = vadd.f32 0.0, %v3599
      %3601 = vmatprep.mubr.bf16.mxu0 0
      %3602 = vmatmul.mubr.bf16.gmra.mrb[0].mxu0 %v936
      %v3603 = vpop.f32.mrb[0].mxu0
      %v3604 = vadd.f32 0.0, %v3603
      %v3605 = vpop.f32.mrb[0].mxu0
      %v3606 = vadd.f32 0.0, %v3605
      %v3607 = vpop.f32.mrb[0].mxu0
      %v3608 = vadd.f32 0.0, %v3607
      %v3609 = vpop.f32.mrb[0].mxu0
      %v3610 = vadd.f32 0.0, %v3609
      %3611 = vmatprep.mubr.bf16.mxu0 0
      %3612 = vmatmul.mubr.bf16.gmra.mrb[0].mxu0 %v939
      %v3613 = vpop.f32.mrb[0].mxu0
      %v3614 = vadd.f32 0.0, %v3613
      %v3615 = vpop.f32.mrb[0].mxu0
      %v3616 = vadd.f32 0.0, %v3615
      %v3617 = vpop.f32.mrb[0].mxu0
      %v3618 = vadd.f32 0.0, %v3617
      %v3619 = vpop.f32.mrb[0].mxu0
      %v3620 = vadd.f32 0.0, %v3619
      %3621 = vmatprep.mubr.bf16.mxu0 0
      %3622 = vmatmul.mubr.bf16.gmra.mrb[0].mxu0 %v942
      %v3623 = vpop.f32.mrb[0].mxu0
      %v3624 = vadd.f32 0.0, %v3623
      %v3625 = vpop.f32.mrb[0].mxu0
      %v3626 = vadd.f32 0.0, %v3625
      %v3627 = vpop.f32.mrb[0].mxu0
      %v3628 = vadd.f32 0.0, %v3627
      %v3629 = vpop.f32.mrb[0].mxu0
      %v3630 = vadd.f32 0.0, %v3629
      %3631 = vmatprep.mubr.bf16.mxu0 0
      %3632 = vmatmul.mubr.bf16.gmra.mrb[0].mxu0 %v945
      %v3633 = vpop.f32.mrb[0].mxu0
      %v3634 = vadd.f32 0.0, %v3633
      %v3635 = vpop.f32.mrb[0].mxu0
      %v3636 = vadd.f32 0.0, %v3635
      %v3637 = vpop.f32.mrb[0].mxu0
      %v3638 = vadd.f32 0.0, %v3637
      %v3639 = vpop.f32.mrb[0].mxu0
      %v3640 = vadd.f32 0.0, %v3639
      %3641 = vmatprep.mubr.bf16.mxu0 0
      %3642 = vmatmul.mubr.bf16.gmra.mrb[0].mxu0 %v948
      %v3643 = vpop.f32.mrb[0].mxu0
      %v3644 = vadd.f32 0.0, %v3643
      %v3645 = vpop.f32.mrb[0].mxu0
      %v3646 = vadd.f32 0.0, %v3645
      %v3647 = vpop.f32.mrb[0].mxu0
      %v3648 = vadd.f32 0.0, %v3647
      %v3649 = vpop.f32.mrb[0].mxu0
      %v3650 = vadd.f32 0.0, %v3649
      %3651 = vmatprep.mubr.bf16.mxu0 0
      %3652 = vmatmul.mubr.bf16.gmra.mrb[0].mxu0 %v951
      %v3653 = vpop.f32.mrb[0].mxu0
      %v3654 = vadd.f32 0.0, %v3653
      %v3655 = vpop.f32.mrb[0].mxu0
      %v3656 = vadd.f32 0.0, %v3655
      %v3657 = vpop.f32.mrb[0].mxu0
      %v3658 = vadd.f32 0.0, %v3657
      %v3659 = vpop.f32.mrb[0].mxu0
      %v3660 = vadd.f32 0.0, %v3659
      %3661 = vmatprep.mubr.bf16.mxu0 0
      %3662 = vmatmul.mubr.bf16.gmra.mrb[0].mxu0 %v954
      %v3663 = vpop.f32.mrb[0].mxu0
      %v3664 = vadd.f32 0.0, %v3663
      %v3665 = vpop.f32.mrb[0].mxu0
      %v3666 = vadd.f32 0.0, %v3665
      %v3667 = vpop.f32.mrb[0].mxu0
      %v3668 = vadd.f32 0.0, %v3667
      %v3669 = vpop.f32.mrb[0].mxu0
      %v3670 = vadd.f32 0.0, %v3669
      %3671 = vmatprep.mubr.bf16.mxu0 0
      %3672 = vmatmul.mubr.bf16.gmra.mrb[0].mxu0 %v957
      %v3673 = vpop.f32.mrb[0].mxu0
      %v3674 = vadd.f32 0.0, %v3673
      %v3675 = vpop.f32.mrb[0].mxu0
      %v3676 = vadd.f32 0.0, %v3675
      %v3677 = vpop.f32.mrb[0].mxu0
      %v3678 = vadd.f32 0.0, %v3677
      %v3679 = vpop.f32.mrb[0].mxu0
      %v3680 = vadd.f32 0.0, %v3679
      %3681 = vmatprep.mubr.bf16.mxu0 0
      %3682 = vmatmul.mubr.bf16.gmra.mrb[0].mxu0 %v960
      %v3683 = vpop.f32.mrb[0].mxu0
      %v3684 = vadd.f32 0.0, %v3683
      %v3685 = vpop.f32.mrb[0].mxu0
      %v3686 = vadd.f32 0.0, %v3685
      %v3687 = vpop.f32.mrb[0].mxu0
      %v3688 = vadd.f32 0.0, %v3687
      %v3689 = vpop.f32.mrb[0].mxu0
      %v3690 = vadd.f32 0.0, %v3689
      %3691 = vmatprep.mubr.bf16.mxu0 0
      %3692 = vmatmul.mubr.bf16.gmra.mrb[0].mxu0 %v963
      %v3693 = vpop.f32.mrb[0].mxu0
      %v3694 = vadd.f32 0.0, %v3693
      %v3695 = vpop.f32.mrb[0].mxu0
      %v3696 = vadd.f32 0.0, %v3695
      %v3697 = vpop.f32.mrb[0].mxu0
      %v3698 = vadd.f32 0.0, %v3697
      %v3699 = vpop.f32.mrb[0].mxu0
      %v3700 = vadd.f32 0.0, %v3699
      %3701 = vmatprep.mubr.bf16.mxu0 0
      %3702 = vmatmul.mubr.bf16.gmra.mrb[0].mxu0 %v966
      %v3703 = vpop.f32.mrb[0].mxu0
      %v3704 = vadd.f32 0.0, %v3703
      %v3705 = vpop.f32.mrb[0].mxu0
      %v3706 = vadd.f32 0.0, %v3705
      %v3707 = vpop.f32.mrb[0].mxu0
      %v3708 = vadd.f32 0.0, %v3707
      %v3709 = vpop.f32.mrb[0].mxu0
      %v3710 = vadd.f32 0.0, %v3709
      %3711 = vmatprep.mubr.bf16.mxu0 0
      %3712 = vmatmul.mubr.bf16.gmra.mrb[0].mxu0 %v969
      %v3713 = vpop.f32.mrb[0].mxu0
      %v3714 = vadd.f32 0.0, %v3713
      %v3715 = vpop.f32.mrb[0].mxu0
      %v3716 = vadd.f32 0.0, %v3715
      %v3717 = vpop.f32.mrb[0].mxu0
      %v3718 = vadd.f32 0.0, %v3717
      %v3719 = vpop.f32.mrb[0].mxu0
      %v3720 = vadd.f32 0.0, %v3719
      %3721 = vdwg.mxu0
      %3722 = vmatprep.subr.bf16.mxu0 %v749
      %3723 = vmatpush1.bf16.msra.mxu0 %v748
      %3724 = vmatprep.subr.bf16.mxu0 %v765
      %3725 = vmatpush1.bf16.msra.mxu0 %v764
      %3726 = vmatprep.subr.bf16.mxu0 %v781
      %3727 = vmatpush1.bf16.msra.mxu0 %v780
      %3728 = vmatprep.subr.bf16.mxu0 %v797
      %3729 = vmatpush1.bf16.msra.mxu0 %v796
      %3730 = vmatprep.subr.bf16.mxu0 0
      %3731 = vmatpush1.bf16.msra.mxu0 0
      %3732 = vmatprep.subr.bf16.mxu0 0
      %3733 = vmatpush1.bf16.msra.mxu0 0
      %3734 = vmatprep.subr.bf16.mxu0 0
      %3735 = vmatpush1.bf16.msra.mxu0 0
      %3736 = vmatprep.subr.bf16.mxu0 0
      %3737 = vmatpush1.bf16.msra.mxu0 0
      %3738 = vmatprep.subr.bf16.mxu0 0
      %3739 = vmatpush1.bf16.msra.mxu0 0
      %3740 = vmatprep.subr.bf16.mxu0 0
      %3741 = vmatpush1.bf16.msra.mxu0 0
      %3742 = vmatprep.subr.bf16.mxu0 0
      %3743 = vmatpush1.bf16.msra.mxu0 0
      %3744 = vmatprep.subr.bf16.mxu0 0
      %3745 = vmatpush1.bf16.msra.mxu0 0
      %3746 = vmatprep.subr.bf16.mxu0 0
      %3747 = vmatpush1.bf16.msra.mxu0 0
      %3748 = vmatprep.subr.bf16.mxu0 0
      %3749 = vmatpush1.bf16.msra.mxu0 0
      %3750 = vmatprep.subr.bf16.mxu0 0
      %3751 = vmatpush1.bf16.msra.mxu0 0
      %3752 = vmatprep.subr.bf16.mxu0 0
      %3753 = vmatpush1.bf16.msra.mxu0 0
      %3754 = vmatprep.mubr.bf16.mxu0 0
      %3755 = vmatmul.mubr.bf16.gmra.mrb[0].mxu0 %v864
      %v3756 = vpop.f32.mrb[0].mxu0
      %v3757 = vadd.f32 0.0, %v3756
      %v3758 = vpop.f32.mrb[0].mxu0
      %v3759 = vadd.f32 0.0, %v3758
      %v3760 = vpop.f32.mrb[0].mxu0
      %v3761 = vadd.f32 0.0, %v3760
      %v3762 = vpop.f32.mrb[0].mxu0
      %v3763 = vadd.f32 0.0, %v3762
      %3764 = vmatprep.mubr.bf16.mxu0 0
      %3765 = vmatmul.mubr.bf16.gmra.mrb[0].mxu0 %v867
      %v3766 = vpop.f32.mrb[0].mxu0
      %v3767 = vadd.f32 0.0, %v3766
      %v3768 = vpop.f32.mrb[0].mxu0
      %v3769 = vadd.f32 0.0, %v3768
      %v3770 = vpop.f32.mrb[0].mxu0
      %v3771 = vadd.f32 0.0, %v3770
      %v3772 = vpop.f32.mrb[0].mxu0
      %v3773 = vadd.f32 0.0, %v3772
      %3774 = vmatprep.mubr.bf16.mxu0 0
      %3775 = vmatmul.mubr.bf16.gmra.mrb[0].mxu0 %v870
      %v3776 = vpop.f32.mrb[0].mxu0
      %v3777 = vadd.f32 0.0, %v3776
      %v3778 = vpop.f32.mrb[0].mxu0
      %v3779 = vadd.f32 0.0, %v3778
      %v3780 = vpop.f32.mrb[0].mxu0
      %v3781 = vadd.f32 0.0, %v3780
      %v3782 = vpop.f32.mrb[0].mxu0
      %v3783 = vadd.f32 0.0, %v3782
      %3784 = vmatprep.mubr.bf16.mxu0 0
      %3785 = vmatmul.mubr.bf16.gmra.mrb[0].mxu0 %v873
      %v3786 = vpop.f32.mrb[0].mxu0
      %v3787 = vadd.f32 0.0, %v3786
      %v3788 = vpop.f32.mrb[0].mxu0
      %v3789 = vadd.f32 0.0, %v3788
      %v3790 = vpop.f32.mrb[0].mxu0
      %v3791 = vadd.f32 0.0, %v3790
      %v3792 = vpop.f32.mrb[0].mxu0
      %v3793 = vadd.f32 0.0, %v3792
      %3794 = vmatprep.mubr.bf16.mxu0 0
      %3795 = vmatmul.mubr.bf16.gmra.mrb[0].mxu0 %v876
      %v3796 = vpop.f32.mrb[0].mxu0
      %v3797 = vadd.f32 0.0, %v3796
      %v3798 = vpop.f32.mrb[0].mxu0
      %v3799 = vadd.f32 0.0, %v3798
      %v3800 = vpop.f32.mrb[0].mxu0
      %v3801 = vadd.f32 0.0, %v3800
      %v3802 = vpop.f32.mrb[0].mxu0
      %v3803 = vadd.f32 0.0, %v3802
      %3804 = vmatprep.mubr.bf16.mxu0 0
      %3805 = vmatmul.mubr.bf16.gmra.mrb[0].mxu0 %v879
      %v3806 = vpop.f32.mrb[0].mxu0
      %v3807 = vadd.f32 0.0, %v3806
      %v3808 = vpop.f32.mrb[0].mxu0
      %v3809 = vadd.f32 0.0, %v3808
      %v3810 = vpop.f32.mrb[0].mxu0
      %v3811 = vadd.f32 0.0, %v3810
      %v3812 = vpop.f32.mrb[0].mxu0
      %v3813 = vadd.f32 0.0, %v3812
      %3814 = vmatprep.mubr.bf16.mxu0 0
      %3815 = vmatmul.mubr.bf16.gmra.mrb[0].mxu0 %v882
      %v3816 = vpop.f32.mrb[0].mxu0
      %v3817 = vadd.f32 0.0, %v3816
      %v3818 = vpop.f32.mrb[0].mxu0
      %v3819 = vadd.f32 0.0, %v3818
      %v3820 = vpop.f32.mrb[0].mxu0
      %v3821 = vadd.f32 0.0, %v3820
      %v3822 = vpop.f32.mrb[0].mxu0
      %v3823 = vadd.f32 0.0, %v3822
      %3824 = vmatprep.mubr.bf16.mxu0 0
      %3825 = vmatmul.mubr.bf16.gmra.mrb[0].mxu0 %v885
      %v3826 = vpop.f32.mrb[0].mxu0
      %v3827 = vadd.f32 0.0, %v3826
      %v3828 = vpop.f32.mrb[0].mxu0
      %v3829 = vadd.f32 0.0, %v3828
      %v3830 = vpop.f32.mrb[0].mxu0
      %v3831 = vadd.f32 0.0, %v3830
      %v3832 = vpop.f32.mrb[0].mxu0
      %v3833 = vadd.f32 0.0, %v3832
      %3834 = vmatprep.mubr.bf16.mxu0 0
      %3835 = vmatmul.mubr.bf16.gmra.mrb[0].mxu0 %v888
      %v3836 = vpop.f32.mrb[0].mxu0
      %v3837 = vadd.f32 0.0, %v3836
      %v3838 = vpop.f32.mrb[0].mxu0
      %v3839 = vadd.f32 0.0, %v3838
      %v3840 = vpop.f32.mrb[0].mxu0
      %v3841 = vadd.f32 0.0, %v3840
      %v3842 = vpop.f32.mrb[0].mxu0
      %v3843 = vadd.f32 0.0, %v3842
      %3844 = vmatprep.mubr.bf16.mxu0 0
      %3845 = vmatmul.mubr.bf16.gmra.mrb[0].mxu0 %v891
      %v3846 = vpop.f32.mrb[0].mxu0
      %v3847 = vadd.f32 0.0, %v3846
      %v3848 = vpop.f32.mrb[0].mxu0
      %v3849 = vadd.f32 0.0, %v3848
      %v3850 = vpop.f32.mrb[0].mxu0
      %v3851 = vadd.f32 0.0, %v3850
      %v3852 = vpop.f32.mrb[0].mxu0
      %v3853 = vadd.f32 0.0, %v3852
      %3854 = vmatprep.mubr.bf16.mxu0 0
      %3855 = vmatmul.mubr.bf16.gmra.mrb[0].mxu0 %v894
      %v3856 = vpop.f32.mrb[0].mxu0
      %v3857 = vadd.f32 0.0, %v3856
      %v3858 = vpop.f32.mrb[0].mxu0
      %v3859 = vadd.f32 0.0, %v3858
      %v3860 = vpop.f32.mrb[0].mxu0
      %v3861 = vadd.f32 0.0, %v3860
      %v3862 = vpop.f32.mrb[0].mxu0
      %v3863 = vadd.f32 0.0, %v3862
      %3864 = vmatprep.mubr.bf16.mxu0 0
      %3865 = vmatmul.mubr.bf16.gmra.mrb[0].mxu0 %v897
      %v3866 = vpop.f32.mrb[0].mxu0
      %v3867 = vadd.f32 0.0, %v3866
      %v3868 = vpop.f32.mrb[0].mxu0
      %v3869 = vadd.f32 0.0, %v3868
      %v3870 = vpop.f32.mrb[0].mxu0
      %v3871 = vadd.f32 0.0, %v3870
      %v3872 = vpop.f32.mrb[0].mxu0
      %v3873 = vadd.f32 0.0, %v3872
      %3874 = vmatprep.mubr.bf16.mxu0 0
      %3875 = vmatmul.mubr.bf16.gmra.mrb[0].mxu0 %v900
      %v3876 = vpop.f32.mrb[0].mxu0
      %v3877 = vadd.f32 0.0, %v3876
      %v3878 = vpop.f32.mrb[0].mxu0
      %v3879 = vadd.f32 0.0, %v3878
      %v3880 = vpop.f32.mrb[0].mxu0
      %v3881 = vadd.f32 0.0, %v3880
      %v3882 = vpop.f32.mrb[0].mxu0
      %v3883 = vadd.f32 0.0, %v3882
      %3884 = vmatprep.mubr.bf16.mxu0 0
      %3885 = vmatmul.mubr.bf16.gmra.mrb[0].mxu0 %v903
      %v3886 = vpop.f32.mrb[0].mxu0
      %v3887 = vadd.f32 0.0, %v3886
      %v3888 = vpop.f32.mrb[0].mxu0
      %v3889 = vadd.f32 0.0, %v3888
      %v3890 = vpop.f32.mrb[0].mxu0
      %v3891 = vadd.f32 0.0, %v3890
      %v3892 = vpop.f32.mrb[0].mxu0
      %v3893 = vadd.f32 0.0, %v3892
      %3894 = vmatprep.mubr.bf16.mxu0 0
      %3895 = vmatmul.mubr.bf16.gmra.mrb[0].mxu0 %v906
      %v3896 = vpop.f32.mrb[0].mxu0
      %v3897 = vadd.f32 0.0, %v3896
      %v3898 = vpop.f32.mrb[0].mxu0
      %v3899 = vadd.f32 0.0, %v3898
      %v3900 = vpop.f32.mrb[0].mxu0
      %v3901 = vadd.f32 0.0, %v3900
      %v3902 = vpop.f32.mrb[0].mxu0
      %v3903 = vadd.f32 0.0, %v3902
      %3904 = vmatprep.mubr.bf16.mxu0 0
      %3905 = vmatmul.mubr.bf16.gmra.mrb[0].mxu0 %v909
      %v3906 = vpop.f32.mrb[0].mxu0
      %v3907 = vadd.f32 0.0, %v3906
      %v3908 = vpop.f32.mrb[0].mxu0
      %v3909 = vadd.f32 0.0, %v3908
      %v3910 = vpop.f32.mrb[0].mxu0
      %v3911 = vadd.f32 0.0, %v3910
      %v3912 = vpop.f32.mrb[0].mxu0
      %v3913 = vadd.f32 0.0, %v3912
      %3914 = vmatprep.mubr.bf16.mxu0 0
      %3915 = vmatmul.mubr.bf16.gmra.mrb[0].mxu0 %v912
      %v3916 = vpop.f32.mrb[0].mxu0
      %v3917 = vadd.f32 0.0, %v3916
      %v3918 = vpop.f32.mrb[0].mxu0
      %v3919 = vadd.f32 0.0, %v3918
      %v3920 = vpop.f32.mrb[0].mxu0
      %v3921 = vadd.f32 0.0, %v3920
      %v3922 = vpop.f32.mrb[0].mxu0
      %v3923 = vadd.f32 0.0, %v3922
      %3924 = vmatprep.mubr.bf16.mxu0 0
      %3925 = vmatmul.mubr.bf16.gmra.mrb[0].mxu0 %v915
      %v3926 = vpop.f32.mrb[0].mxu0
      %v3927 = vadd.f32 0.0, %v3926
      %v3928 = vpop.f32.mrb[0].mxu0
      %v3929 = vadd.f32 0.0, %v3928
      %v3930 = vpop.f32.mrb[0].mxu0
      %v3931 = vadd.f32 0.0, %v3930
      %v3932 = vpop.f32.mrb[0].mxu0
      %v3933 = vadd.f32 0.0, %v3932
      %3934 = vmatprep.mubr.bf16.mxu0 0
      %3935 = vmatmul.mubr.bf16.gmra.mrb[0].mxu0 %v918
      %v3936 = vpop.f32.mrb[0].mxu0
      %v3937 = vadd.f32 0.0, %v3936
      %v3938 = vpop.f32.mrb[0].mxu0
      %v3939 = vadd.f32 0.0, %v3938
      %v3940 = vpop.f32.mrb[0].mxu0
      %v3941 = vadd.f32 0.0, %v3940
      %v3942 = vpop.f32.mrb[0].mxu0
      %v3943 = vadd.f32 0.0, %v3942
      %3944 = vmatprep.mubr.bf16.mxu0 0
      %3945 = vmatmul.mubr.bf16.gmra.mrb[0].mxu0 %v921
      %v3946 = vpop.f32.mrb[0].mxu0
      %v3947 = vadd.f32 0.0, %v3946
      %v3948 = vpop.f32.mrb[0].mxu0
      %v3949 = vadd.f32 0.0, %v3948
      %v3950 = vpop.f32.mrb[0].mxu0
      %v3951 = vadd.f32 0.0, %v3950
      %v3952 = vpop.f32.mrb[0].mxu0
      %v3953 = vadd.f32 0.0, %v3952
      %3954 = vmatprep.mubr.bf16.mxu0 0
      %3955 = vmatmul.mubr.bf16.gmra.mrb[0].mxu0 %v924
      %v3956 = vpop.f32.mrb[0].mxu0
      %v3957 = vadd.f32 0.0, %v3956
      %v3958 = vpop.f32.mrb[0].mxu0
      %v3959 = vadd.f32 0.0, %v3958
      %v3960 = vpop.f32.mrb[0].mxu0
      %v3961 = vadd.f32 0.0, %v3960
      %v3962 = vpop.f32.mrb[0].mxu0
      %v3963 = vadd.f32 0.0, %v3962
      %3964 = vmatprep.mubr.bf16.mxu0 0
      %3965 = vmatmul.mubr.bf16.gmra.mrb[0].mxu0 %v927
      %v3966 = vpop.f32.mrb[0].mxu0
      %v3967 = vadd.f32 0.0, %v3966
      %v3968 = vpop.f32.mrb[0].mxu0
      %v3969 = vadd.f32 0.0, %v3968
      %v3970 = vpop.f32.mrb[0].mxu0
      %v3971 = vadd.f32 0.0, %v3970
      %v3972 = vpop.f32.mrb[0].mxu0
      %v3973 = vadd.f32 0.0, %v3972
      %3974 = vmatprep.mubr.bf16.mxu0 0
      %3975 = vmatmul.mubr.bf16.gmra.mrb[0].mxu0 %v930
      %v3976 = vpop.f32.mrb[0].mxu0
      %v3977 = vadd.f32 0.0, %v3976
      %v3978 = vpop.f32.mrb[0].mxu0
      %v3979 = vadd.f32 0.0, %v3978
      %v3980 = vpop.f32.mrb[0].mxu0
      %v3981 = vadd.f32 0.0, %v3980
      %v3982 = vpop.f32.mrb[0].mxu0
      %v3983 = vadd.f32 0.0, %v3982
      %3984 = vmatprep.mubr.bf16.mxu0 0
      %3985 = vmatmul.mubr.bf16.gmra.mrb[0].mxu0 %v933
      %v3986 = vpop.f32.mrb[0].mxu0
      %v3987 = vadd.f32 0.0, %v3986
      %v3988 = vpop.f32.mrb[0].mxu0
      %v3989 = vadd.f32 0.0, %v3988
      %v3990 = vpop.f32.mrb[0].mxu0
      %v3991 = vadd.f32 0.0, %v3990
      %v3992 = vpop.f32.mrb[0].mxu0
      %v3993 = vadd.f32 0.0, %v3992
      %3994 = vmatprep.mubr.bf16.mxu0 0
      %3995 = vmatmul.mubr.bf16.gmra.mrb[0].mxu0 %v936
      %v3996 = vpop.f32.mrb[0].mxu0
      %v3997 = vadd.f32 0.0, %v3996
      %v3998 = vpop.f32.mrb[0].mxu0
      %v3999 = vadd.f32 0.0, %v3998
      %v4000 = vpop.f32.mrb[0].mxu0
      %v4001 = vadd.f32 0.0, %v4000
      %v4002 = vpop.f32.mrb[0].mxu0
      %v4003 = vadd.f32 0.0, %v4002
      %4004 = vmatprep.mubr.bf16.mxu0 0
      %4005 = vmatmul.mubr.bf16.gmra.mrb[0].mxu0 %v939
      %v4006 = vpop.f32.mrb[0].mxu0
      %v4007 = vadd.f32 0.0, %v4006
      %v4008 = vpop.f32.mrb[0].mxu0
      %v4009 = vadd.f32 0.0, %v4008
      %v4010 = vpop.f32.mrb[0].mxu0
      %v4011 = vadd.f32 0.0, %v4010
      %v4012 = vpop.f32.mrb[0].mxu0
      %v4013 = vadd.f32 0.0, %v4012
      %4014 = vmatprep.mubr.bf16.mxu0 0
      %4015 = vmatmul.mubr.bf16.gmra.mrb[0].mxu0 %v942
      %v4016 = vpop.f32.mrb[0].mxu0
      %v4017 = vadd.f32 0.0, %v4016
      %v4018 = vpop.f32.mrb[0].mxu0
      %v4019 = vadd.f32 0.0, %v4018
      %v4020 = vpop.f32.mrb[0].mxu0
      %v4021 = vadd.f32 0.0, %v4020
      %v4022 = vpop.f32.mrb[0].mxu0
      %v4023 = vadd.f32 0.0, %v4022
      %4024 = vmatprep.mubr.bf16.mxu0 0
      %4025 = vmatmul.mubr.bf16.gmra.mrb[0].mxu0 %v945
      %v4026 = vpop.f32.mrb[0].mxu0
      %v4027 = vadd.f32 0.0, %v4026
      %v4028 = vpop.f32.mrb[0].mxu0
      %v4029 = vadd.f32 0.0, %v4028
      %v4030 = vpop.f32.mrb[0].mxu0
      %v4031 = vadd.f32 0.0, %v4030
      %v4032 = vpop.f32.mrb[0].mxu0
      %v4033 = vadd.f32 0.0, %v4032
      %4034 = vmatprep.mubr.bf16.mxu0 0
      %4035 = vmatmul.mubr.bf16.gmra.mrb[0].mxu0 %v948
      %v4036 = vpop.f32.mrb[0].mxu0
      %v4037 = vadd.f32 0.0, %v4036
      %v4038 = vpop.f32.mrb[0].mxu0
      %v4039 = vadd.f32 0.0, %v4038
      %v4040 = vpop.f32.mrb[0].mxu0
      %v4041 = vadd.f32 0.0, %v4040
      %v4042 = vpop.f32.mrb[0].mxu0
      %v4043 = vadd.f32 0.0, %v4042
      %4044 = vmatprep.mubr.bf16.mxu0 0
      %4045 = vmatmul.mubr.bf16.gmra.mrb[0].mxu0 %v951
      %v4046 = vpop.f32.mrb[0].mxu0
      %v4047 = vadd.f32 0.0, %v4046
      %v4048 = vpop.f32.mrb[0].mxu0
      %v4049 = vadd.f32 0.0, %v4048
      %v4050 = vpop.f32.mrb[0].mxu0
      %v4051 = vadd.f32 0.0, %v4050
      %v4052 = vpop.f32.mrb[0].mxu0
      %v4053 = vadd.f32 0.0, %v4052
      %4054 = vmatprep.mubr.bf16.mxu0 0
      %4055 = vmatmul.mubr.bf16.gmra.mrb[0].mxu0 %v954
      %v4056 = vpop.f32.mrb[0].mxu0
      %v4057 = vadd.f32 0.0, %v4056
      %v4058 = vpop.f32.mrb[0].mxu0
      %v4059 = vadd.f32 0.0, %v4058
      %v4060 = vpop.f32.mrb[0].mxu0
      %v4061 = vadd.f32 0.0, %v4060
      %v4062 = vpop.f32.mrb[0].mxu0
      %v4063 = vadd.f32 0.0, %v4062
      %4064 = vmatprep.mubr.bf16.mxu0 0
      %4065 = vmatmul.mubr.bf16.gmra.mrb[0].mxu0 %v957
      %v4066 = vpop.f32.mrb[0].mxu0
      %v4067 = vadd.f32 0.0, %v4066
      %v4068 = vpop.f32.mrb[0].mxu0
      %v4069 = vadd.f32 0.0, %v4068
      %v4070 = vpop.f32.mrb[0].mxu0
      %v4071 = vadd.f32 0.0, %v4070
      %v4072 = vpop.f32.mrb[0].mxu0
      %v4073 = vadd.f32 0.0, %v4072
      %4074 = vmatprep.mubr.bf16.mxu0 0
      %4075 = vmatmul.mubr.bf16.gmra.mrb[0].mxu0 %v960
      %v4076 = vpop.f32.mrb[0].mxu0
      %v4077 = vadd.f32 0.0, %v4076
      %v4078 = vpop.f32.mrb[0].mxu0
      %v4079 = vadd.f32 0.0, %v4078
      %v4080 = vpop.f32.mrb[0].mxu0
      %v4081 = vadd.f32 0.0, %v4080
      %v4082 = vpop.f32.mrb[0].mxu0
      %v4083 = vadd.f32 0.0, %v4082
      %4084 = vmatprep.mubr.bf16.mxu0 0
      %4085 = vmatmul.mubr.bf16.gmra.mrb[0].mxu0 %v963
      %v4086 = vpop.f32.mrb[0].mxu0
      %v4087 = vadd.f32 0.0, %v4086
      %v4088 = vpop.f32.mrb[0].mxu0
      %v4089 = vadd.f32 0.0, %v4088
      %v4090 = vpop.f32.mrb[0].mxu0
      %v4091 = vadd.f32 0.0, %v4090
      %v4092 = vpop.f32.mrb[0].mxu0
      %v4093 = vadd.f32 0.0, %v4092
      %4094 = vmatprep.mubr.bf16.mxu0 0
      %4095 = vmatmul.mubr.bf16.gmra.mrb[0].mxu0 %v966
      %v4096 = vpop.f32.mrb[0].mxu0
      %v4097 = vadd.f32 0.0, %v4096
      %v4098 = vpop.f32.mrb[0].mxu0
      %v4099 = vadd.f32 0.0, %v4098
      %v4100 = vpop.f32.mrb[0].mxu0
      %v4101 = vadd.f32 0.0, %v4100
      %v4102 = vpop.f32.mrb[0].mxu0
      %v4103 = vadd.f32 0.0, %v4102
      %4104 = vmatprep.mubr.bf16.mxu0 0
      %4105 = vmatmul.mubr.bf16.gmra.mrb[0].mxu0 %v969
      %v4106 = vpop.f32.mrb[0].mxu0
      %v4107 = vadd.f32 0.0, %v4106
      %v4108 = vpop.f32.mrb[0].mxu0
      %v4109 = vadd.f32 0.0, %v4108
      %v4110 = vpop.f32.mrb[0].mxu0
      %v4111 = vadd.f32 0.0, %v4110
      %v4112 = vpop.f32.mrb[0].mxu0
      %v4113 = vadd.f32 0.0, %v4112
      %4114 = vdwg.mxu0
      %4115 = vst [vmem:[#allocation2] sm:$0xff] %v1006
      %4116 = vst [vmem:[#allocation2 + $0x8] sm:$0xff] %v1008
      %4117 = vst [vmem:[#allocation2 + $0x10] sm:$0xff] %v1399
      %4118 = vst [vmem:[#allocation2 + $0x18] sm:$0xff] %v1401
      %4119 = vst [vmem:[#allocation2 + $0x20] sm:$0xff] %v1792
      %4120 = vst [vmem:[#allocation2 + $0x28] sm:$0xff] %v1794
      %4121 = vst [vmem:[#allocation2 + $0x30] sm:$0xff] %v2185
      %4122 = vst [vmem:[#allocation2 + $0x38] sm:$0xff] %v2187
      %4123 = vst [vmem:[#allocation2 + $0x40] sm:$0xff] %v2578
      %4124 = vst [vmem:[#allocation2 + $0x48] sm:$0xff] %v2580
      %4125 = vst [vmem:[#allocation2 + $0x50] sm:$0xff] %v2971
      %4126 = vst [vmem:[#allocation2 + $0x58] sm:$0xff] %v2973
      %4127 = vst [vmem:[#allocation2 + $0x60] sm:$0xff] %v3364
      %4128 = vst [vmem:[#allocation2 + $0x68] sm:$0xff] %v3366
      %4129 = vst [vmem:[#allocation2 + $0x70] sm:$0xff] %v3757
      %4130 = vst [vmem:[#allocation2 + $0x78] sm:$0xff] %v3759
      %4131 = vst [vmem:[#allocation2 + $0x80] sm:$0xff] %v1010
      %4132 = vst [vmem:[#allocation2 + $0x88] sm:$0xff] %v1012
      %4133 = vst [vmem:[#allocation2 + $0x90] sm:$0xff] %v1403
      %4134 = vst [vmem:[#allocation2 + $0x98] sm:$0xff] %v1405
      %4135 = vst [vmem:[#allocation2 + $0xa0] sm:$0xff] %v1796
      %4136 = vst [vmem:[#allocation2 + $0xa8] sm:$0xff] %v1798
      %4137 = vst [vmem:[#allocation2 + $0xb0] sm:$0xff] %v2189
      %4138 = vst [vmem:[#allocation2 + $0xb8] sm:$0xff] %v2191
      %4139 = vst [vmem:[#allocation2 + $0xc0] sm:$0xff] %v2582
      %4140 = vst [vmem:[#allocation2 + $0xc8] sm:$0xff] %v2584
      %4141 = vst [vmem:[#allocation2 + $0xd0] sm:$0xff] %v2975
      %4142 = vst [vmem:[#allocation2 + $0xd8] sm:$0xff] %v2977
      %4143 = vst [vmem:[#allocation2 + $0xe0] sm:$0xff] %v3368
      %4144 = vst [vmem:[#allocation2 + $0xe8] sm:$0xff] %v3370
      %4145 = vst [vmem:[#allocation2 + $0xf0] sm:$0xff] %v3761
      %4146 = vst [vmem:[#allocation2 + $0xf8] sm:$0xff] %v3763
      %4147 = vst [vmem:[#allocation2 + $0x100] sm:$0xff] %v1016
      %4148 = vst [vmem:[#allocation2 + $0x108] sm:$0xff] %v1018
      %4149 = vst [vmem:[#allocation2 + $0x110] sm:$0xff] %v1409
      %4150 = vst [vmem:[#allocation2 + $0x118] sm:$0xff] %v1411
      %4151 = vst [vmem:[#allocation2 + $0x120] sm:$0xff] %v1802
      %4152 = vst [vmem:[#allocation2 + $0x128] sm:$0xff] %v1804
      %4153 = vst [vmem:[#allocation2 + $0x130] sm:$0xff] %v2195
      %4154 = vst [vmem:[#allocation2 + $0x138] sm:$0xff] %v2197
      %4155 = vst [vmem:[#allocation2 + $0x140] sm:$0xff] %v2588
      %4156 = vst [vmem:[#allocation2 + $0x148] sm:$0xff] %v2590
      %4157 = vst [vmem:[#allocation2 + $0x150] sm:$0xff] %v2981
      %4158 = vst [vmem:[#allocation2 + $0x158] sm:$0xff] %v2983
      %4159 = vst [vmem:[#allocation2 + $0x160] sm:$0xff] %v3374
      %4160 = vst [vmem:[#allocation2 + $0x168] sm:$0xff] %v3376
      %4161 = vst [vmem:[#allocation2 + $0x170] sm:$0xff] %v3767
      %4162 = vst [vmem:[#allocation2 + $0x178] sm:$0xff] %v3769
      %4163 = vst [vmem:[#allocation2 + $0x180] sm:$0xff] %v1020
      %4164 = vst [vmem:[#allocation2 + $0x188] sm:$0xff] %v1022
      %4165 = vst [vmem:[#allocation2 + $0x190] sm:$0xff] %v1413
      %4166 = vst [vmem:[#allocation2 + $0x198] sm:$0xff] %v1415
      %4167 = vst [vmem:[#allocation2 + $0x1a0] sm:$0xff] %v1806
      %4168 = vst [vmem:[#allocation2 + $0x1a8] sm:$0xff] %v1808
      %4169 = vst [vmem:[#allocation2 + $0x1b0] sm:$0xff] %v2199
      %4170 = vst [vmem:[#allocation2 + $0x1b8] sm:$0xff] %v2201
      %4171 = vst [vmem:[#allocation2 + $0x1c0] sm:$0xff] %v2592
      %4172 = vst [vmem:[#allocation2 + $0x1c8] sm:$0xff] %v2594
      %4173 = vst [vmem:[#allocation2 + $0x1d0] sm:$0xff] %v2985
      %4174 = vst [vmem:[#allocation2 + $0x1d8] sm:$0xff] %v2987
      %4175 = vst [vmem:[#allocation2 + $0x1e0] sm:$0xff] %v3378
      %4176 = vst [vmem:[#allocation2 + $0x1e8] sm:$0xff] %v3380
      %4177 = vst [vmem:[#allocation2 + $0x1f0] sm:$0xff] %v3771
      %4178 = vst [vmem:[#allocation2 + $0x1f8] sm:$0xff] %v3773
      %4179 = vst [vmem:[#allocation2 + $0x200] sm:$0xff] %v1026
      %4180 = vst [vmem:[#allocation2 + $0x208] sm:$0xff] %v1028
      %4181 = vst [vmem:[#allocation2 + $0x210] sm:$0xff] %v1419
      %4182 = vst [vmem:[#allocation2 + $0x218] sm:$0xff] %v1421
      %4183 = vst [vmem:[#allocation2 + $0x220] sm:$0xff] %v1812
      %4184 = vst [vmem:[#allocation2 + $0x228] sm:$0xff] %v1814
      %4185 = vst [vmem:[#allocation2 + $0x230] sm:$0xff] %v2205
      %4186 = vst [vmem:[#allocation2 + $0x238] sm:$0xff] %v2207
      %4187 = vst [vmem:[#allocation2 + $0x240] sm:$0xff] %v2598
      %4188 = vst [vmem:[#allocation2 + $0x248] sm:$0xff] %v2600
      %4189 = vst [vmem:[#allocation2 + $0x250] sm:$0xff] %v2991
      %4190 = vst [vmem:[#allocation2 + $0x258] sm:$0xff] %v2993
      %4191 = vst [vmem:[#allocation2 + $0x260] sm:$0xff] %v3384
      %4192 = vst [vmem:[#allocation2 + $0x268] sm:$0xff] %v3386
      %4193 = vst [vmem:[#allocation2 + $0x270] sm:$0xff] %v3777
      %4194 = vst [vmem:[#allocation2 + $0x278] sm:$0xff] %v3779
      %4195 = vst [vmem:[#allocation2 + $0x280] sm:$0xff] %v1030
      %4196 = vst [vmem:[#allocation2 + $0x288] sm:$0xff] %v1032
      %4197 = vst [vmem:[#allocation2 + $0x290] sm:$0xff] %v1423
      %4198 = vst [vmem:[#allocation2 + $0x298] sm:$0xff] %v1425
      %4199 = vst [vmem:[#allocation2 + $0x2a0] sm:$0xff] %v1816
      %4200 = vst [vmem:[#allocation2 + $0x2a8] sm:$0xff] %v1818
      %4201 = vst [vmem:[#allocation2 + $0x2b0] sm:$0xff] %v2209
      %4202 = vst [vmem:[#allocation2 + $0x2b8] sm:$0xff] %v2211
      %4203 = vst [vmem:[#allocation2 + $0x2c0] sm:$0xff] %v2602
      %4204 = vst [vmem:[#allocation2 + $0x2c8] sm:$0xff] %v2604
      %4205 = vst [vmem:[#allocation2 + $0x2d0] sm:$0xff] %v2995
      %4206 = vst [vmem:[#allocation2 + $0x2d8] sm:$0xff] %v2997
      %4207 = vst [vmem:[#allocation2 + $0x2e0] sm:$0xff] %v3388
      %4208 = vst [vmem:[#allocation2 + $0x2e8] sm:$0xff] %v3390
      %4209 = vst [vmem:[#allocation2 + $0x2f0] sm:$0xff] %v3781
      %4210 = vst [vmem:[#allocation2 + $0x2f8] sm:$0xff] %v3783
      %4211 = vst [vmem:[#allocation2 + $0x300] sm:$0xff] %v1036
      %4212 = vst [vmem:[#allocation2 + $0x308] sm:$0xff] %v1038
      %4213 = vst [vmem:[#allocation2 + $0x310] sm:$0xff] %v1429
      %4214 = vst [vmem:[#allocation2 + $0x318] sm:$0xff] %v1431
      %4215 = vst [vmem:[#allocation2 + $0x320] sm:$0xff] %v1822
      %4216 = vst [vmem:[#allocation2 + $0x328] sm:$0xff] %v1824
      %4217 = vst [vmem:[#allocation2 + $0x330] sm:$0xff] %v2215
      %4218 = vst [vmem:[#allocation2 + $0x338] sm:$0xff] %v2217
      %4219 = vst [vmem:[#allocation2 + $0x340] sm:$0xff] %v2608
      %4220 = vst [vmem:[#allocation2 + $0x348] sm:$0xff] %v2610
      %4221 = vst [vmem:[#allocation2 + $0x350] sm:$0xff] %v3001
      %4222 = vst [vmem:[#allocation2 + $0x358] sm:$0xff] %v3003
      %4223 = vst [vmem:[#allocation2 + $0x360] sm:$0xff] %v3394
      %4224 = vst [vmem:[#allocation2 + $0x368] sm:$0xff] %v3396
      %4225 = vst [vmem:[#allocation2 + $0x370] sm:$0xff] %v3787
      %4226 = vst [vmem:[#allocation2 + $0x378] sm:$0xff] %v3789
      %4227 = vst [vmem:[#allocation2 + $0x380] sm:$0xff] %v1040
      %4228 = vst [vmem:[#allocation2 + $0x388] sm:$0xff] %v1042
      %4229 = vst [vmem:[#allocation2 + $0x390] sm:$0xff] %v1433
      %4230 = vst [vmem:[#allocation2 + $0x398] sm:$0xff] %v1435
      %4231 = vst [vmem:[#allocation2 + $0x3a0] sm:$0xff] %v1826
      %4232 = vst [vmem:[#allocation2 + $0x3a8] sm:$0xff] %v1828
      %4233 = vst [vmem:[#allocation2 + $0x3b0] sm:$0xff] %v2219
      %4234 = vst [vmem:[#allocation2 + $0x3b8] sm:$0xff] %v2221
      %4235 = vst [vmem:[#allocation2 + $0x3c0] sm:$0xff] %v2612
      %4236 = vst [vmem:[#allocation2 + $0x3c8] sm:$0xff] %v2614
      %4237 = vst [vmem:[#allocation2 + $0x3d0] sm:$0xff] %v3005
      %4238 = vst [vmem:[#allocation2 + $0x3d8] sm:$0xff] %v3007
      %4239 = vst [vmem:[#allocation2 + $0x3e0] sm:$0xff] %v3398
      %4240 = vst [vmem:[#allocation2 + $0x3e8] sm:$0xff] %v3400
      %4241 = vst [vmem:[#allocation2 + $0x3f0] sm:$0xff] %v3791
      %4242 = vst [vmem:[#allocation2 + $0x3f8] sm:$0xff] %v3793
      %4243 = vst [vmem:[#allocation2 + $0x400] sm:$0xff] %v1046
      %4244 = vst [vmem:[#allocation2 + $0x408] sm:$0xff] %v1048
      %4245 = vst [vmem:[#allocation2 + $0x410] sm:$0xff] %v1439
      %4246 = vst [vmem:[#allocation2 + $0x418] sm:$0xff] %v1441
      %4247 = vst [vmem:[#allocation2 + $0x420] sm:$0xff] %v1832
      %4248 = vst [vmem:[#allocation2 + $0x428] sm:$0xff] %v1834
      %4249 = vst [vmem:[#allocation2 + $0x430] sm:$0xff] %v2225
      %4250 = vst [vmem:[#allocation2 + $0x438] sm:$0xff] %v2227
      %4251 = vst [vmem:[#allocation2 + $0x440] sm:$0xff] %v2618
      %4252 = vst [vmem:[#allocation2 + $0x448] sm:$0xff] %v2620
      %4253 = vst [vmem:[#allocation2 + $0x450] sm:$0xff] %v3011
      %4254 = vst [vmem:[#allocation2 + $0x458] sm:$0xff] %v3013
      %4255 = vst [vmem:[#allocation2 + $0x460] sm:$0xff] %v3404
      %4256 = vst [vmem:[#allocation2 + $0x468] sm:$0xff] %v3406
      %4257 = vst [vmem:[#allocation2 + $0x470] sm:$0xff] %v3797
      %4258 = vst [vmem:[#allocation2 + $0x478] sm:$0xff] %v3799
      %4259 = vst [vmem:[#allocation2 + $0x480] sm:$0xff] %v1050
      %4260 = vst [vmem:[#allocation2 + $0x488] sm:$0xff] %v1052
      %4261 = vst [vmem:[#allocation2 + $0x490] sm:$0xff] %v1443
      %4262 = vst [vmem:[#allocation2 + $0x498] sm:$0xff] %v1445
      %4263 = vst [vmem:[#allocation2 + $0x4a0] sm:$0xff] %v1836
      %4264 = vst [vmem:[#allocation2 + $0x4a8] sm:$0xff] %v1838
      %4265 = vst [vmem:[#allocation2 + $0x4b0] sm:$0xff] %v2229
      %4266 = vst [vmem:[#allocation2 + $0x4b8] sm:$0xff] %v2231
      %4267 = vst [vmem:[#allocation2 + $0x4c0] sm:$0xff] %v2622
      %4268 = vst [vmem:[#allocation2 + $0x4c8] sm:$0xff] %v2624
      %4269 = vst [vmem:[#allocation2 + $0x4d0] sm:$0xff] %v3015
      %4270 = vst [vmem:[#allocation2 + $0x4d8] sm:$0xff] %v3017
      %4271 = vst [vmem:[#allocation2 + $0x4e0] sm:$0xff] %v3408
      %4272 = vst [vmem:[#allocation2 + $0x4e8] sm:$0xff] %v3410
      %4273 = vst [vmem:[#allocation2 + $0x4f0] sm:$0xff] %v3801
      %4274 = vst [vmem:[#allocation2 + $0x4f8] sm:$0xff] %v3803
      %4275 = vst [vmem:[#allocation2 + $0x500] sm:$0xff] %v1056
      %4276 = vst [vmem:[#allocation2 + $0x508] sm:$0xff] %v1058
      %4277 = vst [vmem:[#allocation2 + $0x510] sm:$0xff] %v1449
      %4278 = vst [vmem:[#allocation2 + $0x518] sm:$0xff] %v1451
      %4279 = vst [vmem:[#allocation2 + $0x520] sm:$0xff] %v1842
      %4280 = vst [vmem:[#allocation2 + $0x528] sm:$0xff] %v1844
      %4281 = vst [vmem:[#allocation2 + $0x530] sm:$0xff] %v2235
      %4282 = vst [vmem:[#allocation2 + $0x538] sm:$0xff] %v2237
      %4283 = vst [vmem:[#allocation2 + $0x540] sm:$0xff] %v2628
      %4284 = vst [vmem:[#allocation2 + $0x548] sm:$0xff] %v2630
      %4285 = vst [vmem:[#allocation2 + $0x550] sm:$0xff] %v3021
      %4286 = vst [vmem:[#allocation2 + $0x558] sm:$0xff] %v3023
      %4287 = vst [vmem:[#allocation2 + $0x560] sm:$0xff] %v3414
      %4288 = vst [vmem:[#allocation2 + $0x568] sm:$0xff] %v3416
      %4289 = vst [vmem:[#allocation2 + $0x570] sm:$0xff] %v3807
      %4290 = vst [vmem:[#allocation2 + $0x578] sm:$0xff] %v3809
      %4291 = vst [vmem:[#allocation2 + $0x580] sm:$0xff] %v1060
      %4292 = vst [vmem:[#allocation2 + $0x588] sm:$0xff] %v1062
      %4293 = vst [vmem:[#allocation2 + $0x590] sm:$0xff] %v1453
      %4294 = vst [vmem:[#allocation2 + $0x598] sm:$0xff] %v1455
      %4295 = vst [vmem:[#allocation2 + $0x5a0] sm:$0xff] %v1846
      %4296 = vst [vmem:[#allocation2 + $0x5a8] sm:$0xff] %v1848
      %4297 = vst [vmem:[#allocation2 + $0x5b0] sm:$0xff] %v2239
      %4298 = vst [vmem:[#allocation2 + $0x5b8] sm:$0xff] %v2241
      %4299 = vst [vmem:[#allocation2 + $0x5c0] sm:$0xff] %v2632
      %4300 = vst [vmem:[#allocation2 + $0x5c8] sm:$0xff] %v2634
      %4301 = vst [vmem:[#allocation2 + $0x5d0] sm:$0xff] %v3025
      %4302 = vst [vmem:[#allocation2 + $0x5d8] sm:$0xff] %v3027
      %4303 = vst [vmem:[#allocation2 + $0x5e0] sm:$0xff] %v3418
      %4304 = vst [vmem:[#allocation2 + $0x5e8] sm:$0xff] %v3420
      %4305 = vst [vmem:[#allocation2 + $0x5f0] sm:$0xff] %v3811
      %4306 = vst [vmem:[#allocation2 + $0x5f8] sm:$0xff] %v3813
      %4307 = vst [vmem:[#allocation2 + $0x600] sm:$0xff] %v1066
      %4308 = vst [vmem:[#allocation2 + $0x608] sm:$0xff] %v1068
      %4309 = vst [vmem:[#allocation2 + $0x610] sm:$0xff] %v1459
      %4310 = vst [vmem:[#allocation2 + $0x618] sm:$0xff] %v1461
      %4311 = vst [vmem:[#allocation2 + $0x620] sm:$0xff] %v1852
      %4312 = vst [vmem:[#allocation2 + $0x628] sm:$0xff] %v1854
      %4313 = vst [vmem:[#allocation2 + $0x630] sm:$0xff] %v2245
      %4314 = vst [vmem:[#allocation2 + $0x638] sm:$0xff] %v2247
      %4315 = vst [vmem:[#allocation2 + $0x640] sm:$0xff] %v2638
      %4316 = vst [vmem:[#allocation2 + $0x648] sm:$0xff] %v2640
      %4317 = vst [vmem:[#allocation2 + $0x650] sm:$0xff] %v3031
      %4318 = vst [vmem:[#allocation2 + $0x658] sm:$0xff] %v3033
      %4319 = vst [vmem:[#allocation2 + $0x660] sm:$0xff] %v3424
      %4320 = vst [vmem:[#allocation2 + $0x668] sm:$0xff] %v3426
      %4321 = vst [vmem:[#allocation2 + $0x670] sm:$0xff] %v3817
      %4322 = vst [vmem:[#allocation2 + $0x678] sm:$0xff] %v3819
      %4323 = vst [vmem:[#allocation2 + $0x680] sm:$0xff] %v1070
      %4324 = vst [vmem:[#allocation2 + $0x688] sm:$0xff] %v1072
      %4325 = vst [vmem:[#allocation2 + $0x690] sm:$0xff] %v1463
      %4326 = vst [vmem:[#allocation2 + $0x698] sm:$0xff] %v1465
      %4327 = vst [vmem:[#allocation2 + $0x6a0] sm:$0xff] %v1856
      %4328 = vst [vmem:[#allocation2 + $0x6a8] sm:$0xff] %v1858
      %4329 = vst [vmem:[#allocation2 + $0x6b0] sm:$0xff] %v2249
      %4330 = vst [vmem:[#allocation2 + $0x6b8] sm:$0xff] %v2251
      %4331 = vst [vmem:[#allocation2 + $0x6c0] sm:$0xff] %v2642
      %4332 = vst [vmem:[#allocation2 + $0x6c8] sm:$0xff] %v2644
      %4333 = vst [vmem:[#allocation2 + $0x6d0] sm:$0xff] %v3035
      %4334 = vst [vmem:[#allocation2 + $0x6d8] sm:$0xff] %v3037
      %4335 = vst [vmem:[#allocation2 + $0x6e0] sm:$0xff] %v3428
      %4336 = vst [vmem:[#allocation2 + $0x6e8] sm:$0xff] %v3430
      %4337 = vst [vmem:[#allocation2 + $0x6f0] sm:$0xff] %v3821
      %4338 = vst [vmem:[#allocation2 + $0x6f8] sm:$0xff] %v3823
      %4339 = vst [vmem:[#allocation2 + $0x700] sm:$0xff] %v1076
      %4340 = vst [vmem:[#allocation2 + $0x708] sm:$0xff] %v1078
      %4341 = vst [vmem:[#allocation2 + $0x710] sm:$0xff] %v1469
      %4342 = vst [vmem:[#allocation2 + $0x718] sm:$0xff] %v1471
      %4343 = vst [vmem:[#allocation2 + $0x720] sm:$0xff] %v1862
      %4344 = vst [vmem:[#allocation2 + $0x728] sm:$0xff] %v1864
      %4345 = vst [vmem:[#allocation2 + $0x730] sm:$0xff] %v2255
      %4346 = vst [vmem:[#allocation2 + $0x738] sm:$0xff] %v2257
      %4347 = vst [vmem:[#allocation2 + $0x740] sm:$0xff] %v2648
      %4348 = vst [vmem:[#allocation2 + $0x748] sm:$0xff] %v2650
      %4349 = vst [vmem:[#allocation2 + $0x750] sm:$0xff] %v3041
      %4350 = vst [vmem:[#allocation2 + $0x758] sm:$0xff] %v3043
      %4351 = vst [vmem:[#allocation2 + $0x760] sm:$0xff] %v3434
      %4352 = vst [vmem:[#allocation2 + $0x768] sm:$0xff] %v3436
      %4353 = vst [vmem:[#allocation2 + $0x770] sm:$0xff] %v3827
      %4354 = vst [vmem:[#allocation2 + $0x778] sm:$0xff] %v3829
      %4355 = vst [vmem:[#allocation2 + $0x780] sm:$0xff] %v1080
      %4356 = vst [vmem:[#allocation2 + $0x788] sm:$0xff] %v1082
      %4357 = vst [vmem:[#allocation2 + $0x790] sm:$0xff] %v1473
      %4358 = vst [vmem:[#allocation2 + $0x798] sm:$0xff] %v1475
      %4359 = vst [vmem:[#allocation2 + $0x7a0] sm:$0xff] %v1866
      %4360 = vst [vmem:[#allocation2 + $0x7a8] sm:$0xff] %v1868
      %4361 = vst [vmem:[#allocation2 + $0x7b0] sm:$0xff] %v2259
      %4362 = vst [vmem:[#allocation2 + $0x7b8] sm:$0xff] %v2261
      %4363 = vst [vmem:[#allocation2 + $0x7c0] sm:$0xff] %v2652
      %4364 = vst [vmem:[#allocation2 + $0x7c8] sm:$0xff] %v2654
      %4365 = vst [vmem:[#allocation2 + $0x7d0] sm:$0xff] %v3045
      %4366 = vst [vmem:[#allocation2 + $0x7d8] sm:$0xff] %v3047
      %4367 = vst [vmem:[#allocation2 + $0x7e0] sm:$0xff] %v3438
      %4368 = vst [vmem:[#allocation2 + $0x7e8] sm:$0xff] %v3440
      %4369 = vst [vmem:[#allocation2 + $0x7f0] sm:$0xff] %v3831
      %4370 = vst [vmem:[#allocation2 + $0x7f8] sm:$0xff] %v3833
      %4371 = vst [vmem:[#allocation2 + $0x800] sm:$0xff] %v1086
      %4372 = vst [vmem:[#allocation2 + $0x808] sm:$0xff] %v1088
      %4373 = vst [vmem:[#allocation2 + $0x810] sm:$0xff] %v1479
      %4374 = vst [vmem:[#allocation2 + $0x818] sm:$0xff] %v1481
      %4375 = vst [vmem:[#allocation2 + $0x820] sm:$0xff] %v1872
      %4376 = vst [vmem:[#allocation2 + $0x828] sm:$0xff] %v1874
      %4377 = vst [vmem:[#allocation2 + $0x830] sm:$0xff] %v2265
      %4378 = vst [vmem:[#allocation2 + $0x838] sm:$0xff] %v2267
      %4379 = vst [vmem:[#allocation2 + $0x840] sm:$0xff] %v2658
      %4380 = vst [vmem:[#allocation2 + $0x848] sm:$0xff] %v2660
      %4381 = vst [vmem:[#allocation2 + $0x850] sm:$0xff] %v3051
      %4382 = vst [vmem:[#allocation2 + $0x858] sm:$0xff] %v3053
      %4383 = vst [vmem:[#allocation2 + $0x860] sm:$0xff] %v3444
      %4384 = vst [vmem:[#allocation2 + $0x868] sm:$0xff] %v3446
      %4385 = vst [vmem:[#allocation2 + $0x870] sm:$0xff] %v3837
      %4386 = vst [vmem:[#allocation2 + $0x878] sm:$0xff] %v3839
      %4387 = vst [vmem:[#allocation2 + $0x880] sm:$0xff] %v1090
      %4388 = vst [vmem:[#allocation2 + $0x888] sm:$0xff] %v1092
      %4389 = vst [vmem:[#allocation2 + $0x890] sm:$0xff] %v1483
      %4390 = vst [vmem:[#allocation2 + $0x898] sm:$0xff] %v1485
      %4391 = vst [vmem:[#allocation2 + $0x8a0] sm:$0xff] %v1876
      %4392 = vst [vmem:[#allocation2 + $0x8a8] sm:$0xff] %v1878
      %4393 = vst [vmem:[#allocation2 + $0x8b0] sm:$0xff] %v2269
      %4394 = vst [vmem:[#allocation2 + $0x8b8] sm:$0xff] %v2271
      %4395 = vst [vmem:[#allocation2 + $0x8c0] sm:$0xff] %v2662
      %4396 = vst [vmem:[#allocation2 + $0x8c8] sm:$0xff] %v2664
      %4397 = vst [vmem:[#allocation2 + $0x8d0] sm:$0xff] %v3055
      %4398 = vst [vmem:[#allocation2 + $0x8d8] sm:$0xff] %v3057
      %4399 = vst [vmem:[#allocation2 + $0x8e0] sm:$0xff] %v3448
      %4400 = vst [vmem:[#allocation2 + $0x8e8] sm:$0xff] %v3450
      %4401 = vst [vmem:[#allocation2 + $0x8f0] sm:$0xff] %v3841
      %4402 = vst [vmem:[#allocation2 + $0x8f8] sm:$0xff] %v3843
      %4403 = vst [vmem:[#allocation2 + $0x900] sm:$0xff] %v1096
      %4404 = vst [vmem:[#allocation2 + $0x908] sm:$0xff] %v1098
      %4405 = vst [vmem:[#allocation2 + $0x910] sm:$0xff] %v1489
      %4406 = vst [vmem:[#allocation2 + $0x918] sm:$0xff] %v1491
      %4407 = vst [vmem:[#allocation2 + $0x920] sm:$0xff] %v1882
      %4408 = vst [vmem:[#allocation2 + $0x928] sm:$0xff] %v1884
      %4409 = vst [vmem:[#allocation2 + $0x930] sm:$0xff] %v2275
      %4410 = vst [vmem:[#allocation2 + $0x938] sm:$0xff] %v2277
      %4411 = vst [vmem:[#allocation2 + $0x940] sm:$0xff] %v2668
      %4412 = vst [vmem:[#allocation2 + $0x948] sm:$0xff] %v2670
      %4413 = vst [vmem:[#allocation2 + $0x950] sm:$0xff] %v3061
      %4414 = vst [vmem:[#allocation2 + $0x958] sm:$0xff] %v3063
      %4415 = vst [vmem:[#allocation2 + $0x960] sm:$0xff] %v3454
      %4416 = vst [vmem:[#allocation2 + $0x968] sm:$0xff] %v3456
      %4417 = vst [vmem:[#allocation2 + $0x970] sm:$0xff] %v3847
      %4418 = vst [vmem:[#allocation2 + $0x978] sm:$0xff] %v3849
      %4419 = vst [vmem:[#allocation2 + $0x980] sm:$0xff] %v1100
      %4420 = vst [vmem:[#allocation2 + $0x988] sm:$0xff] %v1102
      %4421 = vst [vmem:[#allocation2 + $0x990] sm:$0xff] %v1493
      %4422 = vst [vmem:[#allocation2 + $0x998] sm:$0xff] %v1495
      %4423 = vst [vmem:[#allocation2 + $0x9a0] sm:$0xff] %v1886
      %4424 = vst [vmem:[#allocation2 + $0x9a8] sm:$0xff] %v1888
      %4425 = vst [vmem:[#allocation2 + $0x9b0] sm:$0xff] %v2279
      %4426 = vst [vmem:[#allocation2 + $0x9b8] sm:$0xff] %v2281
      %4427 = vst [vmem:[#allocation2 + $0x9c0] sm:$0xff] %v2672
      %4428 = vst [vmem:[#allocation2 + $0x9c8] sm:$0xff] %v2674
      %4429 = vst [vmem:[#allocation2 + $0x9d0] sm:$0xff] %v3065
      %4430 = vst [vmem:[#allocation2 + $0x9d8] sm:$0xff] %v3067
      %4431 = vst [vmem:[#allocation2 + $0x9e0] sm:$0xff] %v3458
      %4432 = vst [vmem:[#allocation2 + $0x9e8] sm:$0xff] %v3460
      %4433 = vst [vmem:[#allocation2 + $0x9f0] sm:$0xff] %v3851
      %4434 = vst [vmem:[#allocation2 + $0x9f8] sm:$0xff] %v3853
      %4435 = vst [vmem:[#allocation2 + $0xa00] sm:$0xff] %v1106
      %4436 = vst [vmem:[#allocation2 + $0xa08] sm:$0xff] %v1108
      %4437 = vst [vmem:[#allocation2 + $0xa10] sm:$0xff] %v1499
      %4438 = vst [vmem:[#allocation2 + $0xa18] sm:$0xff] %v1501
      %4439 = vst [vmem:[#allocation2 + $0xa20] sm:$0xff] %v1892
      %4440 = vst [vmem:[#allocation2 + $0xa28] sm:$0xff] %v1894
      %4441 = vst [vmem:[#allocation2 + $0xa30] sm:$0xff] %v2285
      %4442 = vst [vmem:[#allocation2 + $0xa38] sm:$0xff] %v2287
      %4443 = vst [vmem:[#allocation2 + $0xa40] sm:$0xff] %v2678
      %4444 = vst [vmem:[#allocation2 + $0xa48] sm:$0xff] %v2680
      %4445 = vst [vmem:[#allocation2 + $0xa50] sm:$0xff] %v3071
      %4446 = vst [vmem:[#allocation2 + $0xa58] sm:$0xff] %v3073
      %4447 = vst [vmem:[#allocation2 + $0xa60] sm:$0xff] %v3464
      %4448 = vst [vmem:[#allocation2 + $0xa68] sm:$0xff] %v3466
      %4449 = vst [vmem:[#allocation2 + $0xa70] sm:$0xff] %v3857
      %4450 = vst [vmem:[#allocation2 + $0xa78] sm:$0xff] %v3859
      %4451 = vst [vmem:[#allocation2 + $0xa80] sm:$0xff] %v1110
      %4452 = vst [vmem:[#allocation2 + $0xa88] sm:$0xff] %v1112
      %4453 = vst [vmem:[#allocation2 + $0xa90] sm:$0xff] %v1503
      %4454 = vst [vmem:[#allocation2 + $0xa98] sm:$0xff] %v1505
      %4455 = vst [vmem:[#allocation2 + $0xaa0] sm:$0xff] %v1896
      %4456 = vst [vmem:[#allocation2 + $0xaa8] sm:$0xff] %v1898
      %4457 = vst [vmem:[#allocation2 + $0xab0] sm:$0xff] %v2289
      %4458 = vst [vmem:[#allocation2 + $0xab8] sm:$0xff] %v2291
      %4459 = vst [vmem:[#allocation2 + $0xac0] sm:$0xff] %v2682
      %4460 = vst [vmem:[#allocation2 + $0xac8] sm:$0xff] %v2684
      %4461 = vst [vmem:[#allocation2 + $0xad0] sm:$0xff] %v3075
      %4462 = vst [vmem:[#allocation2 + $0xad8] sm:$0xff] %v3077
      %4463 = vst [vmem:[#allocation2 + $0xae0] sm:$0xff] %v3468
      %4464 = vst [vmem:[#allocation2 + $0xae8] sm:$0xff] %v3470
      %4465 = vst [vmem:[#allocation2 + $0xaf0] sm:$0xff] %v3861
      %4466 = vst [vmem:[#allocation2 + $0xaf8] sm:$0xff] %v3863
      %4467 = vst [vmem:[#allocation2 + $0xb00] sm:$0xff] %v1116
      %4468 = vst [vmem:[#allocation2 + $0xb08] sm:$0xff] %v1118
      %4469 = vst [vmem:[#allocation2 + $0xb10] sm:$0xff] %v1509
      %4470 = vst [vmem:[#allocation2 + $0xb18] sm:$0xff] %v1511
      %4471 = vst [vmem:[#allocation2 + $0xb20] sm:$0xff] %v1902
      %4472 = vst [vmem:[#allocation2 + $0xb28] sm:$0xff] %v1904
      %4473 = vst [vmem:[#allocation2 + $0xb30] sm:$0xff] %v2295
      %4474 = vst [vmem:[#allocation2 + $0xb38] sm:$0xff] %v2297
      %4475 = vst [vmem:[#allocation2 + $0xb40] sm:$0xff] %v2688
      %4476 = vst [vmem:[#allocation2 + $0xb48] sm:$0xff] %v2690
      %4477 = vst [vmem:[#allocation2 + $0xb50] sm:$0xff] %v3081
      %4478 = vst [vmem:[#allocation2 + $0xb58] sm:$0xff] %v3083
      %4479 = vst [vmem:[#allocation2 + $0xb60] sm:$0xff] %v3474
      %4480 = vst [vmem:[#allocation2 + $0xb68] sm:$0xff] %v3476
      %4481 = vst [vmem:[#allocation2 + $0xb70] sm:$0xff] %v3867
      %4482 = vst [vmem:[#allocation2 + $0xb78] sm:$0xff] %v3869
      %4483 = vst [vmem:[#allocation2 + $0xb80] sm:$0xff] %v1120
      %4484 = vst [vmem:[#allocation2 + $0xb88] sm:$0xff] %v1122
      %4485 = vst [vmem:[#allocation2 + $0xb90] sm:$0xff] %v1513
      %4486 = vst [vmem:[#allocation2 + $0xb98] sm:$0xff] %v1515
      %4487 = vst [vmem:[#allocation2 + $0xba0] sm:$0xff] %v1906
      %4488 = vst [vmem:[#allocation2 + $0xba8] sm:$0xff] %v1908
      %4489 = vst [vmem:[#allocation2 + $0xbb0] sm:$0xff] %v2299
      %4490 = vst [vmem:[#allocation2 + $0xbb8] sm:$0xff] %v2301
      %4491 = vst [vmem:[#allocation2 + $0xbc0] sm:$0xff] %v2692
      %4492 = vst [vmem:[#allocation2 + $0xbc8] sm:$0xff] %v2694
      %4493 = vst [vmem:[#allocation2 + $0xbd0] sm:$0xff] %v3085
      %4494 = vst [vmem:[#allocation2 + $0xbd8] sm:$0xff] %v3087
      %4495 = vst [vmem:[#allocation2 + $0xbe0] sm:$0xff] %v3478
      %4496 = vst [vmem:[#allocation2 + $0xbe8] sm:$0xff] %v3480
      %4497 = vst [vmem:[#allocation2 + $0xbf0] sm:$0xff] %v3871
      %4498 = vst [vmem:[#allocation2 + $0xbf8] sm:$0xff] %v3873
      %4499 = vst [vmem:[#allocation2 + $0xc00] sm:$0xff] %v1126
      %4500 = vst [vmem:[#allocation2 + $0xc08] sm:$0xff] %v1128
      %4501 = vst [vmem:[#allocation2 + $0xc10] sm:$0xff] %v1519
      %4502 = vst [vmem:[#allocation2 + $0xc18] sm:$0xff] %v1521
      %4503 = vst [vmem:[#allocation2 + $0xc20] sm:$0xff] %v1912
      %4504 = vst [vmem:[#allocation2 + $0xc28] sm:$0xff] %v1914
      %4505 = vst [vmem:[#allocation2 + $0xc30] sm:$0xff] %v2305
      %4506 = vst [vmem:[#allocation2 + $0xc38] sm:$0xff] %v2307
      %4507 = vst [vmem:[#allocation2 + $0xc40] sm:$0xff] %v2698
      %4508 = vst [vmem:[#allocation2 + $0xc48] sm:$0xff] %v2700
      %4509 = vst [vmem:[#allocation2 + $0xc50] sm:$0xff] %v3091
      %4510 = vst [vmem:[#allocation2 + $0xc58] sm:$0xff] %v3093
      %4511 = vst [vmem:[#allocation2 + $0xc60] sm:$0xff] %v3484
      %4512 = vst [vmem:[#allocation2 + $0xc68] sm:$0xff] %v3486
      %4513 = vst [vmem:[#allocation2 + $0xc70] sm:$0xff] %v3877
      %4514 = vst [vmem:[#allocation2 + $0xc78] sm:$0xff] %v3879
      %4515 = vst [vmem:[#allocation2 + $0xc80] sm:$0xff] %v1130
      %4516 = vst [vmem:[#allocation2 + $0xc88] sm:$0xff] %v1132
      %4517 = vst [vmem:[#allocation2 + $0xc90] sm:$0xff] %v1523
      %4518 = vst [vmem:[#allocation2 + $0xc98] sm:$0xff] %v1525
      %4519 = vst [vmem:[#allocation2 + $0xca0] sm:$0xff] %v1916
      %4520 = vst [vmem:[#allocation2 + $0xca8] sm:$0xff] %v1918
      %4521 = vst [vmem:[#allocation2 + $0xcb0] sm:$0xff] %v2309
      %4522 = vst [vmem:[#allocation2 + $0xcb8] sm:$0xff] %v2311
      %4523 = vst [vmem:[#allocation2 + $0xcc0] sm:$0xff] %v2702
      %4524 = vst [vmem:[#allocation2 + $0xcc8] sm:$0xff] %v2704
      %4525 = vst [vmem:[#allocation2 + $0xcd0] sm:$0xff] %v3095
      %4526 = vst [vmem:[#allocation2 + $0xcd8] sm:$0xff] %v3097
      %4527 = vst [vmem:[#allocation2 + $0xce0] sm:$0xff] %v3488
      %4528 = vst [vmem:[#allocation2 + $0xce8] sm:$0xff] %v3490
      %4529 = vst [vmem:[#allocation2 + $0xcf0] sm:$0xff] %v3881
      %4530 = vst [vmem:[#allocation2 + $0xcf8] sm:$0xff] %v3883
      %4531 = vst [vmem:[#allocation2 + $0xd00] sm:$0xff] %v1136
      %4532 = vst [vmem:[#allocation2 + $0xd08] sm:$0xff] %v1138
      %4533 = vst [vmem:[#allocation2 + $0xd10] sm:$0xff] %v1529
      %4534 = vst [vmem:[#allocation2 + $0xd18] sm:$0xff] %v1531
      %4535 = vst [vmem:[#allocation2 + $0xd20] sm:$0xff] %v1922
      %4536 = vst [vmem:[#allocation2 + $0xd28] sm:$0xff] %v1924
      %4537 = vst [vmem:[#allocation2 + $0xd30] sm:$0xff] %v2315
      %4538 = vst [vmem:[#allocation2 + $0xd38] sm:$0xff] %v2317
      %4539 = vst [vmem:[#allocation2 + $0xd40] sm:$0xff] %v2708
      %4540 = vst [vmem:[#allocation2 + $0xd48] sm:$0xff] %v2710
      %4541 = vst [vmem:[#allocation2 + $0xd50] sm:$0xff] %v3101
      %4542 = vst [vmem:[#allocation2 + $0xd58] sm:$0xff] %v3103
      %4543 = vst [vmem:[#allocation2 + $0xd60] sm:$0xff] %v3494
      %4544 = vst [vmem:[#allocation2 + $0xd68] sm:$0xff] %v3496
      %4545 = vst [vmem:[#allocation2 + $0xd70] sm:$0xff] %v3887
      %4546 = vst [vmem:[#allocation2 + $0xd78] sm:$0xff] %v3889
      %4547 = vst [vmem:[#allocation2 + $0xd80] sm:$0xff] %v1140
      %4548 = vst [vmem:[#allocation2 + $0xd88] sm:$0xff] %v1142
      %4549 = vst [vmem:[#allocation2 + $0xd90] sm:$0xff] %v1533
      %4550 = vst [vmem:[#allocation2 + $0xd98] sm:$0xff] %v1535
      %4551 = vst [vmem:[#allocation2 + $0xda0] sm:$0xff] %v1926
      %4552 = vst [vmem:[#allocation2 + $0xda8] sm:$0xff] %v1928
      %4553 = vst [vmem:[#allocation2 + $0xdb0] sm:$0xff] %v2319
      %4554 = vst [vmem:[#allocation2 + $0xdb8] sm:$0xff] %v2321
      %4555 = vst [vmem:[#allocation2 + $0xdc0] sm:$0xff] %v2712
      %4556 = vst [vmem:[#allocation2 + $0xdc8] sm:$0xff] %v2714
      %4557 = vst [vmem:[#allocation2 + $0xdd0] sm:$0xff] %v3105
      %4558 = vst [vmem:[#allocation2 + $0xdd8] sm:$0xff] %v3107
      %4559 = vst [vmem:[#allocation2 + $0xde0] sm:$0xff] %v3498
      %4560 = vst [vmem:[#allocation2 + $0xde8] sm:$0xff] %v3500
      %4561 = vst [vmem:[#allocation2 + $0xdf0] sm:$0xff] %v3891
      %4562 = vst [vmem:[#allocation2 + $0xdf8] sm:$0xff] %v3893
      %4563 = vst [vmem:[#allocation2 + $0xe00] sm:$0xff] %v1146
      %4564 = vst [vmem:[#allocation2 + $0xe08] sm:$0xff] %v1148
      %4565 = vst [vmem:[#allocation2 + $0xe10] sm:$0xff] %v1539
      %4566 = vst [vmem:[#allocation2 + $0xe18] sm:$0xff] %v1541
      %4567 = vst [vmem:[#allocation2 + $0xe20] sm:$0xff] %v1932
      %4568 = vst [vmem:[#allocation2 + $0xe28] sm:$0xff] %v1934
      %4569 = vst [vmem:[#allocation2 + $0xe30] sm:$0xff] %v2325
      %4570 = vst [vmem:[#allocation2 + $0xe38] sm:$0xff] %v2327
      %4571 = vst [vmem:[#allocation2 + $0xe40] sm:$0xff] %v2718
      %4572 = vst [vmem:[#allocation2 + $0xe48] sm:$0xff] %v2720
      %4573 = vst [vmem:[#allocation2 + $0xe50] sm:$0xff] %v3111
      %4574 = vst [vmem:[#allocation2 + $0xe58] sm:$0xff] %v3113
      %4575 = vst [vmem:[#allocation2 + $0xe60] sm:$0xff] %v3504
      %4576 = vst [vmem:[#allocation2 + $0xe68] sm:$0xff] %v3506
      %4577 = vst [vmem:[#allocation2 + $0xe70] sm:$0xff] %v3897
      %4578 = vst [vmem:[#allocation2 + $0xe78] sm:$0xff] %v3899
      %4579 = vst [vmem:[#allocation2 + $0xe80] sm:$0xff] %v1150
      %4580 = vst [vmem:[#allocation2 + $0xe88] sm:$0xff] %v1152
      %4581 = vst [vmem:[#allocation2 + $0xe90] sm:$0xff] %v1543
      %4582 = vst [vmem:[#allocation2 + $0xe98] sm:$0xff] %v1545
      %4583 = vst [vmem:[#allocation2 + $0xea0] sm:$0xff] %v1936
      %4584 = vst [vmem:[#allocation2 + $0xea8] sm:$0xff] %v1938
      %4585 = vst [vmem:[#allocation2 + $0xeb0] sm:$0xff] %v2329
      %4586 = vst [vmem:[#allocation2 + $0xeb8] sm:$0xff] %v2331
      %4587 = vst [vmem:[#allocation2 + $0xec0] sm:$0xff] %v2722
      %4588 = vst [vmem:[#allocation2 + $0xec8] sm:$0xff] %v2724
      %4589 = vst [vmem:[#allocation2 + $0xed0] sm:$0xff] %v3115
      %4590 = vst [vmem:[#allocation2 + $0xed8] sm:$0xff] %v3117
      %4591 = vst [vmem:[#allocation2 + $0xee0] sm:$0xff] %v3508
      %4592 = vst [vmem:[#allocation2 + $0xee8] sm:$0xff] %v3510
      %4593 = vst [vmem:[#allocation2 + $0xef0] sm:$0xff] %v3901
      %4594 = vst [vmem:[#allocation2 + $0xef8] sm:$0xff] %v3903
      %4595 = vst [vmem:[#allocation2 + $0xf00] sm:$0xff] %v1156
      %4596 = vst [vmem:[#allocation2 + $0xf08] sm:$0xff] %v1158
      %4597 = vst [vmem:[#allocation2 + $0xf10] sm:$0xff] %v1549
      %4598 = vst [vmem:[#allocation2 + $0xf18] sm:$0xff] %v1551
      %4599 = vst [vmem:[#allocation2 + $0xf20] sm:$0xff] %v1942
      %4600 = vst [vmem:[#allocation2 + $0xf28] sm:$0xff] %v1944
      %4601 = vst [vmem:[#allocation2 + $0xf30] sm:$0xff] %v2335
      %4602 = vst [vmem:[#allocation2 + $0xf38] sm:$0xff] %v2337
      %4603 = vst [vmem:[#allocation2 + $0xf40] sm:$0xff] %v2728
      %4604 = vst [vmem:[#allocation2 + $0xf48] sm:$0xff] %v2730
      %4605 = vst [vmem:[#allocation2 + $0xf50] sm:$0xff] %v3121
      %4606 = vst [vmem:[#allocation2 + $0xf58] sm:$0xff] %v3123
      %4607 = vst [vmem:[#allocation2 + $0xf60] sm:$0xff] %v3514
      %4608 = vst [vmem:[#allocation2 + $0xf68] sm:$0xff] %v3516
      %4609 = vst [vmem:[#allocation2 + $0xf70] sm:$0xff] %v3907
      %4610 = vst [vmem:[#allocation2 + $0xf78] sm:$0xff] %v3909
      %4611 = vst [vmem:[#allocation2 + $0xf80] sm:$0xff] %v1160
      %4612 = vst [vmem:[#allocation2 + $0xf88] sm:$0xff] %v1162
      %4613 = vst [vmem:[#allocation2 + $0xf90] sm:$0xff] %v1553
      %4614 = vst [vmem:[#allocation2 + $0xf98] sm:$0xff] %v1555
      %4615 = vst [vmem:[#allocation2 + $0xfa0] sm:$0xff] %v1946
      %4616 = vst [vmem:[#allocation2 + $0xfa8] sm:$0xff] %v1948
      %4617 = vst [vmem:[#allocation2 + $0xfb0] sm:$0xff] %v2339
      %4618 = vst [vmem:[#allocation2 + $0xfb8] sm:$0xff] %v2341
      %4619 = vst [vmem:[#allocation2 + $0xfc0] sm:$0xff] %v2732
      %4620 = vst [vmem:[#allocation2 + $0xfc8] sm:$0xff] %v2734
      %4621 = vst [vmem:[#allocation2 + $0xfd0] sm:$0xff] %v3125
      %4622 = vst [vmem:[#allocation2 + $0xfd8] sm:$0xff] %v3127
      %4623 = vst [vmem:[#allocation2 + $0xfe0] sm:$0xff] %v3518
      %4624 = vst [vmem:[#allocation2 + $0xfe8] sm:$0xff] %v3520
      %4625 = vst [vmem:[#allocation2 + $0xff0] sm:$0xff] %v3911
      %4626 = vst [vmem:[#allocation2 + $0xff8] sm:$0xff] %v3913
      %4627 = vst [vmem:[#allocation2 + $0x1000] sm:$0xff] %v1166
      %4628 = vst [vmem:[#allocation2 + $0x1008] sm:$0xff] %v1168
      %4629 = vst [vmem:[#allocation2 + $0x1010] sm:$0xff] %v1559
      %4630 = vst [vmem:[#allocation2 + $0x1018] sm:$0xff] %v1561
      %4631 = vst [vmem:[#allocation2 + $0x1020] sm:$0xff] %v1952
      %4632 = vst [vmem:[#allocation2 + $0x1028] sm:$0xff] %v1954
      %4633 = vst [vmem:[#allocation2 + $0x1030] sm:$0xff] %v2345
      %4634 = vst [vmem:[#allocation2 + $0x1038] sm:$0xff] %v2347
      %4635 = vst [vmem:[#allocation2 + $0x1040] sm:$0xff] %v2738
      %4636 = vst [vmem:[#allocation2 + $0x1048] sm:$0xff] %v2740
      %4637 = vst [vmem:[#allocation2 + $0x1050] sm:$0xff] %v3131
      %4638 = vst [vmem:[#allocation2 + $0x1058] sm:$0xff] %v3133
      %4639 = vst [vmem:[#allocation2 + $0x1060] sm:$0xff] %v3524
      %4640 = vst [vmem:[#allocation2 + $0x1068] sm:$0xff] %v3526
      %4641 = vst [vmem:[#allocation2 + $0x1070] sm:$0xff] %v3917
      %4642 = vst [vmem:[#allocation2 + $0x1078] sm:$0xff] %v3919
      %4643 = vst [vmem:[#allocation2 + $0x1080] sm:$0xff] %v1170
      %4644 = vst [vmem:[#allocation2 + $0x1088] sm:$0xff] %v1172
      %4645 = vst [vmem:[#allocation2 + $0x1090] sm:$0xff] %v1563
      %4646 = vst [vmem:[#allocation2 + $0x1098] sm:$0xff] %v1565
      %4647 = vst [vmem:[#allocation2 + $0x10a0] sm:$0xff] %v1956
      %4648 = vst [vmem:[#allocation2 + $0x10a8] sm:$0xff] %v1958
      %4649 = vst [vmem:[#allocation2 + $0x10b0] sm:$0xff] %v2349
      %4650 = vst [vmem:[#allocation2 + $0x10b8] sm:$0xff] %v2351
      %4651 = vst [vmem:[#allocation2 + $0x10c0] sm:$0xff] %v2742
      %4652 = vst [vmem:[#allocation2 + $0x10c8] sm:$0xff] %v2744
      %4653 = vst [vmem:[#allocation2 + $0x10d0] sm:$0xff] %v3135
      %4654 = vst [vmem:[#allocation2 + $0x10d8] sm:$0xff] %v3137
      %4655 = vst [vmem:[#allocation2 + $0x10e0] sm:$0xff] %v3528
      %4656 = vst [vmem:[#allocation2 + $0x10e8] sm:$0xff] %v3530
      %4657 = vst [vmem:[#allocation2 + $0x10f0] sm:$0xff] %v3921
      %4658 = vst [vmem:[#allocation2 + $0x10f8] sm:$0xff] %v3923
      %4659 = vst [vmem:[#allocation2 + $0x1100] sm:$0xff] %v1176
      %4660 = vst [vmem:[#allocation2 + $0x1108] sm:$0xff] %v1178
      %4661 = vst [vmem:[#allocation2 + $0x1110] sm:$0xff] %v1569
      %4662 = vst [vmem:[#allocation2 + $0x1118] sm:$0xff] %v1571
      %4663 = vst [vmem:[#allocation2 + $0x1120] sm:$0xff] %v1962
      %4664 = vst [vmem:[#allocation2 + $0x1128] sm:$0xff] %v1964
      %4665 = vst [vmem:[#allocation2 + $0x1130] sm:$0xff] %v2355
      %4666 = vst [vmem:[#allocation2 + $0x1138] sm:$0xff] %v2357
      %4667 = vst [vmem:[#allocation2 + $0x1140] sm:$0xff] %v2748
      %4668 = vst [vmem:[#allocation2 + $0x1148] sm:$0xff] %v2750
      %4669 = vst [vmem:[#allocation2 + $0x1150] sm:$0xff] %v3141
      %4670 = vst [vmem:[#allocation2 + $0x1158] sm:$0xff] %v3143
      %4671 = vst [vmem:[#allocation2 + $0x1160] sm:$0xff] %v3534
      %4672 = vst [vmem:[#allocation2 + $0x1168] sm:$0xff] %v3536
      %4673 = vst [vmem:[#allocation2 + $0x1170] sm:$0xff] %v3927
      %4674 = vst [vmem:[#allocation2 + $0x1178] sm:$0xff] %v3929
      %4675 = vst [vmem:[#allocation2 + $0x1180] sm:$0xff] %v1180
      %4676 = vst [vmem:[#allocation2 + $0x1188] sm:$0xff] %v1182
      %4677 = vst [vmem:[#allocation2 + $0x1190] sm:$0xff] %v1573
      %4678 = vst [vmem:[#allocation2 + $0x1198] sm:$0xff] %v1575
      %4679 = vst [vmem:[#allocation2 + $0x11a0] sm:$0xff] %v1966
      %4680 = vst [vmem:[#allocation2 + $0x11a8] sm:$0xff] %v1968
      %4681 = vst [vmem:[#allocation2 + $0x11b0] sm:$0xff] %v2359
      %4682 = vst [vmem:[#allocation2 + $0x11b8] sm:$0xff] %v2361
      %4683 = vst [vmem:[#allocation2 + $0x11c0] sm:$0xff] %v2752
      %4684 = vst [vmem:[#allocation2 + $0x11c8] sm:$0xff] %v2754
      %4685 = vst [vmem:[#allocation2 + $0x11d0] sm:$0xff] %v3145
      %4686 = vst [vmem:[#allocation2 + $0x11d8] sm:$0xff] %v3147
      %4687 = vst [vmem:[#allocation2 + $0x11e0] sm:$0xff] %v3538
      %4688 = vst [vmem:[#allocation2 + $0x11e8] sm:$0xff] %v3540
      %4689 = vst [vmem:[#allocation2 + $0x11f0] sm:$0xff] %v3931
      %4690 = vst [vmem:[#allocation2 + $0x11f8] sm:$0xff] %v3933
      %4691 = vst [vmem:[#allocation2 + $0x1200] sm:$0xff] %v1186
      %4692 = vst [vmem:[#allocation2 + $0x1208] sm:$0xff] %v1188
      %4693 = vst [vmem:[#allocation2 + $0x1210] sm:$0xff] %v1579
      %4694 = vst [vmem:[#allocation2 + $0x1218] sm:$0xff] %v1581
      %4695 = vst [vmem:[#allocation2 + $0x1220] sm:$0xff] %v1972
      %4696 = vst [vmem:[#allocation2 + $0x1228] sm:$0xff] %v1974
      %4697 = vst [vmem:[#allocation2 + $0x1230] sm:$0xff] %v2365
      %4698 = vst [vmem:[#allocation2 + $0x1238] sm:$0xff] %v2367
      %4699 = vst [vmem:[#allocation2 + $0x1240] sm:$0xff] %v2758
      %4700 = vst [vmem:[#allocation2 + $0x1248] sm:$0xff] %v2760
      %4701 = vst [vmem:[#allocation2 + $0x1250] sm:$0xff] %v3151
      %4702 = vst [vmem:[#allocation2 + $0x1258] sm:$0xff] %v3153
      %4703 = vst [vmem:[#allocation2 + $0x1260] sm:$0xff] %v3544
      %4704 = vst [vmem:[#allocation2 + $0x1268] sm:$0xff] %v3546
      %4705 = vst [vmem:[#allocation2 + $0x1270] sm:$0xff] %v3937
      %4706 = vst [vmem:[#allocation2 + $0x1278] sm:$0xff] %v3939
      %4707 = vst [vmem:[#allocation2 + $0x1280] sm:$0xff] %v1190
      %4708 = vst [vmem:[#allocation2 + $0x1288] sm:$0xff] %v1192
      %4709 = vst [vmem:[#allocation2 + $0x1290] sm:$0xff] %v1583
      %4710 = vst [vmem:[#allocation2 + $0x1298] sm:$0xff] %v1585
      %4711 = vst [vmem:[#allocation2 + $0x12a0] sm:$0xff] %v1976
      %4712 = vst [vmem:[#allocation2 + $0x12a8] sm:$0xff] %v1978
      %4713 = vst [vmem:[#allocation2 + $0x12b0] sm:$0xff] %v2369
      %4714 = vst [vmem:[#allocation2 + $0x12b8] sm:$0xff] %v2371
      %4715 = vst [vmem:[#allocation2 + $0x12c0] sm:$0xff] %v2762
      %4716 = vst [vmem:[#allocation2 + $0x12c8] sm:$0xff] %v2764
      %4717 = vst [vmem:[#allocation2 + $0x12d0] sm:$0xff] %v3155
      %4718 = vst [vmem:[#allocation2 + $0x12d8] sm:$0xff] %v3157
      %4719 = vst [vmem:[#allocation2 + $0x12e0] sm:$0xff] %v3548
      %4720 = vst [vmem:[#allocation2 + $0x12e8] sm:$0xff] %v3550
      %4721 = vst [vmem:[#allocation2 + $0x12f0] sm:$0xff] %v3941
      %4722 = vst [vmem:[#allocation2 + $0x12f8] sm:$0xff] %v3943
      %4723 = vst [vmem:[#allocation2 + $0x1300] sm:$0xff] %v1196
      %4724 = vst [vmem:[#allocation2 + $0x1308] sm:$0xff] %v1198
      %4725 = vst [vmem:[#allocation2 + $0x1310] sm:$0xff] %v1589
      %4726 = vst [vmem:[#allocation2 + $0x1318] sm:$0xff] %v1591
      %4727 = vst [vmem:[#allocation2 + $0x1320] sm:$0xff] %v1982
      %4728 = vst [vmem:[#allocation2 + $0x1328] sm:$0xff] %v1984
      %4729 = vst [vmem:[#allocation2 + $0x1330] sm:$0xff] %v2375
      %4730 = vst [vmem:[#allocation2 + $0x1338] sm:$0xff] %v2377
      %4731 = vst [vmem:[#allocation2 + $0x1340] sm:$0xff] %v2768
      %4732 = vst [vmem:[#allocation2 + $0x1348] sm:$0xff] %v2770
      %4733 = vst [vmem:[#allocation2 + $0x1350] sm:$0xff] %v3161
      %4734 = vst [vmem:[#allocation2 + $0x1358] sm:$0xff] %v3163
      %4735 = vst [vmem:[#allocation2 + $0x1360] sm:$0xff] %v3554
      %4736 = vst [vmem:[#allocation2 + $0x1368] sm:$0xff] %v3556
      %4737 = vst [vmem:[#allocation2 + $0x1370] sm:$0xff] %v3947
      %4738 = vst [vmem:[#allocation2 + $0x1378] sm:$0xff] %v3949
      %4739 = vst [vmem:[#allocation2 + $0x1380] sm:$0xff] %v1200
      %4740 = vst [vmem:[#allocation2 + $0x1388] sm:$0xff] %v1202
      %4741 = vst [vmem:[#allocation2 + $0x1390] sm:$0xff] %v1593
      %4742 = vst [vmem:[#allocation2 + $0x1398] sm:$0xff] %v1595
      %4743 = vst [vmem:[#allocation2 + $0x13a0] sm:$0xff] %v1986
      %4744 = vst [vmem:[#allocation2 + $0x13a8] sm:$0xff] %v1988
      %4745 = vst [vmem:[#allocation2 + $0x13b0] sm:$0xff] %v2379
      %4746 = vst [vmem:[#allocation2 + $0x13b8] sm:$0xff] %v2381
      %4747 = vst [vmem:[#allocation2 + $0x13c0] sm:$0xff] %v2772
      %4748 = vst [vmem:[#allocation2 + $0x13c8] sm:$0xff] %v2774
      %4749 = vst [vmem:[#allocation2 + $0x13d0] sm:$0xff] %v3165
      %4750 = vst [vmem:[#allocation2 + $0x13d8] sm:$0xff] %v3167
      %4751 = vst [vmem:[#allocation2 + $0x13e0] sm:$0xff] %v3558
      %4752 = vst [vmem:[#allocation2 + $0x13e8] sm:$0xff] %v3560
      %4753 = vst [vmem:[#allocation2 + $0x13f0] sm:$0xff] %v3951
      %4754 = vst [vmem:[#allocation2 + $0x13f8] sm:$0xff] %v3953
      %4755 = vst [vmem:[#allocation2 + $0x1400] sm:$0xff] %v1206
      %4756 = vst [vmem:[#allocation2 + $0x1408] sm:$0xff] %v1208
      %4757 = vst [vmem:[#allocation2 + $0x1410] sm:$0xff] %v1599
      %4758 = vst [vmem:[#allocation2 + $0x1418] sm:$0xff] %v1601
      %4759 = vst [vmem:[#allocation2 + $0x1420] sm:$0xff] %v1992
      %4760 = vst [vmem:[#allocation2 + $0x1428] sm:$0xff] %v1994
      %4761 = vst [vmem:[#allocation2 + $0x1430] sm:$0xff] %v2385
      %4762 = vst [vmem:[#allocation2 + $0x1438] sm:$0xff] %v2387
      %4763 = vst [vmem:[#allocation2 + $0x1440] sm:$0xff] %v2778
      %4764 = vst [vmem:[#allocation2 + $0x1448] sm:$0xff] %v2780
      %4765 = vst [vmem:[#allocation2 + $0x1450] sm:$0xff] %v3171
      %4766 = vst [vmem:[#allocation2 + $0x1458] sm:$0xff] %v3173
      %4767 = vst [vmem:[#allocation2 + $0x1460] sm:$0xff] %v3564
      %4768 = vst [vmem:[#allocation2 + $0x1468] sm:$0xff] %v3566
      %4769 = vst [vmem:[#allocation2 + $0x1470] sm:$0xff] %v3957
      %4770 = vst [vmem:[#allocation2 + $0x1478] sm:$0xff] %v3959
      %4771 = vst [vmem:[#allocation2 + $0x1480] sm:$0xff] %v1210
      %4772 = vst [vmem:[#allocation2 + $0x1488] sm:$0xff] %v1212
      %4773 = vst [vmem:[#allocation2 + $0x1490] sm:$0xff] %v1603
      %4774 = vst [vmem:[#allocation2 + $0x1498] sm:$0xff] %v1605
      %4775 = vst [vmem:[#allocation2 + $0x14a0] sm:$0xff] %v1996
      %4776 = vst [vmem:[#allocation2 + $0x14a8] sm:$0xff] %v1998
      %4777 = vst [vmem:[#allocation2 + $0x14b0] sm:$0xff] %v2389
      %4778 = vst [vmem:[#allocation2 + $0x14b8] sm:$0xff] %v2391
      %4779 = vst [vmem:[#allocation2 + $0x14c0] sm:$0xff] %v2782
      %4780 = vst [vmem:[#allocation2 + $0x14c8] sm:$0xff] %v2784
      %4781 = vst [vmem:[#allocation2 + $0x14d0] sm:$0xff] %v3175
      %4782 = vst [vmem:[#allocation2 + $0x14d8] sm:$0xff] %v3177
      %4783 = vst [vmem:[#allocation2 + $0x14e0] sm:$0xff] %v3568
      %4784 = vst [vmem:[#allocation2 + $0x14e8] sm:$0xff] %v3570
      %4785 = vst [vmem:[#allocation2 + $0x14f0] sm:$0xff] %v3961
      %4786 = vst [vmem:[#allocation2 + $0x14f8] sm:$0xff] %v3963
      %4787 = vst [vmem:[#allocation2 + $0x1500] sm:$0xff] %v1216
      %4788 = vst [vmem:[#allocation2 + $0x1508] sm:$0xff] %v1218
      %4789 = vst [vmem:[#allocation2 + $0x1510] sm:$0xff] %v1609
      %4790 = vst [vmem:[#allocation2 + $0x1518] sm:$0xff] %v1611
      %4791 = vst [vmem:[#allocation2 + $0x1520] sm:$0xff] %v2002
      %4792 = vst [vmem:[#allocation2 + $0x1528] sm:$0xff] %v2004
      %4793 = vst [vmem:[#allocation2 + $0x1530] sm:$0xff] %v2395
      %4794 = vst [vmem:[#allocation2 + $0x1538] sm:$0xff] %v2397
      %4795 = vst [vmem:[#allocation2 + $0x1540] sm:$0xff] %v2788
      %4796 = vst [vmem:[#allocation2 + $0x1548] sm:$0xff] %v2790
      %4797 = vst [vmem:[#allocation2 + $0x1550] sm:$0xff] %v3181
      %4798 = vst [vmem:[#allocation2 + $0x1558] sm:$0xff] %v3183
      %4799 = vst [vmem:[#allocation2 + $0x1560] sm:$0xff] %v3574
      %4800 = vst [vmem:[#allocation2 + $0x1568] sm:$0xff] %v3576
      %4801 = vst [vmem:[#allocation2 + $0x1570] sm:$0xff] %v3967
      %4802 = vst [vmem:[#allocation2 + $0x1578] sm:$0xff] %v3969
      %4803 = vst [vmem:[#allocation2 + $0x1580] sm:$0xff] %v1220
      %4804 = vst [vmem:[#allocation2 + $0x1588] sm:$0xff] %v1222
      %4805 = vst [vmem:[#allocation2 + $0x1590] sm:$0xff] %v1613
      %4806 = vst [vmem:[#allocation2 + $0x1598] sm:$0xff] %v1615
      %4807 = vst [vmem:[#allocation2 + $0x15a0] sm:$0xff] %v2006
      %4808 = vst [vmem:[#allocation2 + $0x15a8] sm:$0xff] %v2008
      %4809 = vst [vmem:[#allocation2 + $0x15b0] sm:$0xff] %v2399
      %4810 = vst [vmem:[#allocation2 + $0x15b8] sm:$0xff] %v2401
      %4811 = vst [vmem:[#allocation2 + $0x15c0] sm:$0xff] %v2792
      %4812 = vst [vmem:[#allocation2 + $0x15c8] sm:$0xff] %v2794
      %4813 = vst [vmem:[#allocation2 + $0x15d0] sm:$0xff] %v3185
      %4814 = vst [vmem:[#allocation2 + $0x15d8] sm:$0xff] %v3187
      %4815 = vst [vmem:[#allocation2 + $0x15e0] sm:$0xff] %v3578
      %4816 = vst [vmem:[#allocation2 + $0x15e8] sm:$0xff] %v3580
      %4817 = vst [vmem:[#allocation2 + $0x15f0] sm:$0xff] %v3971
      %4818 = vst [vmem:[#allocation2 + $0x15f8] sm:$0xff] %v3973
      %4819 = vst [vmem:[#allocation2 + $0x1600] sm:$0xff] %v1226
      %4820 = vst [vmem:[#allocation2 + $0x1608] sm:$0xff] %v1228
      %4821 = vst [vmem:[#allocation2 + $0x1610] sm:$0xff] %v1619
      %4822 = vst [vmem:[#allocation2 + $0x1618] sm:$0xff] %v1621
      %4823 = vst [vmem:[#allocation2 + $0x1620] sm:$0xff] %v2012
      %4824 = vst [vmem:[#allocation2 + $0x1628] sm:$0xff] %v2014
      %4825 = vst [vmem:[#allocation2 + $0x1630] sm:$0xff] %v2405
      %4826 = vst [vmem:[#allocation2 + $0x1638] sm:$0xff] %v2407
      %4827 = vst [vmem:[#allocation2 + $0x1640] sm:$0xff] %v2798
      %4828 = vst [vmem:[#allocation2 + $0x1648] sm:$0xff] %v2800
      %4829 = vst [vmem:[#allocation2 + $0x1650] sm:$0xff] %v3191
      %4830 = vst [vmem:[#allocation2 + $0x1658] sm:$0xff] %v3193
      %4831 = vst [vmem:[#allocation2 + $0x1660] sm:$0xff] %v3584
      %4832 = vst [vmem:[#allocation2 + $0x1668] sm:$0xff] %v3586
      %4833 = vst [vmem:[#allocation2 + $0x1670] sm:$0xff] %v3977
      %4834 = vst [vmem:[#allocation2 + $0x1678] sm:$0xff] %v3979
      %4835 = vst [vmem:[#allocation2 + $0x1680] sm:$0xff] %v1230
      %4836 = vst [vmem:[#allocation2 + $0x1688] sm:$0xff] %v1232
      %4837 = vst [vmem:[#allocation2 + $0x1690] sm:$0xff] %v1623
      %4838 = vst [vmem:[#allocation2 + $0x1698] sm:$0xff] %v1625
      %4839 = vst [vmem:[#allocation2 + $0x16a0] sm:$0xff] %v2016
      %4840 = vst [vmem:[#allocation2 + $0x16a8] sm:$0xff] %v2018
      %4841 = vst [vmem:[#allocation2 + $0x16b0] sm:$0xff] %v2409
      %4842 = vst [vmem:[#allocation2 + $0x16b8] sm:$0xff] %v2411
      %4843 = vst [vmem:[#allocation2 + $0x16c0] sm:$0xff] %v2802
      %4844 = vst [vmem:[#allocation2 + $0x16c8] sm:$0xff] %v2804
      %4845 = vst [vmem:[#allocation2 + $0x16d0] sm:$0xff] %v3195
      %4846 = vst [vmem:[#allocation2 + $0x16d8] sm:$0xff] %v3197
      %4847 = vst [vmem:[#allocation2 + $0x16e0] sm:$0xff] %v3588
      %4848 = vst [vmem:[#allocation2 + $0x16e8] sm:$0xff] %v3590
      %4849 = vst [vmem:[#allocation2 + $0x16f0] sm:$0xff] %v3981
      %4850 = vst [vmem:[#allocation2 + $0x16f8] sm:$0xff] %v3983
      %4851 = vst [vmem:[#allocation2 + $0x1700] sm:$0xff] %v1236
      %4852 = vst [vmem:[#allocation2 + $0x1708] sm:$0xff] %v1238
      %4853 = vst [vmem:[#allocation2 + $0x1710] sm:$0xff] %v1629
      %4854 = vst [vmem:[#allocation2 + $0x1718] sm:$0xff] %v1631
      %4855 = vst [vmem:[#allocation2 + $0x1720] sm:$0xff] %v2022
      %4856 = vst [vmem:[#allocation2 + $0x1728] sm:$0xff] %v2024
      %4857 = vst [vmem:[#allocation2 + $0x1730] sm:$0xff] %v2415
      %4858 = vst [vmem:[#allocation2 + $0x1738] sm:$0xff] %v2417
      %4859 = vst [vmem:[#allocation2 + $0x1740] sm:$0xff] %v2808
      %4860 = vst [vmem:[#allocation2 + $0x1748] sm:$0xff] %v2810
      %4861 = vst [vmem:[#allocation2 + $0x1750] sm:$0xff] %v3201
      %4862 = vst [vmem:[#allocation2 + $0x1758] sm:$0xff] %v3203
      %4863 = vst [vmem:[#allocation2 + $0x1760] sm:$0xff] %v3594
      %4864 = vst [vmem:[#allocation2 + $0x1768] sm:$0xff] %v3596
      %4865 = vst [vmem:[#allocation2 + $0x1770] sm:$0xff] %v3987
      %4866 = vst [vmem:[#allocation2 + $0x1778] sm:$0xff] %v3989
      %4867 = vst [vmem:[#allocation2 + $0x1780] sm:$0xff] %v1240
      %4868 = vst [vmem:[#allocation2 + $0x1788] sm:$0xff] %v1242
      %4869 = vst [vmem:[#allocation2 + $0x1790] sm:$0xff] %v1633
      %4870 = vst [vmem:[#allocation2 + $0x1798] sm:$0xff] %v1635
      %4871 = vst [vmem:[#allocation2 + $0x17a0] sm:$0xff] %v2026
      %4872 = vst [vmem:[#allocation2 + $0x17a8] sm:$0xff] %v2028
      %4873 = vst [vmem:[#allocation2 + $0x17b0] sm:$0xff] %v2419
      %4874 = vst [vmem:[#allocation2 + $0x17b8] sm:$0xff] %v2421
      %4875 = vst [vmem:[#allocation2 + $0x17c0] sm:$0xff] %v2812
      %4876 = vst [vmem:[#allocation2 + $0x17c8] sm:$0xff] %v2814
      %4877 = vst [vmem:[#allocation2 + $0x17d0] sm:$0xff] %v3205
      %4878 = vst [vmem:[#allocation2 + $0x17d8] sm:$0xff] %v3207
      %4879 = vst [vmem:[#allocation2 + $0x17e0] sm:$0xff] %v3598
      %4880 = vst [vmem:[#allocation2 + $0x17e8] sm:$0xff] %v3600
      %4881 = vst [vmem:[#allocation2 + $0x17f0] sm:$0xff] %v3991
      %4882 = vst [vmem:[#allocation2 + $0x17f8] sm:$0xff] %v3993
      %4883 = vst [vmem:[#allocation2 + $0x1800] sm:$0xff] %v1246
      %4884 = vst [vmem:[#allocation2 + $0x1808] sm:$0xff] %v1248
      %4885 = vst [vmem:[#allocation2 + $0x1810] sm:$0xff] %v1639
      %4886 = vst [vmem:[#allocation2 + $0x1818] sm:$0xff] %v1641
      %4887 = vst [vmem:[#allocation2 + $0x1820] sm:$0xff] %v2032
      %4888 = vst [vmem:[#allocation2 + $0x1828] sm:$0xff] %v2034
      %4889 = vst [vmem:[#allocation2 + $0x1830] sm:$0xff] %v2425
      %4890 = vst [vmem:[#allocation2 + $0x1838] sm:$0xff] %v2427
      %4891 = vst [vmem:[#allocation2 + $0x1840] sm:$0xff] %v2818
      %4892 = vst [vmem:[#allocation2 + $0x1848] sm:$0xff] %v2820
      %4893 = vst [vmem:[#allocation2 + $0x1850] sm:$0xff] %v3211
      %4894 = vst [vmem:[#allocation2 + $0x1858] sm:$0xff] %v3213
      %4895 = vst [vmem:[#allocation2 + $0x1860] sm:$0xff] %v3604
      %4896 = vst [vmem:[#allocation2 + $0x1868] sm:$0xff] %v3606
      %4897 = vst [vmem:[#allocation2 + $0x1870] sm:$0xff] %v3997
      %4898 = vst [vmem:[#allocation2 + $0x1878] sm:$0xff] %v3999
      %4899 = vst [vmem:[#allocation2 + $0x1880] sm:$0xff] %v1250
      %4900 = vst [vmem:[#allocation2 + $0x1888] sm:$0xff] %v1252
      %4901 = vst [vmem:[#allocation2 + $0x1890] sm:$0xff] %v1643
      %4902 = vst [vmem:[#allocation2 + $0x1898] sm:$0xff] %v1645
      %4903 = vst [vmem:[#allocation2 + $0x18a0] sm:$0xff] %v2036
      %4904 = vst [vmem:[#allocation2 + $0x18a8] sm:$0xff] %v2038
      %4905 = vst [vmem:[#allocation2 + $0x18b0] sm:$0xff] %v2429
      %4906 = vst [vmem:[#allocation2 + $0x18b8] sm:$0xff] %v2431
      %4907 = vst [vmem:[#allocation2 + $0x18c0] sm:$0xff] %v2822
      %4908 = vst [vmem:[#allocation2 + $0x18c8] sm:$0xff] %v2824
      %4909 = vst [vmem:[#allocation2 + $0x18d0] sm:$0xff] %v3215
      %4910 = vst [vmem:[#allocation2 + $0x18d8] sm:$0xff] %v3217
      %4911 = vst [vmem:[#allocation2 + $0x18e0] sm:$0xff] %v3608
      %4912 = vst [vmem:[#allocation2 + $0x18e8] sm:$0xff] %v3610
      %4913 = vst [vmem:[#allocation2 + $0x18f0] sm:$0xff] %v4001
      %4914 = vst [vmem:[#allocation2 + $0x18f8] sm:$0xff] %v4003
      %4915 = vst [vmem:[#allocation2 + $0x1900] sm:$0xff] %v1256
      %4916 = vst [vmem:[#allocation2 + $0x1908] sm:$0xff] %v1258
      %4917 = vst [vmem:[#allocation2 + $0x1910] sm:$0xff] %v1649
      %4918 = vst [vmem:[#allocation2 + $0x1918] sm:$0xff] %v1651
      %4919 = vst [vmem:[#allocation2 + $0x1920] sm:$0xff] %v2042
      %4920 = vst [vmem:[#allocation2 + $0x1928] sm:$0xff] %v2044
      %4921 = vst [vmem:[#allocation2 + $0x1930] sm:$0xff] %v2435
      %4922 = vst [vmem:[#allocation2 + $0x1938] sm:$0xff] %v2437
      %4923 = vst [vmem:[#allocation2 + $0x1940] sm:$0xff] %v2828
      %4924 = vst [vmem:[#allocation2 + $0x1948] sm:$0xff] %v2830
      %4925 = vst [vmem:[#allocation2 + $0x1950] sm:$0xff] %v3221
      %4926 = vst [vmem:[#allocation2 + $0x1958] sm:$0xff] %v3223
      %4927 = vst [vmem:[#allocation2 + $0x1960] sm:$0xff] %v3614
      %4928 = vst [vmem:[#allocation2 + $0x1968] sm:$0xff] %v3616
      %4929 = vst [vmem:[#allocation2 + $0x1970] sm:$0xff] %v4007
      %4930 = vst [vmem:[#allocation2 + $0x1978] sm:$0xff] %v4009
      %4931 = vst [vmem:[#allocation2 + $0x1980] sm:$0xff] %v1260
      %4932 = vst [vmem:[#allocation2 + $0x1988] sm:$0xff] %v1262
      %4933 = vst [vmem:[#allocation2 + $0x1990] sm:$0xff] %v1653
      %4934 = vst [vmem:[#allocation2 + $0x1998] sm:$0xff] %v1655
      %4935 = vst [vmem:[#allocation2 + $0x19a0] sm:$0xff] %v2046
      %4936 = vst [vmem:[#allocation2 + $0x19a8] sm:$0xff] %v2048
      %4937 = vst [vmem:[#allocation2 + $0x19b0] sm:$0xff] %v2439
      %4938 = vst [vmem:[#allocation2 + $0x19b8] sm:$0xff] %v2441
      %4939 = vst [vmem:[#allocation2 + $0x19c0] sm:$0xff] %v2832
      %4940 = vst [vmem:[#allocation2 + $0x19c8] sm:$0xff] %v2834
      %4941 = vst [vmem:[#allocation2 + $0x19d0] sm:$0xff] %v3225
      %4942 = vst [vmem:[#allocation2 + $0x19d8] sm:$0xff] %v3227
      %4943 = vst [vmem:[#allocation2 + $0x19e0] sm:$0xff] %v3618
      %4944 = vst [vmem:[#allocation2 + $0x19e8] sm:$0xff] %v3620
      %4945 = vst [vmem:[#allocation2 + $0x19f0] sm:$0xff] %v4011
      %4946 = vst [vmem:[#allocation2 + $0x19f8] sm:$0xff] %v4013
      %4947 = vst [vmem:[#allocation2 + $0x1a00] sm:$0xff] %v1266
      %4948 = vst [vmem:[#allocation2 + $0x1a08] sm:$0xff] %v1268
      %4949 = vst [vmem:[#allocation2 + $0x1a10] sm:$0xff] %v1659
      %4950 = vst [vmem:[#allocation2 + $0x1a18] sm:$0xff] %v1661
      %4951 = vst [vmem:[#allocation2 + $0x1a20] sm:$0xff] %v2052
      %4952 = vst [vmem:[#allocation2 + $0x1a28] sm:$0xff] %v2054
      %4953 = vst [vmem:[#allocation2 + $0x1a30] sm:$0xff] %v2445
      %4954 = vst [vmem:[#allocation2 + $0x1a38] sm:$0xff] %v2447
      %4955 = vst [vmem:[#allocation2 + $0x1a40] sm:$0xff] %v2838
      %4956 = vst [vmem:[#allocation2 + $0x1a48] sm:$0xff] %v2840
      %4957 = vst [vmem:[#allocation2 + $0x1a50] sm:$0xff] %v3231
      %4958 = vst [vmem:[#allocation2 + $0x1a58] sm:$0xff] %v3233
      %4959 = vst [vmem:[#allocation2 + $0x1a60] sm:$0xff] %v3624
      %4960 = vst [vmem:[#allocation2 + $0x1a68] sm:$0xff] %v3626
      %4961 = vst [vmem:[#allocation2 + $0x1a70] sm:$0xff] %v4017
      %4962 = vst [vmem:[#allocation2 + $0x1a78] sm:$0xff] %v4019
      %4963 = vst [vmem:[#allocation2 + $0x1a80] sm:$0xff] %v1270
      %4964 = vst [vmem:[#allocation2 + $0x1a88] sm:$0xff] %v1272
      %4965 = vst [vmem:[#allocation2 + $0x1a90] sm:$0xff] %v1663
      %4966 = vst [vmem:[#allocation2 + $0x1a98] sm:$0xff] %v1665
      %4967 = vst [vmem:[#allocation2 + $0x1aa0] sm:$0xff] %v2056
      %4968 = vst [vmem:[#allocation2 + $0x1aa8] sm:$0xff] %v2058
      %4969 = vst [vmem:[#allocation2 + $0x1ab0] sm:$0xff] %v2449
      %4970 = vst [vmem:[#allocation2 + $0x1ab8] sm:$0xff] %v2451
      %4971 = vst [vmem:[#allocation2 + $0x1ac0] sm:$0xff] %v2842
      %4972 = vst [vmem:[#allocation2 + $0x1ac8] sm:$0xff] %v2844
      %4973 = vst [vmem:[#allocation2 + $0x1ad0] sm:$0xff] %v3235
      %4974 = vst [vmem:[#allocation2 + $0x1ad8] sm:$0xff] %v3237
      %4975 = vst [vmem:[#allocation2 + $0x1ae0] sm:$0xff] %v3628
      %4976 = vst [vmem:[#allocation2 + $0x1ae8] sm:$0xff] %v3630
      %4977 = vst [vmem:[#allocation2 + $0x1af0] sm:$0xff] %v4021
      %4978 = vst [vmem:[#allocation2 + $0x1af8] sm:$0xff] %v4023
      %4979 = vst [vmem:[#allocation2 + $0x1b00] sm:$0xff] %v1276
      %4980 = vst [vmem:[#allocation2 + $0x1b08] sm:$0xff] %v1278
      %4981 = vst [vmem:[#allocation2 + $0x1b10] sm:$0xff] %v1669
      %4982 = vst [vmem:[#allocation2 + $0x1b18] sm:$0xff] %v1671
      %4983 = vst [vmem:[#allocation2 + $0x1b20] sm:$0xff] %v2062
      %4984 = vst [vmem:[#allocation2 + $0x1b28] sm:$0xff] %v2064
      %4985 = vst [vmem:[#allocation2 + $0x1b30] sm:$0xff] %v2455
      %4986 = vst [vmem:[#allocation2 + $0x1b38] sm:$0xff] %v2457
      %4987 = vst [vmem:[#allocation2 + $0x1b40] sm:$0xff] %v2848
      %4988 = vst [vmem:[#allocation2 + $0x1b48] sm:$0xff] %v2850
      %4989 = vst [vmem:[#allocation2 + $0x1b50] sm:$0xff] %v3241
      %4990 = vst [vmem:[#allocation2 + $0x1b58] sm:$0xff] %v3243
      %4991 = vst [vmem:[#allocation2 + $0x1b60] sm:$0xff] %v3634
      %4992 = vst [vmem:[#allocation2 + $0x1b68] sm:$0xff] %v3636
      %4993 = vst [vmem:[#allocation2 + $0x1b70] sm:$0xff] %v4027
      %4994 = vst [vmem:[#allocation2 + $0x1b78] sm:$0xff] %v4029
      %4995 = vst [vmem:[#allocation2 + $0x1b80] sm:$0xff] %v1280
      %4996 = vst [vmem:[#allocation2 + $0x1b88] sm:$0xff] %v1282
      %4997 = vst [vmem:[#allocation2 + $0x1b90] sm:$0xff] %v1673
      %4998 = vst [vmem:[#allocation2 + $0x1b98] sm:$0xff] %v1675
      %4999 = vst [vmem:[#allocation2 + $0x1ba0] sm:$0xff] %v2066
      %5000 = vst [vmem:[#allocation2 + $0x1ba8] sm:$0xff] %v2068
      %5001 = vst [vmem:[#allocation2 + $0x1bb0] sm:$0xff] %v2459
      %5002 = vst [vmem:[#allocation2 + $0x1bb8] sm:$0xff] %v2461
      %5003 = vst [vmem:[#allocation2 + $0x1bc0] sm:$0xff] %v2852
      %5004 = vst [vmem:[#allocation2 + $0x1bc8] sm:$0xff] %v2854
      %5005 = vst [vmem:[#allocation2 + $0x1bd0] sm:$0xff] %v3245
      %5006 = vst [vmem:[#allocation2 + $0x1bd8] sm:$0xff] %v3247
      %5007 = vst [vmem:[#allocation2 + $0x1be0] sm:$0xff] %v3638
      %5008 = vst [vmem:[#allocation2 + $0x1be8] sm:$0xff] %v3640
      %5009 = vst [vmem:[#allocation2 + $0x1bf0] sm:$0xff] %v4031
      %5010 = vst [vmem:[#allocation2 + $0x1bf8] sm:$0xff] %v4033
      %5011 = vst [vmem:[#allocation2 + $0x1c00] sm:$0xff] %v1286
      %5012 = vst [vmem:[#allocation2 + $0x1c08] sm:$0xff] %v1288
      %5013 = vst [vmem:[#allocation2 + $0x1c10] sm:$0xff] %v1679
      %5014 = vst [vmem:[#allocation2 + $0x1c18] sm:$0xff] %v1681
      %5015 = vst [vmem:[#allocation2 + $0x1c20] sm:$0xff] %v2072
      %5016 = vst [vmem:[#allocation2 + $0x1c28] sm:$0xff] %v2074
      %5017 = vst [vmem:[#allocation2 + $0x1c30] sm:$0xff] %v2465
      %5018 = vst [vmem:[#allocation2 + $0x1c38] sm:$0xff] %v2467
      %5019 = vst [vmem:[#allocation2 + $0x1c40] sm:$0xff] %v2858
      %5020 = vst [vmem:[#allocation2 + $0x1c48] sm:$0xff] %v2860
      %5021 = vst [vmem:[#allocation2 + $0x1c50] sm:$0xff] %v3251
      %5022 = vst [vmem:[#allocation2 + $0x1c58] sm:$0xff] %v3253
      %5023 = vst [vmem:[#allocation2 + $0x1c60] sm:$0xff] %v3644
      %5024 = vst [vmem:[#allocation2 + $0x1c68] sm:$0xff] %v3646
      %5025 = vst [vmem:[#allocation2 + $0x1c70] sm:$0xff] %v4037
      %5026 = vst [vmem:[#allocation2 + $0x1c78] sm:$0xff] %v4039
      %5027 = vst [vmem:[#allocation2 + $0x1c80] sm:$0xff] %v1290
      %5028 = vst [vmem:[#allocation2 + $0x1c88] sm:$0xff] %v1292
      %5029 = vst [vmem:[#allocation2 + $0x1c90] sm:$0xff] %v1683
      %5030 = vst [vmem:[#allocation2 + $0x1c98] sm:$0xff] %v1685
      %5031 = vst [vmem:[#allocation2 + $0x1ca0] sm:$0xff] %v2076
      %5032 = vst [vmem:[#allocation2 + $0x1ca8] sm:$0xff] %v2078
      %5033 = vst [vmem:[#allocation2 + $0x1cb0] sm:$0xff] %v2469
      %5034 = vst [vmem:[#allocation2 + $0x1cb8] sm:$0xff] %v2471
      %5035 = vst [vmem:[#allocation2 + $0x1cc0] sm:$0xff] %v2862
      %5036 = vst [vmem:[#allocation2 + $0x1cc8] sm:$0xff] %v2864
      %5037 = vst [vmem:[#allocation2 + $0x1cd0] sm:$0xff] %v3255
      %5038 = vst [vmem:[#allocation2 + $0x1cd8] sm:$0xff] %v3257
      %5039 = vst [vmem:[#allocation2 + $0x1ce0] sm:$0xff] %v3648
      %5040 = vst [vmem:[#allocation2 + $0x1ce8] sm:$0xff] %v3650
      %5041 = vst [vmem:[#allocation2 + $0x1cf0] sm:$0xff] %v4041
      %5042 = vst [vmem:[#allocation2 + $0x1cf8] sm:$0xff] %v4043
      %5043 = vst [vmem:[#allocation2 + $0x1d00] sm:$0xff] %v1296
      %5044 = vst [vmem:[#allocation2 + $0x1d08] sm:$0xff] %v1298
      %5045 = vst [vmem:[#allocation2 + $0x1d10] sm:$0xff] %v1689
      %5046 = vst [vmem:[#allocation2 + $0x1d18] sm:$0xff] %v1691
      %5047 = vst [vmem:[#allocation2 + $0x1d20] sm:$0xff] %v2082
      %5048 = vst [vmem:[#allocation2 + $0x1d28] sm:$0xff] %v2084
      %5049 = vst [vmem:[#allocation2 + $0x1d30] sm:$0xff] %v2475
      %5050 = vst [vmem:[#allocation2 + $0x1d38] sm:$0xff] %v2477
      %5051 = vst [vmem:[#allocation2 + $0x1d40] sm:$0xff] %v2868
      %5052 = vst [vmem:[#allocation2 + $0x1d48] sm:$0xff] %v2870
      %5053 = vst [vmem:[#allocation2 + $0x1d50] sm:$0xff] %v3261
      %5054 = vst [vmem:[#allocation2 + $0x1d58] sm:$0xff] %v3263
      %5055 = vst [vmem:[#allocation2 + $0x1d60] sm:$0xff] %v3654
      %5056 = vst [vmem:[#allocation2 + $0x1d68] sm:$0xff] %v3656
      %5057 = vst [vmem:[#allocation2 + $0x1d70] sm:$0xff] %v4047
      %5058 = vst [vmem:[#allocation2 + $0x1d78] sm:$0xff] %v4049
      %5059 = vst [vmem:[#allocation2 + $0x1d80] sm:$0xff] %v1300
      %5060 = vst [vmem:[#allocation2 + $0x1d88] sm:$0xff] %v1302
      %5061 = vst [vmem:[#allocation2 + $0x1d90] sm:$0xff] %v1693
      %5062 = vst [vmem:[#allocation2 + $0x1d98] sm:$0xff] %v1695
      %5063 = vst [vmem:[#allocation2 + $0x1da0] sm:$0xff] %v2086
      %5064 = vst [vmem:[#allocation2 + $0x1da8] sm:$0xff] %v2088
      %5065 = vst [vmem:[#allocation2 + $0x1db0] sm:$0xff] %v2479
      %5066 = vst [vmem:[#allocation2 + $0x1db8] sm:$0xff] %v2481
      %5067 = vst [vmem:[#allocation2 + $0x1dc0] sm:$0xff] %v2872
      %5068 = vst [vmem:[#allocation2 + $0x1dc8] sm:$0xff] %v2874
      %5069 = vst [vmem:[#allocation2 + $0x1dd0] sm:$0xff] %v3265
      %5070 = vst [vmem:[#allocation2 + $0x1dd8] sm:$0xff] %v3267
      %5071 = vst [vmem:[#allocation2 + $0x1de0] sm:$0xff] %v3658
      %5072 = vst [vmem:[#allocation2 + $0x1de8] sm:$0xff] %v3660
      %5073 = vst [vmem:[#allocation2 + $0x1df0] sm:$0xff] %v4051
      %5074 = vst [vmem:[#allocation2 + $0x1df8] sm:$0xff] %v4053
      %5075 = vst [vmem:[#allocation2 + $0x1e00] sm:$0xff] %v1306
      %5076 = vst [vmem:[#allocation2 + $0x1e08] sm:$0xff] %v1308
      %5077 = vst [vmem:[#allocation2 + $0x1e10] sm:$0xff] %v1699
      %5078 = vst [vmem:[#allocation2 + $0x1e18] sm:$0xff] %v1701
      %5079 = vst [vmem:[#allocation2 + $0x1e20] sm:$0xff] %v2092
      %5080 = vst [vmem:[#allocation2 + $0x1e28] sm:$0xff] %v2094
      %5081 = vst [vmem:[#allocation2 + $0x1e30] sm:$0xff] %v2485
      %5082 = vst [vmem:[#allocation2 + $0x1e38] sm:$0xff] %v2487
      %5083 = vst [vmem:[#allocation2 + $0x1e40] sm:$0xff] %v2878
      %5084 = vst [vmem:[#allocation2 + $0x1e48] sm:$0xff] %v2880
      %5085 = vst [vmem:[#allocation2 + $0x1e50] sm:$0xff] %v3271
      %5086 = vst [vmem:[#allocation2 + $0x1e58] sm:$0xff] %v3273
      %5087 = vst [vmem:[#allocation2 + $0x1e60] sm:$0xff] %v3664
      %5088 = vst [vmem:[#allocation2 + $0x1e68] sm:$0xff] %v3666
      %5089 = vst [vmem:[#allocation2 + $0x1e70] sm:$0xff] %v4057
      %5090 = vst [vmem:[#allocation2 + $0x1e78] sm:$0xff] %v4059
      %5091 = vst [vmem:[#allocation2 + $0x1e80] sm:$0xff] %v1310
      %5092 = vst [vmem:[#allocation2 + $0x1e88] sm:$0xff] %v1312
      %5093 = vst [vmem:[#allocation2 + $0x1e90] sm:$0xff] %v1703
      %5094 = vst [vmem:[#allocation2 + $0x1e98] sm:$0xff] %v1705
      %5095 = vst [vmem:[#allocation2 + $0x1ea0] sm:$0xff] %v2096
      %5096 = vst [vmem:[#allocation2 + $0x1ea8] sm:$0xff] %v2098
      %5097 = vst [vmem:[#allocation2 + $0x1eb0] sm:$0xff] %v2489
      %5098 = vst [vmem:[#allocation2 + $0x1eb8] sm:$0xff] %v2491
      %5099 = vst [vmem:[#allocation2 + $0x1ec0] sm:$0xff] %v2882
      %5100 = vst [vmem:[#allocation2 + $0x1ec8] sm:$0xff] %v2884
      %5101 = vst [vmem:[#allocation2 + $0x1ed0] sm:$0xff] %v3275
      %5102 = vst [vmem:[#allocation2 + $0x1ed8] sm:$0xff] %v3277
      %5103 = vst [vmem:[#allocation2 + $0x1ee0] sm:$0xff] %v3668
      %5104 = vst [vmem:[#allocation2 + $0x1ee8] sm:$0xff] %v3670
      %5105 = vst [vmem:[#allocation2 + $0x1ef0] sm:$0xff] %v4061
      %5106 = vst [vmem:[#allocation2 + $0x1ef8] sm:$0xff] %v4063
      %5107 = vst [vmem:[#allocation2 + $0x1f00] sm:$0xff] %v1316
      %5108 = vst [vmem:[#allocation2 + $0x1f08] sm:$0xff] %v1318
      %5109 = vst [vmem:[#allocation2 + $0x1f10] sm:$0xff] %v1709
      %5110 = vst [vmem:[#allocation2 + $0x1f18] sm:$0xff] %v1711
      %5111 = vst [vmem:[#allocation2 + $0x1f20] sm:$0xff] %v2102
      %5112 = vst [vmem:[#allocation2 + $0x1f28] sm:$0xff] %v2104
      %5113 = vst [vmem:[#allocation2 + $0x1f30] sm:$0xff] %v2495
      %5114 = vst [vmem:[#allocation2 + $0x1f38] sm:$0xff] %v2497
      %5115 = vst [vmem:[#allocation2 + $0x1f40] sm:$0xff] %v2888
      %5116 = vst [vmem:[#allocation2 + $0x1f48] sm:$0xff] %v2890
      %5117 = vst [vmem:[#allocation2 + $0x1f50] sm:$0xff] %v3281
      %5118 = vst [vmem:[#allocation2 + $0x1f58] sm:$0xff] %v3283
      %5119 = vst [vmem:[#allocation2 + $0x1f60] sm:$0xff] %v3674
      %5120 = vst [vmem:[#allocation2 + $0x1f68] sm:$0xff] %v3676
      %5121 = vst [vmem:[#allocation2 + $0x1f70] sm:$0xff] %v4067
      %5122 = vst [vmem:[#allocation2 + $0x1f78] sm:$0xff] %v4069
      %5123 = vst [vmem:[#allocation2 + $0x1f80] sm:$0xff] %v1320
      %5124 = vst [vmem:[#allocation2 + $0x1f88] sm:$0xff] %v1322
      %5125 = vst [vmem:[#allocation2 + $0x1f90] sm:$0xff] %v1713
      %5126 = vst [vmem:[#allocation2 + $0x1f98] sm:$0xff] %v1715
      %5127 = vst [vmem:[#allocation2 + $0x1fa0] sm:$0xff] %v2106
      %5128 = vst [vmem:[#allocation2 + $0x1fa8] sm:$0xff] %v2108
      %5129 = vst [vmem:[#allocation2 + $0x1fb0] sm:$0xff] %v2499
      %5130 = vst [vmem:[#allocation2 + $0x1fb8] sm:$0xff] %v2501
      %5131 = vst [vmem:[#allocation2 + $0x1fc0] sm:$0xff] %v2892
      %5132 = vst [vmem:[#allocation2 + $0x1fc8] sm:$0xff] %v2894
      %5133 = vst [vmem:[#allocation2 + $0x1fd0] sm:$0xff] %v3285
      %5134 = vst [vmem:[#allocation2 + $0x1fd8] sm:$0xff] %v3287
      %5135 = vst [vmem:[#allocation2 + $0x1fe0] sm:$0xff] %v3678
      %5136 = vst [vmem:[#allocation2 + $0x1fe8] sm:$0xff] %v3680
      %5137 = vst [vmem:[#allocation2 + $0x1ff0] sm:$0xff] %v4071
      %5138 = vst [vmem:[#allocation2 + $0x1ff8] sm:$0xff] %v4073
      %5139 = vst [vmem:[#allocation2 + $0x2000] sm:$0xff] %v1326
      %5140 = vst [vmem:[#allocation2 + $0x2008] sm:$0xff] %v1328
      %5141 = vst [vmem:[#allocation2 + $0x2010] sm:$0xff] %v1719
      %5142 = vst [vmem:[#allocation2 + $0x2018] sm:$0xff] %v1721
      %5143 = vst [vmem:[#allocation2 + $0x2020] sm:$0xff] %v2112
      %5144 = vst [vmem:[#allocation2 + $0x2028] sm:$0xff] %v2114
      %5145 = vst [vmem:[#allocation2 + $0x2030] sm:$0xff] %v2505
      %5146 = vst [vmem:[#allocation2 + $0x2038] sm:$0xff] %v2507
      %5147 = vst [vmem:[#allocation2 + $0x2040] sm:$0xff] %v2898
      %5148 = vst [vmem:[#allocation2 + $0x2048] sm:$0xff] %v2900
      %5149 = vst [vmem:[#allocation2 + $0x2050] sm:$0xff] %v3291
      %5150 = vst [vmem:[#allocation2 + $0x2058] sm:$0xff] %v3293
      %5151 = vst [vmem:[#allocation2 + $0x2060] sm:$0xff] %v3684
      %5152 = vst [vmem:[#allocation2 + $0x2068] sm:$0xff] %v3686
      %5153 = vst [vmem:[#allocation2 + $0x2070] sm:$0xff] %v4077
      %5154 = vst [vmem:[#allocation2 + $0x2078] sm:$0xff] %v4079
      %5155 = vst [vmem:[#allocation2 + $0x2080] sm:$0xff] %v1330
      %5156 = vst [vmem:[#allocation2 + $0x2088] sm:$0xff] %v1332
      %5157 = vst [vmem:[#allocation2 + $0x2090] sm:$0xff] %v1723
      %5158 = vst [vmem:[#allocation2 + $0x2098] sm:$0xff] %v1725
      %5159 = vst [vmem:[#allocation2 + $0x20a0] sm:$0xff] %v2116
      %5160 = vst [vmem:[#allocation2 + $0x20a8] sm:$0xff] %v2118
      %5161 = vst [vmem:[#allocation2 + $0x20b0] sm:$0xff] %v2509
      %5162 = vst [vmem:[#allocation2 + $0x20b8] sm:$0xff] %v2511
      %5163 = vst [vmem:[#allocation2 + $0x20c0] sm:$0xff] %v2902
      %5164 = vst [vmem:[#allocation2 + $0x20c8] sm:$0xff] %v2904
      %5165 = vst [vmem:[#allocation2 + $0x20d0] sm:$0xff] %v3295
      %5166 = vst [vmem:[#allocation2 + $0x20d8] sm:$0xff] %v3297
      %5167 = vst [vmem:[#allocation2 + $0x20e0] sm:$0xff] %v3688
      %5168 = vst [vmem:[#allocation2 + $0x20e8] sm:$0xff] %v3690
      %5169 = vst [vmem:[#allocation2 + $0x20f0] sm:$0xff] %v4081
      %5170 = vst [vmem:[#allocation2 + $0x20f8] sm:$0xff] %v4083
      %5171 = vst [vmem:[#allocation2 + $0x2100] sm:$0xff] %v1336
      %5172 = vst [vmem:[#allocation2 + $0x2108] sm:$0xff] %v1338
      %5173 = vst [vmem:[#allocation2 + $0x2110] sm:$0xff] %v1729
      %5174 = vst [vmem:[#allocation2 + $0x2118] sm:$0xff] %v1731
      %5175 = vst [vmem:[#allocation2 + $0x2120] sm:$0xff] %v2122
      %5176 = vst [vmem:[#allocation2 + $0x2128] sm:$0xff] %v2124
      %5177 = vst [vmem:[#allocation2 + $0x2130] sm:$0xff] %v2515
      %5178 = vst [vmem:[#allocation2 + $0x2138] sm:$0xff] %v2517
      %5179 = vst [vmem:[#allocation2 + $0x2140] sm:$0xff] %v2908
      %5180 = vst [vmem:[#allocation2 + $0x2148] sm:$0xff] %v2910
      %5181 = vst [vmem:[#allocation2 + $0x2150] sm:$0xff] %v3301
      %5182 = vst [vmem:[#allocation2 + $0x2158] sm:$0xff] %v3303
      %5183 = vst [vmem:[#allocation2 + $0x2160] sm:$0xff] %v3694
      %5184 = vst [vmem:[#allocation2 + $0x2168] sm:$0xff] %v3696
      %5185 = vst [vmem:[#allocation2 + $0x2170] sm:$0xff] %v4087
      %5186 = vst [vmem:[#allocation2 + $0x2178] sm:$0xff] %v4089
      %5187 = vst [vmem:[#allocation2 + $0x2180] sm:$0xff] %v1340
      %5188 = vst [vmem:[#allocation2 + $0x2188] sm:$0xff] %v1342
      %5189 = vst [vmem:[#allocation2 + $0x2190] sm:$0xff] %v1733
      %5190 = vst [vmem:[#allocation2 + $0x2198] sm:$0xff] %v1735
      %5191 = vst [vmem:[#allocation2 + $0x21a0] sm:$0xff] %v2126
      %5192 = vst [vmem:[#allocation2 + $0x21a8] sm:$0xff] %v2128
      %5193 = vst [vmem:[#allocation2 + $0x21b0] sm:$0xff] %v2519
      %5194 = vst [vmem:[#allocation2 + $0x21b8] sm:$0xff] %v2521
      %5195 = vst [vmem:[#allocation2 + $0x21c0] sm:$0xff] %v2912
      %5196 = vst [vmem:[#allocation2 + $0x21c8] sm:$0xff] %v2914
      %5197 = vst [vmem:[#allocation2 + $0x21d0] sm:$0xff] %v3305
      %5198 = vst [vmem:[#allocation2 + $0x21d8] sm:$0xff] %v3307
      %5199 = vst [vmem:[#allocation2 + $0x21e0] sm:$0xff] %v3698
      %5200 = vst [vmem:[#allocation2 + $0x21e8] sm:$0xff] %v3700
      %5201 = vst [vmem:[#allocation2 + $0x21f0] sm:$0xff] %v4091
      %5202 = vst [vmem:[#allocation2 + $0x21f8] sm:$0xff] %v4093
      %5203 = vst [vmem:[#allocation2 + $0x2200] sm:$0xff] %v1346
      %5204 = vst [vmem:[#allocation2 + $0x2208] sm:$0xff] %v1348
      %5205 = vst [vmem:[#allocation2 + $0x2210] sm:$0xff] %v1739
      %5206 = vst [vmem:[#allocation2 + $0x2218] sm:$0xff] %v1741
      %5207 = vst [vmem:[#allocation2 + $0x2220] sm:$0xff] %v2132
      %5208 = vst [vmem:[#allocation2 + $0x2228] sm:$0xff] %v2134
      %5209 = vst [vmem:[#allocation2 + $0x2230] sm:$0xff] %v2525
      %5210 = vst [vmem:[#allocation2 + $0x2238] sm:$0xff] %v2527
      %5211 = vst [vmem:[#allocation2 + $0x2240] sm:$0xff] %v2918
      %5212 = vst [vmem:[#allocation2 + $0x2248] sm:$0xff] %v2920
      %5213 = vst [vmem:[#allocation2 + $0x2250] sm:$0xff] %v3311
      %5214 = vst [vmem:[#allocation2 + $0x2258] sm:$0xff] %v3313
      %5215 = vst [vmem:[#allocation2 + $0x2260] sm:$0xff] %v3704
      %5216 = vst [vmem:[#allocation2 + $0x2268] sm:$0xff] %v3706
      %5217 = vst [vmem:[#allocation2 + $0x2270] sm:$0xff] %v4097
      %5218 = vst [vmem:[#allocation2 + $0x2278] sm:$0xff] %v4099
      %5219 = vst [vmem:[#allocation2 + $0x2280] sm:$0xff] %v1350
      %5220 = vst [vmem:[#allocation2 + $0x2288] sm:$0xff] %v1352
      %5221 = vst [vmem:[#allocation2 + $0x2290] sm:$0xff] %v1743
      %5222 = vst [vmem:[#allocation2 + $0x2298] sm:$0xff] %v1745
      %5223 = vst [vmem:[#allocation2 + $0x22a0] sm:$0xff] %v2136
      %5224 = vst [vmem:[#allocation2 + $0x22a8] sm:$0xff] %v2138
      %5225 = vst [vmem:[#allocation2 + $0x22b0] sm:$0xff] %v2529
      %5226 = vst [vmem:[#allocation2 + $0x22b8] sm:$0xff] %v2531
      %5227 = vst [vmem:[#allocation2 + $0x22c0] sm:$0xff] %v2922
      %5228 = vst [vmem:[#allocation2 + $0x22c8] sm:$0xff] %v2924
      %5229 = vst [vmem:[#allocation2 + $0x22d0] sm:$0xff] %v3315
      %5230 = vst [vmem:[#allocation2 + $0x22d8] sm:$0xff] %v3317
      %5231 = vst [vmem:[#allocation2 + $0x22e0] sm:$0xff] %v3708
      %5232 = vst [vmem:[#allocation2 + $0x22e8] sm:$0xff] %v3710
      %5233 = vst [vmem:[#allocation2 + $0x22f0] sm:$0xff] %v4101
      %5234 = vst [vmem:[#allocation2 + $0x22f8] sm:$0xff] %v4103
      %5235 = vst [vmem:[#allocation2 + $0x2300] sm:$0xff] %v1356
      %5236 = vst [vmem:[#allocation2 + $0x2308] sm:$0xff] %v1358
      %5237 = vst [vmem:[#allocation2 + $0x2310] sm:$0xff] %v1749
      %5238 = vst [vmem:[#allocation2 + $0x2318] sm:$0xff] %v1751
      %5239 = vst [vmem:[#allocation2 + $0x2320] sm:$0xff] %v2142
      %5240 = vst [vmem:[#allocation2 + $0x2328] sm:$0xff] %v2144
      %5241 = vst [vmem:[#allocation2 + $0x2330] sm:$0xff] %v2535
      %5242 = vst [vmem:[#allocation2 + $0x2338] sm:$0xff] %v2537
      %5243 = vst [vmem:[#allocation2 + $0x2340] sm:$0xff] %v2928
      %5244 = vst [vmem:[#allocation2 + $0x2348] sm:$0xff] %v2930
      %5245 = vst [vmem:[#allocation2 + $0x2350] sm:$0xff] %v3321
      %5246 = vst [vmem:[#allocation2 + $0x2358] sm:$0xff] %v3323
      %5247 = vst [vmem:[#allocation2 + $0x2360] sm:$0xff] %v3714
      %5248 = vst [vmem:[#allocation2 + $0x2368] sm:$0xff] %v3716
      %5249 = vst [vmem:[#allocation2 + $0x2370] sm:$0xff] %v4107
      %5250 = vst [vmem:[#allocation2 + $0x2378] sm:$0xff] %v4109
      %5251 = vst [vmem:[#allocation2 + $0x2380] sm:$0xff] %v1360
      %5252 = vst [vmem:[#allocation2 + $0x2388] sm:$0xff] %v1362
      %5253 = vst [vmem:[#allocation2 + $0x2390] sm:$0xff] %v1753
      %5254 = vst [vmem:[#allocation2 + $0x2398] sm:$0xff] %v1755
      %5255 = vst [vmem:[#allocation2 + $0x23a0] sm:$0xff] %v2146
      %5256 = vst [vmem:[#allocation2 + $0x23a8] sm:$0xff] %v2148
      %5257 = vst [vmem:[#allocation2 + $0x23b0] sm:$0xff] %v2539
      %5258 = vst [vmem:[#allocation2 + $0x23b8] sm:$0xff] %v2541
      %5259 = vst [vmem:[#allocation2 + $0x23c0] sm:$0xff] %v2932
      %5260 = vst [vmem:[#allocation2 + $0x23c8] sm:$0xff] %v2934
      %5261 = vst [vmem:[#allocation2 + $0x23d0] sm:$0xff] %v3325
      %5262 = vst [vmem:[#allocation2 + $0x23d8] sm:$0xff] %v3327
      %5263 = vst [vmem:[#allocation2 + $0x23e0] sm:$0xff] %v3718
      %5264 = vst [vmem:[#allocation2 + $0x23e8] sm:$0xff] %v3720
      %5265 = vst [vmem:[#allocation2 + $0x23f0] sm:$0xff] %v4111
      %5266 = vst [vmem:[#allocation2 + $0x23f8] sm:$0xff] %v4113
      %v5267 = vld [vmem:[%s216] sm:$0x1]
      %s5268 = scalar_lea.vmem [#allocation2], 512
      %v5269 = vld [vmem:[%s5268] sm:$0xfe]
      %v5270 = vld [vmem:[%s5268 + $0x80] sm:$0xff]
      %v5271 = vld [vmem:[%s5268 + $0x100] sm:$0xff]
      %v5272 = vld [vmem:[%s5268 + $0x180] sm:$0x1]
      %v5273 = vld [vmem:[%s5268 + $0x200] sm:$0xfe]
      %v5274 = vld [vmem:[%s5268 + $0x280] sm:$0xff]
      %v5275 = vld [vmem:[%s5268 + $0x300] sm:$0xff]
      %v5276 = vld [vmem:[%s5268 + $0x380] sm:$0x1]
      %v5277 = vld [vmem:[%s5268 + $0x400] sm:$0xfe]
      %v5278 = vld [vmem:[%s5268 + $0x480] sm:$0xff]
      %v5279 = vld [vmem:[%s5268 + $0x500] sm:$0xff]
      %v5280 = vld [vmem:[%s5268 + $0x580] sm:$0x1]
      %v5281 = vld [vmem:[%s5268 + $0x600] sm:$0xfe]
      %v5282 = vld [vmem:[%s5268 + $0x680] sm:$0xff]
      %v5283 = vld [vmem:[%s5268 + $0x700] sm:$0xff]
      %v5284 = vld [vmem:[%s5268 + $0x780] sm:$0x1]
      %v5285 = vld [vmem:[%s5268 + $0x800] sm:$0xfe]
      %v5286 = vld [vmem:[%s5268 + $0x880] sm:$0xff]
      %v5287 = vld [vmem:[%s5268 + $0x900] sm:$0xff]
      %v5288 = vld [vmem:[%s5268 + $0x980] sm:$0x1]
      %v5289 = vld [vmem:[%s5268 + $0xa00] sm:$0xfe]
      %v5290 = vld [vmem:[%s5268 + $0xa80] sm:$0xff]
      %v5291 = vld [vmem:[%s5268 + $0xb00] sm:$0xff]
      %v5292 = vld [vmem:[%s5268 + $0xb80] sm:$0x1]
      %v5293 = vld [vmem:[%s5268 + $0xc00] sm:$0xfe]
      %v5294 = vld [vmem:[%s5268 + $0xc80] sm:$0xff]
      %v5295 = vld [vmem:[%s5268 + $0xd00] sm:$0xff]
      %v5296 = vld [vmem:[%s5268 + $0xd80] sm:$0x1]
      %v5297 = vld [vmem:[%s5268 + $0xe00] sm:$0xfe]
      %v5298 = vld [vmem:[%s5268 + $0xe80] sm:$0xff]
      %v5299 = vld [vmem:[%s5268 + $0xf00] sm:$0xff]
      %v5300 = vld [vmem:[%s5268 + $0xf80] sm:$0x1]
      %v5301 = vld [vmem:[%s5268 + $0x1000] sm:$0xfe]
      %v5302 = vld [vmem:[%s5268 + $0x1080] sm:$0xff]
      %v5303 = vld [vmem:[%s5268 + $0x1100] sm:$0xff]
      %v5304 = vld [vmem:[%s5268 + $0x1180] sm:$0x1]
      %v5305 = vld [vmem:[%s5268 + $0x1200] sm:$0xfe]
      %v5306 = vld [vmem:[%s5268 + $0x1280] sm:$0xff]
      %v5307 = vld [vmem:[%s5268 + $0x1300] sm:$0xff]
      %v5308 = vld [vmem:[%s5268 + $0x1380] sm:$0x1]
      %v5309 = vld [vmem:[%s5268 + $0x1400] sm:$0xfe]
      %v5310 = vld [vmem:[%s5268 + $0x1480] sm:$0xff]
      %v5311 = vld [vmem:[%s5268 + $0x1500] sm:$0xff]
      %v5312 = vld [vmem:[%s5268 + $0x1580] sm:$0x1]
      %v5313 = vld [vmem:[%s5268 + $0x1600] sm:$0xfe]
      %v5314 = vld [vmem:[%s5268 + $0x1680] sm:$0xff]
      %v5315 = vld [vmem:[%s5268 + $0x1700] sm:$0xff]
      %v5316 = vld [vmem:[%s5268 + $0x1780] sm:$0x1]
      %v5317 = vld [vmem:[%s5268 + $0x1800] sm:$0xfe]
      %v5318 = vld [vmem:[%s5268 + $0x1880] sm:$0xff]
      %v5319 = vld [vmem:[%s5268 + $0x1900] sm:$0xff]
      %v5320 = vld [vmem:[%s5268 + $0x1980] sm:$0x1]
      %v5321 = vld [vmem:[%s5268 + $0x1a00] sm:$0xfe]
      %v5322 = vld [vmem:[%s5268 + $0x1a80] sm:$0xff]
      %v5323 = vld [vmem:[%s5268 + $0x1b00] sm:$0xff]
      %v5324 = vld [vmem:[%s5268 + $0x1b80] sm:$0x1]
      %v5325 = vld [vmem:[%s5268 + $0x1c00] sm:$0xfe]
      %v5326 = vld [vmem:[%s5268 + $0x1c80] sm:$0xff]
      %v5327 = vld [vmem:[%s5268 + $0x1d00] sm:$0xff]
      %v5328 = vld [vmem:[%s5268 + $0x1d80] sm:$0x1]
      %v5329 = vld [vmem:[%s5268 + $0x1e00] sm:$0xfe]
      %v5330 = vld [vmem:[%s5268 + $0x1e80] sm:$0xff]
      %v5331 = vld [vmem:[%s5268 + $0x1f00] sm:$0xff]
      %v5332 = vld [vmem:[%s5268 + $0x1f80] sm:$0x1]
      %v5333 = vld [vmem:[%s5268 + $0x2000] sm:$0xfe]
      %v5334 = vld [vmem:[%s5268 + $0x2080] sm:$0xff]
      %v5335 = vld [vmem:[%s5268 + $0x2100] sm:$0xff]
      %v5336 = vld [vmem:[%s5268 + $0x2180] sm:$0x1]
      %v5337 = vld [vmem:[%s5268 + $0x10] sm:$0xff]
      %v5338 = vld [vmem:[%s5268 + $0x90] sm:$0xff]
      %v5339 = vld [vmem:[%s5268 + $0x110] sm:$0xff]
      %v5340 = vld [vmem:[%s5268 + $0x210] sm:$0xff]
      %v5341 = vld [vmem:[%s5268 + $0x290] sm:$0xff]
      %v5342 = vld [vmem:[%s5268 + $0x310] sm:$0xff]
      %v5343 = vld [vmem:[%s5268 + $0x410] sm:$0xff]
      %v5344 = vld [vmem:[%s5268 + $0x490] sm:$0xff]
      %v5345 = vld [vmem:[%s5268 + $0x510] sm:$0xff]
      %v5346 = vld [vmem:[%s5268 + $0x610] sm:$0xff]
      %v5347 = vld [vmem:[%s5268 + $0x690] sm:$0xff]
      %v5348 = vld [vmem:[%s5268 + $0x710] sm:$0xff]
      %v5349 = vld [vmem:[%s5268 + $0x810] sm:$0xff]
      %v5350 = vld [vmem:[%s5268 + $0x890] sm:$0xff]
      %v5351 = vld [vmem:[%s5268 + $0x910] sm:$0xff]
      %v5352 = vld [vmem:[%s5268 + $0xa10] sm:$0xff]
      %v5353 = vld [vmem:[%s5268 + $0xa90] sm:$0xff]
      %v5354 = vld [vmem:[%s5268 + $0xb10] sm:$0xff]
      %v5355 = vld [vmem:[%s5268 + $0xc10] sm:$0xff]
      %v5356 = vld [vmem:[%s5268 + $0xc90] sm:$0xff]
      %v5357 = vld [vmem:[%s5268 + $0xd10] sm:$0xff]
      %v5358 = vld [vmem:[%s5268 + $0xe10] sm:$0xff]
      %v5359 = vld [vmem:[%s5268 + $0xe90] sm:$0xff]
      %v5360 = vld [vmem:[%s5268 + $0xf10] sm:$0xff]
      %v5361 = vld [vmem:[%s5268 + $0x1010] sm:$0xff]
      %v5362 = vld [vmem:[%s5268 + $0x1090] sm:$0xff]
      %v5363 = vld [vmem:[%s5268 + $0x1110] sm:$0xff]
      %v5364 = vld [vmem:[%s5268 + $0x1210] sm:$0xff]
      %v5365 = vld [vmem:[%s5268 + $0x1290] sm:$0xff]
      %v5366 = vld [vmem:[%s5268 + $0x1310] sm:$0xff]
      %v5367 = vld [vmem:[%s5268 + $0x1410] sm:$0xff]
      %v5368 = vld [vmem:[%s5268 + $0x1490] sm:$0xff]
      %v5369 = vld [vmem:[%s5268 + $0x1510] sm:$0xff]
      %v5370 = vld [vmem:[%s5268 + $0x1610] sm:$0xff]
      %v5371 = vld [vmem:[%s5268 + $0x1690] sm:$0xff]
      %v5372 = vld [vmem:[%s5268 + $0x1710] sm:$0xff]
      %v5373 = vld [vmem:[%s5268 + $0x1810] sm:$0xff]
      %v5374 = vld [vmem:[%s5268 + $0x1890] sm:$0xff]
      %v5375 = vld [vmem:[%s5268 + $0x1910] sm:$0xff]
      %v5376 = vld [vmem:[%s5268 + $0x1a10] sm:$0xff]
      %v5377 = vld [vmem:[%s5268 + $0x1a90] sm:$0xff]
      %v5378 = vld [vmem:[%s5268 + $0x1b10] sm:$0xff]
      %v5379 = vld [vmem:[%s5268 + $0x1c10] sm:$0xff]
      %v5380 = vld [vmem:[%s5268 + $0x1c90] sm:$0xff]
      %v5381 = vld [vmem:[%s5268 + $0x1d10] sm:$0xff]
      %v5382 = vld [vmem:[%s5268 + $0x1e10] sm:$0xff]
      %v5383 = vld [vmem:[%s5268 + $0x1e90] sm:$0xff]
      %v5384 = vld [vmem:[%s5268 + $0x1f10] sm:$0xff]
      %v5385 = vld [vmem:[%s5268 + $0x2010] sm:$0xff]
      %v5386 = vld [vmem:[%s5268 + $0x2090] sm:$0xff]
      %v5387 = vld [vmem:[%s5268 + $0x2110] sm:$0xff]
      %vm5439 = vcmask 1040384
      %v5440 = vrot.slane %v5337, 7
      %v5441 = vrot.slane %v5338, 7
      %v5442 = vsel %vm5439, %v5440, %v5441
      %v5443 = vrot.slane %v5339, 7
      %v5444 = vsel %vm5439, %v5441, %v5443
      %v5445 = vrot.slane %v5340, 7
      %v5446 = vrot.slane %v5341, 7
      %v5447 = vsel %vm5439, %v5445, %v5446
      %v5448 = vrot.slane %v5342, 7
      %v5449 = vsel %vm5439, %v5446, %v5448
      %v5450 = vrot.slane %v5343, 7
      %v5451 = vrot.slane %v5344, 7
      %v5452 = vsel %vm5439, %v5450, %v5451
      %v5453 = vrot.slane %v5345, 7
      %v5454 = vsel %vm5439, %v5451, %v5453
      %v5455 = vrot.slane %v5346, 7
      %v5456 = vrot.slane %v5347, 7
      %v5457 = vsel %vm5439, %v5455, %v5456
      %v5458 = vrot.slane %v5348, 7
      %v5459 = vsel %vm5439, %v5456, %v5458
      %v5460 = vrot.slane %v5349, 7
      %v5461 = vrot.slane %v5350, 7
      %v5462 = vsel %vm5439, %v5460, %v5461
      %v5463 = vrot.slane %v5351, 7
      %v5464 = vsel %vm5439, %v5461, %v5463
      %v5465 = vrot.slane %v5352, 7
      %v5466 = vrot.slane %v5353, 7
      %v5467 = vsel %vm5439, %v5465, %v5466
      %v5468 = vrot.slane %v5354, 7
      %v5469 = vsel %vm5439, %v5466, %v5468
      %v5470 = vrot.slane %v5355, 7
      %v5471 = vrot.slane %v5356, 7
      %v5472 = vsel %vm5439, %v5470, %v5471
      %v5473 = vrot.slane %v5357, 7
      %v5474 = vsel %vm5439, %v5471, %v5473
      %v5475 = vrot.slane %v5358, 7
      %v5476 = vrot.slane %v5359, 7
      %v5477 = vsel %vm5439, %v5475, %v5476
      %v5478 = vrot.slane %v5360, 7
      %v5479 = vsel %vm5439, %v5476, %v5478
      %v5480 = vrot.slane %v5361, 7
      %v5481 = vrot.slane %v5362, 7
      %v5482 = vsel %vm5439, %v5480, %v5481
      %v5483 = vrot.slane %v5363, 7
      %v5484 = vsel %vm5439, %v5481, %v5483
      %v5485 = vrot.slane %v5364, 7
      %v5486 = vrot.slane %v5365, 7
      %v5487 = vsel %vm5439, %v5485, %v5486
      %v5488 = vrot.slane %v5366, 7
      %v5489 = vsel %vm5439, %v5486, %v5488
      %v5490 = vrot.slane %v5367, 7
      %v5491 = vrot.slane %v5368, 7
      %v5492 = vsel %vm5439, %v5490, %v5491
      %v5493 = vrot.slane %v5369, 7
      %v5494 = vsel %vm5439, %v5491, %v5493
      %v5495 = vrot.slane %v5370, 7
      %v5496 = vrot.slane %v5371, 7
      %v5497 = vsel %vm5439, %v5495, %v5496
      %v5498 = vrot.slane %v5372, 7
      %v5499 = vsel %vm5439, %v5496, %v5498
      %v5500 = vrot.slane %v5373, 7
      %v5501 = vrot.slane %v5374, 7
      %v5502 = vsel %vm5439, %v5500, %v5501
      %v5503 = vrot.slane %v5375, 7
      %v5504 = vsel %vm5439, %v5501, %v5503
      %v5505 = vrot.slane %v5376, 7
      %v5506 = vrot.slane %v5377, 7
      %v5507 = vsel %vm5439, %v5505, %v5506
      %v5508 = vrot.slane %v5378, 7
      %v5509 = vsel %vm5439, %v5506, %v5508
      %v5510 = vrot.slane %v5379, 7
      %v5511 = vrot.slane %v5380, 7
      %v5512 = vsel %vm5439, %v5510, %v5511
      %v5513 = vrot.slane %v5381, 7
      %v5514 = vsel %vm5439, %v5511, %v5513
      %v5515 = vrot.slane %v5382, 7
      %v5516 = vrot.slane %v5383, 7
      %v5517 = vsel %vm5439, %v5515, %v5516
      %v5518 = vrot.slane %v5384, 7
      %v5519 = vsel %vm5439, %v5516, %v5518
      %v5520 = vrot.slane %v5385, 7
      %v5521 = vrot.slane %v5386, 7
      %v5522 = vsel %vm5439, %v5520, %v5521
      %v5523 = vrot.slane %v5387, 7
      %v5524 = vsel %vm5439, %v5521, %v5523
      %v5593 = vadd.f32 %v5269, %v5440
      %v5594 = vadd.f32 %v5270, %v5442
      %v5595 = vadd.f32 %v5271, %v5444
      %v5596 = vadd.f32 %v5272, %v5443
      %v5597 = vadd.f32 %v5273, %v5445
      %v5598 = vadd.f32 %v5274, %v5447
      %v5599 = vadd.f32 %v5275, %v5449
      %v5600 = vadd.f32 %v5276, %v5448
      %v5601 = vadd.f32 %v5277, %v5450
      %v5602 = vadd.f32 %v5278, %v5452
      %v5603 = vadd.f32 %v5279, %v5454
      %v5604 = vadd.f32 %v5280, %v5453
      %v5605 = vadd.f32 %v5281, %v5455
      %v5606 = vadd.f32 %v5282, %v5457
      %v5607 = vadd.f32 %v5283, %v5459
      %v5608 = vadd.f32 %v5284, %v5458
      %v5609 = vadd.f32 %v5285, %v5460
      %v5610 = vadd.f32 %v5286, %v5462
      %v5611 = vadd.f32 %v5287, %v5464
      %v5612 = vadd.f32 %v5288, %v5463
      %v5613 = vadd.f32 %v5289, %v5465
      %v5614 = vadd.f32 %v5290, %v5467
      %v5615 = vadd.f32 %v5291, %v5469
      %v5616 = vadd.f32 %v5292, %v5468
      %v5617 = vadd.f32 %v5293, %v5470
      %v5618 = vadd.f32 %v5294, %v5472
      %v5619 = vadd.f32 %v5295, %v5474
      %v5620 = vadd.f32 %v5296, %v5473
      %v5621 = vadd.f32 %v5297, %v5475
      %v5622 = vadd.f32 %v5298, %v5477
      %v5623 = vadd.f32 %v5299, %v5479
      %v5624 = vadd.f32 %v5300, %v5478
      %v5625 = vadd.f32 %v5301, %v5480
      %v5626 = vadd.f32 %v5302, %v5482
      %v5627 = vadd.f32 %v5303, %v5484
      %v5628 = vadd.f32 %v5304, %v5483
      %v5629 = vadd.f32 %v5305, %v5485
      %v5630 = vadd.f32 %v5306, %v5487
      %v5631 = vadd.f32 %v5307, %v5489
      %v5632 = vadd.f32 %v5308, %v5488
      %v5633 = vadd.f32 %v5309, %v5490
      %v5634 = vadd.f32 %v5310, %v5492
      %v5635 = vadd.f32 %v5311, %v5494
      %v5636 = vadd.f32 %v5312, %v5493
      %v5637 = vadd.f32 %v5313, %v5495
      %v5638 = vadd.f32 %v5314, %v5497
      %v5639 = vadd.f32 %v5315, %v5499
      %v5640 = vadd.f32 %v5316, %v5498
      %v5641 = vadd.f32 %v5317, %v5500
      %v5642 = vadd.f32 %v5318, %v5502
      %v5643 = vadd.f32 %v5319, %v5504
      %v5644 = vadd.f32 %v5320, %v5503
      %v5645 = vadd.f32 %v5321, %v5505
      %v5646 = vadd.f32 %v5322, %v5507
      %v5647 = vadd.f32 %v5323, %v5509
      %v5648 = vadd.f32 %v5324, %v5508
      %v5649 = vadd.f32 %v5325, %v5510
      %v5650 = vadd.f32 %v5326, %v5512
      %v5651 = vadd.f32 %v5327, %v5514
      %v5652 = vadd.f32 %v5328, %v5513
      %v5653 = vadd.f32 %v5329, %v5515
      %v5654 = vadd.f32 %v5330, %v5517
      %v5655 = vadd.f32 %v5331, %v5519
      %v5656 = vadd.f32 %v5332, %v5518
      %v5657 = vadd.f32 %v5333, %v5520
      %v5658 = vadd.f32 %v5334, %v5522
      %v5659 = vadd.f32 %v5335, %v5524
      %v5660 = vadd.f32 %v5336, %v5523
      %v5661 = vld [vmem:[#allocation2 + $0x40] sm:$0xfe]
      %v5662 = vld [vmem:[#allocation2 + $0xc0] sm:$0xff]
      %v5663 = vld [vmem:[#allocation2 + $0x140] sm:$0xff]
      %v5664 = vld [vmem:[#allocation2 + $0x1c0] sm:$0x1]
      %v5665 = vld [vmem:[#allocation2 + $0x240] sm:$0xfe]
      %v5666 = vld [vmem:[#allocation2 + $0x2c0] sm:$0xff]
      %v5667 = vld [vmem:[#allocation2 + $0x340] sm:$0xff]
      %v5668 = vld [vmem:[#allocation2 + $0x3c0] sm:$0x1]
      %v5669 = vld [vmem:[#allocation2 + $0x440] sm:$0xfe]
      %v5670 = vld [vmem:[#allocation2 + $0x4c0] sm:$0xff]
      %v5671 = vld [vmem:[#allocation2 + $0x540] sm:$0xff]
      %v5672 = vld [vmem:[#allocation2 + $0x5c0] sm:$0x1]
      %v5673 = vld [vmem:[#allocation2 + $0x640] sm:$0xfe]
      %v5674 = vld [vmem:[#allocation2 + $0x6c0] sm:$0xff]
      %v5675 = vld [vmem:[#allocation2 + $0x740] sm:$0xff]
      %v5676 = vld [vmem:[#allocation2 + $0x7c0] sm:$0x1]
      %v5677 = vld [vmem:[#allocation2 + $0x840] sm:$0xfe]
      %v5678 = vld [vmem:[#allocation2 + $0x8c0] sm:$0xff]
      %v5679 = vld [vmem:[#allocation2 + $0x940] sm:$0xff]
      %v5680 = vld [vmem:[#allocation2 + $0x9c0] sm:$0x1]
      %v5681 = vld [vmem:[#allocation2 + $0xa40] sm:$0xfe]
      %v5682 = vld [vmem:[#allocation2 + $0xac0] sm:$0xff]
      %v5683 = vld [vmem:[#allocation2 + $0xb40] sm:$0xff]
      %v5684 = vld [vmem:[#allocation2 + $0xbc0] sm:$0x1]
      %v5685 = vld [vmem:[#allocation2 + $0xc40] sm:$0xfe]
      %v5686 = vld [vmem:[#allocation2 + $0xcc0] sm:$0xff]
      %v5687 = vld [vmem:[#allocation2 + $0xd40] sm:$0xff]
      %v5688 = vld [vmem:[#allocation2 + $0xdc0] sm:$0x1]
      %v5689 = vld [vmem:[#allocation2 + $0xe40] sm:$0xfe]
      %v5690 = vld [vmem:[#allocation2 + $0xec0] sm:$0xff]
      %v5691 = vld [vmem:[#allocation2 + $0xf40] sm:$0xff]
      %v5692 = vld [vmem:[#allocation2 + $0xfc0] sm:$0x1]
      %v5693 = vld [vmem:[#allocation2 + $0x1040] sm:$0xfe]
      %v5694 = vld [vmem:[#allocation2 + $0x10c0] sm:$0xff]
      %v5695 = vld [vmem:[#allocation2 + $0x1140] sm:$0xff]
      %v5696 = vld [vmem:[#allocation2 + $0x11c0] sm:$0x1]
      %v5697 = vld [vmem:[#allocation2 + $0x1240] sm:$0xfe]
      %v5698 = vld [vmem:[#allocation2 + $0x12c0] sm:$0xff]
      %v5699 = vld [vmem:[#allocation2 + $0x1340] sm:$0xff]
      %v5700 = vld [vmem:[#allocation2 + $0x13c0] sm:$0x1]
      %v5701 = vld [vmem:[#allocation2 + $0x1440] sm:$0xfe]
      %v5702 = vld [vmem:[#allocation2 + $0x14c0] sm:$0xff]
      %v5703 = vld [vmem:[#allocation2 + $0x1540] sm:$0xff]
      %v5704 = vld [vmem:[#allocation2 + $0x15c0] sm:$0x1]
      %v5705 = vld [vmem:[#allocation2 + $0x1640] sm:$0xfe]
      %v5706 = vld [vmem:[#allocation2 + $0x16c0] sm:$0xff]
      %v5707 = vld [vmem:[#allocation2 + $0x1740] sm:$0xff]
      %v5708 = vld [vmem:[#allocation2 + $0x17c0] sm:$0x1]
      %v5709 = vld [vmem:[#allocation2 + $0x1840] sm:$0xfe]
      %v5710 = vld [vmem:[#allocation2 + $0x18c0] sm:$0xff]
      %v5711 = vld [vmem:[#allocation2 + $0x1940] sm:$0xff]
      %v5712 = vld [vmem:[#allocation2 + $0x19c0] sm:$0x1]
      %v5713 = vld [vmem:[#allocation2 + $0x1a40] sm:$0xfe]
      %v5714 = vld [vmem:[#allocation2 + $0x1ac0] sm:$0xff]
      %v5715 = vld [vmem:[#allocation2 + $0x1b40] sm:$0xff]
      %v5716 = vld [vmem:[#allocation2 + $0x1bc0] sm:$0x1]
      %v5717 = vld [vmem:[#allocation2 + $0x1c40] sm:$0xfe]
      %v5718 = vld [vmem:[#allocation2 + $0x1cc0] sm:$0xff]
      %v5719 = vld [vmem:[#allocation2 + $0x1d40] sm:$0xff]
      %v5720 = vld [vmem:[#allocation2 + $0x1dc0] sm:$0x1]
      %v5721 = vld [vmem:[#allocation2 + $0x1e40] sm:$0xfe]
      %v5722 = vld [vmem:[#allocation2 + $0x1ec0] sm:$0xff]
      %v5723 = vld [vmem:[#allocation2 + $0x1f40] sm:$0xff]
      %v5724 = vld [vmem:[#allocation2 + $0x1fc0] sm:$0x1]
      %v5725 = vld [vmem:[#allocation2 + $0x2040] sm:$0xfe]
      %v5726 = vld [vmem:[#allocation2 + $0x20c0] sm:$0xff]
      %v5727 = vld [vmem:[#allocation2 + $0x2140] sm:$0xff]
      %v5728 = vld [vmem:[#allocation2 + $0x21c0] sm:$0x1]
      %v5729 = vadd.f32 %v5593, %v5661
      %v5730 = vadd.f32 %v5594, %v5662
      %v5731 = vadd.f32 %v5595, %v5663
      %v5732 = vadd.f32 %v5596, %v5664
      %v5733 = vadd.f32 %v5597, %v5665
      %v5734 = vadd.f32 %v5598, %v5666
      %v5735 = vadd.f32 %v5599, %v5667
      %v5736 = vadd.f32 %v5600, %v5668
      %v5737 = vadd.f32 %v5601, %v5669
      %v5738 = vadd.f32 %v5602, %v5670
      %v5739 = vadd.f32 %v5603, %v5671
      %v5740 = vadd.f32 %v5604, %v5672
      %v5741 = vadd.f32 %v5605, %v5673
      %v5742 = vadd.f32 %v5606, %v5674
      %v5743 = vadd.f32 %v5607, %v5675
      %v5744 = vadd.f32 %v5608, %v5676
      %v5745 = vadd.f32 %v5609, %v5677
      %v5746 = vadd.f32 %v5610, %v5678
      %v5747 = vadd.f32 %v5611, %v5679
      %v5748 = vadd.f32 %v5612, %v5680
      %v5749 = vadd.f32 %v5613, %v5681
      %v5750 = vadd.f32 %v5614, %v5682
      %v5751 = vadd.f32 %v5615, %v5683
      %v5752 = vadd.f32 %v5616, %v5684
      %v5753 = vadd.f32 %v5617, %v5685
      %v5754 = vadd.f32 %v5618, %v5686
      %v5755 = vadd.f32 %v5619, %v5687
      %v5756 = vadd.f32 %v5620, %v5688
      %v5757 = vadd.f32 %v5621, %v5689
      %v5758 = vadd.f32 %v5622, %v5690
      %v5759 = vadd.f32 %v5623, %v5691
      %v5760 = vadd.f32 %v5624, %v5692
      %v5761 = vadd.f32 %v5625, %v5693
      %v5762 = vadd.f32 %v5626, %v5694
      %v5763 = vadd.f32 %v5627, %v5695
      %v5764 = vadd.f32 %v5628, %v5696
      %v5765 = vadd.f32 %v5629, %v5697
      %v5766 = vadd.f32 %v5630, %v5698
      %v5767 = vadd.f32 %v5631, %v5699
      %v5768 = vadd.f32 %v5632, %v5700
      %v5769 = vadd.f32 %v5633, %v5701
      %v5770 = vadd.f32 %v5634, %v5702
      %v5771 = vadd.f32 %v5635, %v5703
      %v5772 = vadd.f32 %v5636, %v5704
      %v5773 = vadd.f32 %v5637, %v5705
      %v5774 = vadd.f32 %v5638, %v5706
      %v5775 = vadd.f32 %v5639, %v5707
      %v5776 = vadd.f32 %v5640, %v5708
      %v5777 = vadd.f32 %v5641, %v5709
      %v5778 = vadd.f32 %v5642, %v5710
      %v5779 = vadd.f32 %v5643, %v5711
      %v5780 = vadd.f32 %v5644, %v5712
      %v5781 = vadd.f32 %v5645, %v5713
      %v5782 = vadd.f32 %v5646, %v5714
      %v5783 = vadd.f32 %v5647, %v5715
      %v5784 = vadd.f32 %v5648, %v5716
      %v5785 = vadd.f32 %v5649, %v5717
      %v5786 = vadd.f32 %v5650, %v5718
      %v5787 = vadd.f32 %v5651, %v5719
      %v5788 = vadd.f32 %v5652, %v5720
      %v5789 = vadd.f32 %v5653, %v5721
      %v5790 = vadd.f32 %v5654, %v5722
      %v5791 = vadd.f32 %v5655, %v5723
      %v5792 = vadd.f32 %v5656, %v5724
      %v5793 = vadd.f32 %v5657, %v5725
      %v5794 = vadd.f32 %v5658, %v5726
      %v5795 = vadd.f32 %v5659, %v5727
      %v5796 = vadd.f32 %v5660, %v5728
      %v5797 = vld [vmem:[#allocation2 + $0x50] sm:$0xff]
      %v5798 = vld [vmem:[#allocation2 + $0xd0] sm:$0xff]
      %v5799 = vld [vmem:[#allocation2 + $0x150] sm:$0xff]
      %v5800 = vld [vmem:[#allocation2 + $0x250] sm:$0xff]
      %v5801 = vld [vmem:[#allocation2 + $0x2d0] sm:$0xff]
      %v5802 = vld [vmem:[#allocation2 + $0x350] sm:$0xff]
      %v5803 = vld [vmem:[#allocation2 + $0x450] sm:$0xff]
      %v5804 = vld [vmem:[#allocation2 + $0x4d0] sm:$0xff]
      %v5805 = vld [vmem:[#allocation2 + $0x550] sm:$0xff]
      %v5806 = vld [vmem:[#allocation2 + $0x650] sm:$0xff]
      %v5807 = vld [vmem:[#allocation2 + $0x6d0] sm:$0xff]
      %v5808 = vld [vmem:[#allocation2 + $0x750] sm:$0xff]
      %v5809 = vld [vmem:[#allocation2 + $0x850] sm:$0xff]
      %v5810 = vld [vmem:[#allocation2 + $0x8d0] sm:$0xff]
      %v5811 = vld [vmem:[#allocation2 + $0x950] sm:$0xff]
      %v5812 = vld [vmem:[#allocation2 + $0xa50] sm:$0xff]
      %v5813 = vld [vmem:[#allocation2 + $0xad0] sm:$0xff]
      %v5814 = vld [vmem:[#allocation2 + $0xb50] sm:$0xff]
      %v5815 = vld [vmem:[#allocation2 + $0xc50] sm:$0xff]
      %v5816 = vld [vmem:[#allocation2 + $0xcd0] sm:$0xff]
      %v5817 = vld [vmem:[#allocation2 + $0xd50] sm:$0xff]
      %v5818 = vld [vmem:[#allocation2 + $0xe50] sm:$0xff]
      %v5819 = vld [vmem:[#allocation2 + $0xed0] sm:$0xff]
      %v5820 = vld [vmem:[#allocation2 + $0xf50] sm:$0xff]
      %v5821 = vld [vmem:[#allocation2 + $0x1050] sm:$0xff]
      %v5822 = vld [vmem:[#allocation2 + $0x10d0] sm:$0xff]
      %v5823 = vld [vmem:[#allocation2 + $0x1150] sm:$0xff]
      %v5824 = vld [vmem:[#allocation2 + $0x1250] sm:$0xff]
      %v5825 = vld [vmem:[#allocation2 + $0x12d0] sm:$0xff]
      %v5826 = vld [vmem:[#allocation2 + $0x1350] sm:$0xff]
      %v5827 = vld [vmem:[#allocation2 + $0x1450] sm:$0xff]
      %v5828 = vld [vmem:[#allocation2 + $0x14d0] sm:$0xff]
      %v5829 = vld [vmem:[#allocation2 + $0x1550] sm:$0xff]
      %v5830 = vld [vmem:[#allocation2 + $0x1650] sm:$0xff]
      %v5831 = vld [vmem:[#allocation2 + $0x16d0] sm:$0xff]
      %v5832 = vld [vmem:[#allocation2 + $0x1750] sm:$0xff]
      %v5833 = vld [vmem:[#allocation2 + $0x1850] sm:$0xff]
      %v5834 = vld [vmem:[#allocation2 + $0x18d0] sm:$0xff]
      %v5835 = vld [vmem:[#allocation2 + $0x1950] sm:$0xff]
      %v5836 = vld [vmem:[#allocation2 + $0x1a50] sm:$0xff]
      %v5837 = vld [vmem:[#allocation2 + $0x1ad0] sm:$0xff]
      %v5838 = vld [vmem:[#allocation2 + $0x1b50] sm:$0xff]
      %v5839 = vld [vmem:[#allocation2 + $0x1c50] sm:$0xff]
      %v5840 = vld [vmem:[#allocation2 + $0x1cd0] sm:$0xff]
      %v5841 = vld [vmem:[#allocation2 + $0x1d50] sm:$0xff]
      %v5842 = vld [vmem:[#allocation2 + $0x1e50] sm:$0xff]
      %v5843 = vld [vmem:[#allocation2 + $0x1ed0] sm:$0xff]
      %v5844 = vld [vmem:[#allocation2 + $0x1f50] sm:$0xff]
      %v5845 = vld [vmem:[#allocation2 + $0x2050] sm:$0xff]
      %v5846 = vld [vmem:[#allocation2 + $0x20d0] sm:$0xff]
      %v5847 = vld [vmem:[#allocation2 + $0x2150] sm:$0xff]
      %v5899 = vrot.slane %v5797, 7
      %v5900 = vrot.slane %v5798, 7
      %v5901 = vsel %vm5439, %v5899, %v5900
      %v5902 = vrot.slane %v5799, 7
      %v5903 = vsel %vm5439, %v5900, %v5902
      %v5904 = vrot.slane %v5800, 7
      %v5905 = vrot.slane %v5801, 7
      %v5906 = vsel %vm5439, %v5904, %v5905
      %v5907 = vrot.slane %v5802, 7
      %v5908 = vsel %vm5439, %v5905, %v5907
      %v5909 = vrot.slane %v5803, 7
      %v5910 = vrot.slane %v5804, 7
      %v5911 = vsel %vm5439, %v5909, %v5910
      %v5912 = vrot.slane %v5805, 7
      %v5913 = vsel %vm5439, %v5910, %v5912
      %v5914 = vrot.slane %v5806, 7
      %v5915 = vrot.slane %v5807, 7
      %v5916 = vsel %vm5439, %v5914, %v5915
      %v5917 = vrot.slane %v5808, 7
      %v5918 = vsel %vm5439, %v5915, %v5917
      %v5919 = vrot.slane %v5809, 7
      %v5920 = vrot.slane %v5810, 7
      %v5921 = vsel %vm5439, %v5919, %v5920
      %v5922 = vrot.slane %v5811, 7
      %v5923 = vsel %vm5439, %v5920, %v5922
      %v5924 = vrot.slane %v5812, 7
      %v5925 = vrot.slane %v5813, 7
      %v5926 = vsel %vm5439, %v5924, %v5925
      %v5927 = vrot.slane %v5814, 7
      %v5928 = vsel %vm5439, %v5925, %v5927
      %v5929 = vrot.slane %v5815, 7
      %v5930 = vrot.slane %v5816, 7
      %v5931 = vsel %vm5439, %v5929, %v5930
      %v5932 = vrot.slane %v5817, 7
      %v5933 = vsel %vm5439, %v5930, %v5932
      %v5934 = vrot.slane %v5818, 7
      %v5935 = vrot.slane %v5819, 7
      %v5936 = vsel %vm5439, %v5934, %v5935
      %v5937 = vrot.slane %v5820, 7
      %v5938 = vsel %vm5439, %v5935, %v5937
      %v5939 = vrot.slane %v5821, 7
      %v5940 = vrot.slane %v5822, 7
      %v5941 = vsel %vm5439, %v5939, %v5940
      %v5942 = vrot.slane %v5823, 7
      %v5943 = vsel %vm5439, %v5940, %v5942
      %v5944 = vrot.slane %v5824, 7
      %v5945 = vrot.slane %v5825, 7
      %v5946 = vsel %vm5439, %v5944, %v5945
      %v5947 = vrot.slane %v5826, 7
      %v5948 = vsel %vm5439, %v5945, %v5947
      %v5949 = vrot.slane %v5827, 7
      %v5950 = vrot.slane %v5828, 7
      %v5951 = vsel %vm5439, %v5949, %v5950
      %v5952 = vrot.slane %v5829, 7
      %v5953 = vsel %vm5439, %v5950, %v5952
      %v5954 = vrot.slane %v5830, 7
      %v5955 = vrot.slane %v5831, 7
      %v5956 = vsel %vm5439, %v5954, %v5955
      %v5957 = vrot.slane %v5832, 7
      %v5958 = vsel %vm5439, %v5955, %v5957
      %v5959 = vrot.slane %v5833, 7
      %v5960 = vrot.slane %v5834, 7
      %v5961 = vsel %vm5439, %v5959, %v5960
      %v5962 = vrot.slane %v5835, 7
      %v5963 = vsel %vm5439, %v5960, %v5962
      %v5964 = vrot.slane %v5836, 7
      %v5965 = vrot.slane %v5837, 7
      %v5966 = vsel %vm5439, %v5964, %v5965
      %v5967 = vrot.slane %v5838, 7
      %v5968 = vsel %vm5439, %v5965, %v5967
      %v5969 = vrot.slane %v5839, 7
      %v5970 = vrot.slane %v5840, 7
      %v5971 = vsel %vm5439, %v5969, %v5970
      %v5972 = vrot.slane %v5841, 7
      %v5973 = vsel %vm5439, %v5970, %v5972
      %v5974 = vrot.slane %v5842, 7
      %v5975 = vrot.slane %v5843, 7
      %v5976 = vsel %vm5439, %v5974, %v5975
      %v5977 = vrot.slane %v5844, 7
      %v5978 = vsel %vm5439, %v5975, %v5977
      %v5979 = vrot.slane %v5845, 7
      %v5980 = vrot.slane %v5846, 7
      %v5981 = vsel %vm5439, %v5979, %v5980
      %v5982 = vrot.slane %v5847, 7
      %v5983 = vsel %vm5439, %v5980, %v5982
      %v6052 = vadd.f32 %v5729, %v5899
      %v6053 = vadd.f32 %v5730, %v5901
      %v6054 = vadd.f32 %v5731, %v5903
      %v6055 = vadd.f32 %v5732, %v5902
      %v6056 = vadd.f32 %v5733, %v5904
      %v6057 = vadd.f32 %v5734, %v5906
      %v6058 = vadd.f32 %v5735, %v5908
      %v6059 = vadd.f32 %v5736, %v5907
      %v6060 = vadd.f32 %v5737, %v5909
      %v6061 = vadd.f32 %v5738, %v5911
      %v6062 = vadd.f32 %v5739, %v5913
      %v6063 = vadd.f32 %v5740, %v5912
      %v6064 = vadd.f32 %v5741, %v5914
      %v6065 = vadd.f32 %v5742, %v5916
      %v6066 = vadd.f32 %v5743, %v5918
      %v6067 = vadd.f32 %v5744, %v5917
      %v6068 = vadd.f32 %v5745, %v5919
      %v6069 = vadd.f32 %v5746, %v5921
      %v6070 = vadd.f32 %v5747, %v5923
      %v6071 = vadd.f32 %v5748, %v5922
      %v6072 = vadd.f32 %v5749, %v5924
      %v6073 = vadd.f32 %v5750, %v5926
      %v6074 = vadd.f32 %v5751, %v5928
      %v6075 = vadd.f32 %v5752, %v5927
      %v6076 = vadd.f32 %v5753, %v5929
      %v6077 = vadd.f32 %v5754, %v5931
      %v6078 = vadd.f32 %v5755, %v5933
      %v6079 = vadd.f32 %v5756, %v5932
      %v6080 = vadd.f32 %v5757, %v5934
      %v6081 = vadd.f32 %v5758, %v5936
      %v6082 = vadd.f32 %v5759, %v5938
      %v6083 = vadd.f32 %v5760, %v5937
      %v6084 = vadd.f32 %v5761, %v5939
      %v6085 = vadd.f32 %v5762, %v5941
      %v6086 = vadd.f32 %v5763, %v5943
      %v6087 = vadd.f32 %v5764, %v5942
      %v6088 = vadd.f32 %v5765, %v5944
      %v6089 = vadd.f32 %v5766, %v5946
      %v6090 = vadd.f32 %v5767, %v5948
      %v6091 = vadd.f32 %v5768, %v5947
      %v6092 = vadd.f32 %v5769, %v5949
      %v6093 = vadd.f32 %v5770, %v5951
      %v6094 = vadd.f32 %v5771, %v5953
      %v6095 = vadd.f32 %v5772, %v5952
      %v6096 = vadd.f32 %v5773, %v5954
      %v6097 = vadd.f32 %v5774, %v5956
      %v6098 = vadd.f32 %v5775, %v5958
      %v6099 = vadd.f32 %v5776, %v5957
      %v6100 = vadd.f32 %v5777, %v5959
      %v6101 = vadd.f32 %v5778, %v5961
      %v6102 = vadd.f32 %v5779, %v5963
      %v6103 = vadd.f32 %v5780, %v5962
      %v6104 = vadd.f32 %v5781, %v5964
      %v6105 = vadd.f32 %v5782, %v5966
      %v6106 = vadd.f32 %v5783, %v5968
      %v6107 = vadd.f32 %v5784, %v5967
      %v6108 = vadd.f32 %v5785, %v5969
      %v6109 = vadd.f32 %v5786, %v5971
      %v6110 = vadd.f32 %v5787, %v5973
      %v6111 = vadd.f32 %v5788, %v5972
      %v6112 = vadd.f32 %v5789, %v5974
      %v6113 = vadd.f32 %v5790, %v5976
      %v6114 = vadd.f32 %v5791, %v5978
      %v6115 = vadd.f32 %v5792, %v5977
      %v6116 = vadd.f32 %v5793, %v5979
      %v6117 = vadd.f32 %v5794, %v5981
      %v6118 = vadd.f32 %v5795, %v5983
      %v6119 = vadd.f32 %v5796, %v5982
      %v6121 = vlaneseq
      %v6122 = vshrl.u32 %v6121, 7
      %v6123 = vsub.s32 0, %v6122
      %v6124 = vrot.slane %v5267, %v6123
      %v6126 = vadd.f32 %v6052, %v6124
      %v6127 = vadd.f32 %v6053, %v6124
      %v6128 = vadd.f32 %v6054, %v6124
      %v6129 = vadd.f32 %v6055, %v6124
      %v6130 = vadd.f32 %v6056, %v6124
      %v6131 = vadd.f32 %v6057, %v6124
      %v6132 = vadd.f32 %v6058, %v6124
      %v6133 = vadd.f32 %v6059, %v6124
      %v6134 = vadd.f32 %v6060, %v6124
      %v6135 = vadd.f32 %v6061, %v6124
      %v6136 = vadd.f32 %v6062, %v6124
      %v6137 = vadd.f32 %v6063, %v6124
      %v6138 = vadd.f32 %v6064, %v6124
      %v6139 = vadd.f32 %v6065, %v6124
      %v6140 = vadd.f32 %v6066, %v6124
      %v6141 = vadd.f32 %v6067, %v6124
      %v6142 = vadd.f32 %v6068, %v6124
      %v6143 = vadd.f32 %v6069, %v6124
      %v6144 = vadd.f32 %v6070, %v6124
      %v6145 = vadd.f32 %v6071, %v6124
      %v6146 = vadd.f32 %v6072, %v6124
      %v6147 = vadd.f32 %v6073, %v6124
      %v6148 = vadd.f32 %v6074, %v6124
      %v6149 = vadd.f32 %v6075, %v6124
      %v6150 = vadd.f32 %v6076, %v6124
      %v6151 = vadd.f32 %v6077, %v6124
      %v6152 = vadd.f32 %v6078, %v6124
      %v6153 = vadd.f32 %v6079, %v6124
      %v6154 = vadd.f32 %v6080, %v6124
      %v6155 = vadd.f32 %v6081, %v6124
      %v6156 = vadd.f32 %v6082, %v6124
      %v6157 = vadd.f32 %v6083, %v6124
      %v6158 = vadd.f32 %v6084, %v6124
      %v6159 = vadd.f32 %v6085, %v6124
      %v6160 = vadd.f32 %v6086, %v6124
      %v6161 = vadd.f32 %v6087, %v6124
      %v6162 = vadd.f32 %v6088, %v6124
      %v6163 = vadd.f32 %v6089, %v6124
      %v6164 = vadd.f32 %v6090, %v6124
      %v6165 = vadd.f32 %v6091, %v6124
      %v6166 = vadd.f32 %v6092, %v6124
      %v6167 = vadd.f32 %v6093, %v6124
      %v6168 = vadd.f32 %v6094, %v6124
      %v6169 = vadd.f32 %v6095, %v6124
      %v6170 = vadd.f32 %v6096, %v6124
      %v6171 = vadd.f32 %v6097, %v6124
      %v6172 = vadd.f32 %v6098, %v6124
      %v6173 = vadd.f32 %v6099, %v6124
      %v6174 = vadd.f32 %v6100, %v6124
      %v6175 = vadd.f32 %v6101, %v6124
      %v6176 = vadd.f32 %v6102, %v6124
      %v6177 = vadd.f32 %v6103, %v6124
      %v6178 = vadd.f32 %v6104, %v6124
      %v6179 = vadd.f32 %v6105, %v6124
      %v6180 = vadd.f32 %v6106, %v6124
      %v6181 = vadd.f32 %v6107, %v6124
      %v6182 = vadd.f32 %v6108, %v6124
      %v6183 = vadd.f32 %v6109, %v6124
      %v6184 = vadd.f32 %v6110, %v6124
      %v6185 = vadd.f32 %v6111, %v6124
      %v6186 = vadd.f32 %v6112, %v6124
      %v6187 = vadd.f32 %v6113, %v6124
      %v6188 = vadd.f32 %v6114, %v6124
      %v6189 = vadd.f32 %v6115, %v6124
      %v6190 = vadd.f32 %v6116, %v6124
      %v6191 = vadd.f32 %v6117, %v6124
      %v6192 = vadd.f32 %v6118, %v6124
      %v6193 = vadd.f32 %v6119, %v6124
      %6194 = vst [vmem:[%s224 - $0x1] sm:$0xfe] %v6126
      %6195 = vst [vmem:[%s224 + $0x7] sm:$0xff] %v6127
      %6196 = vst [vmem:[%s224 + $0xf] sm:$0xff] %v6128
      %6197 = vst [vmem:[%s224 + $0x17] sm:$0x1] %v6129
      %6198 = vst [vmem:[%s224 + $0x17] sm:$0xfe] %v6130
      %6199 = vst [vmem:[%s224 + $0x1f] sm:$0xff] %v6131
      %6200 = vst [vmem:[%s224 + $0x27] sm:$0xff] %v6132
      %6201 = vst [vmem:[%s224 + $0x2f] sm:$0x1] %v6133
      %6202 = vst [vmem:[%s224 + $0x2f] sm:$0xfe] %v6134
      %6203 = vst [vmem:[%s224 + $0x37] sm:$0xff] %v6135
      %6204 = vst [vmem:[%s224 + $0x3f] sm:$0xff] %v6136
      %6205 = vst [vmem:[%s224 + $0x47] sm:$0x1] %v6137
      %6206 = vst [vmem:[%s224 + $0x47] sm:$0xfe] %v6138
      %6207 = vst [vmem:[%s224 + $0x4f] sm:$0xff] %v6139
      %6208 = vst [vmem:[%s224 + $0x57] sm:$0xff] %v6140
      %6209 = vst [vmem:[%s224 + $0x5f] sm:$0x1] %v6141
      %6210 = vst [vmem:[%s224 + $0x5f] sm:$0xfe] %v6142
      %6211 = vst [vmem:[%s224 + $0x67] sm:$0xff] %v6143
      %6212 = vst [vmem:[%s224 + $0x6f] sm:$0xff] %v6144
      %6213 = vst [vmem:[%s224 + $0x77] sm:$0x1] %v6145
      %6214 = vst [vmem:[%s224 + $0x77] sm:$0xfe] %v6146
      %6215 = vst [vmem:[%s224 + $0x7f] sm:$0xff] %v6147
      %6216 = vst [vmem:[%s224 + $0x87] sm:$0xff] %v6148
      %6217 = vst [vmem:[%s224 + $0x8f] sm:$0x1] %v6149
      %6218 = vst [vmem:[%s224 + $0x8f] sm:$0xfe] %v6150
      %6219 = vst [vmem:[%s224 + $0x97] sm:$0xff] %v6151
      %6220 = vst [vmem:[%s224 + $0x9f] sm:$0xff] %v6152
      %6221 = vst [vmem:[%s224 + $0xa7] sm:$0x1] %v6153
      %6222 = vst [vmem:[%s224 + $0xa7] sm:$0xfe] %v6154
      %6223 = vst [vmem:[%s224 + $0xaf] sm:$0xff] %v6155
      %6224 = vst [vmem:[%s224 + $0xb7] sm:$0xff] %v6156
      %6225 = vst [vmem:[%s224 + $0xbf] sm:$0x1] %v6157
      %6226 = vst [vmem:[%s224 + $0xbf] sm:$0xfe] %v6158
      %6227 = vst [vmem:[%s224 + $0xc7] sm:$0xff] %v6159
      %6228 = vst [vmem:[%s224 + $0xcf] sm:$0xff] %v6160
      %6229 = vst [vmem:[%s224 + $0xd7] sm:$0x1] %v6161
      %6230 = vst [vmem:[%s224 + $0xd7] sm:$0xfe] %v6162
      %6231 = vst [vmem:[%s224 + $0xdf] sm:$0xff] %v6163
      %6232 = vst [vmem:[%s224 + $0xe7] sm:$0xff] %v6164
      %6233 = vst [vmem:[%s224 + $0xef] sm:$0x1] %v6165
      %6234 = vst [vmem:[%s224 + $0xef] sm:$0xfe] %v6166
      %6235 = vst [vmem:[%s224 + $0xf7] sm:$0xff] %v6167
      %6236 = vst [vmem:[%s224 + $0xff] sm:$0xff] %v6168
      %6237 = vst [vmem:[%s224 + $0x107] sm:$0x1] %v6169
      %6238 = vst [vmem:[%s224 + $0x107] sm:$0xfe] %v6170
      %6239 = vst [vmem:[%s224 + $0x10f] sm:$0xff] %v6171
      %6240 = vst [vmem:[%s224 + $0x117] sm:$0xff] %v6172
      %6241 = vst [vmem:[%s224 + $0x11f] sm:$0x1] %v6173
      %6242 = vst [vmem:[%s224 + $0x11f] sm:$0xfe] %v6174
      %6243 = vst [vmem:[%s224 + $0x127] sm:$0xff] %v6175
      %6244 = vst [vmem:[%s224 + $0x12f] sm:$0xff] %v6176
      %6245 = vst [vmem:[%s224 + $0x137] sm:$0x1] %v6177
      %6246 = vst [vmem:[%s224 + $0x137] sm:$0xfe] %v6178
      %6247 = vst [vmem:[%s224 + $0x13f] sm:$0xff] %v6179
      %6248 = vst [vmem:[%s224 + $0x147] sm:$0xff] %v6180
      %6249 = vst [vmem:[%s224 + $0x14f] sm:$0x1] %v6181
      %6250 = vst [vmem:[%s224 + $0x14f] sm:$0xfe] %v6182
      %6251 = vst [vmem:[%s224 + $0x157] sm:$0xff] %v6183
      %6252 = vst [vmem:[%s224 + $0x15f] sm:$0xff] %v6184
      %6253 = vst [vmem:[%s224 + $0x167] sm:$0x1] %v6185
      %6254 = vst [vmem:[%s224 + $0x167] sm:$0xfe] %v6186
      %6255 = vst [vmem:[%s224 + $0x16f] sm:$0xff] %v6187
      %6256 = vst [vmem:[%s224 + $0x177] sm:$0xff] %v6188
      %6257 = vst [vmem:[%s224 + $0x17f] sm:$0x1] %v6189
      %6258 = vst [vmem:[%s224 + $0x17f] sm:$0xfe] %v6190
      %6259 = vst [vmem:[%s224 + $0x187] sm:$0xff] %v6191
      %6260 = vst [vmem:[%s224 + $0x18f] sm:$0xff] %v6192
      %6261 = vst [vmem:[%s224 + $0x197] sm:$0x1] %v6193
      %v6262 = vld [vmem:[%s5268 + $0x8] sm:$0xfe]
      %v6263 = vld [vmem:[%s5268 + $0x88] sm:$0xff]
      %v6264 = vld [vmem:[%s5268 + $0x108] sm:$0xff]
      %v6265 = vld [vmem:[%s5268 + $0x188] sm:$0x1]
      %v6266 = vld [vmem:[%s5268 + $0x208] sm:$0xfe]
      %v6267 = vld [vmem:[%s5268 + $0x288] sm:$0xff]
      %v6268 = vld [vmem:[%s5268 + $0x308] sm:$0xff]
      %v6269 = vld [vmem:[%s5268 + $0x388] sm:$0x1]
      %v6270 = vld [vmem:[%s5268 + $0x408] sm:$0xfe]
      %v6271 = vld [vmem:[%s5268 + $0x488] sm:$0xff]
      %v6272 = vld [vmem:[%s5268 + $0x508] sm:$0xff]
      %v6273 = vld [vmem:[%s5268 + $0x588] sm:$0x1]
      %v6274 = vld [vmem:[%s5268 + $0x608] sm:$0xfe]
      %v6275 = vld [vmem:[%s5268 + $0x688] sm:$0xff]
      %v6276 = vld [vmem:[%s5268 + $0x708] sm:$0xff]
      %v6277 = vld [vmem:[%s5268 + $0x788] sm:$0x1]
      %v6278 = vld [vmem:[%s5268 + $0x808] sm:$0xfe]
      %v6279 = vld [vmem:[%s5268 + $0x888] sm:$0xff]
      %v6280 = vld [vmem:[%s5268 + $0x908] sm:$0xff]
      %v6281 = vld [vmem:[%s5268 + $0x988] sm:$0x1]
      %v6282 = vld [vmem:[%s5268 + $0xa08] sm:$0xfe]
      %v6283 = vld [vmem:[%s5268 + $0xa88] sm:$0xff]
      %v6284 = vld [vmem:[%s5268 + $0xb08] sm:$0xff]
      %v6285 = vld [vmem:[%s5268 + $0xb88] sm:$0x1]
      %v6286 = vld [vmem:[%s5268 + $0xc08] sm:$0xfe]
      %v6287 = vld [vmem:[%s5268 + $0xc88] sm:$0xff]
      %v6288 = vld [vmem:[%s5268 + $0xd08] sm:$0xff]
      %v6289 = vld [vmem:[%s5268 + $0xd88] sm:$0x1]
      %v6290 = vld [vmem:[%s5268 + $0xe08] sm:$0xfe]
      %v6291 = vld [vmem:[%s5268 + $0xe88] sm:$0xff]
      %v6292 = vld [vmem:[%s5268 + $0xf08] sm:$0xff]
      %v6293 = vld [vmem:[%s5268 + $0xf88] sm:$0x1]
      %v6294 = vld [vmem:[%s5268 + $0x1008] sm:$0xfe]
      %v6295 = vld [vmem:[%s5268 + $0x1088] sm:$0xff]
      %v6296 = vld [vmem:[%s5268 + $0x1108] sm:$0xff]
      %v6297 = vld [vmem:[%s5268 + $0x1188] sm:$0x1]
      %v6298 = vld [vmem:[%s5268 + $0x1208] sm:$0xfe]
      %v6299 = vld [vmem:[%s5268 + $0x1288] sm:$0xff]
      %v6300 = vld [vmem:[%s5268 + $0x1308] sm:$0xff]
      %v6301 = vld [vmem:[%s5268 + $0x1388] sm:$0x1]
      %v6302 = vld [vmem:[%s5268 + $0x1408] sm:$0xfe]
      %v6303 = vld [vmem:[%s5268 + $0x1488] sm:$0xff]
      %v6304 = vld [vmem:[%s5268 + $0x1508] sm:$0xff]
      %v6305 = vld [vmem:[%s5268 + $0x1588] sm:$0x1]
      %v6306 = vld [vmem:[%s5268 + $0x1608] sm:$0xfe]
      %v6307 = vld [vmem:[%s5268 + $0x1688] sm:$0xff]
      %v6308 = vld [vmem:[%s5268 + $0x1708] sm:$0xff]
      %v6309 = vld [vmem:[%s5268 + $0x1788] sm:$0x1]
      %v6310 = vld [vmem:[%s5268 + $0x1808] sm:$0xfe]
      %v6311 = vld [vmem:[%s5268 + $0x1888] sm:$0xff]
      %v6312 = vld [vmem:[%s5268 + $0x1908] sm:$0xff]
      %v6313 = vld [vmem:[%s5268 + $0x1988] sm:$0x1]
      %v6314 = vld [vmem:[%s5268 + $0x1a08] sm:$0xfe]
      %v6315 = vld [vmem:[%s5268 + $0x1a88] sm:$0xff]
      %v6316 = vld [vmem:[%s5268 + $0x1b08] sm:$0xff]
      %v6317 = vld [vmem:[%s5268 + $0x1b88] sm:$0x1]
      %v6318 = vld [vmem:[%s5268 + $0x1c08] sm:$0xfe]
      %v6319 = vld [vmem:[%s5268 + $0x1c88] sm:$0xff]
      %v6320 = vld [vmem:[%s5268 + $0x1d08] sm:$0xff]
      %v6321 = vld [vmem:[%s5268 + $0x1d88] sm:$0x1]
      %v6322 = vld [vmem:[%s5268 + $0x1e08] sm:$0xfe]
      %v6323 = vld [vmem:[%s5268 + $0x1e88] sm:$0xff]
      %v6324 = vld [vmem:[%s5268 + $0x1f08] sm:$0xff]
      %v6325 = vld [vmem:[%s5268 + $0x1f88] sm:$0x1]
      %v6326 = vld [vmem:[%s5268 + $0x2008] sm:$0xfe]
      %v6327 = vld [vmem:[%s5268 + $0x2088] sm:$0xff]
      %v6328 = vld [vmem:[%s5268 + $0x2108] sm:$0xff]
      %v6329 = vld [vmem:[%s5268 + $0x2188] sm:$0x1]
      %v6330 = vld [vmem:[%s5268 + $0x18] sm:$0xff]
      %v6331 = vld [vmem:[%s5268 + $0x98] sm:$0xff]
      %v6332 = vld [vmem:[%s5268 + $0x118] sm:$0xff]
      %v6333 = vld [vmem:[%s5268 + $0x218] sm:$0xff]
      %v6334 = vld [vmem:[%s5268 + $0x298] sm:$0xff]
      %v6335 = vld [vmem:[%s5268 + $0x318] sm:$0xff]
      %v6336 = vld [vmem:[%s5268 + $0x418] sm:$0xff]
      %v6337 = vld [vmem:[%s5268 + $0x498] sm:$0xff]
      %v6338 = vld [vmem:[%s5268 + $0x518] sm:$0xff]
      %v6339 = vld [vmem:[%s5268 + $0x618] sm:$0xff]
      %v6340 = vld [vmem:[%s5268 + $0x698] sm:$0xff]
      %v6341 = vld [vmem:[%s5268 + $0x718] sm:$0xff]
      %v6342 = vld [vmem:[%s5268 + $0x818] sm:$0xff]
      %v6343 = vld [vmem:[%s5268 + $0x898] sm:$0xff]
      %v6344 = vld [vmem:[%s5268 + $0x918] sm:$0xff]
      %v6345 = vld [vmem:[%s5268 + $0xa18] sm:$0xff]
      %v6346 = vld [vmem:[%s5268 + $0xa98] sm:$0xff]
      %v6347 = vld [vmem:[%s5268 + $0xb18] sm:$0xff]
      %v6348 = vld [vmem:[%s5268 + $0xc18] sm:$0xff]
      %v6349 = vld [vmem:[%s5268 + $0xc98] sm:$0xff]
      %v6350 = vld [vmem:[%s5268 + $0xd18] sm:$0xff]
      %v6351 = vld [vmem:[%s5268 + $0xe18] sm:$0xff]
      %v6352 = vld [vmem:[%s5268 + $0xe98] sm:$0xff]
      %v6353 = vld [vmem:[%s5268 + $0xf18] sm:$0xff]
      %v6354 = vld [vmem:[%s5268 + $0x1018] sm:$0xff]
      %v6355 = vld [vmem:[%s5268 + $0x1098] sm:$0xff]
      %v6356 = vld [vmem:[%s5268 + $0x1118] sm:$0xff]
      %v6357 = vld [vmem:[%s5268 + $0x1218] sm:$0xff]
      %v6358 = vld [vmem:[%s5268 + $0x1298] sm:$0xff]
      %v6359 = vld [vmem:[%s5268 + $0x1318] sm:$0xff]
      %v6360 = vld [vmem:[%s5268 + $0x1418] sm:$0xff]
      %v6361 = vld [vmem:[%s5268 + $0x1498] sm:$0xff]
      %v6362 = vld [vmem:[%s5268 + $0x1518] sm:$0xff]
      %v6363 = vld [vmem:[%s5268 + $0x1618] sm:$0xff]
      %v6364 = vld [vmem:[%s5268 + $0x1698] sm:$0xff]
      %v6365 = vld [vmem:[%s5268 + $0x1718] sm:$0xff]
      %v6366 = vld [vmem:[%s5268 + $0x1818] sm:$0xff]
      %v6367 = vld [vmem:[%s5268 + $0x1898] sm:$0xff]
      %v6368 = vld [vmem:[%s5268 + $0x1918] sm:$0xff]
      %v6369 = vld [vmem:[%s5268 + $0x1a18] sm:$0xff]
      %v6370 = vld [vmem:[%s5268 + $0x1a98] sm:$0xff]
      %v6371 = vld [vmem:[%s5268 + $0x1b18] sm:$0xff]
      %v6372 = vld [vmem:[%s5268 + $0x1c18] sm:$0xff]
      %v6373 = vld [vmem:[%s5268 + $0x1c98] sm:$0xff]
      %v6374 = vld [vmem:[%s5268 + $0x1d18] sm:$0xff]
      %v6375 = vld [vmem:[%s5268 + $0x1e18] sm:$0xff]
      %v6376 = vld [vmem:[%s5268 + $0x1e98] sm:$0xff]
      %v6377 = vld [vmem:[%s5268 + $0x1f18] sm:$0xff]
      %v6378 = vld [vmem:[%s5268 + $0x2018] sm:$0xff]
      %v6379 = vld [vmem:[%s5268 + $0x2098] sm:$0xff]
      %v6380 = vld [vmem:[%s5268 + $0x2118] sm:$0xff]
      %v6432 = vrot.slane %v6330, 7
      %v6433 = vrot.slane %v6331, 7
      %v6434 = vsel %vm5439, %v6432, %v6433
      %v6435 = vrot.slane %v6332, 7
      %v6436 = vsel %vm5439, %v6433, %v6435
      %v6437 = vrot.slane %v6333, 7
      %v6438 = vrot.slane %v6334, 7
      %v6439 = vsel %vm5439, %v6437, %v6438
      %v6440 = vrot.slane %v6335, 7
      %v6441 = vsel %vm5439, %v6438, %v6440
      %v6442 = vrot.slane %v6336, 7
      %v6443 = vrot.slane %v6337, 7
      %v6444 = vsel %vm5439, %v6442, %v6443
      %v6445 = vrot.slane %v6338, 7
      %v6446 = vsel %vm5439, %v6443, %v6445
      %v6447 = vrot.slane %v6339, 7
      %v6448 = vrot.slane %v6340, 7
      %v6449 = vsel %vm5439, %v6447, %v6448
      %v6450 = vrot.slane %v6341, 7
      %v6451 = vsel %vm5439, %v6448, %v6450
      %v6452 = vrot.slane %v6342, 7
      %v6453 = vrot.slane %v6343, 7
      %v6454 = vsel %vm5439, %v6452, %v6453
      %v6455 = vrot.slane %v6344, 7
      %v6456 = vsel %vm5439, %v6453, %v6455
      %v6457 = vrot.slane %v6345, 7
      %v6458 = vrot.slane %v6346, 7
      %v6459 = vsel %vm5439, %v6457, %v6458
      %v6460 = vrot.slane %v6347, 7
      %v6461 = vsel %vm5439, %v6458, %v6460
      %v6462 = vrot.slane %v6348, 7
      %v6463 = vrot.slane %v6349, 7
      %v6464 = vsel %vm5439, %v6462, %v6463
      %v6465 = vrot.slane %v6350, 7
      %v6466 = vsel %vm5439, %v6463, %v6465
      %v6467 = vrot.slane %v6351, 7
      %v6468 = vrot.slane %v6352, 7
      %v6469 = vsel %vm5439, %v6467, %v6468
      %v6470 = vrot.slane %v6353, 7
      %v6471 = vsel %vm5439, %v6468, %v6470
      %v6472 = vrot.slane %v6354, 7
      %v6473 = vrot.slane %v6355, 7
      %v6474 = vsel %vm5439, %v6472, %v6473
      %v6475 = vrot.slane %v6356, 7
      %v6476 = vsel %vm5439, %v6473, %v6475
      %v6477 = vrot.slane %v6357, 7
      %v6478 = vrot.slane %v6358, 7
      %v6479 = vsel %vm5439, %v6477, %v6478
      %v6480 = vrot.slane %v6359, 7
      %v6481 = vsel %vm5439, %v6478, %v6480
      %v6482 = vrot.slane %v6360, 7
      %v6483 = vrot.slane %v6361, 7
      %v6484 = vsel %vm5439, %v6482, %v6483
      %v6485 = vrot.slane %v6362, 7
      %v6486 = vsel %vm5439, %v6483, %v6485
      %v6487 = vrot.slane %v6363, 7
      %v6488 = vrot.slane %v6364, 7
      %v6489 = vsel %vm5439, %v6487, %v6488
      %v6490 = vrot.slane %v6365, 7
      %v6491 = vsel %vm5439, %v6488, %v6490
      %v6492 = vrot.slane %v6366, 7
      %v6493 = vrot.slane %v6367, 7
      %v6494 = vsel %vm5439, %v6492, %v6493
      %v6495 = vrot.slane %v6368, 7
      %v6496 = vsel %vm5439, %v6493, %v6495
      %v6497 = vrot.slane %v6369, 7
      %v6498 = vrot.slane %v6370, 7
      %v6499 = vsel %vm5439, %v6497, %v6498
      %v6500 = vrot.slane %v6371, 7
      %v6501 = vsel %vm5439, %v6498, %v6500
      %v6502 = vrot.slane %v6372, 7
      %v6503 = vrot.slane %v6373, 7
      %v6504 = vsel %vm5439, %v6502, %v6503
      %v6505 = vrot.slane %v6374, 7
      %v6506 = vsel %vm5439, %v6503, %v6505
      %v6507 = vrot.slane %v6375, 7
      %v6508 = vrot.slane %v6376, 7
      %v6509 = vsel %vm5439, %v6507, %v6508
      %v6510 = vrot.slane %v6377, 7
      %v6511 = vsel %vm5439, %v6508, %v6510
      %v6512 = vrot.slane %v6378, 7
      %v6513 = vrot.slane %v6379, 7
      %v6514 = vsel %vm5439, %v6512, %v6513
      %v6515 = vrot.slane %v6380, 7
      %v6516 = vsel %vm5439, %v6513, %v6515
      %v6585 = vadd.f32 %v6262, %v6432
      %v6586 = vadd.f32 %v6263, %v6434
      %v6587 = vadd.f32 %v6264, %v6436
      %v6588 = vadd.f32 %v6265, %v6435
      %v6589 = vadd.f32 %v6266, %v6437
      %v6590 = vadd.f32 %v6267, %v6439
      %v6591 = vadd.f32 %v6268, %v6441
      %v6592 = vadd.f32 %v6269, %v6440
      %v6593 = vadd.f32 %v6270, %v6442
      %v6594 = vadd.f32 %v6271, %v6444
      %v6595 = vadd.f32 %v6272, %v6446
      %v6596 = vadd.f32 %v6273, %v6445
      %v6597 = vadd.f32 %v6274, %v6447
      %v6598 = vadd.f32 %v6275, %v6449
      %v6599 = vadd.f32 %v6276, %v6451
      %v6600 = vadd.f32 %v6277, %v6450
      %v6601 = vadd.f32 %v6278, %v6452
      %v6602 = vadd.f32 %v6279, %v6454
      %v6603 = vadd.f32 %v6280, %v6456
      %v6604 = vadd.f32 %v6281, %v6455
      %v6605 = vadd.f32 %v6282, %v6457
      %v6606 = vadd.f32 %v6283, %v6459
      %v6607 = vadd.f32 %v6284, %v6461
      %v6608 = vadd.f32 %v6285, %v6460
      %v6609 = vadd.f32 %v6286, %v6462
      %v6610 = vadd.f32 %v6287, %v6464
      %v6611 = vadd.f32 %v6288, %v6466
      %v6612 = vadd.f32 %v6289, %v6465
      %v6613 = vadd.f32 %v6290, %v6467
      %v6614 = vadd.f32 %v6291, %v6469
      %v6615 = vadd.f32 %v6292, %v6471
      %v6616 = vadd.f32 %v6293, %v6470
      %v6617 = vadd.f32 %v6294, %v6472
      %v6618 = vadd.f32 %v6295, %v6474
      %v6619 = vadd.f32 %v6296, %v6476
      %v6620 = vadd.f32 %v6297, %v6475
      %v6621 = vadd.f32 %v6298, %v6477
      %v6622 = vadd.f32 %v6299, %v6479
      %v6623 = vadd.f32 %v6300, %v6481
      %v6624 = vadd.f32 %v6301, %v6480
      %v6625 = vadd.f32 %v6302, %v6482
      %v6626 = vadd.f32 %v6303, %v6484
      %v6627 = vadd.f32 %v6304, %v6486
      %v6628 = vadd.f32 %v6305, %v6485
      %v6629 = vadd.f32 %v6306, %v6487
      %v6630 = vadd.f32 %v6307, %v6489
      %v6631 = vadd.f32 %v6308, %v6491
      %v6632 = vadd.f32 %v6309, %v6490
      %v6633 = vadd.f32 %v6310, %v6492
      %v6634 = vadd.f32 %v6311, %v6494
      %v6635 = vadd.f32 %v6312, %v6496
      %v6636 = vadd.f32 %v6313, %v6495
      %v6637 = vadd.f32 %v6314, %v6497
      %v6638 = vadd.f32 %v6315, %v6499
      %v6639 = vadd.f32 %v6316, %v6501
      %v6640 = vadd.f32 %v6317, %v6500
      %v6641 = vadd.f32 %v6318, %v6502
      %v6642 = vadd.f32 %v6319, %v6504
      %v6643 = vadd.f32 %v6320, %v6506
      %v6644 = vadd.f32 %v6321, %v6505
      %v6645 = vadd.f32 %v6322, %v6507
      %v6646 = vadd.f32 %v6323, %v6509
      %v6647 = vadd.f32 %v6324, %v6511
      %v6648 = vadd.f32 %v6325, %v6510
      %v6649 = vadd.f32 %v6326, %v6512
      %v6650 = vadd.f32 %v6327, %v6514
      %v6651 = vadd.f32 %v6328, %v6516
      %v6652 = vadd.f32 %v6329, %v6515
      %v6653 = vld [vmem:[#allocation2 + $0x48] sm:$0xfe]
      %v6654 = vld [vmem:[#allocation2 + $0xc8] sm:$0xff]
      %v6655 = vld [vmem:[#allocation2 + $0x148] sm:$0xff]
      %v6656 = vld [vmem:[#allocation2 + $0x1c8] sm:$0x1]
      %v6657 = vld [vmem:[#allocation2 + $0x248] sm:$0xfe]
      %v6658 = vld [vmem:[#allocation2 + $0x2c8] sm:$0xff]
      %v6659 = vld [vmem:[#allocation2 + $0x348] sm:$0xff]
      %v6660 = vld [vmem:[#allocation2 + $0x3c8] sm:$0x1]
      %v6661 = vld [vmem:[#allocation2 + $0x448] sm:$0xfe]
      %v6662 = vld [vmem:[#allocation2 + $0x4c8] sm:$0xff]
      %v6663 = vld [vmem:[#allocation2 + $0x548] sm:$0xff]
      %v6664 = vld [vmem:[#allocation2 + $0x5c8] sm:$0x1]
      %v6665 = vld [vmem:[#allocation2 + $0x648] sm:$0xfe]
      %v6666 = vld [vmem:[#allocation2 + $0x6c8] sm:$0xff]
      %v6667 = vld [vmem:[#allocation2 + $0x748] sm:$0xff]
      %v6668 = vld [vmem:[#allocation2 + $0x7c8] sm:$0x1]
      %v6669 = vld [vmem:[#allocation2 + $0x848] sm:$0xfe]
      %v6670 = vld [vmem:[#allocation2 + $0x8c8] sm:$0xff]
      %v6671 = vld [vmem:[#allocation2 + $0x948] sm:$0xff]
      %v6672 = vld [vmem:[#allocation2 + $0x9c8] sm:$0x1]
      %v6673 = vld [vmem:[#allocation2 + $0xa48] sm:$0xfe]
      %v6674 = vld [vmem:[#allocation2 + $0xac8] sm:$0xff]
      %v6675 = vld [vmem:[#allocation2 + $0xb48] sm:$0xff]
      %v6676 = vld [vmem:[#allocation2 + $0xbc8] sm:$0x1]
      %v6677 = vld [vmem:[#allocation2 + $0xc48] sm:$0xfe]
      %v6678 = vld [vmem:[#allocation2 + $0xcc8] sm:$0xff]
      %v6679 = vld [vmem:[#allocation2 + $0xd48] sm:$0xff]
      %v6680 = vld [vmem:[#allocation2 + $0xdc8] sm:$0x1]
      %v6681 = vld [vmem:[#allocation2 + $0xe48] sm:$0xfe]
      %v6682 = vld [vmem:[#allocation2 + $0xec8] sm:$0xff]
      %v6683 = vld [vmem:[#allocation2 + $0xf48] sm:$0xff]
      %v6684 = vld [vmem:[#allocation2 + $0xfc8] sm:$0x1]
      %v6685 = vld [vmem:[#allocation2 + $0x1048] sm:$0xfe]
      %v6686 = vld [vmem:[#allocation2 + $0x10c8] sm:$0xff]
      %v6687 = vld [vmem:[#allocation2 + $0x1148] sm:$0xff]
      %v6688 = vld [vmem:[#allocation2 + $0x11c8] sm:$0x1]
      %v6689 = vld [vmem:[#allocation2 + $0x1248] sm:$0xfe]
      %v6690 = vld [vmem:[#allocation2 + $0x12c8] sm:$0xff]
      %v6691 = vld [vmem:[#allocation2 + $0x1348] sm:$0xff]
      %v6692 = vld [vmem:[#allocation2 + $0x13c8] sm:$0x1]
      %v6693 = vld [vmem:[#allocation2 + $0x1448] sm:$0xfe]
      %v6694 = vld [vmem:[#allocation2 + $0x14c8] sm:$0xff]
      %v6695 = vld [vmem:[#allocation2 + $0x1548] sm:$0xff]
      %v6696 = vld [vmem:[#allocation2 + $0x15c8] sm:$0x1]
      %v6697 = vld [vmem:[#allocation2 + $0x1648] sm:$0xfe]
      %v6698 = vld [vmem:[#allocation2 + $0x16c8] sm:$0xff]
      %v6699 = vld [vmem:[#allocation2 + $0x1748] sm:$0xff]
      %v6700 = vld [vmem:[#allocation2 + $0x17c8] sm:$0x1]
      %v6701 = vld [vmem:[#allocation2 + $0x1848] sm:$0xfe]
      %v6702 = vld [vmem:[#allocation2 + $0x18c8] sm:$0xff]
      %v6703 = vld [vmem:[#allocation2 + $0x1948] sm:$0xff]
      %v6704 = vld [vmem:[#allocation2 + $0x19c8] sm:$0x1]
      %v6705 = vld [vmem:[#allocation2 + $0x1a48] sm:$0xfe]
      %v6706 = vld [vmem:[#allocation2 + $0x1ac8] sm:$0xff]
      %v6707 = vld [vmem:[#allocation2 + $0x1b48] sm:$0xff]
      %v6708 = vld [vmem:[#allocation2 + $0x1bc8] sm:$0x1]
      %v6709 = vld [vmem:[#allocation2 + $0x1c48] sm:$0xfe]
      %v6710 = vld [vmem:[#allocation2 + $0x1cc8] sm:$0xff]
      %v6711 = vld [vmem:[#allocation2 + $0x1d48] sm:$0xff]
      %v6712 = vld [vmem:[#allocation2 + $0x1dc8] sm:$0x1]
      %v6713 = vld [vmem:[#allocation2 + $0x1e48] sm:$0xfe]
      %v6714 = vld [vmem:[#allocation2 + $0x1ec8] sm:$0xff]
      %v6715 = vld [vmem:[#allocation2 + $0x1f48] sm:$0xff]
      %v6716 = vld [vmem:[#allocation2 + $0x1fc8] sm:$0x1]
      %v6717 = vld [vmem:[#allocation2 + $0x2048] sm:$0xfe]
      %v6718 = vld [vmem:[#allocation2 + $0x20c8] sm:$0xff]
      %v6719 = vld [vmem:[#allocation2 + $0x2148] sm:$0xff]
      %v6720 = vld [vmem:[#allocation2 + $0x21c8] sm:$0x1]
      %v6721 = vadd.f32 %v6585, %v6653
      %v6722 = vadd.f32 %v6586, %v6654
      %v6723 = vadd.f32 %v6587, %v6655
      %v6724 = vadd.f32 %v6588, %v6656
      %v6725 = vadd.f32 %v6589, %v6657
      %v6726 = vadd.f32 %v6590, %v6658
      %v6727 = vadd.f32 %v6591, %v6659
      %v6728 = vadd.f32 %v6592, %v6660
      %v6729 = vadd.f32 %v6593, %v6661
      %v6730 = vadd.f32 %v6594, %v6662
      %v6731 = vadd.f32 %v6595, %v6663
      %v6732 = vadd.f32 %v6596, %v6664
      %v6733 = vadd.f32 %v6597, %v6665
      %v6734 = vadd.f32 %v6598, %v6666
      %v6735 = vadd.f32 %v6599, %v6667
      %v6736 = vadd.f32 %v6600, %v6668
      %v6737 = vadd.f32 %v6601, %v6669
      %v6738 = vadd.f32 %v6602, %v6670
      %v6739 = vadd.f32 %v6603, %v6671
      %v6740 = vadd.f32 %v6604, %v6672
      %v6741 = vadd.f32 %v6605, %v6673
      %v6742 = vadd.f32 %v6606, %v6674
      %v6743 = vadd.f32 %v6607, %v6675
      %v6744 = vadd.f32 %v6608, %v6676
      %v6745 = vadd.f32 %v6609, %v6677
      %v6746 = vadd.f32 %v6610, %v6678
      %v6747 = vadd.f32 %v6611, %v6679
      %v6748 = vadd.f32 %v6612, %v6680
      %v6749 = vadd.f32 %v6613, %v6681
      %v6750 = vadd.f32 %v6614, %v6682
      %v6751 = vadd.f32 %v6615, %v6683
      %v6752 = vadd.f32 %v6616, %v6684
      %v6753 = vadd.f32 %v6617, %v6685
      %v6754 = vadd.f32 %v6618, %v6686
      %v6755 = vadd.f32 %v6619, %v6687
      %v6756 = vadd.f32 %v6620, %v6688
      %v6757 = vadd.f32 %v6621, %v6689
      %v6758 = vadd.f32 %v6622, %v6690
      %v6759 = vadd.f32 %v6623, %v6691
      %v6760 = vadd.f32 %v6624, %v6692
      %v6761 = vadd.f32 %v6625, %v6693
      %v6762 = vadd.f32 %v6626, %v6694
      %v6763 = vadd.f32 %v6627, %v6695
      %v6764 = vadd.f32 %v6628, %v6696
      %v6765 = vadd.f32 %v6629, %v6697
      %v6766 = vadd.f32 %v6630, %v6698
      %v6767 = vadd.f32 %v6631, %v6699
      %v6768 = vadd.f32 %v6632, %v6700
      %v6769 = vadd.f32 %v6633, %v6701
      %v6770 = vadd.f32 %v6634, %v6702
      %v6771 = vadd.f32 %v6635, %v6703
      %v6772 = vadd.f32 %v6636, %v6704
      %v6773 = vadd.f32 %v6637, %v6705
      %v6774 = vadd.f32 %v6638, %v6706
      %v6775 = vadd.f32 %v6639, %v6707
      %v6776 = vadd.f32 %v6640, %v6708
      %v6777 = vadd.f32 %v6641, %v6709
      %v6778 = vadd.f32 %v6642, %v6710
      %v6779 = vadd.f32 %v6643, %v6711
      %v6780 = vadd.f32 %v6644, %v6712
      %v6781 = vadd.f32 %v6645, %v6713
      %v6782 = vadd.f32 %v6646, %v6714
      %v6783 = vadd.f32 %v6647, %v6715
      %v6784 = vadd.f32 %v6648, %v6716
      %v6785 = vadd.f32 %v6649, %v6717
      %v6786 = vadd.f32 %v6650, %v6718
      %v6787 = vadd.f32 %v6651, %v6719
      %v6788 = vadd.f32 %v6652, %v6720
      %v6789 = vld [vmem:[#allocation2 + $0x58] sm:$0xff]
      %v6790 = vld [vmem:[#allocation2 + $0xd8] sm:$0xff]
      %v6791 = vld [vmem:[#allocation2 + $0x158] sm:$0xff]
      %v6792 = vld [vmem:[#allocation2 + $0x258] sm:$0xff]
      %v6793 = vld [vmem:[#allocation2 + $0x2d8] sm:$0xff]
      %v6794 = vld [vmem:[#allocation2 + $0x358] sm:$0xff]
      %v6795 = vld [vmem:[#allocation2 + $0x458] sm:$0xff]
      %v6796 = vld [vmem:[#allocation2 + $0x4d8] sm:$0xff]
      %v6797 = vld [vmem:[#allocation2 + $0x558] sm:$0xff]
      %v6798 = vld [vmem:[#allocation2 + $0x658] sm:$0xff]
      %v6799 = vld [vmem:[#allocation2 + $0x6d8] sm:$0xff]
      %v6800 = vld [vmem:[#allocation2 + $0x758] sm:$0xff]
      %v6801 = vld [vmem:[#allocation2 + $0x858] sm:$0xff]
      %v6802 = vld [vmem:[#allocation2 + $0x8d8] sm:$0xff]
      %v6803 = vld [vmem:[#allocation2 + $0x958] sm:$0xff]
      %v6804 = vld [vmem:[#allocation2 + $0xa58] sm:$0xff]
      %v6805 = vld [vmem:[#allocation2 + $0xad8] sm:$0xff]
      %v6806 = vld [vmem:[#allocation2 + $0xb58] sm:$0xff]
      %v6807 = vld [vmem:[#allocation2 + $0xc58] sm:$0xff]
      %v6808 = vld [vmem:[#allocation2 + $0xcd8] sm:$0xff]
      %v6809 = vld [vmem:[#allocation2 + $0xd58] sm:$0xff]
      %v6810 = vld [vmem:[#allocation2 + $0xe58] sm:$0xff]
      %v6811 = vld [vmem:[#allocation2 + $0xed8] sm:$0xff]
      %v6812 = vld [vmem:[#allocation2 + $0xf58] sm:$0xff]
      %v6813 = vld [vmem:[#allocation2 + $0x1058] sm:$0xff]
      %v6814 = vld [vmem:[#allocation2 + $0x10d8] sm:$0xff]
      %v6815 = vld [vmem:[#allocation2 + $0x1158] sm:$0xff]
      %v6816 = vld [vmem:[#allocation2 + $0x1258] sm:$0xff]
      %v6817 = vld [vmem:[#allocation2 + $0x12d8] sm:$0xff]
      %v6818 = vld [vmem:[#allocation2 + $0x1358] sm:$0xff]
      %v6819 = vld [vmem:[#allocation2 + $0x1458] sm:$0xff]
      %v6820 = vld [vmem:[#allocation2 + $0x14d8] sm:$0xff]
      %v6821 = vld [vmem:[#allocation2 + $0x1558] sm:$0xff]
      %v6822 = vld [vmem:[#allocation2 + $0x1658] sm:$0xff]
      %v6823 = vld [vmem:[#allocation2 + $0x16d8] sm:$0xff]
      %v6824 = vld [vmem:[#allocation2 + $0x1758] sm:$0xff]
      %v6825 = vld [vmem:[#allocation2 + $0x1858] sm:$0xff]
      %v6826 = vld [vmem:[#allocation2 + $0x18d8] sm:$0xff]
      %v6827 = vld [vmem:[#allocation2 + $0x1958] sm:$0xff]
      %v6828 = vld [vmem:[#allocation2 + $0x1a58] sm:$0xff]
      %v6829 = vld [vmem:[#allocation2 + $0x1ad8] sm:$0xff]
      %v6830 = vld [vmem:[#allocation2 + $0x1b58] sm:$0xff]
      %v6831 = vld [vmem:[#allocation2 + $0x1c58] sm:$0xff]
      %v6832 = vld [vmem:[#allocation2 + $0x1cd8] sm:$0xff]
      %v6833 = vld [vmem:[#allocation2 + $0x1d58] sm:$0xff]
      %v6834 = vld [vmem:[#allocation2 + $0x1e58] sm:$0xff]
      %v6835 = vld [vmem:[#allocation2 + $0x1ed8] sm:$0xff]
      %v6836 = vld [vmem:[#allocation2 + $0x1f58] sm:$0xff]
      %v6837 = vld [vmem:[#allocation2 + $0x2058] sm:$0xff]
      %v6838 = vld [vmem:[#allocation2 + $0x20d8] sm:$0xff]
      %v6839 = vld [vmem:[#allocation2 + $0x2158] sm:$0xff]
      %v6891 = vrot.slane %v6789, 7
      %v6892 = vrot.slane %v6790, 7
      %v6893 = vsel %vm5439, %v6891, %v6892
      %v6894 = vrot.slane %v6791, 7
      %v6895 = vsel %vm5439, %v6892, %v6894
      %v6896 = vrot.slane %v6792, 7
      %v6897 = vrot.slane %v6793, 7
      %v6898 = vsel %vm5439, %v6896, %v6897
      %v6899 = vrot.slane %v6794, 7
      %v6900 = vsel %vm5439, %v6897, %v6899
      %v6901 = vrot.slane %v6795, 7
      %v6902 = vrot.slane %v6796, 7
      %v6903 = vsel %vm5439, %v6901, %v6902
      %v6904 = vrot.slane %v6797, 7
      %v6905 = vsel %vm5439, %v6902, %v6904
      %v6906 = vrot.slane %v6798, 7
      %v6907 = vrot.slane %v6799, 7
      %v6908 = vsel %vm5439, %v6906, %v6907
      %v6909 = vrot.slane %v6800, 7
      %v6910 = vsel %vm5439, %v6907, %v6909
      %v6911 = vrot.slane %v6801, 7
      %v6912 = vrot.slane %v6802, 7
      %v6913 = vsel %vm5439, %v6911, %v6912
      %v6914 = vrot.slane %v6803, 7
      %v6915 = vsel %vm5439, %v6912, %v6914
      %v6916 = vrot.slane %v6804, 7
      %v6917 = vrot.slane %v6805, 7
      %v6918 = vsel %vm5439, %v6916, %v6917
      %v6919 = vrot.slane %v6806, 7
      %v6920 = vsel %vm5439, %v6917, %v6919
      %v6921 = vrot.slane %v6807, 7
      %v6922 = vrot.slane %v6808, 7
      %v6923 = vsel %vm5439, %v6921, %v6922
      %v6924 = vrot.slane %v6809, 7
      %v6925 = vsel %vm5439, %v6922, %v6924
      %v6926 = vrot.slane %v6810, 7
      %v6927 = vrot.slane %v6811, 7
      %v6928 = vsel %vm5439, %v6926, %v6927
      %v6929 = vrot.slane %v6812, 7
      %v6930 = vsel %vm5439, %v6927, %v6929
      %v6931 = vrot.slane %v6813, 7
      %v6932 = vrot.slane %v6814, 7
      %v6933 = vsel %vm5439, %v6931, %v6932
      %v6934 = vrot.slane %v6815, 7
      %v6935 = vsel %vm5439, %v6932, %v6934
      %v6936 = vrot.slane %v6816, 7
      %v6937 = vrot.slane %v6817, 7
      %v6938 = vsel %vm5439, %v6936, %v6937
      %v6939 = vrot.slane %v6818, 7
      %v6940 = vsel %vm5439, %v6937, %v6939
      %v6941 = vrot.slane %v6819, 7
      %v6942 = vrot.slane %v6820, 7
      %v6943 = vsel %vm5439, %v6941, %v6942
      %v6944 = vrot.slane %v6821, 7
      %v6945 = vsel %vm5439, %v6942, %v6944
      %v6946 = vrot.slane %v6822, 7
      %v6947 = vrot.slane %v6823, 7
      %v6948 = vsel %vm5439, %v6946, %v6947
      %v6949 = vrot.slane %v6824, 7
      %v6950 = vsel %vm5439, %v6947, %v6949
      %v6951 = vrot.slane %v6825, 7
      %v6952 = vrot.slane %v6826, 7
      %v6953 = vsel %vm5439, %v6951, %v6952
      %v6954 = vrot.slane %v6827, 7
      %v6955 = vsel %vm5439, %v6952, %v6954
      %v6956 = vrot.slane %v6828, 7
      %v6957 = vrot.slane %v6829, 7
      %v6958 = vsel %vm5439, %v6956, %v6957
      %v6959 = vrot.slane %v6830, 7
      %v6960 = vsel %vm5439, %v6957, %v6959
      %v6961 = vrot.slane %v6831, 7
      %v6962 = vrot.slane %v6832, 7
      %v6963 = vsel %vm5439, %v6961, %v6962
      %v6964 = vrot.slane %v6833, 7
      %v6965 = vsel %vm5439, %v6962, %v6964
      %v6966 = vrot.slane %v6834, 7
      %v6967 = vrot.slane %v6835, 7
      %v6968 = vsel %vm5439, %v6966, %v6967
      %v6969 = vrot.slane %v6836, 7
      %v6970 = vsel %vm5439, %v6967, %v6969
      %v6971 = vrot.slane %v6837, 7
      %v6972 = vrot.slane %v6838, 7
      %v6973 = vsel %vm5439, %v6971, %v6972
      %v6974 = vrot.slane %v6839, 7
      %v6975 = vsel %vm5439, %v6972, %v6974
      %v7044 = vadd.f32 %v6721, %v6891
      %v7045 = vadd.f32 %v6722, %v6893
      %v7046 = vadd.f32 %v6723, %v6895
      %v7047 = vadd.f32 %v6724, %v6894
      %v7048 = vadd.f32 %v6725, %v6896
      %v7049 = vadd.f32 %v6726, %v6898
      %v7050 = vadd.f32 %v6727, %v6900
      %v7051 = vadd.f32 %v6728, %v6899
      %v7052 = vadd.f32 %v6729, %v6901
      %v7053 = vadd.f32 %v6730, %v6903
      %v7054 = vadd.f32 %v6731, %v6905
      %v7055 = vadd.f32 %v6732, %v6904
      %v7056 = vadd.f32 %v6733, %v6906
      %v7057 = vadd.f32 %v6734, %v6908
      %v7058 = vadd.f32 %v6735, %v6910
      %v7059 = vadd.f32 %v6736, %v6909
      %v7060 = vadd.f32 %v6737, %v6911
      %v7061 = vadd.f32 %v6738, %v6913
      %v7062 = vadd.f32 %v6739, %v6915
      %v7063 = vadd.f32 %v6740, %v6914
      %v7064 = vadd.f32 %v6741, %v6916
      %v7065 = vadd.f32 %v6742, %v6918
      %v7066 = vadd.f32 %v6743, %v6920
      %v7067 = vadd.f32 %v6744, %v6919
      %v7068 = vadd.f32 %v6745, %v6921
      %v7069 = vadd.f32 %v6746, %v6923
      %v7070 = vadd.f32 %v6747, %v6925
      %v7071 = vadd.f32 %v6748, %v6924
      %v7072 = vadd.f32 %v6749, %v6926
      %v7073 = vadd.f32 %v6750, %v6928
      %v7074 = vadd.f32 %v6751, %v6930
      %v7075 = vadd.f32 %v6752, %v6929
      %v7076 = vadd.f32 %v6753, %v6931
      %v7077 = vadd.f32 %v6754, %v6933
      %v7078 = vadd.f32 %v6755, %v6935
      %v7079 = vadd.f32 %v6756, %v6934
      %v7080 = vadd.f32 %v6757, %v6936
      %v7081 = vadd.f32 %v6758, %v6938
      %v7082 = vadd.f32 %v6759, %v6940
      %v7083 = vadd.f32 %v6760, %v6939
      %v7084 = vadd.f32 %v6761, %v6941
      %v7085 = vadd.f32 %v6762, %v6943
      %v7086 = vadd.f32 %v6763, %v6945
      %v7087 = vadd.f32 %v6764, %v6944
      %v7088 = vadd.f32 %v6765, %v6946
      %v7089 = vadd.f32 %v6766, %v6948
      %v7090 = vadd.f32 %v6767, %v6950
      %v7091 = vadd.f32 %v6768, %v6949
      %v7092 = vadd.f32 %v6769, %v6951
      %v7093 = vadd.f32 %v6770, %v6953
      %v7094 = vadd.f32 %v6771, %v6955
      %v7095 = vadd.f32 %v6772, %v6954
      %v7096 = vadd.f32 %v6773, %v6956
      %v7097 = vadd.f32 %v6774, %v6958
      %v7098 = vadd.f32 %v6775, %v6960
      %v7099 = vadd.f32 %v6776, %v6959
      %v7100 = vadd.f32 %v6777, %v6961
      %v7101 = vadd.f32 %v6778, %v6963
      %v7102 = vadd.f32 %v6779, %v6965
      %v7103 = vadd.f32 %v6780, %v6964
      %v7104 = vadd.f32 %v6781, %v6966
      %v7105 = vadd.f32 %v6782, %v6968
      %v7106 = vadd.f32 %v6783, %v6970
      %v7107 = vadd.f32 %v6784, %v6969
      %v7108 = vadd.f32 %v6785, %v6971
      %v7109 = vadd.f32 %v6786, %v6973
      %v7110 = vadd.f32 %v6787, %v6975
      %v7111 = vadd.f32 %v6788, %v6974
      %v7112 = vadd.f32 %v7044, %v6124
      %v7113 = vadd.f32 %v7045, %v6124
      %v7114 = vadd.f32 %v7046, %v6124
      %v7115 = vadd.f32 %v7047, %v6124
      %v7116 = vadd.f32 %v7048, %v6124
      %v7117 = vadd.f32 %v7049, %v6124
      %v7118 = vadd.f32 %v7050, %v6124
      %v7119 = vadd.f32 %v7051, %v6124
      %v7120 = vadd.f32 %v7052, %v6124
      %v7121 = vadd.f32 %v7053, %v6124
      %v7122 = vadd.f32 %v7054, %v6124
      %v7123 = vadd.f32 %v7055, %v6124
      %v7124 = vadd.f32 %v7056, %v6124
      %v7125 = vadd.f32 %v7057, %v6124
      %v7126 = vadd.f32 %v7058, %v6124
      %v7127 = vadd.f32 %v7059, %v6124
      %v7128 = vadd.f32 %v7060, %v6124
      %v7129 = vadd.f32 %v7061, %v6124
      %v7130 = vadd.f32 %v7062, %v6124
      %v7131 = vadd.f32 %v7063, %v6124
      %v7132 = vadd.f32 %v7064, %v6124
      %v7133 = vadd.f32 %v7065, %v6124
      %v7134 = vadd.f32 %v7066, %v6124
      %v7135 = vadd.f32 %v7067, %v6124
      %v7136 = vadd.f32 %v7068, %v6124
      %v7137 = vadd.f32 %v7069, %v6124
      %v7138 = vadd.f32 %v7070, %v6124
      %v7139 = vadd.f32 %v7071, %v6124
      %v7140 = vadd.f32 %v7072, %v6124
      %v7141 = vadd.f32 %v7073, %v6124
      %v7142 = vadd.f32 %v7074, %v6124
      %v7143 = vadd.f32 %v7075, %v6124
      %v7144 = vadd.f32 %v7076, %v6124
      %v7145 = vadd.f32 %v7077, %v6124
      %v7146 = vadd.f32 %v7078, %v6124
      %v7147 = vadd.f32 %v7079, %v6124
      %v7148 = vadd.f32 %v7080, %v6124
      %v7149 = vadd.f32 %v7081, %v6124
      %v7150 = vadd.f32 %v7082, %v6124
      %v7151 = vadd.f32 %v7083, %v6124
      %v7152 = vadd.f32 %v7084, %v6124
      %v7153 = vadd.f32 %v7085, %v6124
      %v7154 = vadd.f32 %v7086, %v6124
      %v7155 = vadd.f32 %v7087, %v6124
      %v7156 = vadd.f32 %v7088, %v6124
      %v7157 = vadd.f32 %v7089, %v6124
      %v7158 = vadd.f32 %v7090, %v6124
      %v7159 = vadd.f32 %v7091, %v6124
      %v7160 = vadd.f32 %v7092, %v6124
      %v7161 = vadd.f32 %v7093, %v6124
      %v7162 = vadd.f32 %v7094, %v6124
      %v7163 = vadd.f32 %v7095, %v6124
      %v7164 = vadd.f32 %v7096, %v6124
      %v7165 = vadd.f32 %v7097, %v6124
      %v7166 = vadd.f32 %v7098, %v6124
      %v7167 = vadd.f32 %v7099, %v6124
      %v7168 = vadd.f32 %v7100, %v6124
      %v7169 = vadd.f32 %v7101, %v6124
      %v7170 = vadd.f32 %v7102, %v6124
      %v7171 = vadd.f32 %v7103, %v6124
      %v7172 = vadd.f32 %v7104, %v6124
      %v7173 = vadd.f32 %v7105, %v6124
      %v7174 = vadd.f32 %v7106, %v6124
      %v7175 = vadd.f32 %v7107, %v6124
      %v7176 = vadd.f32 %v7108, %v6124
      %v7177 = vadd.f32 %v7109, %v6124
      %v7178 = vadd.f32 %v7110, %v6124
      %v7179 = vadd.f32 %v7111, %v6124
      %s7180 = scalar_lea.vmem %s224, 408
      %7181 = vst [vmem:[%s7180 - $0x1] sm:$0xfe] %v7112
      %7182 = vst [vmem:[%s7180 + $0x7] sm:$0xff] %v7113
      %7183 = vst [vmem:[%s7180 + $0xf] sm:$0xff] %v7114
      %7184 = vst [vmem:[%s7180 + $0x17] sm:$0x1] %v7115
      %7185 = vst [vmem:[%s7180 + $0x17] sm:$0xfe] %v7116
      %7186 = vst [vmem:[%s7180 + $0x1f] sm:$0xff] %v7117
      %7187 = vst [vmem:[%s7180 + $0x27] sm:$0xff] %v7118
      %7188 = vst [vmem:[%s7180 + $0x2f] sm:$0x1] %v7119
      %7189 = vst [vmem:[%s7180 + $0x2f] sm:$0xfe] %v7120
      %7190 = vst [vmem:[%s7180 + $0x37] sm:$0xff] %v7121
      %7191 = vst [vmem:[%s7180 + $0x3f] sm:$0xff] %v7122
      %7192 = vst [vmem:[%s7180 + $0x47] sm:$0x1] %v7123
      %7193 = vst [vmem:[%s7180 + $0x47] sm:$0xfe] %v7124
      %7194 = vst [vmem:[%s7180 + $0x4f] sm:$0xff] %v7125
      %7195 = vst [vmem:[%s7180 + $0x57] sm:$0xff] %v7126
      %7196 = vst [vmem:[%s7180 + $0x5f] sm:$0x1] %v7127
      %7197 = vst [vmem:[%s7180 + $0x5f] sm:$0xfe] %v7128
      %7198 = vst [vmem:[%s7180 + $0x67] sm:$0xff] %v7129
      %7199 = vst [vmem:[%s7180 + $0x6f] sm:$0xff] %v7130
      %7200 = vst [vmem:[%s7180 + $0x77] sm:$0x1] %v7131
      %7201 = vst [vmem:[%s7180 + $0x77] sm:$0xfe] %v7132
      %7202 = vst [vmem:[%s7180 + $0x7f] sm:$0xff] %v7133
      %7203 = vst [vmem:[%s7180 + $0x87] sm:$0xff] %v7134
      %7204 = vst [vmem:[%s7180 + $0x8f] sm:$0x1] %v7135
      %7205 = vst [vmem:[%s7180 + $0x8f] sm:$0xfe] %v7136
      %7206 = vst [vmem:[%s7180 + $0x97] sm:$0xff] %v7137
      %7207 = vst [vmem:[%s7180 + $0x9f] sm:$0xff] %v7138
      %7208 = vst [vmem:[%s7180 + $0xa7] sm:$0x1] %v7139
      %7209 = vst [vmem:[%s7180 + $0xa7] sm:$0xfe] %v7140
      %7210 = vst [vmem:[%s7180 + $0xaf] sm:$0xff] %v7141
      %7211 = vst [vmem:[%s7180 + $0xb7] sm:$0xff] %v7142
      %7212 = vst [vmem:[%s7180 + $0xbf] sm:$0x1] %v7143
      %7213 = vst [vmem:[%s7180 + $0xbf] sm:$0xfe] %v7144
      %7214 = vst [vmem:[%s7180 + $0xc7] sm:$0xff] %v7145
      %7215 = vst [vmem:[%s7180 + $0xcf] sm:$0xff] %v7146
      %7216 = vst [vmem:[%s7180 + $0xd7] sm:$0x1] %v7147
      %7217 = vst [vmem:[%s7180 + $0xd7] sm:$0xfe] %v7148
      %7218 = vst [vmem:[%s7180 + $0xdf] sm:$0xff] %v7149
      %7219 = vst [vmem:[%s7180 + $0xe7] sm:$0xff] %v7150
      %7220 = vst [vmem:[%s7180 + $0xef] sm:$0x1] %v7151
      %7221 = vst [vmem:[%s7180 + $0xef] sm:$0xfe] %v7152
      %7222 = vst [vmem:[%s7180 + $0xf7] sm:$0xff] %v7153
      %7223 = vst [vmem:[%s7180 + $0xff] sm:$0xff] %v7154
      %7224 = vst [vmem:[%s7180 + $0x107] sm:$0x1] %v7155
      %7225 = vst [vmem:[%s7180 + $0x107] sm:$0xfe] %v7156
      %7226 = vst [vmem:[%s7180 + $0x10f] sm:$0xff] %v7157
      %7227 = vst [vmem:[%s7180 + $0x117] sm:$0xff] %v7158
      %7228 = vst [vmem:[%s7180 + $0x11f] sm:$0x1] %v7159
      %7229 = vst [vmem:[%s7180 + $0x11f] sm:$0xfe] %v7160
      %7230 = vst [vmem:[%s7180 + $0x127] sm:$0xff] %v7161
      %7231 = vst [vmem:[%s7180 + $0x12f] sm:$0xff] %v7162
      %7232 = vst [vmem:[%s7180 + $0x137] sm:$0x1] %v7163
      %7233 = vst [vmem:[%s7180 + $0x137] sm:$0xfe] %v7164
      %7234 = vst [vmem:[%s7180 + $0x13f] sm:$0xff] %v7165
      %7235 = vst [vmem:[%s7180 + $0x147] sm:$0xff] %v7166
      %7236 = vst [vmem:[%s7180 + $0x14f] sm:$0x1] %v7167
      %7237 = vst [vmem:[%s7180 + $0x14f] sm:$0xfe] %v7168
      %7238 = vst [vmem:[%s7180 + $0x157] sm:$0xff] %v7169
      %7239 = vst [vmem:[%s7180 + $0x15f] sm:$0xff] %v7170
      %7240 = vst [vmem:[%s7180 + $0x167] sm:$0x1] %v7171
      %7241 = vst [vmem:[%s7180 + $0x167] sm:$0xfe] %v7172
      %7242 = vst [vmem:[%s7180 + $0x16f] sm:$0xff] %v7173
      %7243 = vst [vmem:[%s7180 + $0x177] sm:$0xff] %v7174
      %7244 = vst [vmem:[%s7180 + $0x17f] sm:$0x1] %v7175
      %7245 = vst [vmem:[%s7180 + $0x17f] sm:$0xfe] %v7176
      %7246 = vst [vmem:[%s7180 + $0x187] sm:$0xff] %v7177
      %7247 = vst [vmem:[%s7180 + $0x18f] sm:$0xff] %v7178
      %7248 = vst [vmem:[%s7180 + $0x197] sm:$0x1] %v7179
      %v7249 = vld [vmem:[%s5268 + $0x20] sm:$0xfe]
      %v7250 = vld [vmem:[%s5268 + $0xa0] sm:$0xff]
      %v7251 = vld [vmem:[%s5268 + $0x120] sm:$0xff]
      %v7252 = vld [vmem:[%s5268 + $0x1a0] sm:$0x1]
      %v7253 = vld [vmem:[%s5268 + $0x220] sm:$0xfe]
      %v7254 = vld [vmem:[%s5268 + $0x2a0] sm:$0xff]
      %v7255 = vld [vmem:[%s5268 + $0x320] sm:$0xff]
      %v7256 = vld [vmem:[%s5268 + $0x3a0] sm:$0x1]
      %v7257 = vld [vmem:[%s5268 + $0x420] sm:$0xfe]
      %v7258 = vld [vmem:[%s5268 + $0x4a0] sm:$0xff]
      %v7259 = vld [vmem:[%s5268 + $0x520] sm:$0xff]
      %v7260 = vld [vmem:[%s5268 + $0x5a0] sm:$0x1]
      %v7261 = vld [vmem:[%s5268 + $0x620] sm:$0xfe]
      %v7262 = vld [vmem:[%s5268 + $0x6a0] sm:$0xff]
      %v7263 = vld [vmem:[%s5268 + $0x720] sm:$0xff]
      %v7264 = vld [vmem:[%s5268 + $0x7a0] sm:$0x1]
      %v7265 = vld [vmem:[%s5268 + $0x820] sm:$0xfe]
      %v7266 = vld [vmem:[%s5268 + $0x8a0] sm:$0xff]
      %v7267 = vld [vmem:[%s5268 + $0x920] sm:$0xff]
      %v7268 = vld [vmem:[%s5268 + $0x9a0] sm:$0x1]
      %v7269 = vld [vmem:[%s5268 + $0xa20] sm:$0xfe]
      %v7270 = vld [vmem:[%s5268 + $0xaa0] sm:$0xff]
      %v7271 = vld [vmem:[%s5268 + $0xb20] sm:$0xff]
      %v7272 = vld [vmem:[%s5268 + $0xba0] sm:$0x1]
      %v7273 = vld [vmem:[%s5268 + $0xc20] sm:$0xfe]
      %v7274 = vld [vmem:[%s5268 + $0xca0] sm:$0xff]
      %v7275 = vld [vmem:[%s5268 + $0xd20] sm:$0xff]
      %v7276 = vld [vmem:[%s5268 + $0xda0] sm:$0x1]
      %v7277 = vld [vmem:[%s5268 + $0xe20] sm:$0xfe]
      %v7278 = vld [vmem:[%s5268 + $0xea0] sm:$0xff]
      %v7279 = vld [vmem:[%s5268 + $0xf20] sm:$0xff]
      %v7280 = vld [vmem:[%s5268 + $0xfa0] sm:$0x1]
      %v7281 = vld [vmem:[%s5268 + $0x1020] sm:$0xfe]
      %v7282 = vld [vmem:[%s5268 + $0x10a0] sm:$0xff]
      %v7283 = vld [vmem:[%s5268 + $0x1120] sm:$0xff]
      %v7284 = vld [vmem:[%s5268 + $0x11a0] sm:$0x1]
      %v7285 = vld [vmem:[%s5268 + $0x1220] sm:$0xfe]
      %v7286 = vld [vmem:[%s5268 + $0x12a0] sm:$0xff]
      %v7287 = vld [vmem:[%s5268 + $0x1320] sm:$0xff]
      %v7288 = vld [vmem:[%s5268 + $0x13a0] sm:$0x1]
      %v7289 = vld [vmem:[%s5268 + $0x1420] sm:$0xfe]
      %v7290 = vld [vmem:[%s5268 + $0x14a0] sm:$0xff]
      %v7291 = vld [vmem:[%s5268 + $0x1520] sm:$0xff]
      %v7292 = vld [vmem:[%s5268 + $0x15a0] sm:$0x1]
      %v7293 = vld [vmem:[%s5268 + $0x1620] sm:$0xfe]
      %v7294 = vld [vmem:[%s5268 + $0x16a0] sm:$0xff]
      %v7295 = vld [vmem:[%s5268 + $0x1720] sm:$0xff]
      %v7296 = vld [vmem:[%s5268 + $0x17a0] sm:$0x1]
      %v7297 = vld [vmem:[%s5268 + $0x1820] sm:$0xfe]
      %v7298 = vld [vmem:[%s5268 + $0x18a0] sm:$0xff]
      %v7299 = vld [vmem:[%s5268 + $0x1920] sm:$0xff]
      %v7300 = vld [vmem:[%s5268 + $0x19a0] sm:$0x1]
      %v7301 = vld [vmem:[%s5268 + $0x1a20] sm:$0xfe]
      %v7302 = vld [vmem:[%s5268 + $0x1aa0] sm:$0xff]
      %v7303 = vld [vmem:[%s5268 + $0x1b20] sm:$0xff]
      %v7304 = vld [vmem:[%s5268 + $0x1ba0] sm:$0x1]
      %v7305 = vld [vmem:[%s5268 + $0x1c20] sm:$0xfe]
      %v7306 = vld [vmem:[%s5268 + $0x1ca0] sm:$0xff]
      %v7307 = vld [vmem:[%s5268 + $0x1d20] sm:$0xff]
      %v7308 = vld [vmem:[%s5268 + $0x1da0] sm:$0x1]
      %v7309 = vld [vmem:[%s5268 + $0x1e20] sm:$0xfe]
      %v7310 = vld [vmem:[%s5268 + $0x1ea0] sm:$0xff]
      %v7311 = vld [vmem:[%s5268 + $0x1f20] sm:$0xff]
      %v7312 = vld [vmem:[%s5268 + $0x1fa0] sm:$0x1]
      %v7313 = vld [vmem:[%s5268 + $0x2020] sm:$0xfe]
      %v7314 = vld [vmem:[%s5268 + $0x20a0] sm:$0xff]
      %v7315 = vld [vmem:[%s5268 + $0x2120] sm:$0xff]
      %v7316 = vld [vmem:[%s5268 + $0x21a0] sm:$0x1]
      %v7317 = vld [vmem:[%s5268 + $0x30] sm:$0xff]
      %v7318 = vld [vmem:[%s5268 + $0xb0] sm:$0xff]
      %v7319 = vld [vmem:[%s5268 + $0x130] sm:$0xff]
      %v7320 = vld [vmem:[%s5268 + $0x230] sm:$0xff]
      %v7321 = vld [vmem:[%s5268 + $0x2b0] sm:$0xff]
      %v7322 = vld [vmem:[%s5268 + $0x330] sm:$0xff]
      %v7323 = vld [vmem:[%s5268 + $0x430] sm:$0xff]
      %v7324 = vld [vmem:[%s5268 + $0x4b0] sm:$0xff]
      %v7325 = vld [vmem:[%s5268 + $0x530] sm:$0xff]
      %v7326 = vld [vmem:[%s5268 + $0x630] sm:$0xff]
      %v7327 = vld [vmem:[%s5268 + $0x6b0] sm:$0xff]
      %v7328 = vld [vmem:[%s5268 + $0x730] sm:$0xff]
      %v7329 = vld [vmem:[%s5268 + $0x830] sm:$0xff]
      %v7330 = vld [vmem:[%s5268 + $0x8b0] sm:$0xff]
      %v7331 = vld [vmem:[%s5268 + $0x930] sm:$0xff]
      %v7332 = vld [vmem:[%s5268 + $0xa30] sm:$0xff]
      %v7333 = vld [vmem:[%s5268 + $0xab0] sm:$0xff]
      %v7334 = vld [vmem:[%s5268 + $0xb30] sm:$0xff]
      %v7335 = vld [vmem:[%s5268 + $0xc30] sm:$0xff]
      %v7336 = vld [vmem:[%s5268 + $0xcb0] sm:$0xff]
      %v7337 = vld [vmem:[%s5268 + $0xd30] sm:$0xff]
      %v7338 = vld [vmem:[%s5268 + $0xe30] sm:$0xff]
      %v7339 = vld [vmem:[%s5268 + $0xeb0] sm:$0xff]
      %v7340 = vld [vmem:[%s5268 + $0xf30] sm:$0xff]
      %v7341 = vld [vmem:[%s5268 + $0x1030] sm:$0xff]
      %v7342 = vld [vmem:[%s5268 + $0x10b0] sm:$0xff]
      %v7343 = vld [vmem:[%s5268 + $0x1130] sm:$0xff]
      %v7344 = vld [vmem:[%s5268 + $0x1230] sm:$0xff]
      %v7345 = vld [vmem:[%s5268 + $0x12b0] sm:$0xff]
      %v7346 = vld [vmem:[%s5268 + $0x1330] sm:$0xff]
      %v7347 = vld [vmem:[%s5268 + $0x1430] sm:$0xff]
      %v7348 = vld [vmem:[%s5268 + $0x14b0] sm:$0xff]
      %v7349 = vld [vmem:[%s5268 + $0x1530] sm:$0xff]
      %v7350 = vld [vmem:[%s5268 + $0x1630] sm:$0xff]
      %v7351 = vld [vmem:[%s5268 + $0x16b0] sm:$0xff]
      %v7352 = vld [vmem:[%s5268 + $0x1730] sm:$0xff]
      %v7353 = vld [vmem:[%s5268 + $0x1830] sm:$0xff]
      %v7354 = vld [vmem:[%s5268 + $0x18b0] sm:$0xff]
      %v7355 = vld [vmem:[%s5268 + $0x1930] sm:$0xff]
      %v7356 = vld [vmem:[%s5268 + $0x1a30] sm:$0xff]
      %v7357 = vld [vmem:[%s5268 + $0x1ab0] sm:$0xff]
      %v7358 = vld [vmem:[%s5268 + $0x1b30] sm:$0xff]
      %v7359 = vld [vmem:[%s5268 + $0x1c30] sm:$0xff]
      %v7360 = vld [vmem:[%s5268 + $0x1cb0] sm:$0xff]
      %v7361 = vld [vmem:[%s5268 + $0x1d30] sm:$0xff]
      %v7362 = vld [vmem:[%s5268 + $0x1e30] sm:$0xff]
      %v7363 = vld [vmem:[%s5268 + $0x1eb0] sm:$0xff]
      %v7364 = vld [vmem:[%s5268 + $0x1f30] sm:$0xff]
      %v7365 = vld [vmem:[%s5268 + $0x2030] sm:$0xff]
      %v7366 = vld [vmem:[%s5268 + $0x20b0] sm:$0xff]
      %v7367 = vld [vmem:[%s5268 + $0x2130] sm:$0xff]
      %v7419 = vrot.slane %v7317, 7
      %v7420 = vrot.slane %v7318, 7
      %v7421 = vsel %vm5439, %v7419, %v7420
      %v7422 = vrot.slane %v7319, 7
      %v7423 = vsel %vm5439, %v7420, %v7422
      %v7424 = vrot.slane %v7320, 7
      %v7425 = vrot.slane %v7321, 7
      %v7426 = vsel %vm5439, %v7424, %v7425
      %v7427 = vrot.slane %v7322, 7
      %v7428 = vsel %vm5439, %v7425, %v7427
      %v7429 = vrot.slane %v7323, 7
      %v7430 = vrot.slane %v7324, 7
      %v7431 = vsel %vm5439, %v7429, %v7430
      %v7432 = vrot.slane %v7325, 7
      %v7433 = vsel %vm5439, %v7430, %v7432
      %v7434 = vrot.slane %v7326, 7
      %v7435 = vrot.slane %v7327, 7
      %v7436 = vsel %vm5439, %v7434, %v7435
      %v7437 = vrot.slane %v7328, 7
      %v7438 = vsel %vm5439, %v7435, %v7437
      %v7439 = vrot.slane %v7329, 7
      %v7440 = vrot.slane %v7330, 7
      %v7441 = vsel %vm5439, %v7439, %v7440
      %v7442 = vrot.slane %v7331, 7
      %v7443 = vsel %vm5439, %v7440, %v7442
      %v7444 = vrot.slane %v7332, 7
      %v7445 = vrot.slane %v7333, 7
      %v7446 = vsel %vm5439, %v7444, %v7445
      %v7447 = vrot.slane %v7334, 7
      %v7448 = vsel %vm5439, %v7445, %v7447
      %v7449 = vrot.slane %v7335, 7
      %v7450 = vrot.slane %v7336, 7
      %v7451 = vsel %vm5439, %v7449, %v7450
      %v7452 = vrot.slane %v7337, 7
      %v7453 = vsel %vm5439, %v7450, %v7452
      %v7454 = vrot.slane %v7338, 7
      %v7455 = vrot.slane %v7339, 7
      %v7456 = vsel %vm5439, %v7454, %v7455
      %v7457 = vrot.slane %v7340, 7
      %v7458 = vsel %vm5439, %v7455, %v7457
      %v7459 = vrot.slane %v7341, 7
      %v7460 = vrot.slane %v7342, 7
      %v7461 = vsel %vm5439, %v7459, %v7460
      %v7462 = vrot.slane %v7343, 7
      %v7463 = vsel %vm5439, %v7460, %v7462
      %v7464 = vrot.slane %v7344, 7
      %v7465 = vrot.slane %v7345, 7
      %v7466 = vsel %vm5439, %v7464, %v7465
      %v7467 = vrot.slane %v7346, 7
      %v7468 = vsel %vm5439, %v7465, %v7467
      %v7469 = vrot.slane %v7347, 7
      %v7470 = vrot.slane %v7348, 7
      %v7471 = vsel %vm5439, %v7469, %v7470
      %v7472 = vrot.slane %v7349, 7
      %v7473 = vsel %vm5439, %v7470, %v7472
      %v7474 = vrot.slane %v7350, 7
      %v7475 = vrot.slane %v7351, 7
      %v7476 = vsel %vm5439, %v7474, %v7475
      %v7477 = vrot.slane %v7352, 7
      %v7478 = vsel %vm5439, %v7475, %v7477
      %v7479 = vrot.slane %v7353, 7
      %v7480 = vrot.slane %v7354, 7
      %v7481 = vsel %vm5439, %v7479, %v7480
      %v7482 = vrot.slane %v7355, 7
      %v7483 = vsel %vm5439, %v7480, %v7482
      %v7484 = vrot.slane %v7356, 7
      %v7485 = vrot.slane %v7357, 7
      %v7486 = vsel %vm5439, %v7484, %v7485
      %v7487 = vrot.slane %v7358, 7
      %v7488 = vsel %vm5439, %v7485, %v7487
      %v7489 = vrot.slane %v7359, 7
      %v7490 = vrot.slane %v7360, 7
      %v7491 = vsel %vm5439, %v7489, %v7490
      %v7492 = vrot.slane %v7361, 7
      %v7493 = vsel %vm5439, %v7490, %v7492
      %v7494 = vrot.slane %v7362, 7
      %v7495 = vrot.slane %v7363, 7
      %v7496 = vsel %vm5439, %v7494, %v7495
      %v7497 = vrot.slane %v7364, 7
      %v7498 = vsel %vm5439, %v7495, %v7497
      %v7499 = vrot.slane %v7365, 7
      %v7500 = vrot.slane %v7366, 7
      %v7501 = vsel %vm5439, %v7499, %v7500
      %v7502 = vrot.slane %v7367, 7
      %v7503 = vsel %vm5439, %v7500, %v7502
      %v7572 = vadd.f32 %v7249, %v7419
      %v7573 = vadd.f32 %v7250, %v7421
      %v7574 = vadd.f32 %v7251, %v7423
      %v7575 = vadd.f32 %v7252, %v7422
      %v7576 = vadd.f32 %v7253, %v7424
      %v7577 = vadd.f32 %v7254, %v7426
      %v7578 = vadd.f32 %v7255, %v7428
      %v7579 = vadd.f32 %v7256, %v7427
      %v7580 = vadd.f32 %v7257, %v7429
      %v7581 = vadd.f32 %v7258, %v7431
      %v7582 = vadd.f32 %v7259, %v7433
      %v7583 = vadd.f32 %v7260, %v7432
      %v7584 = vadd.f32 %v7261, %v7434
      %v7585 = vadd.f32 %v7262, %v7436
      %v7586 = vadd.f32 %v7263, %v7438
      %v7587 = vadd.f32 %v7264, %v7437
      %v7588 = vadd.f32 %v7265, %v7439
      %v7589 = vadd.f32 %v7266, %v7441
      %v7590 = vadd.f32 %v7267, %v7443
      %v7591 = vadd.f32 %v7268, %v7442
      %v7592 = vadd.f32 %v7269, %v7444
      %v7593 = vadd.f32 %v7270, %v7446
      %v7594 = vadd.f32 %v7271, %v7448
      %v7595 = vadd.f32 %v7272, %v7447
      %v7596 = vadd.f32 %v7273, %v7449
      %v7597 = vadd.f32 %v7274, %v7451
      %v7598 = vadd.f32 %v7275, %v7453
      %v7599 = vadd.f32 %v7276, %v7452
      %v7600 = vadd.f32 %v7277, %v7454
      %v7601 = vadd.f32 %v7278, %v7456
      %v7602 = vadd.f32 %v7279, %v7458
      %v7603 = vadd.f32 %v7280, %v7457
      %v7604 = vadd.f32 %v7281, %v7459
      %v7605 = vadd.f32 %v7282, %v7461
      %v7606 = vadd.f32 %v7283, %v7463
      %v7607 = vadd.f32 %v7284, %v7462
      %v7608 = vadd.f32 %v7285, %v7464
      %v7609 = vadd.f32 %v7286, %v7466
      %v7610 = vadd.f32 %v7287, %v7468
      %v7611 = vadd.f32 %v7288, %v7467
      %v7612 = vadd.f32 %v7289, %v7469
      %v7613 = vadd.f32 %v7290, %v7471
      %v7614 = vadd.f32 %v7291, %v7473
      %v7615 = vadd.f32 %v7292, %v7472
      %v7616 = vadd.f32 %v7293, %v7474
      %v7617 = vadd.f32 %v7294, %v7476
      %v7618 = vadd.f32 %v7295, %v7478
      %v7619 = vadd.f32 %v7296, %v7477
      %v7620 = vadd.f32 %v7297, %v7479
      %v7621 = vadd.f32 %v7298, %v7481
      %v7622 = vadd.f32 %v7299, %v7483
      %v7623 = vadd.f32 %v7300, %v7482
      %v7624 = vadd.f32 %v7301, %v7484
      %v7625 = vadd.f32 %v7302, %v7486
      %v7626 = vadd.f32 %v7303, %v7488
      %v7627 = vadd.f32 %v7304, %v7487
      %v7628 = vadd.f32 %v7305, %v7489
      %v7629 = vadd.f32 %v7306, %v7491
      %v7630 = vadd.f32 %v7307, %v7493
      %v7631 = vadd.f32 %v7308, %v7492
      %v7632 = vadd.f32 %v7309, %v7494
      %v7633 = vadd.f32 %v7310, %v7496
      %v7634 = vadd.f32 %v7311, %v7498
      %v7635 = vadd.f32 %v7312, %v7497
      %v7636 = vadd.f32 %v7313, %v7499
      %v7637 = vadd.f32 %v7314, %v7501
      %v7638 = vadd.f32 %v7315, %v7503
      %v7639 = vadd.f32 %v7316, %v7502
      %v7640 = vld [vmem:[#allocation2 + $0x60] sm:$0xfe]
      %v7641 = vld [vmem:[#allocation2 + $0xe0] sm:$0xff]
      %v7642 = vld [vmem:[#allocation2 + $0x160] sm:$0xff]
      %v7643 = vld [vmem:[#allocation2 + $0x1e0] sm:$0x1]
      %v7644 = vld [vmem:[#allocation2 + $0x260] sm:$0xfe]
      %v7645 = vld [vmem:[#allocation2 + $0x2e0] sm:$0xff]
      %v7646 = vld [vmem:[#allocation2 + $0x360] sm:$0xff]
      %v7647 = vld [vmem:[#allocation2 + $0x3e0] sm:$0x1]
      %v7648 = vld [vmem:[#allocation2 + $0x460] sm:$0xfe]
      %v7649 = vld [vmem:[#allocation2 + $0x4e0] sm:$0xff]
      %v7650 = vld [vmem:[#allocation2 + $0x560] sm:$0xff]
      %v7651 = vld [vmem:[#allocation2 + $0x5e0] sm:$0x1]
      %v7652 = vld [vmem:[#allocation2 + $0x660] sm:$0xfe]
      %v7653 = vld [vmem:[#allocation2 + $0x6e0] sm:$0xff]
      %v7654 = vld [vmem:[#allocation2 + $0x760] sm:$0xff]
      %v7655 = vld [vmem:[#allocation2 + $0x7e0] sm:$0x1]
      %v7656 = vld [vmem:[#allocation2 + $0x860] sm:$0xfe]
      %v7657 = vld [vmem:[#allocation2 + $0x8e0] sm:$0xff]
      %v7658 = vld [vmem:[#allocation2 + $0x960] sm:$0xff]
      %v7659 = vld [vmem:[#allocation2 + $0x9e0] sm:$0x1]
      %v7660 = vld [vmem:[#allocation2 + $0xa60] sm:$0xfe]
      %v7661 = vld [vmem:[#allocation2 + $0xae0] sm:$0xff]
      %v7662 = vld [vmem:[#allocation2 + $0xb60] sm:$0xff]
      %v7663 = vld [vmem:[#allocation2 + $0xbe0] sm:$0x1]
      %v7664 = vld [vmem:[#allocation2 + $0xc60] sm:$0xfe]
      %v7665 = vld [vmem:[#allocation2 + $0xce0] sm:$0xff]
      %v7666 = vld [vmem:[#allocation2 + $0xd60] sm:$0xff]
      %v7667 = vld [vmem:[#allocation2 + $0xde0] sm:$0x1]
      %v7668 = vld [vmem:[#allocation2 + $0xe60] sm:$0xfe]
      %v7669 = vld [vmem:[#allocation2 + $0xee0] sm:$0xff]
      %v7670 = vld [vmem:[#allocation2 + $0xf60] sm:$0xff]
      %v7671 = vld [vmem:[#allocation2 + $0xfe0] sm:$0x1]
      %v7672 = vld [vmem:[#allocation2 + $0x1060] sm:$0xfe]
      %v7673 = vld [vmem:[#allocation2 + $0x10e0] sm:$0xff]
      %v7674 = vld [vmem:[#allocation2 + $0x1160] sm:$0xff]
      %v7675 = vld [vmem:[#allocation2 + $0x11e0] sm:$0x1]
      %v7676 = vld [vmem:[#allocation2 + $0x1260] sm:$0xfe]
      %v7677 = vld [vmem:[#allocation2 + $0x12e0] sm:$0xff]
      %v7678 = vld [vmem:[#allocation2 + $0x1360] sm:$0xff]
      %v7679 = vld [vmem:[#allocation2 + $0x13e0] sm:$0x1]
      %v7680 = vld [vmem:[#allocation2 + $0x1460] sm:$0xfe]
      %v7681 = vld [vmem:[#allocation2 + $0x14e0] sm:$0xff]
      %v7682 = vld [vmem:[#allocation2 + $0x1560] sm:$0xff]
      %v7683 = vld [vmem:[#allocation2 + $0x15e0] sm:$0x1]
      %v7684 = vld [vmem:[#allocation2 + $0x1660] sm:$0xfe]
      %v7685 = vld [vmem:[#allocation2 + $0x16e0] sm:$0xff]
      %v7686 = vld [vmem:[#allocation2 + $0x1760] sm:$0xff]
      %v7687 = vld [vmem:[#allocation2 + $0x17e0] sm:$0x1]
      %v7688 = vld [vmem:[#allocation2 + $0x1860] sm:$0xfe]
      %v7689 = vld [vmem:[#allocation2 + $0x18e0] sm:$0xff]
      %v7690 = vld [vmem:[#allocation2 + $0x1960] sm:$0xff]
      %v7691 = vld [vmem:[#allocation2 + $0x19e0] sm:$0x1]
      %v7692 = vld [vmem:[#allocation2 + $0x1a60] sm:$0xfe]
      %v7693 = vld [vmem:[#allocation2 + $0x1ae0] sm:$0xff]
      %v7694 = vld [vmem:[#allocation2 + $0x1b60] sm:$0xff]
      %v7695 = vld [vmem:[#allocation2 + $0x1be0] sm:$0x1]
      %v7696 = vld [vmem:[#allocation2 + $0x1c60] sm:$0xfe]
      %v7697 = vld [vmem:[#allocation2 + $0x1ce0] sm:$0xff]
      %v7698 = vld [vmem:[#allocation2 + $0x1d60] sm:$0xff]
      %v7699 = vld [vmem:[#allocation2 + $0x1de0] sm:$0x1]
      %v7700 = vld [vmem:[#allocation2 + $0x1e60] sm:$0xfe]
      %v7701 = vld [vmem:[#allocation2 + $0x1ee0] sm:$0xff]
      %v7702 = vld [vmem:[#allocation2 + $0x1f60] sm:$0xff]
      %v7703 = vld [vmem:[#allocation2 + $0x1fe0] sm:$0x1]
      %v7704 = vld [vmem:[#allocation2 + $0x2060] sm:$0xfe]
      %v7705 = vld [vmem:[#allocation2 + $0x20e0] sm:$0xff]
      %v7706 = vld [vmem:[#allocation2 + $0x2160] sm:$0xff]
      %v7707 = vld [vmem:[#allocation2 + $0x21e0] sm:$0x1]
      %v7708 = vadd.f32 %v7572, %v7640
      %v7709 = vadd.f32 %v7573, %v7641
      %v7710 = vadd.f32 %v7574, %v7642
      %v7711 = vadd.f32 %v7575, %v7643
      %v7712 = vadd.f32 %v7576, %v7644
      %v7713 = vadd.f32 %v7577, %v7645
      %v7714 = vadd.f32 %v7578, %v7646
      %v7715 = vadd.f32 %v7579, %v7647
      %v7716 = vadd.f32 %v7580, %v7648
      %v7717 = vadd.f32 %v7581, %v7649
      %v7718 = vadd.f32 %v7582, %v7650
      %v7719 = vadd.f32 %v7583, %v7651
      %v7720 = vadd.f32 %v7584, %v7652
      %v7721 = vadd.f32 %v7585, %v7653
      %v7722 = vadd.f32 %v7586, %v7654
      %v7723 = vadd.f32 %v7587, %v7655
      %v7724 = vadd.f32 %v7588, %v7656
      %v7725 = vadd.f32 %v7589, %v7657
      %v7726 = vadd.f32 %v7590, %v7658
      %v7727 = vadd.f32 %v7591, %v7659
      %v7728 = vadd.f32 %v7592, %v7660
      %v7729 = vadd.f32 %v7593, %v7661
      %v7730 = vadd.f32 %v7594, %v7662
      %v7731 = vadd.f32 %v7595, %v7663
      %v7732 = vadd.f32 %v7596, %v7664
      %v7733 = vadd.f32 %v7597, %v7665
      %v7734 = vadd.f32 %v7598, %v7666
      %v7735 = vadd.f32 %v7599, %v7667
      %v7736 = vadd.f32 %v7600, %v7668
      %v7737 = vadd.f32 %v7601, %v7669
      %v7738 = vadd.f32 %v7602, %v7670
      %v7739 = vadd.f32 %v7603, %v7671
      %v7740 = vadd.f32 %v7604, %v7672
      %v7741 = vadd.f32 %v7605, %v7673
      %v7742 = vadd.f32 %v7606, %v7674
      %v7743 = vadd.f32 %v7607, %v7675
      %v7744 = vadd.f32 %v7608, %v7676
      %v7745 = vadd.f32 %v7609, %v7677
      %v7746 = vadd.f32 %v7610, %v7678
      %v7747 = vadd.f32 %v7611, %v7679
      %v7748 = vadd.f32 %v7612, %v7680
      %v7749 = vadd.f32 %v7613, %v7681
      %v7750 = vadd.f32 %v7614, %v7682
      %v7751 = vadd.f32 %v7615, %v7683
      %v7752 = vadd.f32 %v7616, %v7684
      %v7753 = vadd.f32 %v7617, %v7685
      %v7754 = vadd.f32 %v7618, %v7686
      %v7755 = vadd.f32 %v7619, %v7687
      %v7756 = vadd.f32 %v7620, %v7688
      %v7757 = vadd.f32 %v7621, %v7689
      %v7758 = vadd.f32 %v7622, %v7690
      %v7759 = vadd.f32 %v7623, %v7691
      %v7760 = vadd.f32 %v7624, %v7692
      %v7761 = vadd.f32 %v7625, %v7693
      %v7762 = vadd.f32 %v7626, %v7694
      %v7763 = vadd.f32 %v7627, %v7695
      %v7764 = vadd.f32 %v7628, %v7696
      %v7765 = vadd.f32 %v7629, %v7697
      %v7766 = vadd.f32 %v7630, %v7698
      %v7767 = vadd.f32 %v7631, %v7699
      %v7768 = vadd.f32 %v7632, %v7700
      %v7769 = vadd.f32 %v7633, %v7701
      %v7770 = vadd.f32 %v7634, %v7702
      %v7771 = vadd.f32 %v7635, %v7703
      %v7772 = vadd.f32 %v7636, %v7704
      %v7773 = vadd.f32 %v7637, %v7705
      %v7774 = vadd.f32 %v7638, %v7706
      %v7775 = vadd.f32 %v7639, %v7707
      %v7776 = vld [vmem:[#allocation2 + $0x70] sm:$0xff]
      %v7777 = vld [vmem:[#allocation2 + $0xf0] sm:$0xff]
      %v7778 = vld [vmem:[#allocation2 + $0x170] sm:$0xff]
      %v7779 = vld [vmem:[#allocation2 + $0x270] sm:$0xff]
      %v7780 = vld [vmem:[#allocation2 + $0x2f0] sm:$0xff]
      %v7781 = vld [vmem:[#allocation2 + $0x370] sm:$0xff]
      %v7782 = vld [vmem:[#allocation2 + $0x470] sm:$0xff]
      %v7783 = vld [vmem:[#allocation2 + $0x4f0] sm:$0xff]
      %v7784 = vld [vmem:[#allocation2 + $0x570] sm:$0xff]
      %v7785 = vld [vmem:[#allocation2 + $0x670] sm:$0xff]
      %v7786 = vld [vmem:[#allocation2 + $0x6f0] sm:$0xff]
      %v7787 = vld [vmem:[#allocation2 + $0x770] sm:$0xff]
      %v7788 = vld [vmem:[#allocation2 + $0x870] sm:$0xff]
      %v7789 = vld [vmem:[#allocation2 + $0x8f0] sm:$0xff]
      %v7790 = vld [vmem:[#allocation2 + $0x970] sm:$0xff]
      %v7791 = vld [vmem:[#allocation2 + $0xa70] sm:$0xff]
      %v7792 = vld [vmem:[#allocation2 + $0xaf0] sm:$0xff]
      %v7793 = vld [vmem:[#allocation2 + $0xb70] sm:$0xff]
      %v7794 = vld [vmem:[#allocation2 + $0xc70] sm:$0xff]
      %v7795 = vld [vmem:[#allocation2 + $0xcf0] sm:$0xff]
      %v7796 = vld [vmem:[#allocation2 + $0xd70] sm:$0xff]
      %v7797 = vld [vmem:[#allocation2 + $0xe70] sm:$0xff]
      %v7798 = vld [vmem:[#allocation2 + $0xef0] sm:$0xff]
      %v7799 = vld [vmem:[#allocation2 + $0xf70] sm:$0xff]
      %v7800 = vld [vmem:[#allocation2 + $0x1070] sm:$0xff]
      %v7801 = vld [vmem:[#allocation2 + $0x10f0] sm:$0xff]
      %v7802 = vld [vmem:[#allocation2 + $0x1170] sm:$0xff]
      %v7803 = vld [vmem:[#allocation2 + $0x1270] sm:$0xff]
      %v7804 = vld [vmem:[#allocation2 + $0x12f0] sm:$0xff]
      %v7805 = vld [vmem:[#allocation2 + $0x1370] sm:$0xff]
      %v7806 = vld [vmem:[#allocation2 + $0x1470] sm:$0xff]
      %v7807 = vld [vmem:[#allocation2 + $0x14f0] sm:$0xff]
      %v7808 = vld [vmem:[#allocation2 + $0x1570] sm:$0xff]
      %v7809 = vld [vmem:[#allocation2 + $0x1670] sm:$0xff]
      %v7810 = vld [vmem:[#allocation2 + $0x16f0] sm:$0xff]
      %v7811 = vld [vmem:[#allocation2 + $0x1770] sm:$0xff]
      %v7812 = vld [vmem:[#allocation2 + $0x1870] sm:$0xff]
      %v7813 = vld [vmem:[#allocation2 + $0x18f0] sm:$0xff]
      %v7814 = vld [vmem:[#allocation2 + $0x1970] sm:$0xff]
      %v7815 = vld [vmem:[#allocation2 + $0x1a70] sm:$0xff]
      %v7816 = vld [vmem:[#allocation2 + $0x1af0] sm:$0xff]
      %v7817 = vld [vmem:[#allocation2 + $0x1b70] sm:$0xff]
      %v7818 = vld [vmem:[#allocation2 + $0x1c70] sm:$0xff]
      %v7819 = vld [vmem:[#allocation2 + $0x1cf0] sm:$0xff]
      %v7820 = vld [vmem:[#allocation2 + $0x1d70] sm:$0xff]
      %v7821 = vld [vmem:[#allocation2 + $0x1e70] sm:$0xff]
      %v7822 = vld [vmem:[#allocation2 + $0x1ef0] sm:$0xff]
      %v7823 = vld [vmem:[#allocation2 + $0x1f70] sm:$0xff]
      %v7824 = vld [vmem:[#allocation2 + $0x2070] sm:$0xff]
      %v7825 = vld [vmem:[#allocation2 + $0x20f0] sm:$0xff]
      %v7826 = vld [vmem:[#allocation2 + $0x2170] sm:$0xff]
      %v7878 = vrot.slane %v7776, 7
      %v7879 = vrot.slane %v7777, 7
      %v7880 = vsel %vm5439, %v7878, %v7879
      %v7881 = vrot.slane %v7778, 7
      %v7882 = vsel %vm5439, %v7879, %v7881
      %v7883 = vrot.slane %v7779, 7
      %v7884 = vrot.slane %v7780, 7
      %v7885 = vsel %vm5439, %v7883, %v7884
      %v7886 = vrot.slane %v7781, 7
      %v7887 = vsel %vm5439, %v7884, %v7886
      %v7888 = vrot.slane %v7782, 7
      %v7889 = vrot.slane %v7783, 7
      %v7890 = vsel %vm5439, %v7888, %v7889
      %v7891 = vrot.slane %v7784, 7
      %v7892 = vsel %vm5439, %v7889, %v7891
      %v7893 = vrot.slane %v7785, 7
      %v7894 = vrot.slane %v7786, 7
      %v7895 = vsel %vm5439, %v7893, %v7894
      %v7896 = vrot.slane %v7787, 7
      %v7897 = vsel %vm5439, %v7894, %v7896
      %v7898 = vrot.slane %v7788, 7
      %v7899 = vrot.slane %v7789, 7
      %v7900 = vsel %vm5439, %v7898, %v7899
      %v7901 = vrot.slane %v7790, 7
      %v7902 = vsel %vm5439, %v7899, %v7901
      %v7903 = vrot.slane %v7791, 7
      %v7904 = vrot.slane %v7792, 7
      %v7905 = vsel %vm5439, %v7903, %v7904
      %v7906 = vrot.slane %v7793, 7
      %v7907 = vsel %vm5439, %v7904, %v7906
      %v7908 = vrot.slane %v7794, 7
      %v7909 = vrot.slane %v7795, 7
      %v7910 = vsel %vm5439, %v7908, %v7909
      %v7911 = vrot.slane %v7796, 7
      %v7912 = vsel %vm5439, %v7909, %v7911
      %v7913 = vrot.slane %v7797, 7
      %v7914 = vrot.slane %v7798, 7
      %v7915 = vsel %vm5439, %v7913, %v7914
      %v7916 = vrot.slane %v7799, 7
      %v7917 = vsel %vm5439, %v7914, %v7916
      %v7918 = vrot.slane %v7800, 7
      %v7919 = vrot.slane %v7801, 7
      %v7920 = vsel %vm5439, %v7918, %v7919
      %v7921 = vrot.slane %v7802, 7
      %v7922 = vsel %vm5439, %v7919, %v7921
      %v7923 = vrot.slane %v7803, 7
      %v7924 = vrot.slane %v7804, 7
      %v7925 = vsel %vm5439, %v7923, %v7924
      %v7926 = vrot.slane %v7805, 7
      %v7927 = vsel %vm5439, %v7924, %v7926
      %v7928 = vrot.slane %v7806, 7
      %v7929 = vrot.slane %v7807, 7
      %v7930 = vsel %vm5439, %v7928, %v7929
      %v7931 = vrot.slane %v7808, 7
      %v7932 = vsel %vm5439, %v7929, %v7931
      %v7933 = vrot.slane %v7809, 7
      %v7934 = vrot.slane %v7810, 7
      %v7935 = vsel %vm5439, %v7933, %v7934
      %v7936 = vrot.slane %v7811, 7
      %v7937 = vsel %vm5439, %v7934, %v7936
      %v7938 = vrot.slane %v7812, 7
      %v7939 = vrot.slane %v7813, 7
      %v7940 = vsel %vm5439, %v7938, %v7939
      %v7941 = vrot.slane %v7814, 7
      %v7942 = vsel %vm5439, %v7939, %v7941
      %v7943 = vrot.slane %v7815, 7
      %v7944 = vrot.slane %v7816, 7
      %v7945 = vsel %vm5439, %v7943, %v7944
      %v7946 = vrot.slane %v7817, 7
      %v7947 = vsel %vm5439, %v7944, %v7946
      %v7948 = vrot.slane %v7818, 7
      %v7949 = vrot.slane %v7819, 7
      %v7950 = vsel %vm5439, %v7948, %v7949
      %v7951 = vrot.slane %v7820, 7
      %v7952 = vsel %vm5439, %v7949, %v7951
      %v7953 = vrot.slane %v7821, 7
      %v7954 = vrot.slane %v7822, 7
      %v7955 = vsel %vm5439, %v7953, %v7954
      %v7956 = vrot.slane %v7823, 7
      %v7957 = vsel %vm5439, %v7954, %v7956
      %v7958 = vrot.slane %v7824, 7
      %v7959 = vrot.slane %v7825, 7
      %v7960 = vsel %vm5439, %v7958, %v7959
      %v7961 = vrot.slane %v7826, 7
      %v7962 = vsel %vm5439, %v7959, %v7961
      %v8031 = vadd.f32 %v7708, %v7878
      %v8032 = vadd.f32 %v7709, %v7880
      %v8033 = vadd.f32 %v7710, %v7882
      %v8034 = vadd.f32 %v7711, %v7881
      %v8035 = vadd.f32 %v7712, %v7883
      %v8036 = vadd.f32 %v7713, %v7885
      %v8037 = vadd.f32 %v7714, %v7887
      %v8038 = vadd.f32 %v7715, %v7886
      %v8039 = vadd.f32 %v7716, %v7888
      %v8040 = vadd.f32 %v7717, %v7890
      %v8041 = vadd.f32 %v7718, %v7892
      %v8042 = vadd.f32 %v7719, %v7891
      %v8043 = vadd.f32 %v7720, %v7893
      %v8044 = vadd.f32 %v7721, %v7895
      %v8045 = vadd.f32 %v7722, %v7897
      %v8046 = vadd.f32 %v7723, %v7896
      %v8047 = vadd.f32 %v7724, %v7898
      %v8048 = vadd.f32 %v7725, %v7900
      %v8049 = vadd.f32 %v7726, %v7902
      %v8050 = vadd.f32 %v7727, %v7901
      %v8051 = vadd.f32 %v7728, %v7903
      %v8052 = vadd.f32 %v7729, %v7905
      %v8053 = vadd.f32 %v7730, %v7907
      %v8054 = vadd.f32 %v7731, %v7906
      %v8055 = vadd.f32 %v7732, %v7908
      %v8056 = vadd.f32 %v7733, %v7910
      %v8057 = vadd.f32 %v7734, %v7912
      %v8058 = vadd.f32 %v7735, %v7911
      %v8059 = vadd.f32 %v7736, %v7913
      %v8060 = vadd.f32 %v7737, %v7915
      %v8061 = vadd.f32 %v7738, %v7917
      %v8062 = vadd.f32 %v7739, %v7916
      %v8063 = vadd.f32 %v7740, %v7918
      %v8064 = vadd.f32 %v7741, %v7920
      %v8065 = vadd.f32 %v7742, %v7922
      %v8066 = vadd.f32 %v7743, %v7921
      %v8067 = vadd.f32 %v7744, %v7923
      %v8068 = vadd.f32 %v7745, %v7925
      %v8069 = vadd.f32 %v7746, %v7927
      %v8070 = vadd.f32 %v7747, %v7926
      %v8071 = vadd.f32 %v7748, %v7928
      %v8072 = vadd.f32 %v7749, %v7930
      %v8073 = vadd.f32 %v7750, %v7932
      %v8074 = vadd.f32 %v7751, %v7931
      %v8075 = vadd.f32 %v7752, %v7933
      %v8076 = vadd.f32 %v7753, %v7935
      %v8077 = vadd.f32 %v7754, %v7937
      %v8078 = vadd.f32 %v7755, %v7936
      %v8079 = vadd.f32 %v7756, %v7938
      %v8080 = vadd.f32 %v7757, %v7940
      %v8081 = vadd.f32 %v7758, %v7942
      %v8082 = vadd.f32 %v7759, %v7941
      %v8083 = vadd.f32 %v7760, %v7943
      %v8084 = vadd.f32 %v7761, %v7945
      %v8085 = vadd.f32 %v7762, %v7947
      %v8086 = vadd.f32 %v7763, %v7946
      %v8087 = vadd.f32 %v7764, %v7948
      %v8088 = vadd.f32 %v7765, %v7950
      %v8089 = vadd.f32 %v7766, %v7952
      %v8090 = vadd.f32 %v7767, %v7951
      %v8091 = vadd.f32 %v7768, %v7953
      %v8092 = vadd.f32 %v7769, %v7955
      %v8093 = vadd.f32 %v7770, %v7957
      %v8094 = vadd.f32 %v7771, %v7956
      %v8095 = vadd.f32 %v7772, %v7958
      %v8096 = vadd.f32 %v7773, %v7960
      %v8097 = vadd.f32 %v7774, %v7962
      %v8098 = vadd.f32 %v7775, %v7961
      %v8099 = vadd.f32 %v8031, %v6124
      %v8100 = vadd.f32 %v8032, %v6124
      %v8101 = vadd.f32 %v8033, %v6124
      %v8102 = vadd.f32 %v8034, %v6124
      %v8103 = vadd.f32 %v8035, %v6124
      %v8104 = vadd.f32 %v8036, %v6124
      %v8105 = vadd.f32 %v8037, %v6124
      %v8106 = vadd.f32 %v8038, %v6124
      %v8107 = vadd.f32 %v8039, %v6124
      %v8108 = vadd.f32 %v8040, %v6124
      %v8109 = vadd.f32 %v8041, %v6124
      %v8110 = vadd.f32 %v8042, %v6124
      %v8111 = vadd.f32 %v8043, %v6124
      %v8112 = vadd.f32 %v8044, %v6124
      %v8113 = vadd.f32 %v8045, %v6124
      %v8114 = vadd.f32 %v8046, %v6124
      %v8115 = vadd.f32 %v8047, %v6124
      %v8116 = vadd.f32 %v8048, %v6124
      %v8117 = vadd.f32 %v8049, %v6124
      %v8118 = vadd.f32 %v8050, %v6124
      %v8119 = vadd.f32 %v8051, %v6124
      %v8120 = vadd.f32 %v8052, %v6124
      %v8121 = vadd.f32 %v8053, %v6124
      %v8122 = vadd.f32 %v8054, %v6124
      %v8123 = vadd.f32 %v8055, %v6124
      %v8124 = vadd.f32 %v8056, %v6124
      %v8125 = vadd.f32 %v8057, %v6124
      %v8126 = vadd.f32 %v8058, %v6124
      %v8127 = vadd.f32 %v8059, %v6124
      %v8128 = vadd.f32 %v8060, %v6124
      %v8129 = vadd.f32 %v8061, %v6124
      %v8130 = vadd.f32 %v8062, %v6124
      %v8131 = vadd.f32 %v8063, %v6124
      %v8132 = vadd.f32 %v8064, %v6124
      %v8133 = vadd.f32 %v8065, %v6124
      %v8134 = vadd.f32 %v8066, %v6124
      %v8135 = vadd.f32 %v8067, %v6124
      %v8136 = vadd.f32 %v8068, %v6124
      %v8137 = vadd.f32 %v8069, %v6124
      %v8138 = vadd.f32 %v8070, %v6124
      %v8139 = vadd.f32 %v8071, %v6124
      %v8140 = vadd.f32 %v8072, %v6124
      %v8141 = vadd.f32 %v8073, %v6124
      %v8142 = vadd.f32 %v8074, %v6124
      %v8143 = vadd.f32 %v8075, %v6124
      %v8144 = vadd.f32 %v8076, %v6124
      %v8145 = vadd.f32 %v8077, %v6124
      %v8146 = vadd.f32 %v8078, %v6124
      %v8147 = vadd.f32 %v8079, %v6124
      %v8148 = vadd.f32 %v8080, %v6124
      %v8149 = vadd.f32 %v8081, %v6124
      %v8150 = vadd.f32 %v8082, %v6124
      %v8151 = vadd.f32 %v8083, %v6124
      %v8152 = vadd.f32 %v8084, %v6124
      %v8153 = vadd.f32 %v8085, %v6124
      %v8154 = vadd.f32 %v8086, %v6124
      %v8155 = vadd.f32 %v8087, %v6124
      %v8156 = vadd.f32 %v8088, %v6124
      %v8157 = vadd.f32 %v8089, %v6124
      %v8158 = vadd.f32 %v8090, %v6124
      %v8159 = vadd.f32 %v8091, %v6124
      %v8160 = vadd.f32 %v8092, %v6124
      %v8161 = vadd.f32 %v8093, %v6124
      %v8162 = vadd.f32 %v8094, %v6124
      %v8163 = vadd.f32 %v8095, %v6124
      %v8164 = vadd.f32 %v8096, %v6124
      %v8165 = vadd.f32 %v8097, %v6124
      %v8166 = vadd.f32 %v8098, %v6124
      %s8167 = scalar_lea.vmem %s224, 816
      %8168 = vst [vmem:[%s8167 - $0x1] sm:$0xfe] %v8099
      %8169 = vst [vmem:[%s8167 + $0x7] sm:$0xff] %v8100
      %8170 = vst [vmem:[%s8167 + $0xf] sm:$0xff] %v8101
      %8171 = vst [vmem:[%s8167 + $0x17] sm:$0x1] %v8102
      %8172 = vst [vmem:[%s8167 + $0x17] sm:$0xfe] %v8103
      %8173 = vst [vmem:[%s8167 + $0x1f] sm:$0xff] %v8104
      %8174 = vst [vmem:[%s8167 + $0x27] sm:$0xff] %v8105
      %8175 = vst [vmem:[%s8167 + $0x2f] sm:$0x1] %v8106
      %8176 = vst [vmem:[%s8167 + $0x2f] sm:$0xfe] %v8107
      %8177 = vst [vmem:[%s8167 + $0x37] sm:$0xff] %v8108
      %8178 = vst [vmem:[%s8167 + $0x3f] sm:$0xff] %v8109
      %8179 = vst [vmem:[%s8167 + $0x47] sm:$0x1] %v8110
      %8180 = vst [vmem:[%s8167 + $0x47] sm:$0xfe] %v8111
      %8181 = vst [vmem:[%s8167 + $0x4f] sm:$0xff] %v8112
      %8182 = vst [vmem:[%s8167 + $0x57] sm:$0xff] %v8113
      %8183 = vst [vmem:[%s8167 + $0x5f] sm:$0x1] %v8114
      %8184 = vst [vmem:[%s8167 + $0x5f] sm:$0xfe] %v8115
      %8185 = vst [vmem:[%s8167 + $0x67] sm:$0xff] %v8116
      %8186 = vst [vmem:[%s8167 + $0x6f] sm:$0xff] %v8117
      %8187 = vst [vmem:[%s8167 + $0x77] sm:$0x1] %v8118
      %8188 = vst [vmem:[%s8167 + $0x77] sm:$0xfe] %v8119
      %8189 = vst [vmem:[%s8167 + $0x7f] sm:$0xff] %v8120
      %8190 = vst [vmem:[%s8167 + $0x87] sm:$0xff] %v8121
      %8191 = vst [vmem:[%s8167 + $0x8f] sm:$0x1] %v8122
      %8192 = vst [vmem:[%s8167 + $0x8f] sm:$0xfe] %v8123
      %8193 = vst [vmem:[%s8167 + $0x97] sm:$0xff] %v8124
      %8194 = vst [vmem:[%s8167 + $0x9f] sm:$0xff] %v8125
      %8195 = vst [vmem:[%s8167 + $0xa7] sm:$0x1] %v8126
      %8196 = vst [vmem:[%s8167 + $0xa7] sm:$0xfe] %v8127
      %8197 = vst [vmem:[%s8167 + $0xaf] sm:$0xff] %v8128
      %8198 = vst [vmem:[%s8167 + $0xb7] sm:$0xff] %v8129
      %8199 = vst [vmem:[%s8167 + $0xbf] sm:$0x1] %v8130
      %8200 = vst [vmem:[%s8167 + $0xbf] sm:$0xfe] %v8131
      %8201 = vst [vmem:[%s8167 + $0xc7] sm:$0xff] %v8132
      %8202 = vst [vmem:[%s8167 + $0xcf] sm:$0xff] %v8133
      %8203 = vst [vmem:[%s8167 + $0xd7] sm:$0x1] %v8134
      %8204 = vst [vmem:[%s8167 + $0xd7] sm:$0xfe] %v8135
      %8205 = vst [vmem:[%s8167 + $0xdf] sm:$0xff] %v8136
      %8206 = vst [vmem:[%s8167 + $0xe7] sm:$0xff] %v8137
      %8207 = vst [vmem:[%s8167 + $0xef] sm:$0x1] %v8138
      %8208 = vst [vmem:[%s8167 + $0xef] sm:$0xfe] %v8139
      %8209 = vst [vmem:[%s8167 + $0xf7] sm:$0xff] %v8140
      %8210 = vst [vmem:[%s8167 + $0xff] sm:$0xff] %v8141
      %8211 = vst [vmem:[%s8167 + $0x107] sm:$0x1] %v8142
      %8212 = vst [vmem:[%s8167 + $0x107] sm:$0xfe] %v8143
      %8213 = vst [vmem:[%s8167 + $0x10f] sm:$0xff] %v8144
      %8214 = vst [vmem:[%s8167 + $0x117] sm:$0xff] %v8145
      %8215 = vst [vmem:[%s8167 + $0x11f] sm:$0x1] %v8146
      %8216 = vst [vmem:[%s8167 + $0x11f] sm:$0xfe] %v8147
      %8217 = vst [vmem:[%s8167 + $0x127] sm:$0xff] %v8148
      %8218 = vst [vmem:[%s8167 + $0x12f] sm:$0xff] %v8149
      %8219 = vst [vmem:[%s8167 + $0x137] sm:$0x1] %v8150
      %8220 = vst [vmem:[%s8167 + $0x137] sm:$0xfe] %v8151
      %8221 = vst [vmem:[%s8167 + $0x13f] sm:$0xff] %v8152
      %8222 = vst [vmem:[%s8167 + $0x147] sm:$0xff] %v8153
      %8223 = vst [vmem:[%s8167 + $0x14f] sm:$0x1] %v8154
      %8224 = vst [vmem:[%s8167 + $0x14f] sm:$0xfe] %v8155
      %8225 = vst [vmem:[%s8167 + $0x157] sm:$0xff] %v8156
      %8226 = vst [vmem:[%s8167 + $0x15f] sm:$0xff] %v8157
      %8227 = vst [vmem:[%s8167 + $0x167] sm:$0x1] %v8158
      %8228 = vst [vmem:[%s8167 + $0x167] sm:$0xfe] %v8159
      %8229 = vst [vmem:[%s8167 + $0x16f] sm:$0xff] %v8160
      %8230 = vst [vmem:[%s8167 + $0x177] sm:$0xff] %v8161
      %8231 = vst [vmem:[%s8167 + $0x17f] sm:$0x1] %v8162
      %8232 = vst [vmem:[%s8167 + $0x17f] sm:$0xfe] %v8163
      %8233 = vst [vmem:[%s8167 + $0x187] sm:$0xff] %v8164
      %8234 = vst [vmem:[%s8167 + $0x18f] sm:$0xff] %v8165
      %8235 = vst [vmem:[%s8167 + $0x197] sm:$0x1] %v8166
      %v8236 = vld [vmem:[%s5268 + $0x28] sm:$0xfe]
      %v8237 = vld [vmem:[%s5268 + $0xa8] sm:$0xff]
      %v8238 = vld [vmem:[%s5268 + $0x128] sm:$0xff]
      %v8239 = vld [vmem:[%s5268 + $0x1a8] sm:$0x1]
      %v8240 = vld [vmem:[%s5268 + $0x228] sm:$0xfe]
      %v8241 = vld [vmem:[%s5268 + $0x2a8] sm:$0xff]
      %v8242 = vld [vmem:[%s5268 + $0x328] sm:$0xff]
      %v8243 = vld [vmem:[%s5268 + $0x3a8] sm:$0x1]
      %v8244 = vld [vmem:[%s5268 + $0x428] sm:$0xfe]
      %v8245 = vld [vmem:[%s5268 + $0x4a8] sm:$0xff]
      %v8246 = vld [vmem:[%s5268 + $0x528] sm:$0xff]
      %v8247 = vld [vmem:[%s5268 + $0x5a8] sm:$0x1]
      %v8248 = vld [vmem:[%s5268 + $0x628] sm:$0xfe]
      %v8249 = vld [vmem:[%s5268 + $0x6a8] sm:$0xff]
      %v8250 = vld [vmem:[%s5268 + $0x728] sm:$0xff]
      %v8251 = vld [vmem:[%s5268 + $0x7a8] sm:$0x1]
      %v8252 = vld [vmem:[%s5268 + $0x828] sm:$0xfe]
      %v8253 = vld [vmem:[%s5268 + $0x8a8] sm:$0xff]
      %v8254 = vld [vmem:[%s5268 + $0x928] sm:$0xff]
      %v8255 = vld [vmem:[%s5268 + $0x9a8] sm:$0x1]
      %v8256 = vld [vmem:[%s5268 + $0xa28] sm:$0xfe]
      %v8257 = vld [vmem:[%s5268 + $0xaa8] sm:$0xff]
      %v8258 = vld [vmem:[%s5268 + $0xb28] sm:$0xff]
      %v8259 = vld [vmem:[%s5268 + $0xba8] sm:$0x1]
      %v8260 = vld [vmem:[%s5268 + $0xc28] sm:$0xfe]
      %v8261 = vld [vmem:[%s5268 + $0xca8] sm:$0xff]
      %v8262 = vld [vmem:[%s5268 + $0xd28] sm:$0xff]
      %v8263 = vld [vmem:[%s5268 + $0xda8] sm:$0x1]
      %v8264 = vld [vmem:[%s5268 + $0xe28] sm:$0xfe]
      %v8265 = vld [vmem:[%s5268 + $0xea8] sm:$0xff]
      %v8266 = vld [vmem:[%s5268 + $0xf28] sm:$0xff]
      %v8267 = vld [vmem:[%s5268 + $0xfa8] sm:$0x1]
      %v8268 = vld [vmem:[%s5268 + $0x1028] sm:$0xfe]
      %v8269 = vld [vmem:[%s5268 + $0x10a8] sm:$0xff]
      %v8270 = vld [vmem:[%s5268 + $0x1128] sm:$0xff]
      %v8271 = vld [vmem:[%s5268 + $0x11a8] sm:$0x1]
      %v8272 = vld [vmem:[%s5268 + $0x1228] sm:$0xfe]
      %v8273 = vld [vmem:[%s5268 + $0x12a8] sm:$0xff]
      %v8274 = vld [vmem:[%s5268 + $0x1328] sm:$0xff]
      %v8275 = vld [vmem:[%s5268 + $0x13a8] sm:$0x1]
      %v8276 = vld [vmem:[%s5268 + $0x1428] sm:$0xfe]
      %v8277 = vld [vmem:[%s5268 + $0x14a8] sm:$0xff]
      %v8278 = vld [vmem:[%s5268 + $0x1528] sm:$0xff]
      %v8279 = vld [vmem:[%s5268 + $0x15a8] sm:$0x1]
      %v8280 = vld [vmem:[%s5268 + $0x1628] sm:$0xfe]
      %v8281 = vld [vmem:[%s5268 + $0x16a8] sm:$0xff]
      %v8282 = vld [vmem:[%s5268 + $0x1728] sm:$0xff]
      %v8283 = vld [vmem:[%s5268 + $0x17a8] sm:$0x1]
      %v8284 = vld [vmem:[%s5268 + $0x1828] sm:$0xfe]
      %v8285 = vld [vmem:[%s5268 + $0x18a8] sm:$0xff]
      %v8286 = vld [vmem:[%s5268 + $0x1928] sm:$0xff]
      %v8287 = vld [vmem:[%s5268 + $0x19a8] sm:$0x1]
      %v8288 = vld [vmem:[%s5268 + $0x1a28] sm:$0xfe]
      %v8289 = vld [vmem:[%s5268 + $0x1aa8] sm:$0xff]
      %v8290 = vld [vmem:[%s5268 + $0x1b28] sm:$0xff]
      %v8291 = vld [vmem:[%s5268 + $0x1ba8] sm:$0x1]
      %v8292 = vld [vmem:[%s5268 + $0x1c28] sm:$0xfe]
      %v8293 = vld [vmem:[%s5268 + $0x1ca8] sm:$0xff]
      %v8294 = vld [vmem:[%s5268 + $0x1d28] sm:$0xff]
      %v8295 = vld [vmem:[%s5268 + $0x1da8] sm:$0x1]
      %v8296 = vld [vmem:[%s5268 + $0x1e28] sm:$0xfe]
      %v8297 = vld [vmem:[%s5268 + $0x1ea8] sm:$0xff]
      %v8298 = vld [vmem:[%s5268 + $0x1f28] sm:$0xff]
      %v8299 = vld [vmem:[%s5268 + $0x1fa8] sm:$0x1]
      %v8300 = vld [vmem:[%s5268 + $0x2028] sm:$0xfe]
      %v8301 = vld [vmem:[%s5268 + $0x20a8] sm:$0xff]
      %v8302 = vld [vmem:[%s5268 + $0x2128] sm:$0xff]
      %v8303 = vld [vmem:[%s5268 + $0x21a8] sm:$0x1]
      %v8304 = vld [vmem:[%s5268 + $0x38] sm:$0xff]
      %v8305 = vld [vmem:[%s5268 + $0xb8] sm:$0xff]
      %v8306 = vld [vmem:[%s5268 + $0x138] sm:$0xff]
      %v8307 = vld [vmem:[%s5268 + $0x238] sm:$0xff]
      %v8308 = vld [vmem:[%s5268 + $0x2b8] sm:$0xff]
      %v8309 = vld [vmem:[%s5268 + $0x338] sm:$0xff]
      %v8310 = vld [vmem:[%s5268 + $0x438] sm:$0xff]
      %v8311 = vld [vmem:[%s5268 + $0x4b8] sm:$0xff]
      %v8312 = vld [vmem:[%s5268 + $0x538] sm:$0xff]
      %v8313 = vld [vmem:[%s5268 + $0x638] sm:$0xff]
      %v8314 = vld [vmem:[%s5268 + $0x6b8] sm:$0xff]
      %v8315 = vld [vmem:[%s5268 + $0x738] sm:$0xff]
      %v8316 = vld [vmem:[%s5268 + $0x838] sm:$0xff]
      %v8317 = vld [vmem:[%s5268 + $0x8b8] sm:$0xff]
      %v8318 = vld [vmem:[%s5268 + $0x938] sm:$0xff]
      %v8319 = vld [vmem:[%s5268 + $0xa38] sm:$0xff]
      %v8320 = vld [vmem:[%s5268 + $0xab8] sm:$0xff]
      %v8321 = vld [vmem:[%s5268 + $0xb38] sm:$0xff]
      %v8322 = vld [vmem:[%s5268 + $0xc38] sm:$0xff]
      %v8323 = vld [vmem:[%s5268 + $0xcb8] sm:$0xff]
      %v8324 = vld [vmem:[%s5268 + $0xd38] sm:$0xff]
      %v8325 = vld [vmem:[%s5268 + $0xe38] sm:$0xff]
      %v8326 = vld [vmem:[%s5268 + $0xeb8] sm:$0xff]
      %v8327 = vld [vmem:[%s5268 + $0xf38] sm:$0xff]
      %v8328 = vld [vmem:[%s5268 + $0x1038] sm:$0xff]
      %v8329 = vld [vmem:[%s5268 + $0x10b8] sm:$0xff]
      %v8330 = vld [vmem:[%s5268 + $0x1138] sm:$0xff]
      %v8331 = vld [vmem:[%s5268 + $0x1238] sm:$0xff]
      %v8332 = vld [vmem:[%s5268 + $0x12b8] sm:$0xff]
      %v8333 = vld [vmem:[%s5268 + $0x1338] sm:$0xff]
      %v8334 = vld [vmem:[%s5268 + $0x1438] sm:$0xff]
      %v8335 = vld [vmem:[%s5268 + $0x14b8] sm:$0xff]
      %v8336 = vld [vmem:[%s5268 + $0x1538] sm:$0xff]
      %v8337 = vld [vmem:[%s5268 + $0x1638] sm:$0xff]
      %v8338 = vld [vmem:[%s5268 + $0x16b8] sm:$0xff]
      %v8339 = vld [vmem:[%s5268 + $0x1738] sm:$0xff]
      %v8340 = vld [vmem:[%s5268 + $0x1838] sm:$0xff]
      %v8341 = vld [vmem:[%s5268 + $0x18b8] sm:$0xff]
      %v8342 = vld [vmem:[%s5268 + $0x1938] sm:$0xff]
      %v8343 = vld [vmem:[%s5268 + $0x1a38] sm:$0xff]
      %v8344 = vld [vmem:[%s5268 + $0x1ab8] sm:$0xff]
      %v8345 = vld [vmem:[%s5268 + $0x1b38] sm:$0xff]
      %v8346 = vld [vmem:[%s5268 + $0x1c38] sm:$0xff]
      %v8347 = vld [vmem:[%s5268 + $0x1cb8] sm:$0xff]
      %v8348 = vld [vmem:[%s5268 + $0x1d38] sm:$0xff]
      %v8349 = vld [vmem:[%s5268 + $0x1e38] sm:$0xff]
      %v8350 = vld [vmem:[%s5268 + $0x1eb8] sm:$0xff]
      %v8351 = vld [vmem:[%s5268 + $0x1f38] sm:$0xff]
      %v8352 = vld [vmem:[%s5268 + $0x2038] sm:$0xff]
      %v8353 = vld [vmem:[%s5268 + $0x20b8] sm:$0xff]
      %v8354 = vld [vmem:[%s5268 + $0x2138] sm:$0xff]
      %v8406 = vrot.slane %v8304, 7
      %v8407 = vrot.slane %v8305, 7
      %v8408 = vsel %vm5439, %v8406, %v8407
      %v8409 = vrot.slane %v8306, 7
      %v8410 = vsel %vm5439, %v8407, %v8409
      %v8411 = vrot.slane %v8307, 7
      %v8412 = vrot.slane %v8308, 7
      %v8413 = vsel %vm5439, %v8411, %v8412
      %v8414 = vrot.slane %v8309, 7
      %v8415 = vsel %vm5439, %v8412, %v8414
      %v8416 = vrot.slane %v8310, 7
      %v8417 = vrot.slane %v8311, 7
      %v8418 = vsel %vm5439, %v8416, %v8417
      %v8419 = vrot.slane %v8312, 7
      %v8420 = vsel %vm5439, %v8417, %v8419
      %v8421 = vrot.slane %v8313, 7
      %v8422 = vrot.slane %v8314, 7
      %v8423 = vsel %vm5439, %v8421, %v8422
      %v8424 = vrot.slane %v8315, 7
      %v8425 = vsel %vm5439, %v8422, %v8424
      %v8426 = vrot.slane %v8316, 7
      %v8427 = vrot.slane %v8317, 7
      %v8428 = vsel %vm5439, %v8426, %v8427
      %v8429 = vrot.slane %v8318, 7
      %v8430 = vsel %vm5439, %v8427, %v8429
      %v8431 = vrot.slane %v8319, 7
      %v8432 = vrot.slane %v8320, 7
      %v8433 = vsel %vm5439, %v8431, %v8432
      %v8434 = vrot.slane %v8321, 7
      %v8435 = vsel %vm5439, %v8432, %v8434
      %v8436 = vrot.slane %v8322, 7
      %v8437 = vrot.slane %v8323, 7
      %v8438 = vsel %vm5439, %v8436, %v8437
      %v8439 = vrot.slane %v8324, 7
      %v8440 = vsel %vm5439, %v8437, %v8439
      %v8441 = vrot.slane %v8325, 7
      %v8442 = vrot.slane %v8326, 7
      %v8443 = vsel %vm5439, %v8441, %v8442
      %v8444 = vrot.slane %v8327, 7
      %v8445 = vsel %vm5439, %v8442, %v8444
      %v8446 = vrot.slane %v8328, 7
      %v8447 = vrot.slane %v8329, 7
      %v8448 = vsel %vm5439, %v8446, %v8447
      %v8449 = vrot.slane %v8330, 7
      %v8450 = vsel %vm5439, %v8447, %v8449
      %v8451 = vrot.slane %v8331, 7
      %v8452 = vrot.slane %v8332, 7
      %v8453 = vsel %vm5439, %v8451, %v8452
      %v8454 = vrot.slane %v8333, 7
      %v8455 = vsel %vm5439, %v8452, %v8454
      %v8456 = vrot.slane %v8334, 7
      %v8457 = vrot.slane %v8335, 7
      %v8458 = vsel %vm5439, %v8456, %v8457
      %v8459 = vrot.slane %v8336, 7
      %v8460 = vsel %vm5439, %v8457, %v8459
      %v8461 = vrot.slane %v8337, 7
      %v8462 = vrot.slane %v8338, 7
      %v8463 = vsel %vm5439, %v8461, %v8462
      %v8464 = vrot.slane %v8339, 7
      %v8465 = vsel %vm5439, %v8462, %v8464
      %v8466 = vrot.slane %v8340, 7
      %v8467 = vrot.slane %v8341, 7
      %v8468 = vsel %vm5439, %v8466, %v8467
      %v8469 = vrot.slane %v8342, 7
      %v8470 = vsel %vm5439, %v8467, %v8469
      %v8471 = vrot.slane %v8343, 7
      %v8472 = vrot.slane %v8344, 7
      %v8473 = vsel %vm5439, %v8471, %v8472
      %v8474 = vrot.slane %v8345, 7
      %v8475 = vsel %vm5439, %v8472, %v8474
      %v8476 = vrot.slane %v8346, 7
      %v8477 = vrot.slane %v8347, 7
      %v8478 = vsel %vm5439, %v8476, %v8477
      %v8479 = vrot.slane %v8348, 7
      %v8480 = vsel %vm5439, %v8477, %v8479
      %v8481 = vrot.slane %v8349, 7
      %v8482 = vrot.slane %v8350, 7
      %v8483 = vsel %vm5439, %v8481, %v8482
      %v8484 = vrot.slane %v8351, 7
      %v8485 = vsel %vm5439, %v8482, %v8484
      %v8486 = vrot.slane %v8352, 7
      %v8487 = vrot.slane %v8353, 7
      %v8488 = vsel %vm5439, %v8486, %v8487
      %v8489 = vrot.slane %v8354, 7
      %v8490 = vsel %vm5439, %v8487, %v8489
      %v8559 = vadd.f32 %v8236, %v8406
      %v8560 = vadd.f32 %v8237, %v8408
      %v8561 = vadd.f32 %v8238, %v8410
      %v8562 = vadd.f32 %v8239, %v8409
      %v8563 = vadd.f32 %v8240, %v8411
      %v8564 = vadd.f32 %v8241, %v8413
      %v8565 = vadd.f32 %v8242, %v8415
      %v8566 = vadd.f32 %v8243, %v8414
      %v8567 = vadd.f32 %v8244, %v8416
      %v8568 = vadd.f32 %v8245, %v8418
      %v8569 = vadd.f32 %v8246, %v8420
      %v8570 = vadd.f32 %v8247, %v8419
      %v8571 = vadd.f32 %v8248, %v8421
      %v8572 = vadd.f32 %v8249, %v8423
      %v8573 = vadd.f32 %v8250, %v8425
      %v8574 = vadd.f32 %v8251, %v8424
      %v8575 = vadd.f32 %v8252, %v8426
      %v8576 = vadd.f32 %v8253, %v8428
      %v8577 = vadd.f32 %v8254, %v8430
      %v8578 = vadd.f32 %v8255, %v8429
      %v8579 = vadd.f32 %v8256, %v8431
      %v8580 = vadd.f32 %v8257, %v8433
      %v8581 = vadd.f32 %v8258, %v8435
      %v8582 = vadd.f32 %v8259, %v8434
      %v8583 = vadd.f32 %v8260, %v8436
      %v8584 = vadd.f32 %v8261, %v8438
      %v8585 = vadd.f32 %v8262, %v8440
      %v8586 = vadd.f32 %v8263, %v8439
      %v8587 = vadd.f32 %v8264, %v8441
      %v8588 = vadd.f32 %v8265, %v8443
      %v8589 = vadd.f32 %v8266, %v8445
      %v8590 = vadd.f32 %v8267, %v8444
      %v8591 = vadd.f32 %v8268, %v8446
      %v8592 = vadd.f32 %v8269, %v8448
      %v8593 = vadd.f32 %v8270, %v8450
      %v8594 = vadd.f32 %v8271, %v8449
      %v8595 = vadd.f32 %v8272, %v8451
      %v8596 = vadd.f32 %v8273, %v8453
      %v8597 = vadd.f32 %v8274, %v8455
      %v8598 = vadd.f32 %v8275, %v8454
      %v8599 = vadd.f32 %v8276, %v8456
      %v8600 = vadd.f32 %v8277, %v8458
      %v8601 = vadd.f32 %v8278, %v8460
      %v8602 = vadd.f32 %v8279, %v8459
      %v8603 = vadd.f32 %v8280, %v8461
      %v8604 = vadd.f32 %v8281, %v8463
      %v8605 = vadd.f32 %v8282, %v8465
      %v8606 = vadd.f32 %v8283, %v8464
      %v8607 = vadd.f32 %v8284, %v8466
      %v8608 = vadd.f32 %v8285, %v8468
      %v8609 = vadd.f32 %v8286, %v8470
      %v8610 = vadd.f32 %v8287, %v8469
      %v8611 = vadd.f32 %v8288, %v8471
      %v8612 = vadd.f32 %v8289, %v8473
      %v8613 = vadd.f32 %v8290, %v8475
      %v8614 = vadd.f32 %v8291, %v8474
      %v8615 = vadd.f32 %v8292, %v8476
      %v8616 = vadd.f32 %v8293, %v8478
      %v8617 = vadd.f32 %v8294, %v8480
      %v8618 = vadd.f32 %v8295, %v8479
      %v8619 = vadd.f32 %v8296, %v8481
      %v8620 = vadd.f32 %v8297, %v8483
      %v8621 = vadd.f32 %v8298, %v8485
      %v8622 = vadd.f32 %v8299, %v8484
      %v8623 = vadd.f32 %v8300, %v8486
      %v8624 = vadd.f32 %v8301, %v8488
      %v8625 = vadd.f32 %v8302, %v8490
      %v8626 = vadd.f32 %v8303, %v8489
      %v8627 = vld [vmem:[#allocation2 + $0x68] sm:$0xfe]
      %v8628 = vld [vmem:[#allocation2 + $0xe8] sm:$0xff]
      %v8629 = vld [vmem:[#allocation2 + $0x168] sm:$0xff]
      %v8630 = vld [vmem:[#allocation2 + $0x1e8] sm:$0x1]
      %v8631 = vld [vmem:[#allocation2 + $0x268] sm:$0xfe]
      %v8632 = vld [vmem:[#allocation2 + $0x2e8] sm:$0xff]
      %v8633 = vld [vmem:[#allocation2 + $0x368] sm:$0xff]
      %v8634 = vld [vmem:[#allocation2 + $0x3e8] sm:$0x1]
      %v8635 = vld [vmem:[#allocation2 + $0x468] sm:$0xfe]
      %v8636 = vld [vmem:[#allocation2 + $0x4e8] sm:$0xff]
      %v8637 = vld [vmem:[#allocation2 + $0x568] sm:$0xff]
      %v8638 = vld [vmem:[#allocation2 + $0x5e8] sm:$0x1]
      %v8639 = vld [vmem:[#allocation2 + $0x668] sm:$0xfe]
      %v8640 = vld [vmem:[#allocation2 + $0x6e8] sm:$0xff]
      %v8641 = vld [vmem:[#allocation2 + $0x768] sm:$0xff]
      %v8642 = vld [vmem:[#allocation2 + $0x7e8] sm:$0x1]
      %v8643 = vld [vmem:[#allocation2 + $0x868] sm:$0xfe]
      %v8644 = vld [vmem:[#allocation2 + $0x8e8] sm:$0xff]
      %v8645 = vld [vmem:[#allocation2 + $0x968] sm:$0xff]
      %v8646 = vld [vmem:[#allocation2 + $0x9e8] sm:$0x1]
      %v8647 = vld [vmem:[#allocation2 + $0xa68] sm:$0xfe]
      %v8648 = vld [vmem:[#allocation2 + $0xae8] sm:$0xff]
      %v8649 = vld [vmem:[#allocation2 + $0xb68] sm:$0xff]
      %v8650 = vld [vmem:[#allocation2 + $0xbe8] sm:$0x1]
      %v8651 = vld [vmem:[#allocation2 + $0xc68] sm:$0xfe]
      %v8652 = vld [vmem:[#allocation2 + $0xce8] sm:$0xff]
      %v8653 = vld [vmem:[#allocation2 + $0xd68] sm:$0xff]
      %v8654 = vld [vmem:[#allocation2 + $0xde8] sm:$0x1]
      %v8655 = vld [vmem:[#allocation2 + $0xe68] sm:$0xfe]
      %v8656 = vld [vmem:[#allocation2 + $0xee8] sm:$0xff]
      %v8657 = vld [vmem:[#allocation2 + $0xf68] sm:$0xff]
      %v8658 = vld [vmem:[#allocation2 + $0xfe8] sm:$0x1]
      %v8659 = vld [vmem:[#allocation2 + $0x1068] sm:$0xfe]
      %v8660 = vld [vmem:[#allocation2 + $0x10e8] sm:$0xff]
      %v8661 = vld [vmem:[#allocation2 + $0x1168] sm:$0xff]
      %v8662 = vld [vmem:[#allocation2 + $0x11e8] sm:$0x1]
      %v8663 = vld [vmem:[#allocation2 + $0x1268] sm:$0xfe]
      %v8664 = vld [vmem:[#allocation2 + $0x12e8] sm:$0xff]
      %v8665 = vld [vmem:[#allocation2 + $0x1368] sm:$0xff]
      %v8666 = vld [vmem:[#allocation2 + $0x13e8] sm:$0x1]
      %v8667 = vld [vmem:[#allocation2 + $0x1468] sm:$0xfe]
      %v8668 = vld [vmem:[#allocation2 + $0x14e8] sm:$0xff]
      %v8669 = vld [vmem:[#allocation2 + $0x1568] sm:$0xff]
      %v8670 = vld [vmem:[#allocation2 + $0x15e8] sm:$0x1]
      %v8671 = vld [vmem:[#allocation2 + $0x1668] sm:$0xfe]
      %v8672 = vld [vmem:[#allocation2 + $0x16e8] sm:$0xff]
      %v8673 = vld [vmem:[#allocation2 + $0x1768] sm:$0xff]
      %v8674 = vld [vmem:[#allocation2 + $0x17e8] sm:$0x1]
      %v8675 = vld [vmem:[#allocation2 + $0x1868] sm:$0xfe]
      %v8676 = vld [vmem:[#allocation2 + $0x18e8] sm:$0xff]
      %v8677 = vld [vmem:[#allocation2 + $0x1968] sm:$0xff]
      %v8678 = vld [vmem:[#allocation2 + $0x19e8] sm:$0x1]
      %v8679 = vld [vmem:[#allocation2 + $0x1a68] sm:$0xfe]
      %v8680 = vld [vmem:[#allocation2 + $0x1ae8] sm:$0xff]
      %v8681 = vld [vmem:[#allocation2 + $0x1b68] sm:$0xff]
      %v8682 = vld [vmem:[#allocation2 + $0x1be8] sm:$0x1]
      %v8683 = vld [vmem:[#allocation2 + $0x1c68] sm:$0xfe]
      %v8684 = vld [vmem:[#allocation2 + $0x1ce8] sm:$0xff]
      %v8685 = vld [vmem:[#allocation2 + $0x1d68] sm:$0xff]
      %v8686 = vld [vmem:[#allocation2 + $0x1de8] sm:$0x1]
      %v8687 = vld [vmem:[#allocation2 + $0x1e68] sm:$0xfe]
      %v8688 = vld [vmem:[#allocation2 + $0x1ee8] sm:$0xff]
      %v8689 = vld [vmem:[#allocation2 + $0x1f68] sm:$0xff]
      %v8690 = vld [vmem:[#allocation2 + $0x1fe8] sm:$0x1]
      %v8691 = vld [vmem:[#allocation2 + $0x2068] sm:$0xfe]
      %v8692 = vld [vmem:[#allocation2 + $0x20e8] sm:$0xff]
      %v8693 = vld [vmem:[#allocation2 + $0x2168] sm:$0xff]
      %v8694 = vld [vmem:[#allocation2 + $0x21e8] sm:$0x1]
      %v8695 = vadd.f32 %v8559, %v8627
      %v8696 = vadd.f32 %v8560, %v8628
      %v8697 = vadd.f32 %v8561, %v8629
      %v8698 = vadd.f32 %v8562, %v8630
      %v8699 = vadd.f32 %v8563, %v8631
      %v8700 = vadd.f32 %v8564, %v8632
      %v8701 = vadd.f32 %v8565, %v8633
      %v8702 = vadd.f32 %v8566, %v8634
      %v8703 = vadd.f32 %v8567, %v8635
      %v8704 = vadd.f32 %v8568, %v8636
      %v8705 = vadd.f32 %v8569, %v8637
      %v8706 = vadd.f32 %v8570, %v8638
      %v8707 = vadd.f32 %v8571, %v8639
      %v8708 = vadd.f32 %v8572, %v8640
      %v8709 = vadd.f32 %v8573, %v8641
      %v8710 = vadd.f32 %v8574, %v8642
      %v8711 = vadd.f32 %v8575, %v8643
      %v8712 = vadd.f32 %v8576, %v8644
      %v8713 = vadd.f32 %v8577, %v8645
      %v8714 = vadd.f32 %v8578, %v8646
      %v8715 = vadd.f32 %v8579, %v8647
      %v8716 = vadd.f32 %v8580, %v8648
      %v8717 = vadd.f32 %v8581, %v8649
      %v8718 = vadd.f32 %v8582, %v8650
      %v8719 = vadd.f32 %v8583, %v8651
      %v8720 = vadd.f32 %v8584, %v8652
      %v8721 = vadd.f32 %v8585, %v8653
      %v8722 = vadd.f32 %v8586, %v8654
      %v8723 = vadd.f32 %v8587, %v8655
      %v8724 = vadd.f32 %v8588, %v8656
      %v8725 = vadd.f32 %v8589, %v8657
      %v8726 = vadd.f32 %v8590, %v8658
      %v8727 = vadd.f32 %v8591, %v8659
      %v8728 = vadd.f32 %v8592, %v8660
      %v8729 = vadd.f32 %v8593, %v8661
      %v8730 = vadd.f32 %v8594, %v8662
      %v8731 = vadd.f32 %v8595, %v8663
      %v8732 = vadd.f32 %v8596, %v8664
      %v8733 = vadd.f32 %v8597, %v8665
      %v8734 = vadd.f32 %v8598, %v8666
      %v8735 = vadd.f32 %v8599, %v8667
      %v8736 = vadd.f32 %v8600, %v8668
      %v8737 = vadd.f32 %v8601, %v8669
      %v8738 = vadd.f32 %v8602, %v8670
      %v8739 = vadd.f32 %v8603, %v8671
      %v8740 = vadd.f32 %v8604, %v8672
      %v8741 = vadd.f32 %v8605, %v8673
      %v8742 = vadd.f32 %v8606, %v8674
      %v8743 = vadd.f32 %v8607, %v8675
      %v8744 = vadd.f32 %v8608, %v8676
      %v8745 = vadd.f32 %v8609, %v8677
      %v8746 = vadd.f32 %v8610, %v8678
      %v8747 = vadd.f32 %v8611, %v8679
      %v8748 = vadd.f32 %v8612, %v8680
      %v8749 = vadd.f32 %v8613, %v8681
      %v8750 = vadd.f32 %v8614, %v8682
      %v8751 = vadd.f32 %v8615, %v8683
      %v8752 = vadd.f32 %v8616, %v8684
      %v8753 = vadd.f32 %v8617, %v8685
      %v8754 = vadd.f32 %v8618, %v8686
      %v8755 = vadd.f32 %v8619, %v8687
      %v8756 = vadd.f32 %v8620, %v8688
      %v8757 = vadd.f32 %v8621, %v8689
      %v8758 = vadd.f32 %v8622, %v8690
      %v8759 = vadd.f32 %v8623, %v8691
      %v8760 = vadd.f32 %v8624, %v8692
      %v8761 = vadd.f32 %v8625, %v8693
      %v8762 = vadd.f32 %v8626, %v8694
      %v8763 = vld [vmem:[#allocation2 + $0x78] sm:$0xff]
      %v8764 = vld [vmem:[#allocation2 + $0xf8] sm:$0xff]
      %v8765 = vld [vmem:[#allocation2 + $0x178] sm:$0xff]
      %v8766 = vld [vmem:[#allocation2 + $0x278] sm:$0xff]
      %v8767 = vld [vmem:[#allocation2 + $0x2f8] sm:$0xff]
      %v8768 = vld [vmem:[#allocation2 + $0x378] sm:$0xff]
      %v8769 = vld [vmem:[#allocation2 + $0x478] sm:$0xff]
      %v8770 = vld [vmem:[#allocation2 + $0x4f8] sm:$0xff]
      %v8771 = vld [vmem:[#allocation2 + $0x578] sm:$0xff]
      %v8772 = vld [vmem:[#allocation2 + $0x678] sm:$0xff]
      %v8773 = vld [vmem:[#allocation2 + $0x6f8] sm:$0xff]
      %v8774 = vld [vmem:[#allocation2 + $0x778] sm:$0xff]
      %v8775 = vld [vmem:[#allocation2 + $0x878] sm:$0xff]
      %v8776 = vld [vmem:[#allocation2 + $0x8f8] sm:$0xff]
      %v8777 = vld [vmem:[#allocation2 + $0x978] sm:$0xff]
      %v8778 = vld [vmem:[#allocation2 + $0xa78] sm:$0xff]
      %v8779 = vld [vmem:[#allocation2 + $0xaf8] sm:$0xff]
      %v8780 = vld [vmem:[#allocation2 + $0xb78] sm:$0xff]
      %v8781 = vld [vmem:[#allocation2 + $0xc78] sm:$0xff]
      %v8782 = vld [vmem:[#allocation2 + $0xcf8] sm:$0xff]
      %v8783 = vld [vmem:[#allocation2 + $0xd78] sm:$0xff]
      %v8784 = vld [vmem:[#allocation2 + $0xe78] sm:$0xff]
      %v8785 = vld [vmem:[#allocation2 + $0xef8] sm:$0xff]
      %v8786 = vld [vmem:[#allocation2 + $0xf78] sm:$0xff]
      %v8787 = vld [vmem:[#allocation2 + $0x1078] sm:$0xff]
      %v8788 = vld [vmem:[#allocation2 + $0x10f8] sm:$0xff]
      %v8789 = vld [vmem:[#allocation2 + $0x1178] sm:$0xff]
      %v8790 = vld [vmem:[#allocation2 + $0x1278] sm:$0xff]
      %v8791 = vld [vmem:[#allocation2 + $0x12f8] sm:$0xff]
      %v8792 = vld [vmem:[#allocation2 + $0x1378] sm:$0xff]
      %v8793 = vld [vmem:[#allocation2 + $0x1478] sm:$0xff]
      %v8794 = vld [vmem:[#allocation2 + $0x14f8] sm:$0xff]
      %v8795 = vld [vmem:[#allocation2 + $0x1578] sm:$0xff]
      %v8796 = vld [vmem:[#allocation2 + $0x1678] sm:$0xff]
      %v8797 = vld [vmem:[#allocation2 + $0x16f8] sm:$0xff]
      %v8798 = vld [vmem:[#allocation2 + $0x1778] sm:$0xff]
      %v8799 = vld [vmem:[#allocation2 + $0x1878] sm:$0xff]
      %v8800 = vld [vmem:[#allocation2 + $0x18f8] sm:$0xff]
      %v8801 = vld [vmem:[#allocation2 + $0x1978] sm:$0xff]
      %v8802 = vld [vmem:[#allocation2 + $0x1a78] sm:$0xff]
      %v8803 = vld [vmem:[#allocation2 + $0x1af8] sm:$0xff]
      %v8804 = vld [vmem:[#allocation2 + $0x1b78] sm:$0xff]
      %v8805 = vld [vmem:[#allocation2 + $0x1c78] sm:$0xff]
      %v8806 = vld [vmem:[#allocation2 + $0x1cf8] sm:$0xff]
      %v8807 = vld [vmem:[#allocation2 + $0x1d78] sm:$0xff]
      %v8808 = vld [vmem:[#allocation2 + $0x1e78] sm:$0xff]
      %v8809 = vld [vmem:[#allocation2 + $0x1ef8] sm:$0xff]
      %v8810 = vld [vmem:[#allocation2 + $0x1f78] sm:$0xff]
      %v8811 = vld [vmem:[#allocation2 + $0x2078] sm:$0xff]
      %v8812 = vld [vmem:[#allocation2 + $0x20f8] sm:$0xff]
      %v8813 = vld [vmem:[#allocation2 + $0x2178] sm:$0xff]
      %v8865 = vrot.slane %v8763, 7
      %v8866 = vrot.slane %v8764, 7
      %v8867 = vsel %vm5439, %v8865, %v8866
      %v8868 = vrot.slane %v8765, 7
      %v8869 = vsel %vm5439, %v8866, %v8868
      %v8870 = vrot.slane %v8766, 7
      %v8871 = vrot.slane %v8767, 7
      %v8872 = vsel %vm5439, %v8870, %v8871
      %v8873 = vrot.slane %v8768, 7
      %v8874 = vsel %vm5439, %v8871, %v8873
      %v8875 = vrot.slane %v8769, 7
      %v8876 = vrot.slane %v8770, 7
      %v8877 = vsel %vm5439, %v8875, %v8876
      %v8878 = vrot.slane %v8771, 7
      %v8879 = vsel %vm5439, %v8876, %v8878
      %v8880 = vrot.slane %v8772, 7
      %v8881 = vrot.slane %v8773, 7
      %v8882 = vsel %vm5439, %v8880, %v8881
      %v8883 = vrot.slane %v8774, 7
      %v8884 = vsel %vm5439, %v8881, %v8883
      %v8885 = vrot.slane %v8775, 7
      %v8886 = vrot.slane %v8776, 7
      %v8887 = vsel %vm5439, %v8885, %v8886
      %v8888 = vrot.slane %v8777, 7
      %v8889 = vsel %vm5439, %v8886, %v8888
      %v8890 = vrot.slane %v8778, 7
      %v8891 = vrot.slane %v8779, 7
      %v8892 = vsel %vm5439, %v8890, %v8891
      %v8893 = vrot.slane %v8780, 7
      %v8894 = vsel %vm5439, %v8891, %v8893
      %v8895 = vrot.slane %v8781, 7
      %v8896 = vrot.slane %v8782, 7
      %v8897 = vsel %vm5439, %v8895, %v8896
      %v8898 = vrot.slane %v8783, 7
      %v8899 = vsel %vm5439, %v8896, %v8898
      %v8900 = vrot.slane %v8784, 7
      %v8901 = vrot.slane %v8785, 7
      %v8902 = vsel %vm5439, %v8900, %v8901
      %v8903 = vrot.slane %v8786, 7
      %v8904 = vsel %vm5439, %v8901, %v8903
      %v8905 = vrot.slane %v8787, 7
      %v8906 = vrot.slane %v8788, 7
      %v8907 = vsel %vm5439, %v8905, %v8906
      %v8908 = vrot.slane %v8789, 7
      %v8909 = vsel %vm5439, %v8906, %v8908
      %v8910 = vrot.slane %v8790, 7
      %v8911 = vrot.slane %v8791, 7
      %v8912 = vsel %vm5439, %v8910, %v8911
      %v8913 = vrot.slane %v8792, 7
      %v8914 = vsel %vm5439, %v8911, %v8913
      %v8915 = vrot.slane %v8793, 7
      %v8916 = vrot.slane %v8794, 7
      %v8917 = vsel %vm5439, %v8915, %v8916
      %v8918 = vrot.slane %v8795, 7
      %v8919 = vsel %vm5439, %v8916, %v8918
      %v8920 = vrot.slane %v8796, 7
      %v8921 = vrot.slane %v8797, 7
      %v8922 = vsel %vm5439, %v8920, %v8921
      %v8923 = vrot.slane %v8798, 7
      %v8924 = vsel %vm5439, %v8921, %v8923
      %v8925 = vrot.slane %v8799, 7
      %v8926 = vrot.slane %v8800, 7
      %v8927 = vsel %vm5439, %v8925, %v8926
      %v8928 = vrot.slane %v8801, 7
      %v8929 = vsel %vm5439, %v8926, %v8928
      %v8930 = vrot.slane %v8802, 7
      %v8931 = vrot.slane %v8803, 7
      %v8932 = vsel %vm5439, %v8930, %v8931
      %v8933 = vrot.slane %v8804, 7
      %v8934 = vsel %vm5439, %v8931, %v8933
      %v8935 = vrot.slane %v8805, 7
      %v8936 = vrot.slane %v8806, 7
      %v8937 = vsel %vm5439, %v8935, %v8936
      %v8938 = vrot.slane %v8807, 7
      %v8939 = vsel %vm5439, %v8936, %v8938
      %v8940 = vrot.slane %v8808, 7
      %v8941 = vrot.slane %v8809, 7
      %v8942 = vsel %vm5439, %v8940, %v8941
      %v8943 = vrot.slane %v8810, 7
      %v8944 = vsel %vm5439, %v8941, %v8943
      %v8945 = vrot.slane %v8811, 7
      %v8946 = vrot.slane %v8812, 7
      %v8947 = vsel %vm5439, %v8945, %v8946
      %v8948 = vrot.slane %v8813, 7
      %v8949 = vsel %vm5439, %v8946, %v8948
      %v9018 = vadd.f32 %v8695, %v8865
      %v9019 = vadd.f32 %v8696, %v8867
      %v9020 = vadd.f32 %v8697, %v8869
      %v9021 = vadd.f32 %v8698, %v8868
      %v9022 = vadd.f32 %v8699, %v8870
      %v9023 = vadd.f32 %v8700, %v8872
      %v9024 = vadd.f32 %v8701, %v8874
      %v9025 = vadd.f32 %v8702, %v8873
      %v9026 = vadd.f32 %v8703, %v8875
      %v9027 = vadd.f32 %v8704, %v8877
      %v9028 = vadd.f32 %v8705, %v8879
      %v9029 = vadd.f32 %v8706, %v8878
      %v9030 = vadd.f32 %v8707, %v8880
      %v9031 = vadd.f32 %v8708, %v8882
      %v9032 = vadd.f32 %v8709, %v8884
      %v9033 = vadd.f32 %v8710, %v8883
      %v9034 = vadd.f32 %v8711, %v8885
      %v9035 = vadd.f32 %v8712, %v8887
      %v9036 = vadd.f32 %v8713, %v8889
      %v9037 = vadd.f32 %v8714, %v8888
      %v9038 = vadd.f32 %v8715, %v8890
      %v9039 = vadd.f32 %v8716, %v8892
      %v9040 = vadd.f32 %v8717, %v8894
      %v9041 = vadd.f32 %v8718, %v8893
      %v9042 = vadd.f32 %v8719, %v8895
      %v9043 = vadd.f32 %v8720, %v8897
      %v9044 = vadd.f32 %v8721, %v8899
      %v9045 = vadd.f32 %v8722, %v8898
      %v9046 = vadd.f32 %v8723, %v8900
      %v9047 = vadd.f32 %v8724, %v8902
      %v9048 = vadd.f32 %v8725, %v8904
      %v9049 = vadd.f32 %v8726, %v8903
      %v9050 = vadd.f32 %v8727, %v8905
      %v9051 = vadd.f32 %v8728, %v8907
      %v9052 = vadd.f32 %v8729, %v8909
      %v9053 = vadd.f32 %v8730, %v8908
      %v9054 = vadd.f32 %v8731, %v8910
      %v9055 = vadd.f32 %v8732, %v8912
      %v9056 = vadd.f32 %v8733, %v8914
      %v9057 = vadd.f32 %v8734, %v8913
      %v9058 = vadd.f32 %v8735, %v8915
      %v9059 = vadd.f32 %v8736, %v8917
      %v9060 = vadd.f32 %v8737, %v8919
      %v9061 = vadd.f32 %v8738, %v8918
      %v9062 = vadd.f32 %v8739, %v8920
      %v9063 = vadd.f32 %v8740, %v8922
      %v9064 = vadd.f32 %v8741, %v8924
      %v9065 = vadd.f32 %v8742, %v8923
      %v9066 = vadd.f32 %v8743, %v8925
      %v9067 = vadd.f32 %v8744, %v8927
      %v9068 = vadd.f32 %v8745, %v8929
      %v9069 = vadd.f32 %v8746, %v8928
      %v9070 = vadd.f32 %v8747, %v8930
      %v9071 = vadd.f32 %v8748, %v8932
      %v9072 = vadd.f32 %v8749, %v8934
      %v9073 = vadd.f32 %v8750, %v8933
      %v9074 = vadd.f32 %v8751, %v8935
      %v9075 = vadd.f32 %v8752, %v8937
      %v9076 = vadd.f32 %v8753, %v8939
      %v9077 = vadd.f32 %v8754, %v8938
      %v9078 = vadd.f32 %v8755, %v8940
      %v9079 = vadd.f32 %v8756, %v8942
      %v9080 = vadd.f32 %v8757, %v8944
      %v9081 = vadd.f32 %v8758, %v8943
      %v9082 = vadd.f32 %v8759, %v8945
      %v9083 = vadd.f32 %v8760, %v8947
      %v9084 = vadd.f32 %v8761, %v8949
      %v9085 = vadd.f32 %v8762, %v8948
      %v9086 = vadd.f32 %v9018, %v6124
      %v9087 = vadd.f32 %v9019, %v6124
      %v9088 = vadd.f32 %v9020, %v6124
      %v9089 = vadd.f32 %v9021, %v6124
      %v9090 = vadd.f32 %v9022, %v6124
      %v9091 = vadd.f32 %v9023, %v6124
      %v9092 = vadd.f32 %v9024, %v6124
      %v9093 = vadd.f32 %v9025, %v6124
      %v9094 = vadd.f32 %v9026, %v6124
      %v9095 = vadd.f32 %v9027, %v6124
      %v9096 = vadd.f32 %v9028, %v6124
      %v9097 = vadd.f32 %v9029, %v6124
      %v9098 = vadd.f32 %v9030, %v6124
      %v9099 = vadd.f32 %v9031, %v6124
      %v9100 = vadd.f32 %v9032, %v6124
      %v9101 = vadd.f32 %v9033, %v6124
      %v9102 = vadd.f32 %v9034, %v6124
      %v9103 = vadd.f32 %v9035, %v6124
      %v9104 = vadd.f32 %v9036, %v6124
      %v9105 = vadd.f32 %v9037, %v6124
      %v9106 = vadd.f32 %v9038, %v6124
      %v9107 = vadd.f32 %v9039, %v6124
      %v9108 = vadd.f32 %v9040, %v6124
      %v9109 = vadd.f32 %v9041, %v6124
      %v9110 = vadd.f32 %v9042, %v6124
      %v9111 = vadd.f32 %v9043, %v6124
      %v9112 = vadd.f32 %v9044, %v6124
      %v9113 = vadd.f32 %v9045, %v6124
      %v9114 = vadd.f32 %v9046, %v6124
      %v9115 = vadd.f32 %v9047, %v6124
      %v9116 = vadd.f32 %v9048, %v6124
      %v9117 = vadd.f32 %v9049, %v6124
      %v9118 = vadd.f32 %v9050, %v6124
      %v9119 = vadd.f32 %v9051, %v6124
      %v9120 = vadd.f32 %v9052, %v6124
      %v9121 = vadd.f32 %v9053, %v6124
      %v9122 = vadd.f32 %v9054, %v6124
      %v9123 = vadd.f32 %v9055, %v6124
      %v9124 = vadd.f32 %v9056, %v6124
      %v9125 = vadd.f32 %v9057, %v6124
      %v9126 = vadd.f32 %v9058, %v6124
      %v9127 = vadd.f32 %v9059, %v6124
      %v9128 = vadd.f32 %v9060, %v6124
      %v9129 = vadd.f32 %v9061, %v6124
      %v9130 = vadd.f32 %v9062, %v6124
      %v9131 = vadd.f32 %v9063, %v6124
      %v9132 = vadd.f32 %v9064, %v6124
      %v9133 = vadd.f32 %v9065, %v6124
      %v9134 = vadd.f32 %v9066, %v6124
      %v9135 = vadd.f32 %v9067, %v6124
      %v9136 = vadd.f32 %v9068, %v6124
      %v9137 = vadd.f32 %v9069, %v6124
      %v9138 = vadd.f32 %v9070, %v6124
      %v9139 = vadd.f32 %v9071, %v6124
      %v9140 = vadd.f32 %v9072, %v6124
      %v9141 = vadd.f32 %v9073, %v6124
      %v9142 = vadd.f32 %v9074, %v6124
      %v9143 = vadd.f32 %v9075, %v6124
      %v9144 = vadd.f32 %v9076, %v6124
      %v9145 = vadd.f32 %v9077, %v6124
      %v9146 = vadd.f32 %v9078, %v6124
      %v9147 = vadd.f32 %v9079, %v6124
      %v9148 = vadd.f32 %v9080, %v6124
      %v9149 = vadd.f32 %v9081, %v6124
      %v9150 = vadd.f32 %v9082, %v6124
      %v9151 = vadd.f32 %v9083, %v6124
      %v9152 = vadd.f32 %v9084, %v6124
      %v9153 = vadd.f32 %v9085, %v6124
      %s9154 = scalar_lea.vmem %s224, 1224
      %9155 = vst [vmem:[%s9154 - $0x1] sm:$0xfe] %v9086
      %9156 = vst [vmem:[%s9154 + $0x7] sm:$0xff] %v9087
      %9157 = vst [vmem:[%s9154 + $0xf] sm:$0xff] %v9088
      %9158 = vst [vmem:[%s9154 + $0x17] sm:$0x1] %v9089
      %9159 = vst [vmem:[%s9154 + $0x17] sm:$0xfe] %v9090
      %9160 = vst [vmem:[%s9154 + $0x1f] sm:$0xff] %v9091
      %9161 = vst [vmem:[%s9154 + $0x27] sm:$0xff] %v9092
      %9162 = vst [vmem:[%s9154 + $0x2f] sm:$0x1] %v9093
      %9163 = vst [vmem:[%s9154 + $0x2f] sm:$0xfe] %v9094
      %9164 = vst [vmem:[%s9154 + $0x37] sm:$0xff] %v9095
      %9165 = vst [vmem:[%s9154 + $0x3f] sm:$0xff] %v9096
      %9166 = vst [vmem:[%s9154 + $0x47] sm:$0x1] %v9097
      %9167 = vst [vmem:[%s9154 + $0x47] sm:$0xfe] %v9098
      %9168 = vst [vmem:[%s9154 + $0x4f] sm:$0xff] %v9099
      %9169 = vst [vmem:[%s9154 + $0x57] sm:$0xff] %v9100
      %9170 = vst [vmem:[%s9154 + $0x5f] sm:$0x1] %v9101
      %9171 = vst [vmem:[%s9154 + $0x5f] sm:$0xfe] %v9102
      %9172 = vst [vmem:[%s9154 + $0x67] sm:$0xff] %v9103
      %9173 = vst [vmem:[%s9154 + $0x6f] sm:$0xff] %v9104
      %9174 = vst [vmem:[%s9154 + $0x77] sm:$0x1] %v9105
      %9175 = vst [vmem:[%s9154 + $0x77] sm:$0xfe] %v9106
      %9176 = vst [vmem:[%s9154 + $0x7f] sm:$0xff] %v9107
      %9177 = vst [vmem:[%s9154 + $0x87] sm:$0xff] %v9108
      %9178 = vst [vmem:[%s9154 + $0x8f] sm:$0x1] %v9109
      %9179 = vst [vmem:[%s9154 + $0x8f] sm:$0xfe] %v9110
      %9180 = vst [vmem:[%s9154 + $0x97] sm:$0xff] %v9111
      %9181 = vst [vmem:[%s9154 + $0x9f] sm:$0xff] %v9112
      %9182 = vst [vmem:[%s9154 + $0xa7] sm:$0x1] %v9113
      %9183 = vst [vmem:[%s9154 + $0xa7] sm:$0xfe] %v9114
      %9184 = vst [vmem:[%s9154 + $0xaf] sm:$0xff] %v9115
      %9185 = vst [vmem:[%s9154 + $0xb7] sm:$0xff] %v9116
      %9186 = vst [vmem:[%s9154 + $0xbf] sm:$0x1] %v9117
      %9187 = vst [vmem:[%s9154 + $0xbf] sm:$0xfe] %v9118
      %9188 = vst [vmem:[%s9154 + $0xc7] sm:$0xff] %v9119
      %9189 = vst [vmem:[%s9154 + $0xcf] sm:$0xff] %v9120
      %9190 = vst [vmem:[%s9154 + $0xd7] sm:$0x1] %v9121
      %9191 = vst [vmem:[%s9154 + $0xd7] sm:$0xfe] %v9122
      %9192 = vst [vmem:[%s9154 + $0xdf] sm:$0xff] %v9123
      %9193 = vst [vmem:[%s9154 + $0xe7] sm:$0xff] %v9124
      %9194 = vst [vmem:[%s9154 + $0xef] sm:$0x1] %v9125
      %9195 = vst [vmem:[%s9154 + $0xef] sm:$0xfe] %v9126
      %9196 = vst [vmem:[%s9154 + $0xf7] sm:$0xff] %v9127
      %9197 = vst [vmem:[%s9154 + $0xff] sm:$0xff] %v9128
      %9198 = vst [vmem:[%s9154 + $0x107] sm:$0x1] %v9129
      %9199 = vst [vmem:[%s9154 + $0x107] sm:$0xfe] %v9130
      %9200 = vst [vmem:[%s9154 + $0x10f] sm:$0xff] %v9131
      %9201 = vst [vmem:[%s9154 + $0x117] sm:$0xff] %v9132
      %9202 = vst [vmem:[%s9154 + $0x11f] sm:$0x1] %v9133
      %9203 = vst [vmem:[%s9154 + $0x11f] sm:$0xfe] %v9134
      %9204 = vst [vmem:[%s9154 + $0x127] sm:$0xff] %v9135
      %9205 = vst [vmem:[%s9154 + $0x12f] sm:$0xff] %v9136
      %9206 = vst [vmem:[%s9154 + $0x137] sm:$0x1] %v9137
      %9207 = vst [vmem:[%s9154 + $0x137] sm:$0xfe] %v9138
      %9208 = vst [vmem:[%s9154 + $0x13f] sm:$0xff] %v9139
      %9209 = vst [vmem:[%s9154 + $0x147] sm:$0xff] %v9140
      %9210 = vst [vmem:[%s9154 + $0x14f] sm:$0x1] %v9141
      %9211 = vst [vmem:[%s9154 + $0x14f] sm:$0xfe] %v9142
      %9212 = vst [vmem:[%s9154 + $0x157] sm:$0xff] %v9143
      %9213 = vst [vmem:[%s9154 + $0x15f] sm:$0xff] %v9144
      %9214 = vst [vmem:[%s9154 + $0x167] sm:$0x1] %v9145
      %9215 = vst [vmem:[%s9154 + $0x167] sm:$0xfe] %v9146
      %9216 = vst [vmem:[%s9154 + $0x16f] sm:$0xff] %v9147
      %9217 = vst [vmem:[%s9154 + $0x177] sm:$0xff] %v9148
      %9218 = vst [vmem:[%s9154 + $0x17f] sm:$0x1] %v9149
      %9219 = vst [vmem:[%s9154 + $0x17f] sm:$0xfe] %v9150
      %9220 = vst [vmem:[%s9154 + $0x187] sm:$0xff] %v9151
      %9221 = vst [vmem:[%s9154 + $0x18f] sm:$0xff] %v9152
      %9222 = vst [vmem:[%s9154 + $0x197] sm:$0x1] %v9153
      %p9223 = scmp.lt.s32.totalorder %s19, 1
      %s9224 = scalar_select %p9223, %s19, 1
      %p9225 = scmp.lt.s32.totalorder %s18, 0
      %s9226 = scalar_select %p9225, %s18, 0
      %s9227 = smul.addr %s9224, 204
      %s9228 = sadd.s32 %s9226, %s9227
      %s9229 = smul.addr %s9228, 8
      %s9230 = scalar_lea.vmem %s3, %s9229
      // Predicated region
      $region33: #{equal_conv_transpose2d.1} parent=31 // pred_check
        %p9231 = pneg %p124
      $region34: #{equal_conv_transpose2d.1} parent=31 // pred_check_branch
        %9233 = sbr.rel (%p9231) target = $region36
      $region35: #{equal_conv_transpose2d.1} parent=31 // pred_region
        _
      $region36: #{equal_conv_transpose2d.1} parent=31 // pred_fallthru
        _
    $region32: #{equal_conv_transpose2d.1} parent=5 // pred_fallthru
      _
    %p9234 = scmp.le.s32.totalorder 2, %s9
    // Predicated region
    $region37: #{equal_conv_transpose2d.1} parent=5 // pred_check
      %p9235 = pneg %p9234
    $region38: #{equal_conv_transpose2d.1} parent=5 // pred_check_branch
      %9237 = sbr.rel (%p9235) target = $region40
    $region39: #{equal_conv_transpose2d.1} parent=5 // pred_region
      %s9238 = ssub.s32 %s9, 2
      // Predicated region
      $region41: #{equal_conv_transpose2d.1} parent=39 // pred_check
        %p9239 = pneg %p130
      $region42: #{equal_conv_transpose2d.1} parent=39 // pred_check_branch
        %9241 = sbr.rel (%p9239) target = $region44
      $region43: #{equal_conv_transpose2d.1} parent=39 // pred_region
        %p9242 = scmp.lt.s32.totalorder %s21, 1
        %s9243 = scalar_select %p9242, %s21, 1
        %p9244 = scmp.lt.s32.totalorder %s20, 0
        %s9245 = scalar_select %p9244, %s20, 0
        %s9246 = smul.addr %s9243, 204
        %s9247 = sadd.s32 %s9245, %s9246
        %s9248 = smul.addr %s9247, 8
        %s9249 = scalar_lea.vmem %s3, %s9248
      $region44: #{equal_conv_transpose2d.1} parent=39 // pred_fallthru
        _
    $region40: #{equal_conv_transpose2d.1} parent=5 // pred_fallthru
      _
  $region6: #{equal_conv_transpose2d.1} parent=0 // loop_footer
    %s13 = sadd.s32 1, %s9
  $region7: #{equal_conv_transpose2d.1} parent=0 // loop_footer_branch
    %8 = sbr.rel target = $region3
  $region8: #{equal_conv_transpose2d.1} parent=0 // loop_exit
    _

</llo_original>
